<compile_context>
chip_gen: v7x
topology: tpu7x:2x2x1
jax: 0.10.0
libtpu: 0.0.40
codegen_flags: <defaults>
</compile_context>

<pallas_src>
import jax
import jax.numpy as jnp
from jax.experimental import pallas as pl
from jax.experimental.pallas import tpu as pltpu


def _round_up(x, m):
    return (x + m - 1) // m * m


_CONV_COMPILER_PARAMS = pltpu.CompilerParams(
    dimension_semantics=("parallel",),
    vmem_limit_bytes=32 * 1024 * 1024)

_FC_COMPILER_PARAMS = pltpu.CompilerParams(
    dimension_semantics=("arbitrary",),   # fc2 accumulator carried across grid
    vmem_limit_bytes=32 * 1024 * 1024)


# ----------------------------- Pallas kernels ------------------------------

def _conv_pool_mm_kernel(p_ref, w_ref, b_ref, o_ref):
    """Fused 3x3 conv (im2col) + bias + ReLU + 2x2 maxpool on the MXU.

    p_ref: (4, K, tm) bf16 patches grouped by pool-window position.
    w_ref: (Cout, K) bf16.  b_ref: (Cout, 1) f32.  o_ref: (Cout, tm) bf16.
    bias/ReLU commute with the 2x2 max, so pooling is an elementwise max of
    the four per-position conv results (no transpose, no separate pool pass).
    """
    w = w_ref[...]
    acc = None
    for q in range(4):
        y = jnp.dot(w, p_ref[q], preferred_element_type=jnp.float32)
        acc = y if acc is None else jnp.maximum(acc, y)
    o_ref[...] = jnp.maximum(acc + b_ref[...], 0.0).astype(o_ref.dtype)


def _fc_fused_kernel(x_ref, w1_ref, b1_ref, w2_ref, b2_ref, o_ref, acc_ref):
    """Fused fc1 + ReLU + fc2, blocked over fc1's output (= fc2's K) dim.

    x_ref: (N, 3136) bf16, w1_ref: (3136, tn) bf16, b1_ref: (1, tn) f32,
    w2_ref: (tn, Npad) bf16, b2_ref: (1, Npad) f32,
    o_ref: (N, Npad) f32, acc_ref: VMEM (N, Npad) f32 accumulator.
    """
    j = pl.program_id(0)

    @pl.when(j == 0)
    def _():
        acc_ref[...] = jnp.zeros_like(acc_ref)

    h = jnp.dot(x_ref[...], w1_ref[...], preferred_element_type=jnp.float32)
    h = jnp.maximum(h + b1_ref[...], 0.0).astype(jnp.bfloat16)
    acc_ref[...] += jnp.dot(h, w2_ref[...], preferred_element_type=jnp.float32)

    @pl.when(j == pl.num_programs(0) - 1)
    def _():
        o_ref[...] = (acc_ref[...] + b2_ref[...]).astype(o_ref.dtype)


# ------------------------------- JAX glue -----------------------------------

def _pooled_patches(x_cnhw, m_pad):
    """x: (C, N, H, W) feature-major, even H/W. Build bf16 im2col patches for
    a fused 3x3/pad=1 conv + 2x2/stride-2 maxpool.

    Returns (4, C*9, m_pad) bf16: axis 0 = pool-window position (dy, dx);
    axis 1 ordered (c, ky, kx) to match torch weight.reshape(Cout, Cin*9);
    columns ordered (n, oh, ow) over the pooled output grid.
    Only cheap strided slices / pads; the HBM write is bf16.
    """
    # TODO(synk): for large batch, form the 9 taps inside the kernel from the
    # raw padded activation (pl.ANY + manual DMA) to avoid the ~9x patch
    # blow-up in HBM; kept as XLA glue here for lowering robustness.
    x_cnhw = x_cnhw.astype(jnp.bfloat16)
    c, n, h, w = x_cnhw.shape
    ho, wo = h // 2, w // 2
    m = n * ho * wo
    xp = jnp.pad(x_cnhw, ((0, 0), (0, 0), (1, 1), (1, 1)))
    qs = []
    for dy in range(2):
        for dx in range(2):
            ks = []
            for ky in range(3):
                for kx in range(3):
                    sl = xp[:, :, dy + ky: dy + ky + h: 2,
                            dx + kx: dx + kx + w: 2]      # (C, N, ho, wo)
                    ks.append(sl)
            k9 = jnp.stack(ks, axis=1)                     # (C, 9, N, ho, wo)
            qs.append(k9.reshape(c * 9, m))
    p = jnp.stack(qs, axis=0)                              # (4, C*9, M) bf16
    if m_pad > m:
        p = jnp.pad(p, ((0, 0), (0, 0), (0, m_pad - m)))
    return p


def conv_relu_pool(x_cnhw, w_mat, b_col, *, tm=512):
    """Fused 3x3 conv + bias + ReLU + 2x2 pool. x feature-major (Cin, N, H, W);
    w_mat (Cout, Cin*9) bf16 (pre-reshaped); b_col (Cout, 1) f32.
    Returns feature-major (Cout, N*ho*wo) bf16."""
    cin, n, h, w = x_cnhw.shape
    cout, k = w_mat.shape
    assert k == cin * 9
    ho, wo = h // 2, w // 2
    m = n * ho * wo
    mp = _round_up(m, 128)
    tm = min(tm, mp)

    p = _pooled_patches(x_cnhw, mp)                        # (4, K, mp) bf16

    out = pl.pallas_call(
        _conv_pool_mm_kernel,
        out_shape=jax.ShapeDtypeStruct((cout, mp), jnp.bfloat16),
        grid_spec=pltpu.PrefetchScalarGridSpec(
            num_scalar_prefetch=0,
            grid=(pl.cdiv(mp, tm),),
            in_specs=[
                pl.BlockSpec((4, k, tm), lambda i: (0, 0, i)),
                pl.BlockSpec((cout, k), lambda i: (0, 0)),
                pl.BlockSpec((cout, 1), lambda i: (0, 0)),
            ],
            out_specs=pl.BlockSpec((cout, tm), lambda i: (0, i)),
        ),
        compiler_params=_CONV_COMPILER_PARAMS,
    )(p, w_mat, b_col)
    return out[:, :m]


def fc_fused(x, w1, b1, w2p, b2p, *, tn=128):
    """y = fc2(relu(fc1(x) + b1)) + b2 as one kernel (K-blocked fc2 accumulation).
    x (N, K) bf16, w1 (K, H) bf16, b1 (1, H) f32, w2p (H, Npad) bf16,
    b2p (1, Npad) f32. Returns (N, Npad) f32."""
    m, kdim = x.shape
    hdim = w1.shape[1]
    npad = w2p.shape[1]
    assert hdim % tn == 0

    return pl.pallas_call(
        _fc_fused_kernel,
        out_shape=jax.ShapeDtypeStruct((m, npad), jnp.float32),
        grid_spec=pltpu.PrefetchScalarGridSpec(
            num_scalar_prefetch=0,
            grid=(hdim // tn,),
            in_specs=[
                pl.BlockSpec((m, kdim), lambda j: (0, 0)),
                pl.BlockSpec((kdim, tn), lambda j: (0, j)),
                pl.BlockSpec((1, tn), lambda j: (0, j)),
                pl.BlockSpec((tn, npad), lambda j: (j, 0)),
                pl.BlockSpec((1, npad), lambda j: (0, 0)),
            ],
            out_specs=pl.BlockSpec((m, npad), lambda j: (0, 0)),
            scratch_shapes=[pltpu.VMEM((m, npad), jnp.float32)],
        ),
        compiler_params=_FC_COMPILER_PARAMS,
    )(x, w1, b1, w2p, b2p)


def prepare_params(params):
    """One-time weight preprocessing (casts / reshapes / pads), hoisted out of
    the per-call forward graph (perf-review item #1)."""
    w1, b1, w2, b2, wf1, bf1, wf2, bf2 = params
    c1, c2 = w1.shape[0], w2.shape[0]
    nclass = wf2.shape[1]
    npad = _round_up(nclass, 128)
    return {
        "w1": w1.reshape(c1, -1).astype(jnp.bfloat16),        # (32, 9)
        "b1": b1.reshape(c1, 1).astype(jnp.float32),
        "w2": w2.reshape(c2, -1).astype(jnp.bfloat16),         # (64, 288)
        "b2": b2.reshape(c2, 1).astype(jnp.float32),
        "wf1": wf1.astype(jnp.bfloat16),                       # (3136, 1024)
        "bf1": bf1.reshape(1, -1).astype(jnp.float32),         # (1, 1024)
        "wf2": jnp.pad(wf2, ((0, 0), (0, npad - nclass))).astype(jnp.bfloat16),
        "bf2": jnp.pad(bf2, (0, npad - nclass)).reshape(1, npad).astype(jnp.float32),
    }


def cnn_forward(x, p, *, num_classes=10):
    """Forward pass matching the PyTorch CNN. x: (N, 1, H, W) f32,
    p: output of prepare_params()."""
    n, cin, h, w = x.shape
    assert cin == 1
    c1 = p["w1"].shape[0]
    c2 = p["w2"].shape[0]

    # Block 1: conv1(1->32, 3x3) + ReLU + 2x2 pool, fused MXU kernel, bf16 out.
    a1 = conv_relu_pool(x.reshape(1, n, h, w), p["w1"], p["b1"], tm=512)
    a1 = a1.reshape(c1, n, h // 2, w // 2)                  # (32, N, 14, 14) bf16
    # Block 2: conv2(32->64, 3x3) + ReLU + 2x2 pool, fused MXU kernel, bf16 out.
    a2 = conv_relu_pool(a1, p["w2"], p["b2"], tm=512)       # (64, N*7*7) bf16
    # Flatten to torch NCHW .view(-1, 64*7*7) order: tiny bf16 transpose.
    hw2 = (h // 4) * (w // 4)
    xf = a2.reshape(c2, n, hw2).transpose(1, 0, 2).reshape(n, c2 * hw2)
    # fc1 + ReLU + fc2 fused into one kernel.
    y = fc_fused(xf, p["wf1"], p["bf1"], p["wf2"], p["bf2"], tn=128)
    return y[:, :num_classes]


# --------------------------- pure-JAX reference ------------------------------

def cnn_reference(x, params):
    w1, b1, w2, b2, wf1, bf1, wf2, bf2 = params

    def conv(x, w, b):
        y = jax.lax.conv_general_dilated(
            x, w, (1, 1), "SAME",
            dimension_numbers=("NCHW", "OIHW", "NCHW"))
        return jax.nn.relu(y + b.reshape(1, -1, 1, 1))

    def pool(x):
        return jax.lax.reduce_window(
            x, -jnp.inf, jax.lax.max, (1, 1, 2, 2), (1, 1, 2, 2), "VALID")

    x = pool(conv(x, w1, b1))
    x = pool(conv(x, w2, b2))
    x = x.reshape(x.shape[0], -1)
    x = jax.nn.relu(x @ wf1 + bf1)
    return x @ wf2 + bf2


# --------------------------------- main --------------------------------------

if __name__ == "__main__":
    key = jax.random.PRNGKey(0)
    ks = jax.random.split(key, 9)
    # Deterministic synthetic parameters (shapes from the PyTorch __init__).
    w1 = jax.random.normal(ks[0], (32, 1, 3, 3), jnp.float32) * 0.10
    b1 = jax.random.normal(ks[1], (32,), jnp.float32) * 0.10
    w2 = jax.random.normal(ks[2], (64, 32, 3, 3), jnp.float32) * 0.05
    b2 = jax.random.normal(ks[3], (64,), jnp.float32) * 0.05
    wf1 = jax.random.normal(ks[4], (64 * 7 * 7, 1024), jnp.float32) * 0.02
    bf1 = jax.random.normal(ks[5], (1024,), jnp.float32) * 0.02
    wf2 = jax.random.normal(ks[6], (1024, 10), jnp.float32) * 0.02
    bf2 = jax.random.normal(ks[7], (10,), jnp.float32) * 0.02
    params = (w1, b1, w2, b2, wf1, bf1, wf2, bf2)

    # One-time weight preprocessing, outside the jitted forward.
    prepped = prepare_params(params)

    # MNIST-like input (the .view(-1, 64*7*7) in forward() implies 28x28).
    x = jax.random.normal(ks[8], (2, 1, 28, 28), jnp.float32)

    fwd = jax.jit(cnn_forward)
    out = jax.block_until_ready(fwd(x, prepped))
    assert out.shape == (2, 10), out.shape

    ref = jax.block_until_ready(cnn_reference(x, params))
    max_err = float(jnp.max(jnp.abs(out - ref)))
    # bf16 activations/operands with f32 accumulation -> small tolerance vs f32 ref.
    assert jnp.allclose(out, ref, atol=3e-2, rtol=3e-2), ("mismatch", max_err)

    print("KERNEL_OK")
</pallas_src>

<mosaic_0001>
module attributes {stable_mosaic.version = 11 : i64} {
  func.func @_conv_pool_mm_kernel(%arg0: i32, %arg1: memref<4x9x512xbf16, #tpu.memory_space<vmem>>, %arg2: memref<32x9xbf16, #tpu.memory_space<vmem>>, %arg3: memref<32x1xf32, #tpu.memory_space<vmem>>, %arg4: memref<32x512xbf16, #tpu.memory_space<vmem>>) attributes {dimension_semantics = [#tpu.dimension_semantics<parallel>], iteration_bounds = array<i64: 1>, scalar_prefetch = 0 : i64, scratch_operands = 0 : i64, tpu.core_type = #tpu.core_type<tc>, window_params = [{transform_indices = @transform_0, window_bounds = array<i64: 4, 9, 512>}, {pipeline_mode = #tpu.pipeline_mode<synchronous>, transform_indices = @transform_1, window_bounds = array<i64: 32, 9>}, {pipeline_mode = #tpu.pipeline_mode<synchronous>, transform_indices = @transform_2, window_bounds = array<i64: 32, 1>}, {transform_indices = @transform_3, window_bounds = array<i64: 32, 512>}]} {
    %c0 = arith.constant 0 : index
    %c0_0 = arith.constant 0 : index
    %0 = vector.load %arg2[%c0, %c0_0] : memref<32x9xbf16, #tpu.memory_space<vmem>>, vector<32x9xbf16>
    %c0_1 = arith.constant 0 : index
    %c0_2 = arith.constant 0 : index
    %c0_3 = arith.constant 0 : index
    %1 = vector.load %arg1[%c0_1, %c0_2, %c0_3] : memref<4x9x512xbf16, #tpu.memory_space<vmem>>, vector<1x9x512xbf16>
    %2 = vector.shape_cast %1 : vector<1x9x512xbf16> to vector<9x512xbf16>
    %cst = arith.constant dense<0.000000e+00> : vector<32x512xf32>
    %3 = tpu.matmul %0, %2, %cst {dimension_numbers = #tpu.dot_dimension_numbers<[1], [0], [0], [1], [0, 0, 1, 1], [], []>} : vector<32x9xbf16>, vector<9x512xbf16>, vector<32x512xf32> -> vector<32x512xf32>
    %c1 = arith.constant 1 : index
    %c0_4 = arith.constant 0 : index
    %c0_5 = arith.constant 0 : index
    %4 = vector.load %arg1[%c1, %c0_4, %c0_5] : memref<4x9x512xbf16, #tpu.memory_space<vmem>>, vector<1x9x512xbf16>
    %5 = vector.shape_cast %4 : vector<1x9x512xbf16> to vector<9x512xbf16>
    %cst_6 = arith.constant dense<0.000000e+00> : vector<32x512xf32>
    %6 = tpu.matmul %0, %5, %cst_6 {dimension_numbers = #tpu.dot_dimension_numbers<[1], [0], [0], [1], [0, 0, 1, 1], [], []>} : vector<32x9xbf16>, vector<9x512xbf16>, vector<32x512xf32> -> vector<32x512xf32>
    %7 = arith.maximumf %3, %6 : vector<32x512xf32>
    %c2 = arith.constant 2 : index
    %c0_7 = arith.constant 0 : index
    %c0_8 = arith.constant 0 : index
    %8 = vector.load %arg1[%c2, %c0_7, %c0_8] : memref<4x9x512xbf16, #tpu.memory_space<vmem>>, vector<1x9x512xbf16>
    %9 = vector.shape_cast %8 : vector<1x9x512xbf16> to vector<9x512xbf16>
    %cst_9 = arith.constant dense<0.000000e+00> : vector<32x512xf32>
    %10 = tpu.matmul %0, %9, %cst_9 {dimension_numbers = #tpu.dot_dimension_numbers<[1], [0], [0], [1], [0, 0, 1, 1], [], []>} : vector<32x9xbf16>, vector<9x512xbf16>, vector<32x512xf32> -> vector<32x512xf32>
    %11 = arith.maximumf %7, %10 : vector<32x512xf32>
    %c3 = arith.constant 3 : index
    %c0_10 = arith.constant 0 : index
    %c0_11 = arith.constant 0 : index
    %12 = vector.load %arg1[%c3, %c0_10, %c0_11] : memref<4x9x512xbf16, #tpu.memory_space<vmem>>, vector<1x9x512xbf16>
    %13 = vector.shape_cast %12 : vector<1x9x512xbf16> to vector<9x512xbf16>
    %cst_12 = arith.constant dense<0.000000e+00> : vector<32x512xf32>
    %14 = tpu.matmul %0, %13, %cst_12 {dimension_numbers = #tpu.dot_dimension_numbers<[1], [0], [0], [1], [0, 0, 1, 1], [], []>} : vector<32x9xbf16>, vector<9x512xbf16>, vector<32x512xf32> -> vector<32x512xf32>
    %15 = arith.maximumf %11, %14 : vector<32x512xf32>
    %c0_13 = arith.constant 0 : index
    %c0_14 = arith.constant 0 : index
    %16 = vector.load %arg3[%c0_13, %c0_14] : memref<32x1xf32, #tpu.memory_space<vmem>>, vector<32x1xf32>
    %17 = vector.broadcast %16 : vector<32x1xf32> to vector<32x512xf32>
    %18 = arith.addf %15, %17 : vector<32x512xf32>
    %cst_15 = arith.constant 0.000000e+00 : f32
    %19 = vector.broadcast %cst_15 : f32 to vector<32x512xf32>
    %20 = arith.maximumf %18, %19 : vector<32x512xf32>
    %21 = arith.truncf %20 : vector<32x512xf32> to vector<32x512xbf16>
    %c0_16 = arith.constant 0 : index
    %c0_17 = arith.constant 0 : index
    %22 = vector.load %arg4[%c0_16, %c0_17] : memref<32x512xbf16, #tpu.memory_space<vmem>>, vector<32x512xbf16>
    tpu.vector_store %arg4[%c0_16, %c0_17], %21 {strides = array<i32>} : memref<32x512xbf16, #tpu.memory_space<vmem>>, vector<32x512xbf16>,
    return
  }
  func.func @transform_0(%arg0: i32) -> (i32, i32, i32) {
    %c0_i32 = arith.constant 0 : i32
    %c0_i32_0 = arith.constant 0 : i32
    %c0_i32_1 = arith.constant 0 : i32
    return %c0_i32, %c0_i32_0, %arg0 : i32, i32, i32
  }
  func.func @transform_1(%arg0: i32) -> (i32, i32) {
    %c0_i32 = arith.constant 0 : i32
    %c0_i32_0 = arith.constant 0 : i32
    %c0_i32_1 = arith.constant 0 : i32
    return %c0_i32, %c0_i32_0 : i32, i32
  }
  func.func @transform_2(%arg0: i32) -> (i32, i32) {
    %c0_i32 = arith.constant 0 : i32
    %c0_i32_0 = arith.constant 0 : i32
    %c0_i32_1 = arith.constant 0 : i32
    return %c0_i32, %c0_i32_0 : i32, i32
  }
  func.func @transform_3(%arg0: i32) -> (i32, i32) {
    %c0_i32 = arith.constant 0 : i32
    %c0_i32_0 = arith.constant 0 : i32
    return %c0_i32, %arg0 : i32, i32
  }
}

module attributes {stable_mosaic.version = 11 : i64} {
  func.func @_conv_pool_mm_kernel(%arg0: i32, %arg1: memref<4x288x128xbf16, #tpu.memory_space<vmem>>, %arg2: memref<64x288xbf16, #tpu.memory_space<vmem>>, %arg3: memref<64x1xf32, #tpu.memory_space<vmem>>, %arg4: memref<64x128xbf16, #tpu.memory_space<vmem>>) attributes {dimension_semantics = [#tpu.dimension_semantics<parallel>], iteration_bounds = array<i64: 1>, scalar_prefetch = 0 : i64, scratch_operands = 0 : i64, tpu.core_type = #tpu.core_type<tc>, window_params = [{transform_indices = @transform_0, window_bounds = array<i64: 4, 288, 128>}, {pipeline_mode = #tpu.pipeline_mode<synchronous>, transform_indices = @transform_1, window_bounds = array<i64: 64, 288>}, {pipeline_mode = #tpu.pipeline_mode<synchronous>, transform_indices = @transform_2, window_bounds = array<i64: 64, 1>}, {transform_indices = @transform_3, window_bounds = array<i64: 64, 128>}]} {
    %c0 = arith.constant 0 : index
    %c0_0 = arith.constant 0 : index
    %0 = vector.load %arg2[%c0, %c0_0] : memref<64x288xbf16, #tpu.memory_space<vmem>>, vector<64x288xbf16>
    %c0_1 = arith.constant 0 : index
    %c0_2 = arith.constant 0 : index
    %c0_3 = arith.constant 0 : index
    %1 = vector.load %arg1[%c0_1, %c0_2, %c0_3] : memref<4x288x128xbf16, #tpu.memory_space<vmem>>, vector<1x288x128xbf16>
    %2 = vector.shape_cast %1 : vector<1x288x128xbf16> to vector<288x128xbf16>
    %cst = arith.constant dense<0.000000e+00> : vector<64x128xf32>
    %3 = tpu.matmul %0, %2, %cst {dimension_numbers = #tpu.dot_dimension_numbers<[1], [0], [0], [1], [0, 0, 1, 1], [], []>} : vector<64x288xbf16>, vector<288x128xbf16>, vector<64x128xf32> -> vector<64x128xf32>
    %c1 = arith.constant 1 : index
    %c0_4 = arith.constant 0 : index
    %c0_5 = arith.constant 0 : index
    %4 = vector.load %arg1[%c1, %c0_4, %c0_5] : memref<4x288x128xbf16, #tpu.memory_space<vmem>>, vector<1x288x128xbf16>
    %5 = vector.shape_cast %4 : vector<1x288x128xbf16> to vector<288x128xbf16>
    %cst_6 = arith.constant dense<0.000000e+00> : vector<64x128xf32>
    %6 = tpu.matmul %0, %5, %cst_6 {dimension_numbers = #tpu.dot_dimension_numbers<[1], [0], [0], [1], [0, 0, 1, 1], [], []>} : vector<64x288xbf16>, vector<288x128xbf16>, vector<64x128xf32> -> vector<64x128xf32>
    %7 = arith.maximumf %3, %6 : vector<64x128xf32>
    %c2 = arith.constant 2 : index
    %c0_7 = arith.constant 0 : index
    %c0_8 = arith.constant 0 : index
    %8 = vector.load %arg1[%c2, %c0_7, %c0_8] : memref<4x288x128xbf16, #tpu.memory_space<vmem>>, vector<1x288x128xbf16>
    %9 = vector.shape_cast %8 : vector<1x288x128xbf16> to vector<288x128xbf16>
    %cst_9 = arith.constant dense<0.000000e+00> : vector<64x128xf32>
    %10 = tpu.matmul %0, %9, %cst_9 {dimension_numbers = #tpu.dot_dimension_numbers<[1], [0], [0], [1], [0, 0, 1, 1], [], []>} : vector<64x288xbf16>, vector<288x128xbf16>, vector<64x128xf32> -> vector<64x128xf32>
    %11 = arith.maximumf %7, %10 : vector<64x128xf32>
    %c3 = arith.constant 3 : index
    %c0_10 = arith.constant 0 : index
    %c0_11 = arith.constant 0 : index
    %12 = vector.load %arg1[%c3, %c0_10, %c0_11] : memref<4x288x128xbf16, #tpu.memory_space<vmem>>, vector<1x288x128xbf16>
    %13 = vector.shape_cast %12 : vector<1x288x128xbf16> to vector<288x128xbf16>
    %cst_12 = arith.constant dense<0.000000e+00> : vector<64x128xf32>
    %14 = tpu.matmul %0, %13, %cst_12 {dimension_numbers = #tpu.dot_dimension_numbers<[1], [0], [0], [1], [0, 0, 1, 1], [], []>} : vector<64x288xbf16>, vector<288x128xbf16>, vector<64x128xf32> -> vector<64x128xf32>
    %15 = arith.maximumf %11, %14 : vector<64x128xf32>
    %c0_13 = arith.constant 0 : index
    %c0_14 = arith.constant 0 : index
    %16 = vector.load %arg3[%c0_13, %c0_14] : memref<64x1xf32, #tpu.memory_space<vmem>>, vector<64x1xf32>
    %17 = vector.broadcast %16 : vector<64x1xf32> to vector<64x128xf32>
    %18 = arith.addf %15, %17 : vector<64x128xf32>
    %cst_15 = arith.constant 0.000000e+00 : f32
    %19 = vector.broadcast %cst_15 : f32 to vector<64x128xf32>
    %20 = arith.maximumf %18, %19 : vector<64x128xf32>
    %21 = arith.truncf %20 : vector<64x128xf32> to vector<64x128xbf16>
    %c0_16 = arith.constant 0 : index
    %c0_17 = arith.constant 0 : index
    %22 = vector.load %arg4[%c0_16, %c0_17] : memref<64x128xbf16, #tpu.memory_space<vmem>>, vector<64x128xbf16>
    tpu.vector_store %arg4[%c0_16, %c0_17], %21 {strides = array<i32>} : memref<64x128xbf16, #tpu.memory_space<vmem>>, vector<64x128xbf16>,
    return
  }
  func.func @transform_0(%arg0: i32) -> (i32, i32, i32) {
    %c0_i32 = arith.constant 0 : i32
    %c0_i32_0 = arith.constant 0 : i32
    %c0_i32_1 = arith.constant 0 : i32
    return %c0_i32, %c0_i32_0, %arg0 : i32, i32, i32
  }
  func.func @transform_1(%arg0: i32) -> (i32, i32) {
    %c0_i32 = arith.constant 0 : i32
    %c0_i32_0 = arith.constant 0 : i32
    %c0_i32_1 = arith.constant 0 : i32
    return %c0_i32, %c0_i32_0 : i32, i32
  }
  func.func @transform_2(%arg0: i32) -> (i32, i32) {
    %c0_i32 = arith.constant 0 : i32
    %c0_i32_0 = arith.constant 0 : i32
    %c0_i32_1 = arith.constant 0 : i32
    return %c0_i32, %c0_i32_0 : i32, i32
  }
  func.func @transform_3(%arg0: i32) -> (i32, i32) {
    %c0_i32 = arith.constant 0 : i32
    %c0_i32_0 = arith.constant 0 : i32
    return %c0_i32, %arg0 : i32, i32
  }
}

module attributes {stable_mosaic.version = 11 : i64} {
  func.func @_fc_fused_kernel(%arg0: i32, %arg1: memref<2x3136xbf16, #tpu.memory_space<vmem>>, %arg2: memref<3136x128xbf16, #tpu.memory_space<vmem>>, %arg3: memref<1x128xf32, #tpu.memory_space<vmem>>, %arg4: memref<128x128xbf16, #tpu.memory_space<vmem>>, %arg5: memref<1x128xf32, #tpu.memory_space<vmem>>, %arg6: memref<2x128xf32, #tpu.memory_space<vmem>>, %arg7: memref<2x128xf32, #tpu.memory_space<vmem>>) attributes {dimension_semantics = [#tpu.dimension_semantics<arbitrary>], iteration_bounds = array<i64: 8>, scalar_prefetch = 0 : i64, scratch_operands = 1 : i64, tpu.core_type = #tpu.core_type<tc>, window_params = [{pipeline_mode = #tpu.pipeline_mode<synchronous>, transform_indices = @transform_0, window_bounds = array<i64: 2, 3136>}, {transform_indices = @transform_1, window_bounds = array<i64: 3136, 128>}, {transform_indices = @transform_2, window_bounds = array<i64: 1, 128>}, {transform_indices = @transform_3, window_bounds = array<i64: 128, 128>}, {pipeline_mode = #tpu.pipeline_mode<synchronous>, transform_indices = @transform_4, window_bounds = array<i64: 1, 128>}, {pipeline_mode = #tpu.pipeline_mode<synchronous>, transform_indices = @transform_5, window_bounds = array<i64: 2, 128>}]} {
    %c0_i32 = arith.constant 0 : i32
    %0 = arith.cmpi eq, %arg0, %c0_i32 : i32
    %1 = arith.extui %0 : i1 to i32
    %c0_i32_0 = arith.constant 0 : i32
    %2 = arith.cmpi ne, %1, %c0_i32_0 : i32
    scf.if %2 {
      %cst_15 = arith.constant 0.000000e+00 : f32
      %20 = vector.broadcast %cst_15 : f32 to vector<2x128xf32>
      %c0_16 = arith.constant 0 : index
      %c0_17 = arith.constant 0 : index
      %21 = vector.load %arg7[%c0_16, %c0_17] : memref<2x128xf32, #tpu.memory_space<vmem>>, vector<2x128xf32>
      tpu.vector_store %arg7[%c0_16, %c0_17], %20 {strides = array<i32>} : memref<2x128xf32, #tpu.memory_space<vmem>>, vector<2x128xf32>,
    } else {
    }
    %c0 = arith.constant 0 : index
    %c0_1 = arith.constant 0 : index
    %3 = vector.load %arg1[%c0, %c0_1] : memref<2x3136xbf16, #tpu.memory_space<vmem>>, vector<2x3136xbf16>
    %c0_2 = arith.constant 0 : index
    %c0_3 = arith.constant 0 : index
    %4 = vector.load %arg2[%c0_2, %c0_3] : memref<3136x128xbf16, #tpu.memory_space<vmem>>, vector<3136x128xbf16>
    %cst = arith.constant dense<0.000000e+00> : vector<2x128xf32>
    %5 = tpu.matmul %3, %4, %cst {dimension_numbers = #tpu.dot_dimension_numbers<[1], [0], [0], [1], [0, 0, 1, 1], [], []>} : vector<2x3136xbf16>, vector<3136x128xbf16>, vector<2x128xf32> -> vector<2x128xf32>
    %c0_4 = arith.constant 0 : index
    %c0_5 = arith.constant 0 : index
    %6 = vector.load %arg3[%c0_4, %c0_5] : memref<1x128xf32, #tpu.memory_space<vmem>>, vector<1x128xf32>
    %7 = vector.broadcast %6 : vector<1x128xf32> to vector<2x128xf32>
    %8 = arith.addf %5, %7 : vector<2x128xf32>
    %cst_6 = arith.constant 0.000000e+00 : f32
    %9 = vector.broadcast %cst_6 : f32 to vector<2x128xf32>
    %10 = arith.maximumf %8, %9 : vector<2x128xf32>
    %11 = arith.truncf %10 : vector<2x128xf32> to vector<2x128xbf16>
    %c0_7 = arith.constant 0 : index
    %c0_8 = arith.constant 0 : index
    %12 = vector.load %arg7[%c0_7, %c0_8] : memref<2x128xf32, #tpu.memory_space<vmem>>, vector<2x128xf32>
    %c0_9 = arith.constant 0 : index
    %c0_10 = arith.constant 0 : index
    %13 = vector.load %arg4[%c0_9, %c0_10] : memref<128x128xbf16, #tpu.memory_space<vmem>>, vector<128x128xbf16>
    %cst_11 = arith.constant dense<0.000000e+00> : vector<2x128xf32>
    %14 = tpu.matmul %11, %13, %cst_11 {dimension_numbers = #tpu.dot_dimension_numbers<[1], [0], [0], [1], [0, 0, 1, 1], [], []>} : vector<2x128xbf16>, vector<128x128xbf16>, vector<2x128xf32> -> vector<2x128xf32>
    %15 = arith.addf %12, %14 : vector<2x128xf32>
    %c0_12 = arith.constant 0 : index
    %c0_13 = arith.constant 0 : index
    %16 = vector.load %arg7[%c0_12, %c0_13] : memref<2x128xf32, #tpu.memory_space<vmem>>, vector<2x128xf32>
    tpu.vector_store %arg7[%c0_12, %c0_13], %15 {strides = array<i32>} : memref<2x128xf32, #tpu.memory_space<vmem>>, vector<2x128xf32>,
    %c7_i32 = arith.constant 7 : i32
    %17 = arith.cmpi eq, %arg0, %c7_i32 : i32
    %18 = arith.extui %17 : i1 to i32
    %c0_i32_14 = arith.constant 0 : i32
    %19 = arith.cmpi ne, %18, %c0_i32_14 : i32
    scf.if %19 {
      %c0_15 = arith.constant 0 : index
      %c0_16 = arith.constant 0 : index
      %20 = vector.load %arg7[%c0_15, %c0_16] : memref<2x128xf32, #tpu.memory_space<vmem>>, vector<2x128xf32>
      %c0_17 = arith.constant 0 : index
      %c0_18 = arith.constant 0 : index
      %21 = vector.load %arg5[%c0_17, %c0_18] : memref<1x128xf32, #tpu.memory_space<vmem>>, vector<1x128xf32>
      %22 = vector.broadcast %21 : vector<1x128xf32> to vector<2x128xf32>
      %23 = arith.addf %20, %22 : vector<2x128xf32>
      %c0_19 = arith.constant 0 : index
      %c0_20 = arith.constant 0 : index
      %24 = vector.load %arg6[%c0_19, %c0_20] : memref<2x128xf32, #tpu.memory_space<vmem>>, vector<2x128xf32>
      tpu.vector_store %arg6[%c0_19, %c0_20], %23 {strides = array<i32>} : memref<2x128xf32, #tpu.memory_space<vmem>>, vector<2x128xf32>,
    } else {
    }
    return
  }
  func.func @transform_0(%arg0: i32) -> (i32, i32) {
    %c0_i32 = arith.constant 0 : i32
    %c0_i32_0 = arith.constant 0 : i32
    %c0_i32_1 = arith.constant 0 : i32
    return %c0_i32, %c0_i32_0 : i32, i32
  }
  func.func @transform_1(%arg0: i32) -> (i32, i32) {
    %c0_i32 = arith.constant 0 : i32
    %c0_i32_0 = arith.constant 0 : i32
    return %c0_i32, %arg0 : i32, i32
  }
  func.func @transform_2(%arg0: i32) -> (i32, i32) {
    %c0_i32 = arith.constant 0 : i32
    %c0_i32_0 = arith.constant 0 : i32
    return %c0_i32, %arg0 : i32, i32
  }
  func.func @transform_3(%arg0: i32) -> (i32, i32) {
    %c0_i32 = arith.constant 0 : i32
    %c0_i32_0 = arith.constant 0 : i32
    return %arg0, %c0_i32 : i32, i32
  }
  func.func @transform_4(%arg0: i32) -> (i32, i32) {
    %c0_i32 = arith.constant 0 : i32
    %c0_i32_0 = arith.constant 0 : i32
    %c0_i32_1 = arith.constant 0 : i32
    return %c0_i32, %c0_i32_0 : i32, i32
  }
  func.func @transform_5(%arg0: i32) -> (i32, i32) {
    %c0_i32 = arith.constant 0 : i32
    %c0_i32_0 = arith.constant 0 : i32
    %c0_i32_1 = arith.constant 0 : i32
    return %c0_i32, %c0_i32_0 : i32, i32
  }
}

</mosaic_0001>

<llo_original>
// kernel: cnn_forward.3
$region0: #{cnn_forward.3}
  #allocation0 [shape = 'u32[]', space=smem, size = 0x4, offset = 0x4, fixed_abs, tag = 'smem constant byte address 0x4 - core index']
  #allocation1 [shape = 'u32[144,128]{1,0:T(1,128)}', space=vmem, size = 0x12000, scoped, tag = 'internal scratch']
  %s0 = inlined_call_operand.vmem [shape: bf16[4,9,512], index: 0, kind: input, shape index: {}]
  %s1 = inlined_call_operand.vmem [shape: bf16[32,9], index: 1, kind: input, shape index: {}]
  %s2 = inlined_call_operand.vmem [shape: f32[32,1], index: 2, kind: input, shape index: {}]
  %s3 = inlined_call_operand.vmem [shape: bf16[32,512], index: 3, kind: output, shape index: {}]
  %s4 = sld [smem:[#allocation0]]
  $region22: #{cnn_forward.3} parent=0
    _
  %s6 = ssub.s32 1, %s4
  %s7 = scalar_select 0, %s6, %s4
  // Predicated region
  $region2: #{cnn_forward.3} parent=0 // pred_check
    _
  $region3: #{cnn_forward.3} parent=0 // pred_check_branch
    %9 = sbr.rel (0) target = $region5
  $region4: #{cnn_forward.3} parent=0 // pred_region
    _
  $region5: #{cnn_forward.3} parent=0 // pred_fallthru
    _
  // Predicated region
  $region6: #{cnn_forward.3} parent=0 // pred_check
    _
  $region7: #{cnn_forward.3} parent=0 // pred_check_branch
    %11 = sbr.rel (0) target = $region9
  $region8: #{cnn_forward.3} parent=0 // pred_region
    _
  $region9: #{cnn_forward.3} parent=0 // pred_fallthru
    _
  // Predicated region
  $region10: #{cnn_forward.3} parent=0 // pred_check
    _
  $region11: #{cnn_forward.3} parent=0 // pred_check_branch
    %13 = sbr.rel (0) target = $region13
  $region12: #{cnn_forward.3} parent=0 // pred_region
    _
  $region13: #{cnn_forward.3} parent=0 // pred_fallthru
    _
  %v15 = vld [vmem:[%s1] sm:$0xf]
  %v16 = vld [vmem:[%s1 + $0x4] sm:$0xf]
  %v17 = vld [vmem:[%s1 + $0x8] sm:$0xf]
  %v18 = vld [vmem:[%s1 + $0xc] sm:$0xf]
  %v19 = vld [vmem:[%s0] sm:$0xff]
  %v20 = vld [vmem:[%s0 + $0x8] sm:$0xff]
  %v21 = vld [vmem:[%s0 + $0x10] sm:$0x11]
  %v22 = vld [vmem:[%s0 + $0x18] sm:$0x11]
  %v27 = vunpack.c.l.b16 %v15
  %v28 = vunpack.c.l.b16 %v16
  %v29 = vunpack.c.l.b16 %v17
  %v30 = vunpack.c.l.b16 %v18
  %v31 = vpack.c.b16 %v28, %v27
  %v32 = vpack.c.b16 %v30, %v29
  %v37 = vunpack.c.l.b16 %v19
  %v38 = vunpack.c.h.b16 %v19
  %v39 = vunpack.c.l.b16 %v20
  %v40 = vunpack.c.h.b16 %v20
  %v41 = vunpack.c.l.b16 %v21
  %v42 = vunpack.c.h.b16 %v21
  %v43 = vunpack.c.l.b16 %v22
  %v44 = vunpack.c.h.b16 %v22
  %v45 = vpack.c.b16 %v41, %v37
  %v46 = vpack.c.b16 %v42, %v38
  %v47 = vpack.c.b16 %v43, %v39
  %v48 = vpack.c.b16 %v44, %v40
  %vm49 = vcmask 72704
  %v51 = vsel %vm49, %v31, 0
  %v54 = vsel %vm49, %v32, 0
  %vm56 = vcmask 1043456
  %vm57 = vcmask 1044480
  %v58 = vsel %vm56, 4294967295, 65535
  %v59 = vsel %vm57, %v58, 0
  %v61 = vand.u32 %v45, %v59
  %v64 = vand.u32 %v46, %v59
  %v67 = vand.u32 %v47, %v59
  %v70 = vand.u32 %v48, %v59
  %72 = vmatprep.subr.bf16.mxu0 %v64
  %73 = vmatpush1.bf16.msra.mxu0 %v61
  %74 = vmatprep.subr.bf16.mxu0 0
  %75 = vmatpush1.bf16.msra.mxu0 0
  %76 = vmatprep.subr.bf16.mxu0 0
  %77 = vmatpush1.bf16.msra.mxu0 0
  %78 = vmatprep.subr.bf16.mxu0 0
  %79 = vmatpush1.bf16.msra.mxu0 0
  %80 = vmatprep.subr.bf16.mxu0 0
  %81 = vmatpush1.bf16.msra.mxu0 0
  %82 = vmatprep.subr.bf16.mxu0 0
  %83 = vmatpush1.bf16.msra.mxu0 0
  %84 = vmatprep.subr.bf16.mxu0 0
  %85 = vmatpush1.bf16.msra.mxu0 0
  %86 = vmatprep.subr.bf16.mxu0 0
  %87 = vmatpush1.bf16.msra.mxu0 0
  %88 = vmatprep.subr.bf16.mxu0 0
  %89 = vmatpush1.bf16.msra.mxu0 0
  %90 = vmatprep.subr.bf16.mxu0 0
  %91 = vmatpush1.bf16.msra.mxu0 0
  %92 = vmatprep.subr.bf16.mxu0 0
  %93 = vmatpush1.bf16.msra.mxu0 0
  %94 = vmatprep.subr.bf16.mxu0 0
  %95 = vmatpush1.bf16.msra.mxu0 0
  %96 = vmatprep.subr.bf16.mxu0 0
  %97 = vmatpush1.bf16.msra.mxu0 0
  %98 = vmatprep.subr.bf16.mxu0 0
  %99 = vmatpush1.bf16.msra.mxu0 0
  %100 = vmatprep.subr.bf16.mxu0 0
  %101 = vmatpush1.bf16.msra.mxu0 0
  %102 = vmatprep.subr.bf16.mxu0 0
  %103 = vmatpush1.bf16.msra.mxu0 0
  %104 = vmatprep.mubr.bf16.mxu0 0
  %105 = vmatmul.mubr.bf16.gmra.mrb[0].mxu0 %v51
  %v106 = vpop.f32.mrb[0].mxu0
  %v107 = vadd.f32 0.0, %v106
  %v108 = vpop.f32.mrb[0].mxu0
  %v109 = vadd.f32 0.0, %v108
  %v110 = vpop.f32.mrb[0].mxu0
  %v111 = vadd.f32 0.0, %v110
  %v112 = vpop.f32.mrb[0].mxu0
  %v113 = vadd.f32 0.0, %v112
  %114 = vmatprep.mubr.bf16.mxu0 0
  %115 = vmatmul.mubr.bf16.gmra.mrb[0].mxu0 %v54
  %v116 = vpop.f32.mrb[0].mxu0
  %v117 = vadd.f32 0.0, %v116
  %v118 = vpop.f32.mrb[0].mxu0
  %v119 = vadd.f32 0.0, %v118
  %v120 = vpop.f32.mrb[0].mxu0
  %v121 = vadd.f32 0.0, %v120
  %v122 = vpop.f32.mrb[0].mxu0
  %v123 = vadd.f32 0.0, %v122
  %124 = vdwg.mxu0
  %125 = vmatprep.subr.bf16.mxu0 %v70
  %126 = vmatpush1.bf16.msra.mxu0 %v67
  %127 = vmatprep.subr.bf16.mxu0 0
  %128 = vmatpush1.bf16.msra.mxu0 0
  %129 = vmatprep.subr.bf16.mxu0 0
  %130 = vmatpush1.bf16.msra.mxu0 0
  %131 = vmatprep.subr.bf16.mxu0 0
  %132 = vmatpush1.bf16.msra.mxu0 0
  %133 = vmatprep.subr.bf16.mxu0 0
  %134 = vmatpush1.bf16.msra.mxu0 0
  %135 = vmatprep.subr.bf16.mxu0 0
  %136 = vmatpush1.bf16.msra.mxu0 0
  %137 = vmatprep.subr.bf16.mxu0 0
  %138 = vmatpush1.bf16.msra.mxu0 0
  %139 = vmatprep.subr.bf16.mxu0 0
  %140 = vmatpush1.bf16.msra.mxu0 0
  %141 = vmatprep.subr.bf16.mxu0 0
  %142 = vmatpush1.bf16.msra.mxu0 0
  %143 = vmatprep.subr.bf16.mxu0 0
  %144 = vmatpush1.bf16.msra.mxu0 0
  %145 = vmatprep.subr.bf16.mxu0 0
  %146 = vmatpush1.bf16.msra.mxu0 0
  %147 = vmatprep.subr.bf16.mxu0 0
  %148 = vmatpush1.bf16.msra.mxu0 0
  %149 = vmatprep.subr.bf16.mxu0 0
  %150 = vmatpush1.bf16.msra.mxu0 0
  %151 = vmatprep.subr.bf16.mxu0 0
  %152 = vmatpush1.bf16.msra.mxu0 0
  %153 = vmatprep.subr.bf16.mxu0 0
  %154 = vmatpush1.bf16.msra.mxu0 0
  %155 = vmatprep.subr.bf16.mxu0 0
  %156 = vmatpush1.bf16.msra.mxu0 0
  %157 = vmatprep.mubr.bf16.mxu0 0
  %158 = vmatmul.mubr.bf16.gmra.mrb[0].mxu0 %v51
  %v159 = vpop.f32.mrb[0].mxu0
  %v160 = vadd.f32 0.0, %v159
  %v161 = vpop.f32.mrb[0].mxu0
  %v162 = vadd.f32 0.0, %v161
  %v163 = vpop.f32.mrb[0].mxu0
  %v164 = vadd.f32 0.0, %v163
  %v165 = vpop.f32.mrb[0].mxu0
  %v166 = vadd.f32 0.0, %v165
  %167 = vmatprep.mubr.bf16.mxu0 0
  %168 = vmatmul.mubr.bf16.gmra.mrb[0].mxu0 %v54
  %v169 = vpop.f32.mrb[0].mxu0
  %v170 = vadd.f32 0.0, %v169
  %v171 = vpop.f32.mrb[0].mxu0
  %v172 = vadd.f32 0.0, %v171
  %v173 = vpop.f32.mrb[0].mxu0
  %v174 = vadd.f32 0.0, %v173
  %v175 = vpop.f32.mrb[0].mxu0
  %v176 = vadd.f32 0.0, %v175
  %177 = vdwg.mxu0
  %s178 = scalar_lea.vmem %s0, 32
  %v179 = vld [vmem:[%s178] sm:$0xff]
  %v180 = vld [vmem:[%s178 + $0x8] sm:$0xff]
  %v181 = vld [vmem:[%s178 + $0x10] sm:$0x11]
  %v182 = vld [vmem:[%s178 + $0x18] sm:$0x11]
  %v187 = vunpack.c.l.b16 %v179
  %v188 = vunpack.c.h.b16 %v179
  %v189 = vunpack.c.l.b16 %v180
  %v190 = vunpack.c.h.b16 %v180
  %v191 = vunpack.c.l.b16 %v181
  %v192 = vunpack.c.h.b16 %v181
  %v193 = vunpack.c.l.b16 %v182
  %v194 = vunpack.c.h.b16 %v182
  %v195 = vpack.c.b16 %v191, %v187
  %v196 = vpack.c.b16 %v192, %v188
  %v197 = vpack.c.b16 %v193, %v189
  %v198 = vpack.c.b16 %v194, %v190
  %v200 = vand.u32 %v195, %v59
  %v203 = vand.u32 %v196, %v59
  %v206 = vand.u32 %v197, %v59
  %v209 = vand.u32 %v198, %v59
  %211 = vmatprep.subr.bf16.mxu0 %v203
  %212 = vmatpush1.bf16.msra.mxu0 %v200
  %213 = vmatprep.subr.bf16.mxu0 0
  %214 = vmatpush1.bf16.msra.mxu0 0
  %215 = vmatprep.subr.bf16.mxu0 0
  %216 = vmatpush1.bf16.msra.mxu0 0
  %217 = vmatprep.subr.bf16.mxu0 0
  %218 = vmatpush1.bf16.msra.mxu0 0
  %219 = vmatprep.subr.bf16.mxu0 0
  %220 = vmatpush1.bf16.msra.mxu0 0
  %221 = vmatprep.subr.bf16.mxu0 0
  %222 = vmatpush1.bf16.msra.mxu0 0
  %223 = vmatprep.subr.bf16.mxu0 0
  %224 = vmatpush1.bf16.msra.mxu0 0
  %225 = vmatprep.subr.bf16.mxu0 0
  %226 = vmatpush1.bf16.msra.mxu0 0
  %227 = vmatprep.subr.bf16.mxu0 0
  %228 = vmatpush1.bf16.msra.mxu0 0
  %229 = vmatprep.subr.bf16.mxu0 0
  %230 = vmatpush1.bf16.msra.mxu0 0
  %231 = vmatprep.subr.bf16.mxu0 0
  %232 = vmatpush1.bf16.msra.mxu0 0
  %233 = vmatprep.subr.bf16.mxu0 0
  %234 = vmatpush1.bf16.msra.mxu0 0
  %235 = vmatprep.subr.bf16.mxu0 0
  %236 = vmatpush1.bf16.msra.mxu0 0
  %237 = vmatprep.subr.bf16.mxu0 0
  %238 = vmatpush1.bf16.msra.mxu0 0
  %239 = vmatprep.subr.bf16.mxu0 0
  %240 = vmatpush1.bf16.msra.mxu0 0
  %241 = vmatprep.subr.bf16.mxu0 0
  %242 = vmatpush1.bf16.msra.mxu0 0
  %243 = vmatprep.mubr.bf16.mxu0 0
  %244 = vmatmul.mubr.bf16.gmra.mrb[0].mxu0 %v51
  %v245 = vpop.f32.mrb[0].mxu0
  %v246 = vadd.f32 0.0, %v245
  %v247 = vpop.f32.mrb[0].mxu0
  %v248 = vadd.f32 0.0, %v247
  %v249 = vpop.f32.mrb[0].mxu0
  %v250 = vadd.f32 0.0, %v249
  %v251 = vpop.f32.mrb[0].mxu0
  %v252 = vadd.f32 0.0, %v251
  %253 = vmatprep.mubr.bf16.mxu0 0
  %254 = vmatmul.mubr.bf16.gmra.mrb[0].mxu0 %v54
  %v255 = vpop.f32.mrb[0].mxu0
  %v256 = vadd.f32 0.0, %v255
  %v257 = vpop.f32.mrb[0].mxu0
  %v258 = vadd.f32 0.0, %v257
  %v259 = vpop.f32.mrb[0].mxu0
  %v260 = vadd.f32 0.0, %v259
  %v261 = vpop.f32.mrb[0].mxu0
  %v262 = vadd.f32 0.0, %v261
  %263 = vdwg.mxu0
  %264 = vmatprep.subr.bf16.mxu0 %v209
  %265 = vmatpush1.bf16.msra.mxu0 %v206
  %266 = vmatprep.subr.bf16.mxu0 0
  %267 = vmatpush1.bf16.msra.mxu0 0
  %268 = vmatprep.subr.bf16.mxu0 0
  %269 = vmatpush1.bf16.msra.mxu0 0
  %270 = vmatprep.subr.bf16.mxu0 0
  %271 = vmatpush1.bf16.msra.mxu0 0
  %272 = vmatprep.subr.bf16.mxu0 0
  %273 = vmatpush1.bf16.msra.mxu0 0
  %274 = vmatprep.subr.bf16.mxu0 0
  %275 = vmatpush1.bf16.msra.mxu0 0
  %276 = vmatprep.subr.bf16.mxu0 0
  %277 = vmatpush1.bf16.msra.mxu0 0
  %278 = vmatprep.subr.bf16.mxu0 0
  %279 = vmatpush1.bf16.msra.mxu0 0
  %280 = vmatprep.subr.bf16.mxu0 0
  %281 = vmatpush1.bf16.msra.mxu0 0
  %282 = vmatprep.subr.bf16.mxu0 0
  %283 = vmatpush1.bf16.msra.mxu0 0
  %284 = vmatprep.subr.bf16.mxu0 0
  %285 = vmatpush1.bf16.msra.mxu0 0
  %286 = vmatprep.subr.bf16.mxu0 0
  %287 = vmatpush1.bf16.msra.mxu0 0
  %288 = vmatprep.subr.bf16.mxu0 0
  %289 = vmatpush1.bf16.msra.mxu0 0
  %290 = vmatprep.subr.bf16.mxu0 0
  %291 = vmatpush1.bf16.msra.mxu0 0
  %292 = vmatprep.subr.bf16.mxu0 0
  %293 = vmatpush1.bf16.msra.mxu0 0
  %294 = vmatprep.subr.bf16.mxu0 0
  %295 = vmatpush1.bf16.msra.mxu0 0
  %296 = vmatprep.mubr.bf16.mxu0 0
  %297 = vmatmul.mubr.bf16.gmra.mrb[0].mxu0 %v51
  %v298 = vpop.f32.mrb[0].mxu0
  %v299 = vadd.f32 0.0, %v298
  %v300 = vpop.f32.mrb[0].mxu0
  %v301 = vadd.f32 0.0, %v300
  %v302 = vpop.f32.mrb[0].mxu0
  %v303 = vadd.f32 0.0, %v302
  %v304 = vpop.f32.mrb[0].mxu0
  %v305 = vadd.f32 0.0, %v304
  %306 = vmatprep.mubr.bf16.mxu0 0
  %307 = vmatmul.mubr.bf16.gmra.mrb[0].mxu0 %v54
  %v308 = vpop.f32.mrb[0].mxu0
  %v309 = vadd.f32 0.0, %v308
  %v310 = vpop.f32.mrb[0].mxu0
  %v311 = vadd.f32 0.0, %v310
  %v312 = vpop.f32.mrb[0].mxu0
  %v313 = vadd.f32 0.0, %v312
  %v314 = vpop.f32.mrb[0].mxu0
  %v315 = vadd.f32 0.0, %v314
  %316 = vdwg.mxu0
  %v317 = vmax.f32 %v107, %v246
  %v318 = vmax.f32 %v109, %v248
  %v319 = vmax.f32 %v160, %v299
  %v320 = vmax.f32 %v162, %v301
  %v321 = vmax.f32 %v111, %v250
  %v322 = vmax.f32 %v113, %v252
  %v323 = vmax.f32 %v164, %v303
  %v324 = vmax.f32 %v166, %v305
  %v325 = vmax.f32 %v117, %v256
  %v326 = vmax.f32 %v119, %v258
  %v327 = vmax.f32 %v170, %v309
  %v328 = vmax.f32 %v172, %v311
  %v329 = vmax.f32 %v121, %v260
  %v330 = vmax.f32 %v123, %v262
  %v331 = vmax.f32 %v174, %v313
  %v332 = vmax.f32 %v176, %v315
  %s333 = scalar_lea.vmem %s0, 64
  %v334 = vld [vmem:[%s333] sm:$0xff]
  %v335 = vld [vmem:[%s333 + $0x8] sm:$0xff]
  %v336 = vld [vmem:[%s333 + $0x10] sm:$0x11]
  %v337 = vld [vmem:[%s333 + $0x18] sm:$0x11]
  %v342 = vunpack.c.l.b16 %v334
  %v343 = vunpack.c.h.b16 %v334
  %v344 = vunpack.c.l.b16 %v335
  %v345 = vunpack.c.h.b16 %v335
  %v346 = vunpack.c.l.b16 %v336
  %v347 = vunpack.c.h.b16 %v336
  %v348 = vunpack.c.l.b16 %v337
  %v349 = vunpack.c.h.b16 %v337
  %v350 = vpack.c.b16 %v346, %v342
  %v351 = vpack.c.b16 %v347, %v343
  %v352 = vpack.c.b16 %v348, %v344
  %v353 = vpack.c.b16 %v349, %v345
  %v355 = vand.u32 %v350, %v59
  %v358 = vand.u32 %v351, %v59
  %v361 = vand.u32 %v352, %v59
  %v364 = vand.u32 %v353, %v59
  %366 = vmatprep.subr.bf16.mxu0 %v358
  %367 = vmatpush1.bf16.msra.mxu0 %v355
  %368 = vmatprep.subr.bf16.mxu0 0
  %369 = vmatpush1.bf16.msra.mxu0 0
  %370 = vmatprep.subr.bf16.mxu0 0
  %371 = vmatpush1.bf16.msra.mxu0 0
  %372 = vmatprep.subr.bf16.mxu0 0
  %373 = vmatpush1.bf16.msra.mxu0 0
  %374 = vmatprep.subr.bf16.mxu0 0
  %375 = vmatpush1.bf16.msra.mxu0 0
  %376 = vmatprep.subr.bf16.mxu0 0
  %377 = vmatpush1.bf16.msra.mxu0 0
  %378 = vmatprep.subr.bf16.mxu0 0
  %379 = vmatpush1.bf16.msra.mxu0 0
  %380 = vmatprep.subr.bf16.mxu0 0
  %381 = vmatpush1.bf16.msra.mxu0 0
  %382 = vmatprep.subr.bf16.mxu0 0
  %383 = vmatpush1.bf16.msra.mxu0 0
  %384 = vmatprep.subr.bf16.mxu0 0
  %385 = vmatpush1.bf16.msra.mxu0 0
  %386 = vmatprep.subr.bf16.mxu0 0
  %387 = vmatpush1.bf16.msra.mxu0 0
  %388 = vmatprep.subr.bf16.mxu0 0
  %389 = vmatpush1.bf16.msra.mxu0 0
  %390 = vmatprep.subr.bf16.mxu0 0
  %391 = vmatpush1.bf16.msra.mxu0 0
  %392 = vmatprep.subr.bf16.mxu0 0
  %393 = vmatpush1.bf16.msra.mxu0 0
  %394 = vmatprep.subr.bf16.mxu0 0
  %395 = vmatpush1.bf16.msra.mxu0 0
  %396 = vmatprep.subr.bf16.mxu0 0
  %397 = vmatpush1.bf16.msra.mxu0 0
  %398 = vmatprep.mubr.bf16.mxu0 0
  %399 = vmatmul.mubr.bf16.gmra.mrb[0].mxu0 %v51
  %v400 = vpop.f32.mrb[0].mxu0
  %v401 = vadd.f32 0.0, %v400
  %v402 = vpop.f32.mrb[0].mxu0
  %v403 = vadd.f32 0.0, %v402
  %v404 = vpop.f32.mrb[0].mxu0
  %v405 = vadd.f32 0.0, %v404
  %v406 = vpop.f32.mrb[0].mxu0
  %v407 = vadd.f32 0.0, %v406
  %408 = vmatprep.mubr.bf16.mxu0 0
  %409 = vmatmul.mubr.bf16.gmra.mrb[0].mxu0 %v54
  %v410 = vpop.f32.mrb[0].mxu0
  %v411 = vadd.f32 0.0, %v410
  %v412 = vpop.f32.mrb[0].mxu0
  %v413 = vadd.f32 0.0, %v412
  %v414 = vpop.f32.mrb[0].mxu0
  %v415 = vadd.f32 0.0, %v414
  %v416 = vpop.f32.mrb[0].mxu0
  %v417 = vadd.f32 0.0, %v416
  %418 = vdwg.mxu0
  %419 = vmatprep.subr.bf16.mxu0 %v364
  %420 = vmatpush1.bf16.msra.mxu0 %v361
  %421 = vmatprep.subr.bf16.mxu0 0
  %422 = vmatpush1.bf16.msra.mxu0 0
  %423 = vmatprep.subr.bf16.mxu0 0
  %424 = vmatpush1.bf16.msra.mxu0 0
  %425 = vmatprep.subr.bf16.mxu0 0
  %426 = vmatpush1.bf16.msra.mxu0 0
  %427 = vmatprep.subr.bf16.mxu0 0
  %428 = vmatpush1.bf16.msra.mxu0 0
  %429 = vmatprep.subr.bf16.mxu0 0
  %430 = vmatpush1.bf16.msra.mxu0 0
  %431 = vmatprep.subr.bf16.mxu0 0
  %432 = vmatpush1.bf16.msra.mxu0 0
  %433 = vmatprep.subr.bf16.mxu0 0
  %434 = vmatpush1.bf16.msra.mxu0 0
  %435 = vmatprep.subr.bf16.mxu0 0
  %436 = vmatpush1.bf16.msra.mxu0 0
  %437 = vmatprep.subr.bf16.mxu0 0
  %438 = vmatpush1.bf16.msra.mxu0 0
  %439 = vmatprep.subr.bf16.mxu0 0
  %440 = vmatpush1.bf16.msra.mxu0 0
  %441 = vmatprep.subr.bf16.mxu0 0
  %442 = vmatpush1.bf16.msra.mxu0 0
  %443 = vmatprep.subr.bf16.mxu0 0
  %444 = vmatpush1.bf16.msra.mxu0 0
  %445 = vmatprep.subr.bf16.mxu0 0
  %446 = vmatpush1.bf16.msra.mxu0 0
  %447 = vmatprep.subr.bf16.mxu0 0
  %448 = vmatpush1.bf16.msra.mxu0 0
  %449 = vmatprep.subr.bf16.mxu0 0
  %450 = vmatpush1.bf16.msra.mxu0 0
  %451 = vmatprep.mubr.bf16.mxu0 0
  %452 = vmatmul.mubr.bf16.gmra.mrb[0].mxu0 %v51
  %v453 = vpop.f32.mrb[0].mxu0
  %v454 = vadd.f32 0.0, %v453
  %v455 = vpop.f32.mrb[0].mxu0
  %v456 = vadd.f32 0.0, %v455
  %v457 = vpop.f32.mrb[0].mxu0
  %v458 = vadd.f32 0.0, %v457
  %v459 = vpop.f32.mrb[0].mxu0
  %v460 = vadd.f32 0.0, %v459
  %461 = vmatprep.mubr.bf16.mxu0 0
  %462 = vmatmul.mubr.bf16.gmra.mrb[0].mxu0 %v54
  %v463 = vpop.f32.mrb[0].mxu0
  %v464 = vadd.f32 0.0, %v463
  %v465 = vpop.f32.mrb[0].mxu0
  %v466 = vadd.f32 0.0, %v465
  %v467 = vpop.f32.mrb[0].mxu0
  %v468 = vadd.f32 0.0, %v467
  %v469 = vpop.f32.mrb[0].mxu0
  %v470 = vadd.f32 0.0, %v469
  %471 = vdwg.mxu0
  %v472 = vmax.f32 %v317, %v401
  %v473 = vmax.f32 %v318, %v403
  %v474 = vmax.f32 %v319, %v454
  %v475 = vmax.f32 %v320, %v456
  %v476 = vmax.f32 %v321, %v405
  %v477 = vmax.f32 %v322, %v407
  %v478 = vmax.f32 %v323, %v458
  %v479 = vmax.f32 %v324, %v460
  %v480 = vmax.f32 %v325, %v411
  %v481 = vmax.f32 %v326, %v413
  %v482 = vmax.f32 %v327, %v464
  %v483 = vmax.f32 %v328, %v466
  %v484 = vmax.f32 %v329, %v415
  %v485 = vmax.f32 %v330, %v417
  %v486 = vmax.f32 %v331, %v468
  %v487 = vmax.f32 %v332, %v470
  %s488 = scalar_lea.vmem %s0, 96
  %v489 = vld [vmem:[%s488] sm:$0xff]
  %v490 = vld [vmem:[%s488 + $0x8] sm:$0xff]
  %v491 = vld [vmem:[%s488 + $0x10] sm:$0x11]
  %v492 = vld [vmem:[%s488 + $0x18] sm:$0x11]
  %v497 = vunpack.c.l.b16 %v489
  %v498 = vunpack.c.h.b16 %v489
  %v499 = vunpack.c.l.b16 %v490
  %v500 = vunpack.c.h.b16 %v490
  %v501 = vunpack.c.l.b16 %v491
  %v502 = vunpack.c.h.b16 %v491
  %v503 = vunpack.c.l.b16 %v492
  %v504 = vunpack.c.h.b16 %v492
  %v505 = vpack.c.b16 %v501, %v497
  %v506 = vpack.c.b16 %v502, %v498
  %v507 = vpack.c.b16 %v503, %v499
  %v508 = vpack.c.b16 %v504, %v500
  %v510 = vand.u32 %v505, %v59
  %v513 = vand.u32 %v506, %v59
  %v516 = vand.u32 %v507, %v59
  %v519 = vand.u32 %v508, %v59
  %521 = vmatprep.subr.bf16.mxu0 %v513
  %522 = vmatpush1.bf16.msra.mxu0 %v510
  %523 = vmatprep.subr.bf16.mxu0 0
  %524 = vmatpush1.bf16.msra.mxu0 0
  %525 = vmatprep.subr.bf16.mxu0 0
  %526 = vmatpush1.bf16.msra.mxu0 0
  %527 = vmatprep.subr.bf16.mxu0 0
  %528 = vmatpush1.bf16.msra.mxu0 0
  %529 = vmatprep.subr.bf16.mxu0 0
  %530 = vmatpush1.bf16.msra.mxu0 0
  %531 = vmatprep.subr.bf16.mxu0 0
  %532 = vmatpush1.bf16.msra.mxu0 0
  %533 = vmatprep.subr.bf16.mxu0 0
  %534 = vmatpush1.bf16.msra.mxu0 0
  %535 = vmatprep.subr.bf16.mxu0 0
  %536 = vmatpush1.bf16.msra.mxu0 0
  %537 = vmatprep.subr.bf16.mxu0 0
  %538 = vmatpush1.bf16.msra.mxu0 0
  %539 = vmatprep.subr.bf16.mxu0 0
  %540 = vmatpush1.bf16.msra.mxu0 0
  %541 = vmatprep.subr.bf16.mxu0 0
  %542 = vmatpush1.bf16.msra.mxu0 0
  %543 = vmatprep.subr.bf16.mxu0 0
  %544 = vmatpush1.bf16.msra.mxu0 0
  %545 = vmatprep.subr.bf16.mxu0 0
  %546 = vmatpush1.bf16.msra.mxu0 0
  %547 = vmatprep.subr.bf16.mxu0 0
  %548 = vmatpush1.bf16.msra.mxu0 0
  %549 = vmatprep.subr.bf16.mxu0 0
  %550 = vmatpush1.bf16.msra.mxu0 0
  %551 = vmatprep.subr.bf16.mxu0 0
  %552 = vmatpush1.bf16.msra.mxu0 0
  %553 = vmatprep.mubr.bf16.mxu0 0
  %554 = vmatmul.mubr.bf16.gmra.mrb[0].mxu0 %v51
  %v555 = vpop.f32.mrb[0].mxu0
  %v556 = vadd.f32 0.0, %v555
  %v557 = vpop.f32.mrb[0].mxu0
  %v558 = vadd.f32 0.0, %v557
  %v559 = vpop.f32.mrb[0].mxu0
  %v560 = vadd.f32 0.0, %v559
  %v561 = vpop.f32.mrb[0].mxu0
  %v562 = vadd.f32 0.0, %v561
  %563 = vmatprep.mubr.bf16.mxu0 0
  %564 = vmatmul.mubr.bf16.gmra.mrb[0].mxu0 %v54
  %v565 = vpop.f32.mrb[0].mxu0
  %v566 = vadd.f32 0.0, %v565
  %v567 = vpop.f32.mrb[0].mxu0
  %v568 = vadd.f32 0.0, %v567
  %v569 = vpop.f32.mrb[0].mxu0
  %v570 = vadd.f32 0.0, %v569
  %v571 = vpop.f32.mrb[0].mxu0
  %v572 = vadd.f32 0.0, %v571
  %573 = vdwg.mxu0
  %574 = vmatprep.subr.bf16.mxu0 %v519
  %575 = vmatpush1.bf16.msra.mxu0 %v516
  %576 = vmatprep.subr.bf16.mxu0 0
  %577 = vmatpush1.bf16.msra.mxu0 0
  %578 = vmatprep.subr.bf16.mxu0 0
  %579 = vmatpush1.bf16.msra.mxu0 0
  %580 = vmatprep.subr.bf16.mxu0 0
  %581 = vmatpush1.bf16.msra.mxu0 0
  %582 = vmatprep.subr.bf16.mxu0 0
  %583 = vmatpush1.bf16.msra.mxu0 0
  %584 = vmatprep.subr.bf16.mxu0 0
  %585 = vmatpush1.bf16.msra.mxu0 0
  %586 = vmatprep.subr.bf16.mxu0 0
  %587 = vmatpush1.bf16.msra.mxu0 0
  %588 = vmatprep.subr.bf16.mxu0 0
  %589 = vmatpush1.bf16.msra.mxu0 0
  %590 = vmatprep.subr.bf16.mxu0 0
  %591 = vmatpush1.bf16.msra.mxu0 0
  %592 = vmatprep.subr.bf16.mxu0 0
  %593 = vmatpush1.bf16.msra.mxu0 0
  %594 = vmatprep.subr.bf16.mxu0 0
  %595 = vmatpush1.bf16.msra.mxu0 0
  %596 = vmatprep.subr.bf16.mxu0 0
  %597 = vmatpush1.bf16.msra.mxu0 0
  %598 = vmatprep.subr.bf16.mxu0 0
  %599 = vmatpush1.bf16.msra.mxu0 0
  %600 = vmatprep.subr.bf16.mxu0 0
  %601 = vmatpush1.bf16.msra.mxu0 0
  %602 = vmatprep.subr.bf16.mxu0 0
  %603 = vmatpush1.bf16.msra.mxu0 0
  %604 = vmatprep.subr.bf16.mxu0 0
  %605 = vmatpush1.bf16.msra.mxu0 0
  %606 = vmatprep.mubr.bf16.mxu0 0
  %607 = vmatmul.mubr.bf16.gmra.mrb[0].mxu0 %v51
  %v608 = vpop.f32.mrb[0].mxu0
  %v609 = vadd.f32 0.0, %v608
  %v610 = vpop.f32.mrb[0].mxu0
  %v611 = vadd.f32 0.0, %v610
  %v612 = vpop.f32.mrb[0].mxu0
  %v613 = vadd.f32 0.0, %v612
  %v614 = vpop.f32.mrb[0].mxu0
  %v615 = vadd.f32 0.0, %v614
  %616 = vmatprep.mubr.bf16.mxu0 0
  %617 = vmatmul.mubr.bf16.gmra.mrb[0].mxu0 %v54
  %v618 = vpop.f32.mrb[0].mxu0
  %v619 = vadd.f32 0.0, %v618
  %v620 = vpop.f32.mrb[0].mxu0
  %v621 = vadd.f32 0.0, %v620
  %v622 = vpop.f32.mrb[0].mxu0
  %v623 = vadd.f32 0.0, %v622
  %v624 = vpop.f32.mrb[0].mxu0
  %v625 = vadd.f32 0.0, %v624
  %626 = vdwg.mxu0
  %v627 = vmax.f32 %v472, %v556
  %v628 = vmax.f32 %v473, %v558
  %v629 = vmax.f32 %v474, %v609
  %v630 = vmax.f32 %v475, %v611
  %v631 = vmax.f32 %v476, %v560
  %v632 = vmax.f32 %v477, %v562
  %v633 = vmax.f32 %v478, %v613
  %v634 = vmax.f32 %v479, %v615
  %v635 = vmax.f32 %v480, %v566
  %v636 = vmax.f32 %v481, %v568
  %v637 = vmax.f32 %v482, %v619
  %v638 = vmax.f32 %v483, %v621
  %v639 = vmax.f32 %v484, %v570
  %v640 = vmax.f32 %v485, %v572
  %v641 = vmax.f32 %v486, %v623
  %v642 = vmax.f32 %v487, %v625
  %v643 = vld [vmem:[%s2] sm:$0xff]
  %v644 = vld [vmem:[%s2 + $0x8] sm:$0xff]
  %v645 = vld [vmem:[%s2 + $0x10] sm:$0xff]
  %v646 = vld [vmem:[%s2 + $0x18] sm:$0xff]
  %648 = vset.pattern.permute.xlu0 0
  %649 = vperm.xlu0 %648, %v643
  %v650 = vpop.permute.xlu0 %649
  %653 = vset.pattern.permute.xlu0 0
  %654 = vperm.xlu0 %653, %v644
  %v655 = vpop.permute.xlu0 %654
  %658 = vset.pattern.permute.xlu0 0
  %659 = vperm.xlu0 %658, %v645
  %v660 = vpop.permute.xlu0 %659
  %663 = vset.pattern.permute.xlu0 0
  %664 = vperm.xlu0 %663, %v646
  %v665 = vpop.permute.xlu0 %664
  %v667 = vadd.f32 %v627, %v650
  %v668 = vadd.f32 %v628, %v650
  %v669 = vadd.f32 %v629, %v650
  %v670 = vadd.f32 %v630, %v650
  %v671 = vadd.f32 %v631, %v655
  %v672 = vadd.f32 %v632, %v655
  %v673 = vadd.f32 %v633, %v655
  %v674 = vadd.f32 %v634, %v655
  %v675 = vadd.f32 %v635, %v660
  %v676 = vadd.f32 %v636, %v660
  %v677 = vadd.f32 %v637, %v660
  %v678 = vadd.f32 %v638, %v660
  %v679 = vadd.f32 %v639, %v665
  %v680 = vadd.f32 %v640, %v665
  %v681 = vadd.f32 %v641, %v665
  %v682 = vadd.f32 %v642, %v665
  %v683 = vmax.f32 %v667, 0.0
  %v684 = vmax.f32 %v668, 0.0
  %v685 = vmax.f32 %v669, 0.0
  %v686 = vmax.f32 %v670, 0.0
  %v687 = vmax.f32 %v671, 0.0
  %v688 = vmax.f32 %v672, 0.0
  %v689 = vmax.f32 %v673, 0.0
  %v690 = vmax.f32 %v674, 0.0
  %v691 = vmax.f32 %v675, 0.0
  %v692 = vmax.f32 %v676, 0.0
  %v693 = vmax.f32 %v677, 0.0
  %v694 = vmax.f32 %v678, 0.0
  %v695 = vmax.f32 %v679, 0.0
  %v696 = vmax.f32 %v680, 0.0
  %v697 = vmax.f32 %v681, 0.0
  %v698 = vmax.f32 %v682, 0.0
  %v699 = vpack.c.bf16 %v687, %v683
  %v700 = vpack.c.bf16 %v688, %v684
  %v701 = vpack.c.bf16 %v689, %v685
  %v702 = vpack.c.bf16 %v690, %v686
  %v703 = vpack.c.bf16 %v695, %v691
  %v704 = vpack.c.bf16 %v696, %v692
  %v705 = vpack.c.bf16 %v697, %v693
  %v706 = vpack.c.bf16 %v698, %v694
  %v715 = vunpack.c.l.b16 %v699
  %v716 = vunpack.c.l.b16 %v700
  %v717 = vunpack.c.l.b16 %v701
  %v718 = vunpack.c.l.b16 %v702
  %v719 = vunpack.c.h.b16 %v699
  %v720 = vunpack.c.h.b16 %v700
  %v721 = vunpack.c.h.b16 %v701
  %v722 = vunpack.c.h.b16 %v702
  %v723 = vunpack.c.l.b16 %v703
  %v724 = vunpack.c.l.b16 %v704
  %v725 = vunpack.c.l.b16 %v705
  %v726 = vunpack.c.l.b16 %v706
  %v727 = vunpack.c.h.b16 %v703
  %v728 = vunpack.c.h.b16 %v704
  %v729 = vunpack.c.h.b16 %v705
  %v730 = vunpack.c.h.b16 %v706
  %v731 = vpack.c.b16 %v716, %v715
  %v732 = vpack.c.b16 %v718, %v717
  %v733 = vpack.c.b16 %v720, %v719
  %v734 = vpack.c.b16 %v722, %v721
  %v735 = vpack.c.b16 %v724, %v723
  %v736 = vpack.c.b16 %v726, %v725
  %v737 = vpack.c.b16 %v728, %v727
  %v738 = vpack.c.b16 %v730, %v729
  %747 = vst [vmem:[%s3] sm:$0xff] %v731
  %748 = vst [vmem:[%s3 + $0x8] sm:$0xff] %v732
  %749 = vst [vmem:[%s3 + $0x10] sm:$0xff] %v733
  %750 = vst [vmem:[%s3 + $0x18] sm:$0xff] %v734
  %751 = vst [vmem:[%s3 + $0x20] sm:$0xff] %v735
  %752 = vst [vmem:[%s3 + $0x28] sm:$0xff] %v736
  %753 = vst [vmem:[%s3 + $0x30] sm:$0xff] %v737
  %754 = vst [vmem:[%s3 + $0x38] sm:$0xff] %v738
  // Predicated region
  $region14: #{cnn_forward.3} parent=0 // pred_check
    _
  $region15: #{cnn_forward.3} parent=0 // pred_check_branch
    %756 = sbr.rel (0) target = $region17
  $region16: #{cnn_forward.3} parent=0 // pred_region
    _
  $region17: #{cnn_forward.3} parent=0 // pred_fallthru
    _
  // Predicated region
  $region18: #{cnn_forward.3} parent=0 // pred_check
    _
  $region19: #{cnn_forward.3} parent=0 // pred_check_branch
    %758 = sbr.rel (0) target = $region21
  $region20: #{cnn_forward.3} parent=0 // pred_region
    _
  $region21: #{cnn_forward.3} parent=0 // pred_fallthru
    _

// kernel: cnn_forward.4
$region0: #{cnn_forward.4}
  #allocation0 [shape = 'u32[]', space=smem, size = 0x4, offset = 0x4, fixed_abs, tag = 'smem constant byte address 0x4 - core index']
  #allocation1 [shape = 'u32[144,128]{1,0:T(1,128)}', space=vmem, size = 0x12000, scoped, tag = 'internal scratch']
  %s0 = inlined_call_operand.vmem [shape: bf16[4,288,128], index: 0, kind: input, shape index: {}]
  %s1 = inlined_call_operand.vmem [shape: bf16[64,288], index: 1, kind: input, shape index: {}]
  %s2 = inlined_call_operand.vmem [shape: f32[64,1], index: 2, kind: input, shape index: {}]
  %s3 = inlined_call_operand.vmem [shape: bf16[64,128], index: 3, kind: output, shape index: {}]
  %s4 = sld [smem:[#allocation0]]
  $region22: #{cnn_forward.4} parent=0
    _
  %s6 = ssub.s32 1, %s4
  %s7 = scalar_select 0, %s6, %s4
  // Predicated region
  $region2: #{cnn_forward.4} parent=0 // pred_check
    _
  $region3: #{cnn_forward.4} parent=0 // pred_check_branch
    %9 = sbr.rel (0) target = $region5
  $region4: #{cnn_forward.4} parent=0 // pred_region
    _
  $region5: #{cnn_forward.4} parent=0 // pred_fallthru
    _
  // Predicated region
  $region6: #{cnn_forward.4} parent=0 // pred_check
    _
  $region7: #{cnn_forward.4} parent=0 // pred_check_branch
    %11 = sbr.rel (0) target = $region9
  $region8: #{cnn_forward.4} parent=0 // pred_region
    _
  $region9: #{cnn_forward.4} parent=0 // pred_fallthru
    _
  // Predicated region
  $region10: #{cnn_forward.4} parent=0 // pred_check
    _
  $region11: #{cnn_forward.4} parent=0 // pred_check_branch
    %13 = sbr.rel (0) target = $region13
  $region12: #{cnn_forward.4} parent=0 // pred_region
    _
  $region13: #{cnn_forward.4} parent=0 // pred_fallthru
    _
  %v15 = vld [vmem:[%s1] sm:$0xff]
  %v16 = vld [vmem:[%s1 + $0x8] sm:$0xf]
  %v17 = vld [vmem:[%s1 + $0xc] sm:$0xff]
  %v18 = vld [vmem:[%s1 + $0x14] sm:$0xf]
  %v19 = vld [vmem:[%s1 + $0x18] sm:$0xff]
  %v20 = vld [vmem:[%s1 + $0x20] sm:$0xf]
  %v21 = vld [vmem:[%s1 + $0x24] sm:$0xff]
  %v22 = vld [vmem:[%s1 + $0x2c] sm:$0xf]
  %v23 = vld [vmem:[%s1 + $0x30] sm:$0xff]
  %v24 = vld [vmem:[%s1 + $0x38] sm:$0xf]
  %v25 = vld [vmem:[%s1 + $0x3c] sm:$0xff]
  %v26 = vld [vmem:[%s1 + $0x44] sm:$0xf]
  %v27 = vld [vmem:[%s1 + $0x48] sm:$0xff]
  %v28 = vld [vmem:[%s1 + $0x50] sm:$0xf]
  %v29 = vld [vmem:[%s1 + $0x54] sm:$0xff]
  %v30 = vld [vmem:[%s1 + $0x5c] sm:$0xf]
  %v31 = vld [vmem:[%s0] sm:$0xf]
  %v32 = vld [vmem:[%s0 + $0x4] sm:$0xf]
  %v33 = vld [vmem:[%s0 + $0x8] sm:$0xf]
  %v34 = vld [vmem:[%s0 + $0xc] sm:$0xf]
  %v35 = vld [vmem:[%s0 + $0x10] sm:$0xf]
  %v36 = vld [vmem:[%s0 + $0x14] sm:$0xf]
  %v37 = vld [vmem:[%s0 + $0x18] sm:$0xf]
  %v38 = vld [vmem:[%s0 + $0x1c] sm:$0xf]
  %v39 = vld [vmem:[%s0 + $0x20] sm:$0xf]
  %v40 = vld [vmem:[%s0 + $0x24] sm:$0xf]
  %v41 = vld [vmem:[%s0 + $0x28] sm:$0xf]
  %v42 = vld [vmem:[%s0 + $0x2c] sm:$0xf]
  %v43 = vld [vmem:[%s0 + $0x30] sm:$0xf]
  %v44 = vld [vmem:[%s0 + $0x34] sm:$0xf]
  %v45 = vld [vmem:[%s0 + $0x38] sm:$0xf]
  %v46 = vld [vmem:[%s0 + $0x3c] sm:$0xf]
  %v47 = vld [vmem:[%s0 + $0x40] sm:$0xf]
  %v48 = vld [vmem:[%s0 + $0x44] sm:$0xf]
  %v49 = vld [vmem:[%s0 + $0x48] sm:$0xf]
  %v50 = vld [vmem:[%s0 + $0x4c] sm:$0xf]
  %v51 = vld [vmem:[%s0 + $0x50] sm:$0xf]
  %v52 = vld [vmem:[%s0 + $0x54] sm:$0xf]
  %v53 = vld [vmem:[%s0 + $0x58] sm:$0xf]
  %v54 = vld [vmem:[%s0 + $0x5c] sm:$0xf]
  %v55 = vld [vmem:[%s0 + $0x60] sm:$0xf]
  %v56 = vld [vmem:[%s0 + $0x64] sm:$0xf]
  %v57 = vld [vmem:[%s0 + $0x68] sm:$0xf]
  %v58 = vld [vmem:[%s0 + $0x6c] sm:$0xf]
  %v59 = vld [vmem:[%s0 + $0x70] sm:$0xf]
  %v60 = vld [vmem:[%s0 + $0x74] sm:$0xf]
  %v61 = vld [vmem:[%s0 + $0x78] sm:$0xf]
  %v62 = vld [vmem:[%s0 + $0x7c] sm:$0xf]
  %v63 = vld [vmem:[%s0 + $0x80] sm:$0xf]
  %v64 = vld [vmem:[%s0 + $0x84] sm:$0xf]
  %v65 = vld [vmem:[%s0 + $0x88] sm:$0xf]
  %v66 = vld [vmem:[%s0 + $0x8c] sm:$0xf]
  %v83 = vunpack.c.l.b16 %v15
  %v84 = vunpack.c.h.b16 %v15
  %v85 = vunpack.c.l.b16 %v16
  %v86 = vunpack.c.l.b16 %v17
  %v87 = vunpack.c.h.b16 %v17
  %v88 = vunpack.c.l.b16 %v18
  %v89 = vunpack.c.l.b16 %v19
  %v90 = vunpack.c.h.b16 %v19
  %v91 = vunpack.c.l.b16 %v20
  %v92 = vunpack.c.l.b16 %v21
  %v93 = vunpack.c.h.b16 %v21
  %v94 = vunpack.c.l.b16 %v22
  %v95 = vunpack.c.l.b16 %v23
  %v96 = vunpack.c.h.b16 %v23
  %v97 = vunpack.c.l.b16 %v24
  %v98 = vunpack.c.l.b16 %v25
  %v99 = vunpack.c.h.b16 %v25
  %v100 = vunpack.c.l.b16 %v26
  %v101 = vunpack.c.l.b16 %v27
  %v102 = vunpack.c.h.b16 %v27
  %v103 = vunpack.c.l.b16 %v28
  %v104 = vunpack.c.l.b16 %v29
  %v105 = vunpack.c.h.b16 %v29
  %v106 = vunpack.c.l.b16 %v30
  %v107 = vpack.c.b16 %v86, %v83
  %v108 = vpack.c.b16 %v87, %v84
  %v109 = vpack.c.b16 %v88, %v85
  %v110 = vpack.c.b16 %v92, %v89
  %v111 = vpack.c.b16 %v93, %v90
  %v112 = vpack.c.b16 %v94, %v91
  %v113 = vpack.c.b16 %v98, %v95
  %v114 = vpack.c.b16 %v99, %v96
  %v115 = vpack.c.b16 %v100, %v97
  %v116 = vpack.c.b16 %v104, %v101
  %v117 = vpack.c.b16 %v105, %v102
  %v118 = vpack.c.b16 %v106, %v103
  %v163 = vunpack.c.l.b16 %v31
  %v164 = vunpack.c.l.b16 %v32
  %v165 = vunpack.c.l.b16 %v33
  %v166 = vunpack.c.l.b16 %v34
  %v167 = vunpack.c.l.b16 %v35
  %v168 = vunpack.c.l.b16 %v36
  %v169 = vunpack.c.l.b16 %v37
  %v170 = vunpack.c.l.b16 %v38
  %v171 = vunpack.c.l.b16 %v39
  %v172 = vunpack.c.l.b16 %v40
  %v173 = vunpack.c.l.b16 %v41
  %v174 = vunpack.c.l.b16 %v42
  %v175 = vunpack.c.l.b16 %v43
  %v176 = vunpack.c.l.b16 %v44
  %v177 = vunpack.c.l.b16 %v45
  %v178 = vunpack.c.l.b16 %v46
  %v179 = vunpack.c.l.b16 %v47
  %v180 = vunpack.c.l.b16 %v48
  %v181 = vunpack.c.l.b16 %v49
  %v182 = vunpack.c.l.b16 %v50
  %v183 = vunpack.c.l.b16 %v51
  %v184 = vunpack.c.l.b16 %v52
  %v185 = vunpack.c.l.b16 %v53
  %v186 = vunpack.c.l.b16 %v54
  %v187 = vunpack.c.l.b16 %v55
  %v188 = vunpack.c.l.b16 %v56
  %v189 = vunpack.c.l.b16 %v57
  %v190 = vunpack.c.l.b16 %v58
  %v191 = vunpack.c.l.b16 %v59
  %v192 = vunpack.c.l.b16 %v60
  %v193 = vunpack.c.l.b16 %v61
  %v194 = vunpack.c.l.b16 %v62
  %v195 = vunpack.c.l.b16 %v63
  %v196 = vunpack.c.l.b16 %v64
  %v197 = vunpack.c.l.b16 %v65
  %v198 = vunpack.c.l.b16 %v66
  %v199 = vpack.c.b16 %v164, %v163
  %v200 = vpack.c.b16 %v166, %v165
  %v201 = vpack.c.b16 %v168, %v167
  %v202 = vpack.c.b16 %v170, %v169
  %v203 = vpack.c.b16 %v172, %v171
  %v204 = vpack.c.b16 %v174, %v173
  %v205 = vpack.c.b16 %v176, %v175
  %v206 = vpack.c.b16 %v178, %v177
  %v207 = vpack.c.b16 %v180, %v179
  %v208 = vpack.c.b16 %v182, %v181
  %v209 = vpack.c.b16 %v184, %v183
  %v210 = vpack.c.b16 %v186, %v185
  %v211 = vpack.c.b16 %v188, %v187
  %v212 = vpack.c.b16 %v190, %v189
  %v213 = vpack.c.b16 %v192, %v191
  %v214 = vpack.c.b16 %v194, %v193
  %v215 = vpack.c.b16 %v196, %v195
  %v216 = vpack.c.b16 %v198, %v197
  %vm235 = vcmask 261120
  %v237 = vsel %vm235, %v109, 0
  %v240 = vsel %vm235, %v112, 0
  %v243 = vsel %vm235, %v115, 0
  %v246 = vsel %vm235, %v118, 0
  %248 = vmatprep.subr.bf16.mxu0 0
  %249 = vmatpush1.bf16.msra.mxu0 %v199
  %250 = vmatprep.subr.bf16.mxu0 0
  %251 = vmatpush1.bf16.msra.mxu0 %v200
  %252 = vmatprep.subr.bf16.mxu0 0
  %253 = vmatpush1.bf16.msra.mxu0 %v201
  %254 = vmatprep.subr.bf16.mxu0 0
  %255 = vmatpush1.bf16.msra.mxu0 %v202
  %256 = vmatprep.subr.bf16.mxu0 0
  %257 = vmatpush1.bf16.msra.mxu0 %v203
  %258 = vmatprep.subr.bf16.mxu0 0
  %259 = vmatpush1.bf16.msra.mxu0 %v204
  %260 = vmatprep.subr.bf16.mxu0 0
  %261 = vmatpush1.bf16.msra.mxu0 %v205
  %262 = vmatprep.subr.bf16.mxu0 0
  %263 = vmatpush1.bf16.msra.mxu0 %v206
  %264 = vmatprep.subr.bf16.mxu0 0
  %265 = vmatpush1.bf16.msra.mxu0 %v207
  %266 = vmatprep.subr.bf16.mxu0 0
  %267 = vmatpush1.bf16.msra.mxu0 %v208
  %268 = vmatprep.subr.bf16.mxu0 0
  %269 = vmatpush1.bf16.msra.mxu0 %v209
  %270 = vmatprep.subr.bf16.mxu0 0
  %271 = vmatpush1.bf16.msra.mxu0 %v210
  %272 = vmatprep.subr.bf16.mxu0 0
  %273 = vmatpush1.bf16.msra.mxu0 %v211
  %274 = vmatprep.subr.bf16.mxu0 0
  %275 = vmatpush1.bf16.msra.mxu0 %v212
  %276 = vmatprep.subr.bf16.mxu0 0
  %277 = vmatpush1.bf16.msra.mxu0 %v213
  %278 = vmatprep.subr.bf16.mxu0 0
  %279 = vmatpush1.bf16.msra.mxu0 %v214
  %280 = vmatprep.mubr.bf16.mxu0 %v108
  %281 = vmatmul.mubr.bf16.gmra.mrb[0].mxu0 %v107
  %v282 = vpop.f32.mrb[0].mxu0
  %v283 = vadd.f32 0.0, %v282
  %v284 = vpop.f32.mrb[0].mxu0
  %v285 = vpop.f32.mrb[0].mxu0
  %v286 = vadd.f32 0.0, %v285
  %v287 = vpop.f32.mrb[0].mxu0
  %288 = vmatprep.mubr.bf16.mxu0 %v111
  %289 = vmatmul.mubr.bf16.gmra.mrb[0].mxu0 %v110
  %v290 = vpop.f32.mrb[0].mxu0
  %v291 = vadd.f32 0.0, %v290
  %v292 = vpop.f32.mrb[0].mxu0
  %v293 = vpop.f32.mrb[0].mxu0
  %v294 = vadd.f32 0.0, %v293
  %v295 = vpop.f32.mrb[0].mxu0
  %296 = vmatprep.mubr.bf16.mxu0 %v114
  %297 = vmatmul.mubr.bf16.gmra.mrb[0].mxu0 %v113
  %v298 = vpop.f32.mrb[0].mxu0
  %v299 = vadd.f32 0.0, %v298
  %v300 = vpop.f32.mrb[0].mxu0
  %v301 = vpop.f32.mrb[0].mxu0
  %v302 = vadd.f32 0.0, %v301
  %v303 = vpop.f32.mrb[0].mxu0
  %304 = vmatprep.mubr.bf16.mxu0 %v117
  %305 = vmatmul.mubr.bf16.gmra.mrb[0].mxu0 %v116
  %v306 = vpop.f32.mrb[0].mxu0
  %v307 = vadd.f32 0.0, %v306
  %v308 = vpop.f32.mrb[0].mxu0
  %v309 = vpop.f32.mrb[0].mxu0
  %v310 = vadd.f32 0.0, %v309
  %v311 = vpop.f32.mrb[0].mxu0
  %312 = vdwg.mxu0
  %313 = vmatprep.subr.bf16.mxu0 0
  %314 = vmatpush1.bf16.msra.mxu0 %v215
  %315 = vmatprep.subr.bf16.mxu0 0
  %316 = vmatpush1.bf16.msra.mxu0 %v216
  %317 = vmatprep.subr.bf16.mxu0 0
  %318 = vmatpush1.bf16.msra.mxu0 0
  %319 = vmatprep.subr.bf16.mxu0 0
  %320 = vmatpush1.bf16.msra.mxu0 0
  %321 = vmatprep.subr.bf16.mxu0 0
  %322 = vmatpush1.bf16.msra.mxu0 0
  %323 = vmatprep.subr.bf16.mxu0 0
  %324 = vmatpush1.bf16.msra.mxu0 0
  %325 = vmatprep.subr.bf16.mxu0 0
  %326 = vmatpush1.bf16.msra.mxu0 0
  %327 = vmatprep.subr.bf16.mxu0 0
  %328 = vmatpush1.bf16.msra.mxu0 0
  %329 = vmatprep.subr.bf16.mxu0 0
  %330 = vmatpush1.bf16.msra.mxu0 0
  %331 = vmatprep.subr.bf16.mxu0 0
  %332 = vmatpush1.bf16.msra.mxu0 0
  %333 = vmatprep.subr.bf16.mxu0 0
  %334 = vmatpush1.bf16.msra.mxu0 0
  %335 = vmatprep.subr.bf16.mxu0 0
  %336 = vmatpush1.bf16.msra.mxu0 0
  %337 = vmatprep.subr.bf16.mxu0 0
  %338 = vmatpush1.bf16.msra.mxu0 0
  %339 = vmatprep.subr.bf16.mxu0 0
  %340 = vmatpush1.bf16.msra.mxu0 0
  %341 = vmatprep.subr.bf16.mxu0 0
  %342 = vmatpush1.bf16.msra.mxu0 0
  %343 = vmatprep.subr.bf16.mxu0 0
  %344 = vmatpush1.bf16.msra.mxu0 0
  %345 = vmatprep.mubr.bf16.mxu0 0
  %346 = vmatmul.mubr.bf16.gmra.mrb[0].mxu0 %v237
  %v347 = vpop.f32.mrb[0].mxu0
  %v348 = vadd.f32 %v283, %v347
  %v349 = vpop.f32.mrb[0].mxu0
  %v350 = vpop.f32.mrb[0].mxu0
  %v351 = vadd.f32 %v286, %v350
  %v352 = vpop.f32.mrb[0].mxu0
  %353 = vmatprep.mubr.bf16.mxu0 0
  %354 = vmatmul.mubr.bf16.gmra.mrb[0].mxu0 %v240
  %v355 = vpop.f32.mrb[0].mxu0
  %v356 = vadd.f32 %v291, %v355
  %v357 = vpop.f32.mrb[0].mxu0
  %v358 = vpop.f32.mrb[0].mxu0
  %v359 = vadd.f32 %v294, %v358
  %v360 = vpop.f32.mrb[0].mxu0
  %361 = vmatprep.mubr.bf16.mxu0 0
  %362 = vmatmul.mubr.bf16.gmra.mrb[0].mxu0 %v243
  %v363 = vpop.f32.mrb[0].mxu0
  %v364 = vadd.f32 %v299, %v363
  %v365 = vpop.f32.mrb[0].mxu0
  %v366 = vpop.f32.mrb[0].mxu0
  %v367 = vadd.f32 %v302, %v366
  %v368 = vpop.f32.mrb[0].mxu0
  %369 = vmatprep.mubr.bf16.mxu0 0
  %370 = vmatmul.mubr.bf16.gmra.mrb[0].mxu0 %v246
  %v371 = vpop.f32.mrb[0].mxu0
  %v372 = vadd.f32 %v307, %v371
  %v373 = vpop.f32.mrb[0].mxu0
  %v374 = vpop.f32.mrb[0].mxu0
  %v375 = vadd.f32 %v310, %v374
  %v376 = vpop.f32.mrb[0].mxu0
  %377 = vdwg.mxu0
  %s378 = scalar_lea.vmem %s0, 144
  %v379 = vld [vmem:[%s378] sm:$0xf]
  %v380 = vld [vmem:[%s378 + $0x4] sm:$0xf]
  %v381 = vld [vmem:[%s378 + $0x8] sm:$0xf]
  %v382 = vld [vmem:[%s378 + $0xc] sm:$0xf]
  %v383 = vld [vmem:[%s378 + $0x10] sm:$0xf]
  %v384 = vld [vmem:[%s378 + $0x14] sm:$0xf]
  %v385 = vld [vmem:[%s378 + $0x18] sm:$0xf]
  %v386 = vld [vmem:[%s378 + $0x1c] sm:$0xf]
  %v387 = vld [vmem:[%s378 + $0x20] sm:$0xf]
  %v388 = vld [vmem:[%s378 + $0x24] sm:$0xf]
  %v389 = vld [vmem:[%s378 + $0x28] sm:$0xf]
  %v390 = vld [vmem:[%s378 + $0x2c] sm:$0xf]
  %v391 = vld [vmem:[%s378 + $0x30] sm:$0xf]
  %v392 = vld [vmem:[%s378 + $0x34] sm:$0xf]
  %v393 = vld [vmem:[%s378 + $0x38] sm:$0xf]
  %v394 = vld [vmem:[%s378 + $0x3c] sm:$0xf]
  %v395 = vld [vmem:[%s378 + $0x40] sm:$0xf]
  %v396 = vld [vmem:[%s378 + $0x44] sm:$0xf]
  %v397 = vld [vmem:[%s378 + $0x48] sm:$0xf]
  %v398 = vld [vmem:[%s378 + $0x4c] sm:$0xf]
  %v399 = vld [vmem:[%s378 + $0x50] sm:$0xf]
  %v400 = vld [vmem:[%s378 + $0x54] sm:$0xf]
  %v401 = vld [vmem:[%s378 + $0x58] sm:$0xf]
  %v402 = vld [vmem:[%s378 + $0x5c] sm:$0xf]
  %v403 = vld [vmem:[%s378 + $0x60] sm:$0xf]
  %v404 = vld [vmem:[%s378 + $0x64] sm:$0xf]
  %v405 = vld [vmem:[%s378 + $0x68] sm:$0xf]
  %v406 = vld [vmem:[%s378 + $0x6c] sm:$0xf]
  %v407 = vld [vmem:[%s378 + $0x70] sm:$0xf]
  %v408 = vld [vmem:[%s378 + $0x74] sm:$0xf]
  %v409 = vld [vmem:[%s378 + $0x78] sm:$0xf]
  %v410 = vld [vmem:[%s378 + $0x7c] sm:$0xf]
  %v411 = vld [vmem:[%s378 + $0x80] sm:$0xf]
  %v412 = vld [vmem:[%s378 + $0x84] sm:$0xf]
  %v413 = vld [vmem:[%s378 + $0x88] sm:$0xf]
  %v414 = vld [vmem:[%s378 + $0x8c] sm:$0xf]
  %v451 = vunpack.c.l.b16 %v379
  %v452 = vunpack.c.l.b16 %v380
  %v453 = vunpack.c.l.b16 %v381
  %v454 = vunpack.c.l.b16 %v382
  %v455 = vunpack.c.l.b16 %v383
  %v456 = vunpack.c.l.b16 %v384
  %v457 = vunpack.c.l.b16 %v385
  %v458 = vunpack.c.l.b16 %v386
  %v459 = vunpack.c.l.b16 %v387
  %v460 = vunpack.c.l.b16 %v388
  %v461 = vunpack.c.l.b16 %v389
  %v462 = vunpack.c.l.b16 %v390
  %v463 = vunpack.c.l.b16 %v391
  %v464 = vunpack.c.l.b16 %v392
  %v465 = vunpack.c.l.b16 %v393
  %v466 = vunpack.c.l.b16 %v394
  %v467 = vunpack.c.l.b16 %v395
  %v468 = vunpack.c.l.b16 %v396
  %v469 = vunpack.c.l.b16 %v397
  %v470 = vunpack.c.l.b16 %v398
  %v471 = vunpack.c.l.b16 %v399
  %v472 = vunpack.c.l.b16 %v400
  %v473 = vunpack.c.l.b16 %v401
  %v474 = vunpack.c.l.b16 %v402
  %v475 = vunpack.c.l.b16 %v403
  %v476 = vunpack.c.l.b16 %v404
  %v477 = vunpack.c.l.b16 %v405
  %v478 = vunpack.c.l.b16 %v406
  %v479 = vunpack.c.l.b16 %v407
  %v480 = vunpack.c.l.b16 %v408
  %v481 = vunpack.c.l.b16 %v409
  %v482 = vunpack.c.l.b16 %v410
  %v483 = vunpack.c.l.b16 %v411
  %v484 = vunpack.c.l.b16 %v412
  %v485 = vunpack.c.l.b16 %v413
  %v486 = vunpack.c.l.b16 %v414
  %v487 = vpack.c.b16 %v452, %v451
  %v488 = vpack.c.b16 %v454, %v453
  %v489 = vpack.c.b16 %v456, %v455
  %v490 = vpack.c.b16 %v458, %v457
  %v491 = vpack.c.b16 %v460, %v459
  %v492 = vpack.c.b16 %v462, %v461
  %v493 = vpack.c.b16 %v464, %v463
  %v494 = vpack.c.b16 %v466, %v465
  %v495 = vpack.c.b16 %v468, %v467
  %v496 = vpack.c.b16 %v470, %v469
  %v497 = vpack.c.b16 %v472, %v471
  %v498 = vpack.c.b16 %v474, %v473
  %v499 = vpack.c.b16 %v476, %v475
  %v500 = vpack.c.b16 %v478, %v477
  %v501 = vpack.c.b16 %v480, %v479
  %v502 = vpack.c.b16 %v482, %v481
  %v503 = vpack.c.b16 %v484, %v483
  %v504 = vpack.c.b16 %v486, %v485
  %523 = vmatprep.subr.bf16.mxu0 0
  %524 = vmatpush1.bf16.msra.mxu0 %v487
  %525 = vmatprep.subr.bf16.mxu0 0
  %526 = vmatpush1.bf16.msra.mxu0 %v488
  %527 = vmatprep.subr.bf16.mxu0 0
  %528 = vmatpush1.bf16.msra.mxu0 %v489
  %529 = vmatprep.subr.bf16.mxu0 0
  %530 = vmatpush1.bf16.msra.mxu0 %v490
  %531 = vmatprep.subr.bf16.mxu0 0
  %532 = vmatpush1.bf16.msra.mxu0 %v491
  %533 = vmatprep.subr.bf16.mxu0 0
  %534 = vmatpush1.bf16.msra.mxu0 %v492
  %535 = vmatprep.subr.bf16.mxu0 0
  %536 = vmatpush1.bf16.msra.mxu0 %v493
  %537 = vmatprep.subr.bf16.mxu0 0
  %538 = vmatpush1.bf16.msra.mxu0 %v494
  %539 = vmatprep.subr.bf16.mxu0 0
  %540 = vmatpush1.bf16.msra.mxu0 %v495
  %541 = vmatprep.subr.bf16.mxu0 0
  %542 = vmatpush1.bf16.msra.mxu0 %v496
  %543 = vmatprep.subr.bf16.mxu0 0
  %544 = vmatpush1.bf16.msra.mxu0 %v497
  %545 = vmatprep.subr.bf16.mxu0 0
  %546 = vmatpush1.bf16.msra.mxu0 %v498
  %547 = vmatprep.subr.bf16.mxu0 0
  %548 = vmatpush1.bf16.msra.mxu0 %v499
  %549 = vmatprep.subr.bf16.mxu0 0
  %550 = vmatpush1.bf16.msra.mxu0 %v500
  %551 = vmatprep.subr.bf16.mxu0 0
  %552 = vmatpush1.bf16.msra.mxu0 %v501
  %553 = vmatprep.subr.bf16.mxu0 0
  %554 = vmatpush1.bf16.msra.mxu0 %v502
  %555 = vmatprep.mubr.bf16.mxu0 %v108
  %556 = vmatmul.mubr.bf16.gmra.mrb[0].mxu0 %v107
  %v557 = vpop.f32.mrb[0].mxu0
  %v558 = vadd.f32 0.0, %v557
  %v559 = vpop.f32.mrb[0].mxu0
  %v560 = vpop.f32.mrb[0].mxu0
  %v561 = vadd.f32 0.0, %v560
  %v562 = vpop.f32.mrb[0].mxu0
  %563 = vmatprep.mubr.bf16.mxu0 %v111
  %564 = vmatmul.mubr.bf16.gmra.mrb[0].mxu0 %v110
  %v565 = vpop.f32.mrb[0].mxu0
  %v566 = vadd.f32 0.0, %v565
  %v567 = vpop.f32.mrb[0].mxu0
  %v568 = vpop.f32.mrb[0].mxu0
  %v569 = vadd.f32 0.0, %v568
  %v570 = vpop.f32.mrb[0].mxu0
  %571 = vmatprep.mubr.bf16.mxu0 %v114
  %572 = vmatmul.mubr.bf16.gmra.mrb[0].mxu0 %v113
  %v573 = vpop.f32.mrb[0].mxu0
  %v574 = vadd.f32 0.0, %v573
  %v575 = vpop.f32.mrb[0].mxu0
  %v576 = vpop.f32.mrb[0].mxu0
  %v577 = vadd.f32 0.0, %v576
  %v578 = vpop.f32.mrb[0].mxu0
  %579 = vmatprep.mubr.bf16.mxu0 %v117
  %580 = vmatmul.mubr.bf16.gmra.mrb[0].mxu0 %v116
  %v581 = vpop.f32.mrb[0].mxu0
  %v582 = vadd.f32 0.0, %v581
  %v583 = vpop.f32.mrb[0].mxu0
  %v584 = vpop.f32.mrb[0].mxu0
  %v585 = vadd.f32 0.0, %v584
  %v586 = vpop.f32.mrb[0].mxu0
  %587 = vdwg.mxu0
  %588 = vmatprep.subr.bf16.mxu0 0
  %589 = vmatpush1.bf16.msra.mxu0 %v503
  %590 = vmatprep.subr.bf16.mxu0 0
  %591 = vmatpush1.bf16.msra.mxu0 %v504
  %592 = vmatprep.subr.bf16.mxu0 0
  %593 = vmatpush1.bf16.msra.mxu0 0
  %594 = vmatprep.subr.bf16.mxu0 0
  %595 = vmatpush1.bf16.msra.mxu0 0
  %596 = vmatprep.subr.bf16.mxu0 0
  %597 = vmatpush1.bf16.msra.mxu0 0
  %598 = vmatprep.subr.bf16.mxu0 0
  %599 = vmatpush1.bf16.msra.mxu0 0
  %600 = vmatprep.subr.bf16.mxu0 0
  %601 = vmatpush1.bf16.msra.mxu0 0
  %602 = vmatprep.subr.bf16.mxu0 0
  %603 = vmatpush1.bf16.msra.mxu0 0
  %604 = vmatprep.subr.bf16.mxu0 0
  %605 = vmatpush1.bf16.msra.mxu0 0
  %606 = vmatprep.subr.bf16.mxu0 0
  %607 = vmatpush1.bf16.msra.mxu0 0
  %608 = vmatprep.subr.bf16.mxu0 0
  %609 = vmatpush1.bf16.msra.mxu0 0
  %610 = vmatprep.subr.bf16.mxu0 0
  %611 = vmatpush1.bf16.msra.mxu0 0
  %612 = vmatprep.subr.bf16.mxu0 0
  %613 = vmatpush1.bf16.msra.mxu0 0
  %614 = vmatprep.subr.bf16.mxu0 0
  %615 = vmatpush1.bf16.msra.mxu0 0
  %616 = vmatprep.subr.bf16.mxu0 0
  %617 = vmatpush1.bf16.msra.mxu0 0
  %618 = vmatprep.subr.bf16.mxu0 0
  %619 = vmatpush1.bf16.msra.mxu0 0
  %620 = vmatprep.mubr.bf16.mxu0 0
  %621 = vmatmul.mubr.bf16.gmra.mrb[0].mxu0 %v237
  %v622 = vpop.f32.mrb[0].mxu0
  %v623 = vadd.f32 %v558, %v622
  %v624 = vpop.f32.mrb[0].mxu0
  %v625 = vpop.f32.mrb[0].mxu0
  %v626 = vadd.f32 %v561, %v625
  %v627 = vpop.f32.mrb[0].mxu0
  %628 = vmatprep.mubr.bf16.mxu0 0
  %629 = vmatmul.mubr.bf16.gmra.mrb[0].mxu0 %v240
  %v630 = vpop.f32.mrb[0].mxu0
  %v631 = vadd.f32 %v566, %v630
  %v632 = vpop.f32.mrb[0].mxu0
  %v633 = vpop.f32.mrb[0].mxu0
  %v634 = vadd.f32 %v569, %v633
  %v635 = vpop.f32.mrb[0].mxu0
  %636 = vmatprep.mubr.bf16.mxu0 0
  %637 = vmatmul.mubr.bf16.gmra.mrb[0].mxu0 %v243
  %v638 = vpop.f32.mrb[0].mxu0
  %v639 = vadd.f32 %v574, %v638
  %v640 = vpop.f32.mrb[0].mxu0
  %v641 = vpop.f32.mrb[0].mxu0
  %v642 = vadd.f32 %v577, %v641
  %v643 = vpop.f32.mrb[0].mxu0
  %644 = vmatprep.mubr.bf16.mxu0 0
  %645 = vmatmul.mubr.bf16.gmra.mrb[0].mxu0 %v246
  %v646 = vpop.f32.mrb[0].mxu0
  %v647 = vadd.f32 %v582, %v646
  %v648 = vpop.f32.mrb[0].mxu0
  %v649 = vpop.f32.mrb[0].mxu0
  %v650 = vadd.f32 %v585, %v649
  %v651 = vpop.f32.mrb[0].mxu0
  %652 = vdwg.mxu0
  %v653 = vmax.f32 %v348, %v623
  %v654 = vmax.f32 %v351, %v626
  %v655 = vmax.f32 %v356, %v631
  %v656 = vmax.f32 %v359, %v634
  %v657 = vmax.f32 %v364, %v639
  %v658 = vmax.f32 %v367, %v642
  %v659 = vmax.f32 %v372, %v647
  %v660 = vmax.f32 %v375, %v650
  %s661 = scalar_lea.vmem %s0, 288
  %v662 = vld [vmem:[%s661] sm:$0xf]
  %v663 = vld [vmem:[%s661 + $0x4] sm:$0xf]
  %v664 = vld [vmem:[%s661 + $0x8] sm:$0xf]
  %v665 = vld [vmem:[%s661 + $0xc] sm:$0xf]
  %v666 = vld [vmem:[%s661 + $0x10] sm:$0xf]
  %v667 = vld [vmem:[%s661 + $0x14] sm:$0xf]
  %v668 = vld [vmem:[%s661 + $0x18] sm:$0xf]
  %v669 = vld [vmem:[%s661 + $0x1c] sm:$0xf]
  %v670 = vld [vmem:[%s661 + $0x20] sm:$0xf]
  %v671 = vld [vmem:[%s661 + $0x24] sm:$0xf]
  %v672 = vld [vmem:[%s661 + $0x28] sm:$0xf]
  %v673 = vld [vmem:[%s661 + $0x2c] sm:$0xf]
  %v674 = vld [vmem:[%s661 + $0x30] sm:$0xf]
  %v675 = vld [vmem:[%s661 + $0x34] sm:$0xf]
  %v676 = vld [vmem:[%s661 + $0x38] sm:$0xf]
  %v677 = vld [vmem:[%s661 + $0x3c] sm:$0xf]
  %v678 = vld [vmem:[%s661 + $0x40] sm:$0xf]
  %v679 = vld [vmem:[%s661 + $0x44] sm:$0xf]
  %v680 = vld [vmem:[%s661 + $0x48] sm:$0xf]
  %v681 = vld [vmem:[%s661 + $0x4c] sm:$0xf]
  %v682 = vld [vmem:[%s661 + $0x50] sm:$0xf]
  %v683 = vld [vmem:[%s661 + $0x54] sm:$0xf]
  %v684 = vld [vmem:[%s661 + $0x58] sm:$0xf]
  %v685 = vld [vmem:[%s661 + $0x5c] sm:$0xf]
  %v686 = vld [vmem:[%s661 + $0x60] sm:$0xf]
  %v687 = vld [vmem:[%s661 + $0x64] sm:$0xf]
  %v688 = vld [vmem:[%s661 + $0x68] sm:$0xf]
  %v689 = vld [vmem:[%s661 + $0x6c] sm:$0xf]
  %v690 = vld [vmem:[%s661 + $0x70] sm:$0xf]
  %v691 = vld [vmem:[%s661 + $0x74] sm:$0xf]
  %v692 = vld [vmem:[%s661 + $0x78] sm:$0xf]
  %v693 = vld [vmem:[%s661 + $0x7c] sm:$0xf]
  %v694 = vld [vmem:[%s661 + $0x80] sm:$0xf]
  %v695 = vld [vmem:[%s661 + $0x84] sm:$0xf]
  %v696 = vld [vmem:[%s661 + $0x88] sm:$0xf]
  %v697 = vld [vmem:[%s661 + $0x8c] sm:$0xf]
  %v734 = vunpack.c.l.b16 %v662
  %v735 = vunpack.c.l.b16 %v663
  %v736 = vunpack.c.l.b16 %v664
  %v737 = vunpack.c.l.b16 %v665
  %v738 = vunpack.c.l.b16 %v666
  %v739 = vunpack.c.l.b16 %v667
  %v740 = vunpack.c.l.b16 %v668
  %v741 = vunpack.c.l.b16 %v669
  %v742 = vunpack.c.l.b16 %v670
  %v743 = vunpack.c.l.b16 %v671
  %v744 = vunpack.c.l.b16 %v672
  %v745 = vunpack.c.l.b16 %v673
  %v746 = vunpack.c.l.b16 %v674
  %v747 = vunpack.c.l.b16 %v675
  %v748 = vunpack.c.l.b16 %v676
  %v749 = vunpack.c.l.b16 %v677
  %v750 = vunpack.c.l.b16 %v678
  %v751 = vunpack.c.l.b16 %v679
  %v752 = vunpack.c.l.b16 %v680
  %v753 = vunpack.c.l.b16 %v681
  %v754 = vunpack.c.l.b16 %v682
  %v755 = vunpack.c.l.b16 %v683
  %v756 = vunpack.c.l.b16 %v684
  %v757 = vunpack.c.l.b16 %v685
  %v758 = vunpack.c.l.b16 %v686
  %v759 = vunpack.c.l.b16 %v687
  %v760 = vunpack.c.l.b16 %v688
  %v761 = vunpack.c.l.b16 %v689
  %v762 = vunpack.c.l.b16 %v690
  %v763 = vunpack.c.l.b16 %v691
  %v764 = vunpack.c.l.b16 %v692
  %v765 = vunpack.c.l.b16 %v693
  %v766 = vunpack.c.l.b16 %v694
  %v767 = vunpack.c.l.b16 %v695
  %v768 = vunpack.c.l.b16 %v696
  %v769 = vunpack.c.l.b16 %v697
  %v770 = vpack.c.b16 %v735, %v734
  %v771 = vpack.c.b16 %v737, %v736
  %v772 = vpack.c.b16 %v739, %v738
  %v773 = vpack.c.b16 %v741, %v740
  %v774 = vpack.c.b16 %v743, %v742
  %v775 = vpack.c.b16 %v745, %v744
  %v776 = vpack.c.b16 %v747, %v746
  %v777 = vpack.c.b16 %v749, %v748
  %v778 = vpack.c.b16 %v751, %v750
  %v779 = vpack.c.b16 %v753, %v752
  %v780 = vpack.c.b16 %v755, %v754
  %v781 = vpack.c.b16 %v757, %v756
  %v782 = vpack.c.b16 %v759, %v758
  %v783 = vpack.c.b16 %v761, %v760
  %v784 = vpack.c.b16 %v763, %v762
  %v785 = vpack.c.b16 %v765, %v764
  %v786 = vpack.c.b16 %v767, %v766
  %v787 = vpack.c.b16 %v769, %v768
  %806 = vmatprep.subr.bf16.mxu0 0
  %807 = vmatpush1.bf16.msra.mxu0 %v770
  %808 = vmatprep.subr.bf16.mxu0 0
  %809 = vmatpush1.bf16.msra.mxu0 %v771
  %810 = vmatprep.subr.bf16.mxu0 0
  %811 = vmatpush1.bf16.msra.mxu0 %v772
  %812 = vmatprep.subr.bf16.mxu0 0
  %813 = vmatpush1.bf16.msra.mxu0 %v773
  %814 = vmatprep.subr.bf16.mxu0 0
  %815 = vmatpush1.bf16.msra.mxu0 %v774
  %816 = vmatprep.subr.bf16.mxu0 0
  %817 = vmatpush1.bf16.msra.mxu0 %v775
  %818 = vmatprep.subr.bf16.mxu0 0
  %819 = vmatpush1.bf16.msra.mxu0 %v776
  %820 = vmatprep.subr.bf16.mxu0 0
  %821 = vmatpush1.bf16.msra.mxu0 %v777
  %822 = vmatprep.subr.bf16.mxu0 0
  %823 = vmatpush1.bf16.msra.mxu0 %v778
  %824 = vmatprep.subr.bf16.mxu0 0
  %825 = vmatpush1.bf16.msra.mxu0 %v779
  %826 = vmatprep.subr.bf16.mxu0 0
  %827 = vmatpush1.bf16.msra.mxu0 %v780
  %828 = vmatprep.subr.bf16.mxu0 0
  %829 = vmatpush1.bf16.msra.mxu0 %v781
  %830 = vmatprep.subr.bf16.mxu0 0
  %831 = vmatpush1.bf16.msra.mxu0 %v782
  %832 = vmatprep.subr.bf16.mxu0 0
  %833 = vmatpush1.bf16.msra.mxu0 %v783
  %834 = vmatprep.subr.bf16.mxu0 0
  %835 = vmatpush1.bf16.msra.mxu0 %v784
  %836 = vmatprep.subr.bf16.mxu0 0
  %837 = vmatpush1.bf16.msra.mxu0 %v785
  %838 = vmatprep.mubr.bf16.mxu0 %v108
  %839 = vmatmul.mubr.bf16.gmra.mrb[0].mxu0 %v107
  %v840 = vpop.f32.mrb[0].mxu0
  %v841 = vadd.f32 0.0, %v840
  %v842 = vpop.f32.mrb[0].mxu0
  %v843 = vpop.f32.mrb[0].mxu0
  %v844 = vadd.f32 0.0, %v843
  %v845 = vpop.f32.mrb[0].mxu0
  %846 = vmatprep.mubr.bf16.mxu0 %v111
  %847 = vmatmul.mubr.bf16.gmra.mrb[0].mxu0 %v110
  %v848 = vpop.f32.mrb[0].mxu0
  %v849 = vadd.f32 0.0, %v848
  %v850 = vpop.f32.mrb[0].mxu0
  %v851 = vpop.f32.mrb[0].mxu0
  %v852 = vadd.f32 0.0, %v851
  %v853 = vpop.f32.mrb[0].mxu0
  %854 = vmatprep.mubr.bf16.mxu0 %v114
  %855 = vmatmul.mubr.bf16.gmra.mrb[0].mxu0 %v113
  %v856 = vpop.f32.mrb[0].mxu0
  %v857 = vadd.f32 0.0, %v856
  %v858 = vpop.f32.mrb[0].mxu0
  %v859 = vpop.f32.mrb[0].mxu0
  %v860 = vadd.f32 0.0, %v859
  %v861 = vpop.f32.mrb[0].mxu0
  %862 = vmatprep.mubr.bf16.mxu0 %v117
  %863 = vmatmul.mubr.bf16.gmra.mrb[0].mxu0 %v116
  %v864 = vpop.f32.mrb[0].mxu0
  %v865 = vadd.f32 0.0, %v864
  %v866 = vpop.f32.mrb[0].mxu0
  %v867 = vpop.f32.mrb[0].mxu0
  %v868 = vadd.f32 0.0, %v867
  %v869 = vpop.f32.mrb[0].mxu0
  %870 = vdwg.mxu0
  %871 = vmatprep.subr.bf16.mxu0 0
  %872 = vmatpush1.bf16.msra.mxu0 %v786
  %873 = vmatprep.subr.bf16.mxu0 0
  %874 = vmatpush1.bf16.msra.mxu0 %v787
  %875 = vmatprep.subr.bf16.mxu0 0
  %876 = vmatpush1.bf16.msra.mxu0 0
  %877 = vmatprep.subr.bf16.mxu0 0
  %878 = vmatpush1.bf16.msra.mxu0 0
  %879 = vmatprep.subr.bf16.mxu0 0
  %880 = vmatpush1.bf16.msra.mxu0 0
  %881 = vmatprep.subr.bf16.mxu0 0
  %882 = vmatpush1.bf16.msra.mxu0 0
  %883 = vmatprep.subr.bf16.mxu0 0
  %884 = vmatpush1.bf16.msra.mxu0 0
  %885 = vmatprep.subr.bf16.mxu0 0
  %886 = vmatpush1.bf16.msra.mxu0 0
  %887 = vmatprep.subr.bf16.mxu0 0
  %888 = vmatpush1.bf16.msra.mxu0 0
  %889 = vmatprep.subr.bf16.mxu0 0
  %890 = vmatpush1.bf16.msra.mxu0 0
  %891 = vmatprep.subr.bf16.mxu0 0
  %892 = vmatpush1.bf16.msra.mxu0 0
  %893 = vmatprep.subr.bf16.mxu0 0
  %894 = vmatpush1.bf16.msra.mxu0 0
  %895 = vmatprep.subr.bf16.mxu0 0
  %896 = vmatpush1.bf16.msra.mxu0 0
  %897 = vmatprep.subr.bf16.mxu0 0
  %898 = vmatpush1.bf16.msra.mxu0 0
  %899 = vmatprep.subr.bf16.mxu0 0
  %900 = vmatpush1.bf16.msra.mxu0 0
  %901 = vmatprep.subr.bf16.mxu0 0
  %902 = vmatpush1.bf16.msra.mxu0 0
  %903 = vmatprep.mubr.bf16.mxu0 0
  %904 = vmatmul.mubr.bf16.gmra.mrb[0].mxu0 %v237
  %v905 = vpop.f32.mrb[0].mxu0
  %v906 = vadd.f32 %v841, %v905
  %v907 = vpop.f32.mrb[0].mxu0
  %v908 = vpop.f32.mrb[0].mxu0
  %v909 = vadd.f32 %v844, %v908
  %v910 = vpop.f32.mrb[0].mxu0
  %911 = vmatprep.mubr.bf16.mxu0 0
  %912 = vmatmul.mubr.bf16.gmra.mrb[0].mxu0 %v240
  %v913 = vpop.f32.mrb[0].mxu0
  %v914 = vadd.f32 %v849, %v913
  %v915 = vpop.f32.mrb[0].mxu0
  %v916 = vpop.f32.mrb[0].mxu0
  %v917 = vadd.f32 %v852, %v916
  %v918 = vpop.f32.mrb[0].mxu0
  %919 = vmatprep.mubr.bf16.mxu0 0
  %920 = vmatmul.mubr.bf16.gmra.mrb[0].mxu0 %v243
  %v921 = vpop.f32.mrb[0].mxu0
  %v922 = vadd.f32 %v857, %v921
  %v923 = vpop.f32.mrb[0].mxu0
  %v924 = vpop.f32.mrb[0].mxu0
  %v925 = vadd.f32 %v860, %v924
  %v926 = vpop.f32.mrb[0].mxu0
  %927 = vmatprep.mubr.bf16.mxu0 0
  %928 = vmatmul.mubr.bf16.gmra.mrb[0].mxu0 %v246
  %v929 = vpop.f32.mrb[0].mxu0
  %v930 = vadd.f32 %v865, %v929
  %v931 = vpop.f32.mrb[0].mxu0
  %v932 = vpop.f32.mrb[0].mxu0
  %v933 = vadd.f32 %v868, %v932
  %v934 = vpop.f32.mrb[0].mxu0
  %935 = vdwg.mxu0
  %v936 = vmax.f32 %v653, %v906
  %v937 = vmax.f32 %v654, %v909
  %v938 = vmax.f32 %v655, %v914
  %v939 = vmax.f32 %v656, %v917
  %v940 = vmax.f32 %v657, %v922
  %v941 = vmax.f32 %v658, %v925
  %v942 = vmax.f32 %v659, %v930
  %v943 = vmax.f32 %v660, %v933
  %s944 = scalar_lea.vmem %s0, 432
  %v945 = vld [vmem:[%s944] sm:$0xf]
  %v946 = vld [vmem:[%s944 + $0x4] sm:$0xf]
  %v947 = vld [vmem:[%s944 + $0x8] sm:$0xf]
  %v948 = vld [vmem:[%s944 + $0xc] sm:$0xf]
  %v949 = vld [vmem:[%s944 + $0x10] sm:$0xf]
  %v950 = vld [vmem:[%s944 + $0x14] sm:$0xf]
  %v951 = vld [vmem:[%s944 + $0x18] sm:$0xf]
  %v952 = vld [vmem:[%s944 + $0x1c] sm:$0xf]
  %v953 = vld [vmem:[%s944 + $0x20] sm:$0xf]
  %v954 = vld [vmem:[%s944 + $0x24] sm:$0xf]
  %v955 = vld [vmem:[%s944 + $0x28] sm:$0xf]
  %v956 = vld [vmem:[%s944 + $0x2c] sm:$0xf]
  %v957 = vld [vmem:[%s944 + $0x30] sm:$0xf]
  %v958 = vld [vmem:[%s944 + $0x34] sm:$0xf]
  %v959 = vld [vmem:[%s944 + $0x38] sm:$0xf]
  %v960 = vld [vmem:[%s944 + $0x3c] sm:$0xf]
  %v961 = vld [vmem:[%s944 + $0x40] sm:$0xf]
  %v962 = vld [vmem:[%s944 + $0x44] sm:$0xf]
  %v963 = vld [vmem:[%s944 + $0x48] sm:$0xf]
  %v964 = vld [vmem:[%s944 + $0x4c] sm:$0xf]
  %v965 = vld [vmem:[%s944 + $0x50] sm:$0xf]
  %v966 = vld [vmem:[%s944 + $0x54] sm:$0xf]
  %v967 = vld [vmem:[%s944 + $0x58] sm:$0xf]
  %v968 = vld [vmem:[%s944 + $0x5c] sm:$0xf]
  %v969 = vld [vmem:[%s944 + $0x60] sm:$0xf]
  %v970 = vld [vmem:[%s944 + $0x64] sm:$0xf]
  %v971 = vld [vmem:[%s944 + $0x68] sm:$0xf]
  %v972 = vld [vmem:[%s944 + $0x6c] sm:$0xf]
  %v973 = vld [vmem:[%s944 + $0x70] sm:$0xf]
  %v974 = vld [vmem:[%s944 + $0x74] sm:$0xf]
  %v975 = vld [vmem:[%s944 + $0x78] sm:$0xf]
  %v976 = vld [vmem:[%s944 + $0x7c] sm:$0xf]
  %v977 = vld [vmem:[%s944 + $0x80] sm:$0xf]
  %v978 = vld [vmem:[%s944 + $0x84] sm:$0xf]
  %v979 = vld [vmem:[%s944 + $0x88] sm:$0xf]
  %v980 = vld [vmem:[%s944 + $0x8c] sm:$0xf]
  %v1017 = vunpack.c.l.b16 %v945
  %v1018 = vunpack.c.l.b16 %v946
  %v1019 = vunpack.c.l.b16 %v947
  %v1020 = vunpack.c.l.b16 %v948
  %v1021 = vunpack.c.l.b16 %v949
  %v1022 = vunpack.c.l.b16 %v950
  %v1023 = vunpack.c.l.b16 %v951
  %v1024 = vunpack.c.l.b16 %v952
  %v1025 = vunpack.c.l.b16 %v953
  %v1026 = vunpack.c.l.b16 %v954
  %v1027 = vunpack.c.l.b16 %v955
  %v1028 = vunpack.c.l.b16 %v956
  %v1029 = vunpack.c.l.b16 %v957
  %v1030 = vunpack.c.l.b16 %v958
  %v1031 = vunpack.c.l.b16 %v959
  %v1032 = vunpack.c.l.b16 %v960
  %v1033 = vunpack.c.l.b16 %v961
  %v1034 = vunpack.c.l.b16 %v962
  %v1035 = vunpack.c.l.b16 %v963
  %v1036 = vunpack.c.l.b16 %v964
  %v1037 = vunpack.c.l.b16 %v965
  %v1038 = vunpack.c.l.b16 %v966
  %v1039 = vunpack.c.l.b16 %v967
  %v1040 = vunpack.c.l.b16 %v968
  %v1041 = vunpack.c.l.b16 %v969
  %v1042 = vunpack.c.l.b16 %v970
  %v1043 = vunpack.c.l.b16 %v971
  %v1044 = vunpack.c.l.b16 %v972
  %v1045 = vunpack.c.l.b16 %v973
  %v1046 = vunpack.c.l.b16 %v974
  %v1047 = vunpack.c.l.b16 %v975
  %v1048 = vunpack.c.l.b16 %v976
  %v1049 = vunpack.c.l.b16 %v977
  %v1050 = vunpack.c.l.b16 %v978
  %v1051 = vunpack.c.l.b16 %v979
  %v1052 = vunpack.c.l.b16 %v980
  %v1053 = vpack.c.b16 %v1018, %v1017
  %v1054 = vpack.c.b16 %v1020, %v1019
  %v1055 = vpack.c.b16 %v1022, %v1021
  %v1056 = vpack.c.b16 %v1024, %v1023
  %v1057 = vpack.c.b16 %v1026, %v1025
  %v1058 = vpack.c.b16 %v1028, %v1027
  %v1059 = vpack.c.b16 %v1030, %v1029
  %v1060 = vpack.c.b16 %v1032, %v1031
  %v1061 = vpack.c.b16 %v1034, %v1033
  %v1062 = vpack.c.b16 %v1036, %v1035
  %v1063 = vpack.c.b16 %v1038, %v1037
  %v1064 = vpack.c.b16 %v1040, %v1039
  %v1065 = vpack.c.b16 %v1042, %v1041
  %v1066 = vpack.c.b16 %v1044, %v1043
  %v1067 = vpack.c.b16 %v1046, %v1045
  %v1068 = vpack.c.b16 %v1048, %v1047
  %v1069 = vpack.c.b16 %v1050, %v1049
  %v1070 = vpack.c.b16 %v1052, %v1051
  %1089 = vmatprep.subr.bf16.mxu0 0
  %1090 = vmatpush1.bf16.msra.mxu0 %v1053
  %1091 = vmatprep.subr.bf16.mxu0 0
  %1092 = vmatpush1.bf16.msra.mxu0 %v1054
  %1093 = vmatprep.subr.bf16.mxu0 0
  %1094 = vmatpush1.bf16.msra.mxu0 %v1055
  %1095 = vmatprep.subr.bf16.mxu0 0
  %1096 = vmatpush1.bf16.msra.mxu0 %v1056
  %1097 = vmatprep.subr.bf16.mxu0 0
  %1098 = vmatpush1.bf16.msra.mxu0 %v1057
  %1099 = vmatprep.subr.bf16.mxu0 0
  %1100 = vmatpush1.bf16.msra.mxu0 %v1058
  %1101 = vmatprep.subr.bf16.mxu0 0
  %1102 = vmatpush1.bf16.msra.mxu0 %v1059
  %1103 = vmatprep.subr.bf16.mxu0 0
  %1104 = vmatpush1.bf16.msra.mxu0 %v1060
  %1105 = vmatprep.subr.bf16.mxu0 0
  %1106 = vmatpush1.bf16.msra.mxu0 %v1061
  %1107 = vmatprep.subr.bf16.mxu0 0
  %1108 = vmatpush1.bf16.msra.mxu0 %v1062
  %1109 = vmatprep.subr.bf16.mxu0 0
  %1110 = vmatpush1.bf16.msra.mxu0 %v1063
  %1111 = vmatprep.subr.bf16.mxu0 0
  %1112 = vmatpush1.bf16.msra.mxu0 %v1064
  %1113 = vmatprep.subr.bf16.mxu0 0
  %1114 = vmatpush1.bf16.msra.mxu0 %v1065
  %1115 = vmatprep.subr.bf16.mxu0 0
  %1116 = vmatpush1.bf16.msra.mxu0 %v1066
  %1117 = vmatprep.subr.bf16.mxu0 0
  %1118 = vmatpush1.bf16.msra.mxu0 %v1067
  %1119 = vmatprep.subr.bf16.mxu0 0
  %1120 = vmatpush1.bf16.msra.mxu0 %v1068
  %1121 = vmatprep.mubr.bf16.mxu0 %v108
  %1122 = vmatmul.mubr.bf16.gmra.mrb[0].mxu0 %v107
  %v1123 = vpop.f32.mrb[0].mxu0
  %v1124 = vadd.f32 0.0, %v1123
  %v1125 = vpop.f32.mrb[0].mxu0
  %v1126 = vpop.f32.mrb[0].mxu0
  %v1127 = vadd.f32 0.0, %v1126
  %v1128 = vpop.f32.mrb[0].mxu0
  %1129 = vmatprep.mubr.bf16.mxu0 %v111
  %1130 = vmatmul.mubr.bf16.gmra.mrb[0].mxu0 %v110
  %v1131 = vpop.f32.mrb[0].mxu0
  %v1132 = vadd.f32 0.0, %v1131
  %v1133 = vpop.f32.mrb[0].mxu0
  %v1134 = vpop.f32.mrb[0].mxu0
  %v1135 = vadd.f32 0.0, %v1134
  %v1136 = vpop.f32.mrb[0].mxu0
  %1137 = vmatprep.mubr.bf16.mxu0 %v114
  %1138 = vmatmul.mubr.bf16.gmra.mrb[0].mxu0 %v113
  %v1139 = vpop.f32.mrb[0].mxu0
  %v1140 = vadd.f32 0.0, %v1139
  %v1141 = vpop.f32.mrb[0].mxu0
  %v1142 = vpop.f32.mrb[0].mxu0
  %v1143 = vadd.f32 0.0, %v1142
  %v1144 = vpop.f32.mrb[0].mxu0
  %1145 = vmatprep.mubr.bf16.mxu0 %v117
  %1146 = vmatmul.mubr.bf16.gmra.mrb[0].mxu0 %v116
  %v1147 = vpop.f32.mrb[0].mxu0
  %v1148 = vadd.f32 0.0, %v1147
  %v1149 = vpop.f32.mrb[0].mxu0
  %v1150 = vpop.f32.mrb[0].mxu0
  %v1151 = vadd.f32 0.0, %v1150
  %v1152 = vpop.f32.mrb[0].mxu0
  %1153 = vdwg.mxu0
  %1154 = vmatprep.subr.bf16.mxu0 0
  %1155 = vmatpush1.bf16.msra.mxu0 %v1069
  %1156 = vmatprep.subr.bf16.mxu0 0
  %1157 = vmatpush1.bf16.msra.mxu0 %v1070
  %1158 = vmatprep.subr.bf16.mxu0 0
  %1159 = vmatpush1.bf16.msra.mxu0 0
  %1160 = vmatprep.subr.bf16.mxu0 0
  %1161 = vmatpush1.bf16.msra.mxu0 0
  %1162 = vmatprep.subr.bf16.mxu0 0
  %1163 = vmatpush1.bf16.msra.mxu0 0
  %1164 = vmatprep.subr.bf16.mxu0 0
  %1165 = vmatpush1.bf16.msra.mxu0 0
  %1166 = vmatprep.subr.bf16.mxu0 0
  %1167 = vmatpush1.bf16.msra.mxu0 0
  %1168 = vmatprep.subr.bf16.mxu0 0
  %1169 = vmatpush1.bf16.msra.mxu0 0
  %1170 = vmatprep.subr.bf16.mxu0 0
  %1171 = vmatpush1.bf16.msra.mxu0 0
  %1172 = vmatprep.subr.bf16.mxu0 0
  %1173 = vmatpush1.bf16.msra.mxu0 0
  %1174 = vmatprep.subr.bf16.mxu0 0
  %1175 = vmatpush1.bf16.msra.mxu0 0
  %1176 = vmatprep.subr.bf16.mxu0 0
  %1177 = vmatpush1.bf16.msra.mxu0 0
  %1178 = vmatprep.subr.bf16.mxu0 0
  %1179 = vmatpush1.bf16.msra.mxu0 0
  %1180 = vmatprep.subr.bf16.mxu0 0
  %1181 = vmatpush1.bf16.msra.mxu0 0
  %1182 = vmatprep.subr.bf16.mxu0 0
  %1183 = vmatpush1.bf16.msra.mxu0 0
  %1184 = vmatprep.subr.bf16.mxu0 0
  %1185 = vmatpush1.bf16.msra.mxu0 0
  %1186 = vmatprep.mubr.bf16.mxu0 0
  %1187 = vmatmul.mubr.bf16.gmra.mrb[0].mxu0 %v237
  %v1188 = vpop.f32.mrb[0].mxu0
  %v1189 = vadd.f32 %v1124, %v1188
  %v1190 = vpop.f32.mrb[0].mxu0
  %v1191 = vpop.f32.mrb[0].mxu0
  %v1192 = vadd.f32 %v1127, %v1191
  %v1193 = vpop.f32.mrb[0].mxu0
  %1194 = vmatprep.mubr.bf16.mxu0 0
  %1195 = vmatmul.mubr.bf16.gmra.mrb[0].mxu0 %v240
  %v1196 = vpop.f32.mrb[0].mxu0
  %v1197 = vadd.f32 %v1132, %v1196
  %v1198 = vpop.f32.mrb[0].mxu0
  %v1199 = vpop.f32.mrb[0].mxu0
  %v1200 = vadd.f32 %v1135, %v1199
  %v1201 = vpop.f32.mrb[0].mxu0
  %1202 = vmatprep.mubr.bf16.mxu0 0
  %1203 = vmatmul.mubr.bf16.gmra.mrb[0].mxu0 %v243
  %v1204 = vpop.f32.mrb[0].mxu0
  %v1205 = vadd.f32 %v1140, %v1204
  %v1206 = vpop.f32.mrb[0].mxu0
  %v1207 = vpop.f32.mrb[0].mxu0
  %v1208 = vadd.f32 %v1143, %v1207
  %v1209 = vpop.f32.mrb[0].mxu0
  %1210 = vmatprep.mubr.bf16.mxu0 0
  %1211 = vmatmul.mubr.bf16.gmra.mrb[0].mxu0 %v246
  %v1212 = vpop.f32.mrb[0].mxu0
  %v1213 = vadd.f32 %v1148, %v1212
  %v1214 = vpop.f32.mrb[0].mxu0
  %v1215 = vpop.f32.mrb[0].mxu0
  %v1216 = vadd.f32 %v1151, %v1215
  %v1217 = vpop.f32.mrb[0].mxu0
  %1218 = vdwg.mxu0
  %v1219 = vmax.f32 %v936, %v1189
  %v1220 = vmax.f32 %v937, %v1192
  %v1221 = vmax.f32 %v938, %v1197
  %v1222 = vmax.f32 %v939, %v1200
  %v1223 = vmax.f32 %v940, %v1205
  %v1224 = vmax.f32 %v941, %v1208
  %v1225 = vmax.f32 %v942, %v1213
  %v1226 = vmax.f32 %v943, %v1216
  %v1227 = vld [vmem:[%s2] sm:$0xff]
  %v1228 = vld [vmem:[%s2 + $0x8] sm:$0xff]
  %v1229 = vld [vmem:[%s2 + $0x10] sm:$0xff]
  %v1230 = vld [vmem:[%s2 + $0x18] sm:$0xff]
  %v1231 = vld [vmem:[%s2 + $0x20] sm:$0xff]
  %v1232 = vld [vmem:[%s2 + $0x28] sm:$0xff]
  %v1233 = vld [vmem:[%s2 + $0x30] sm:$0xff]
  %v1234 = vld [vmem:[%s2 + $0x38] sm:$0xff]
  %1236 = vset.pattern.permute.xlu0 0
  %1237 = vperm.xlu0 %1236, %v1227
  %v1238 = vpop.permute.xlu0 %1237
  %1241 = vset.pattern.permute.xlu0 0
  %1242 = vperm.xlu0 %1241, %v1228
  %v1243 = vpop.permute.xlu0 %1242
  %1246 = vset.pattern.permute.xlu0 0
  %1247 = vperm.xlu0 %1246, %v1229
  %v1248 = vpop.permute.xlu0 %1247
  %1251 = vset.pattern.permute.xlu0 0
  %1252 = vperm.xlu0 %1251, %v1230
  %v1253 = vpop.permute.xlu0 %1252
  %1256 = vset.pattern.permute.xlu0 0
  %1257 = vperm.xlu0 %1256, %v1231
  %v1258 = vpop.permute.xlu0 %1257
  %1261 = vset.pattern.permute.xlu0 0
  %1262 = vperm.xlu0 %1261, %v1232
  %v1263 = vpop.permute.xlu0 %1262
  %1266 = vset.pattern.permute.xlu0 0
  %1267 = vperm.xlu0 %1266, %v1233
  %v1268 = vpop.permute.xlu0 %1267
  %1271 = vset.pattern.permute.xlu0 0
  %1272 = vperm.xlu0 %1271, %v1234
  %v1273 = vpop.permute.xlu0 %1272
  %v1275 = vadd.f32 %v1219, %v1238
  %v1276 = vadd.f32 %v1220, %v1243
  %v1277 = vadd.f32 %v1221, %v1248
  %v1278 = vadd.f32 %v1222, %v1253
  %v1279 = vadd.f32 %v1223, %v1258
  %v1280 = vadd.f32 %v1224, %v1263
  %v1281 = vadd.f32 %v1225, %v1268
  %v1282 = vadd.f32 %v1226, %v1273
  %v1283 = vmax.f32 %v1275, 0.0
  %v1284 = vmax.f32 %v1276, 0.0
  %v1285 = vmax.f32 %v1277, 0.0
  %v1286 = vmax.f32 %v1278, 0.0
  %v1287 = vmax.f32 %v1279, 0.0
  %v1288 = vmax.f32 %v1280, 0.0
  %v1289 = vmax.f32 %v1281, 0.0
  %v1290 = vmax.f32 %v1282, 0.0
  %v1291 = vpack.c.bf16 %v1284, %v1283
  %v1292 = vpack.c.bf16 %v1286, %v1285
  %v1293 = vpack.c.bf16 %v1288, %v1287
  %v1294 = vpack.c.bf16 %v1290, %v1289
  %v1299 = vunpack.c.l.b16 %v1291
  %v1300 = vunpack.c.h.b16 %v1291
  %v1301 = vunpack.c.l.b16 %v1292
  %v1302 = vunpack.c.h.b16 %v1292
  %v1303 = vunpack.c.l.b16 %v1293
  %v1304 = vunpack.c.h.b16 %v1293
  %v1305 = vunpack.c.l.b16 %v1294
  %v1306 = vunpack.c.h.b16 %v1294
  %v1307 = vpack.c.b16 %v1299, %v1299
  %v1308 = vpack.c.b16 %v1300, %v1300
  %v1309 = vpack.c.b16 %v1301, %v1301
  %v1310 = vpack.c.b16 %v1302, %v1302
  %v1311 = vpack.c.b16 %v1303, %v1303
  %v1312 = vpack.c.b16 %v1304, %v1304
  %v1313 = vpack.c.b16 %v1305, %v1305
  %v1314 = vpack.c.b16 %v1306, %v1306
  %1323 = vst [vmem:[%s3] sm:$0xf] %v1307
  %1324 = vst [vmem:[%s3 + $0x4] sm:$0xf] %v1308
  %1325 = vst [vmem:[%s3 + $0x8] sm:$0xf] %v1309
  %1326 = vst [vmem:[%s3 + $0xc] sm:$0xf] %v1310
  %1327 = vst [vmem:[%s3 + $0x10] sm:$0xf] %v1311
  %1328 = vst [vmem:[%s3 + $0x14] sm:$0xf] %v1312
  %1329 = vst [vmem:[%s3 + $0x18] sm:$0xf] %v1313
  %1330 = vst [vmem:[%s3 + $0x1c] sm:$0xf] %v1314
  // Predicated region
  $region14: #{cnn_forward.4} parent=0 // pred_check
    _
  $region15: #{cnn_forward.4} parent=0 // pred_check_branch
    %1332 = sbr.rel (0) target = $region17
  $region16: #{cnn_forward.4} parent=0 // pred_region
    _
  $region17: #{cnn_forward.4} parent=0 // pred_fallthru
    _
  // Predicated region
  $region18: #{cnn_forward.4} parent=0 // pred_check
    _
  $region19: #{cnn_forward.4} parent=0 // pred_check_branch
    %1334 = sbr.rel (0) target = $region21
  $region20: #{cnn_forward.4} parent=0 // pred_region
    _
  $region21: #{cnn_forward.4} parent=0 // pred_fallthru
    _

// kernel: cnn_forward.5
$region0: #{cnn_forward.5}
  #allocation0 [shape = 'u32[]', space=smem, size = 0x4, offset = 0x4, fixed_abs, tag = 'smem constant byte address 0x4 - core index']
  #allocation1 [shape = 'u32[144,128]{1,0:T(1,128)}', space=vmem, size = 0x12000, scoped, tag = 'internal scratch']
  #allocation2 [shape = 'f32[2,128]{1,0:T(2,128)}', space=vmem, size = 0x400, scoped, tag = 'scratch operand']
  %s0 = inlined_call_operand.vmem [shape: bf16[2,3136], index: 0, kind: input, shape index: {}]
  %s1 = inlined_call_operand.vmem [shape: bf16[3136,1024], index: 1, kind: input, shape index: {}]
  %s2 = inlined_call_operand.vmem [shape: f32[1,1024], index: 2, kind: input, shape index: {}]
  %s3 = inlined_call_operand.vmem [shape: bf16[1024,128], index: 3, kind: input, shape index: {}]
  %s4 = inlined_call_operand.vmem [shape: f32[1,128], index: 4, kind: input, shape index: {}]
  %s5 = inlined_call_operand.hbm [shape: f32[2,128], index: 5, kind: output, shape index: {}]
  %s6 = sld [smem:[#allocation0]]
  $region102: #{cnn_forward.5} parent=0
    _
  %s8 = ssub.s32 1, %s6
  %s9 = scalar_select 0, %s8, %s6
  $region1: #{cnn_forward.5} parent=0
    #allocation3 [shape = 'u8[1605632]{0}', space=vmem, size = 0x188000, scoped, tag = 'input window, operand 1']
    #allocation4 [shape = 'u8[1024]{0}', space=vmem, size = 0x400, scoped, tag = 'output window, operand 0, single buffered']
    #allocation5 [shape = 's32[2]{0}', space=sflag, size = 0x8, scoped, tag = 'scoped memory for cnn_forward.5']
    %10 = vsyncpa [#allocation5], 0
    loop: start=0, step=1, limit=10
    $region2: #{cnn_forward.5} parent=1 // loop_pre_header
      _
    $region3: #{cnn_forward.5} parent=1 // loop_header
      %s12 = sphi 0, %s16
      %p13 = scmp.ge.s32.totalorder %s12, 10
      %s20 = sphi 0, %s20
      %s22 = sphi 0, %s20
      %s23 = sphi 0, %s22
      %s37 = sphi 0, %s23
      %s43 = sphi 0, %s45
      %s46 = sphi 0, %s43
      %s47 = sphi 0, %s46
      %s63 = sphi 0, %s47
      %s69 = sphi 0, %s71
      %s72 = sphi 0, %s69
      %s73 = sphi 0, %s72
      %s89 = sphi 0, %s73
      %s95 = sphi 0, %s97
      %s98 = sphi 0, %s95
      %s99 = sphi 0, %s98
      %s115 = sphi 0, %s99
      %s119 = sphi 0, %s119
      %s121 = sphi 0, %s119
      %s122 = sphi 0, %s121
      %s136 = sphi 0, %s122
      %s140 = sphi 0, %s140
      %s142 = sphi 0, %s140
      %s143 = sphi 0, %s142
      %s157 = sphi 0, %s143
    $region4: #{cnn_forward.5} parent=1 // loop_header_branch
      %15 = sbr.rel (%p13) target = $region8
    $region5: #{cnn_forward.5} parent=1 // loop_body
      %s17 = ssub.s32 %s12, 1
      %s18 = ssub.s32 %s12, 2
      %s19 = sadd.s32 %s12, 1
      %s21 = sadd.s32 %s20, 1
      %p24 = scmp.eq.s32.totalorder %s12, 7
      %p25 = scmp.ne.s32.totalorder %s20, %s22
      %p26 = scmp.eq.s32.totalorder %s12, 0
      %p27 = por %p25, %p26
      %p28 = scmp.ne.s32.totalorder %s20, %s22
      %p29 = scmp.eq.s32.totalorder %s17, 7
      %p30 = por %p28, %p29
      %p31 = scmp.ne.s32.totalorder %s22, %s23
      %p32 = scmp.eq.s32.totalorder %s17, 0
      %p33 = por %p31, %p32
      %p34 = scmp.ne.s32.totalorder %s22, %s23
      %p35 = scmp.eq.s32.totalorder %s18, 7
      %p36 = por %p34, %p35
      %p38 = scmp.ne.s32.totalorder %s23, %s37
      %p39 = scmp.eq.s32.totalorder %s18, 0
      %p40 = por %p38, %p39
      %s41 = ssub.s32 %s12, %s19
      %p42 = scmp.eq.s32.totalorder %s41, 0
      %s44 = sadd.s32 %s43, 1
      %s45 = scalar_select %p42, %s43, %s44
      %p48 = pneg %p42
      %p49 = scmp.eq.s32.totalorder %s12, 7
      %p50 = por %p48, %p49
      %p51 = scmp.ne.s32.totalorder %s43, %s46
      %p52 = scmp.eq.s32.totalorder %s12, 0
      %p53 = por %p51, %p52
      %p54 = scmp.ne.s32.totalorder %s43, %s46
      %p55 = scmp.eq.s32.totalorder %s17, 7
      %p56 = por %p54, %p55
      %p57 = scmp.ne.s32.totalorder %s46, %s47
      %p58 = scmp.eq.s32.totalorder %s17, 0
      %p59 = por %p57, %p58
      %p60 = scmp.ne.s32.totalorder %s46, %s47
      %p61 = scmp.eq.s32.totalorder %s18, 7
      %p62 = por %p60, %p61
      %p64 = scmp.ne.s32.totalorder %s47, %s63
      %p65 = scmp.eq.s32.totalorder %s18, 0
      %p66 = por %p64, %p65
      %s67 = ssub.s32 %s12, %s19
      %p68 = scmp.eq.s32.totalorder %s67, 0
      %s70 = sadd.s32 %s69, 1
      %s71 = scalar_select %p68, %s69, %s70
      %p74 = pneg %p68
      %p75 = scmp.eq.s32.totalorder %s12, 7
      %p76 = por %p74, %p75
      %p77 = scmp.ne.s32.totalorder %s69, %s72
      %p78 = scmp.eq.s32.totalorder %s12, 0
      %p79 = por %p77, %p78
      %p80 = scmp.ne.s32.totalorder %s69, %s72
      %p81 = scmp.eq.s32.totalorder %s17, 7
      %p82 = por %p80, %p81
      %p83 = scmp.ne.s32.totalorder %s72, %s73
      %p84 = scmp.eq.s32.totalorder %s17, 0
      %p85 = por %p83, %p84
      %p86 = scmp.ne.s32.totalorder %s72, %s73
      %p87 = scmp.eq.s32.totalorder %s18, 7
      %p88 = por %p86, %p87
      %p90 = scmp.ne.s32.totalorder %s73, %s89
      %p91 = scmp.eq.s32.totalorder %s18, 0
      %p92 = por %p90, %p91
      %s93 = ssub.s32 %s12, %s19
      %p94 = scmp.eq.s32.totalorder %s93, 0
      %s96 = sadd.s32 %s95, 1
      %s97 = scalar_select %p94, %s95, %s96
      %p100 = pneg %p94
      %p101 = scmp.eq.s32.totalorder %s12, 7
      %p102 = por %p100, %p101
      %p103 = scmp.ne.s32.totalorder %s95, %s98
      %p104 = scmp.eq.s32.totalorder %s12, 0
      %p105 = por %p103, %p104
      %p106 = scmp.ne.s32.totalorder %s95, %s98
      %p107 = scmp.eq.s32.totalorder %s17, 7
      %p108 = por %p106, %p107
      %p109 = scmp.ne.s32.totalorder %s98, %s99
      %p110 = scmp.eq.s32.totalorder %s17, 0
      %p111 = por %p109, %p110
      %p112 = scmp.ne.s32.totalorder %s98, %s99
      %p113 = scmp.eq.s32.totalorder %s18, 7
      %p114 = por %p112, %p113
      %p116 = scmp.ne.s32.totalorder %s99, %s115
      %p117 = scmp.eq.s32.totalorder %s18, 0
      %p118 = por %p116, %p117
      %s120 = sadd.s32 %s119, 1
      %p123 = scmp.eq.s32.totalorder %s12, 7
      %p124 = scmp.ne.s32.totalorder %s119, %s121
      %p125 = scmp.eq.s32.totalorder %s12, 0
      %p126 = por %p124, %p125
      %p127 = scmp.ne.s32.totalorder %s119, %s121
      %p128 = scmp.eq.s32.totalorder %s17, 7
      %p129 = por %p127, %p128
      %p130 = scmp.ne.s32.totalorder %s121, %s122
      %p131 = scmp.eq.s32.totalorder %s17, 0
      %p132 = por %p130, %p131
      %p133 = scmp.ne.s32.totalorder %s121, %s122
      %p134 = scmp.eq.s32.totalorder %s18, 7
      %p135 = por %p133, %p134
      %p137 = scmp.ne.s32.totalorder %s122, %s136
      %p138 = scmp.eq.s32.totalorder %s18, 0
      %p139 = por %p137, %p138
      %s141 = sadd.s32 %s140, 1
      %p144 = scmp.eq.s32.totalorder %s12, 7
      %p145 = scmp.ne.s32.totalorder %s140, %s142
      %p146 = scmp.eq.s32.totalorder %s12, 0
      %p147 = por %p145, %p146
      %p148 = scmp.ne.s32.totalorder %s140, %s142
      %p149 = scmp.eq.s32.totalorder %s17, 7
      %p150 = por %p148, %p149
      %p151 = scmp.ne.s32.totalorder %s142, %s143
      %p152 = scmp.eq.s32.totalorder %s17, 0
      %p153 = por %p151, %p152
      %p154 = scmp.ne.s32.totalorder %s142, %s143
      %p155 = scmp.eq.s32.totalorder %s18, 7
      %p156 = por %p154, %p155
      %p158 = scmp.ne.s32.totalorder %s143, %s157
      %p159 = scmp.eq.s32.totalorder %s18, 0
      %p160 = por %p158, %p159
      %p161 = scmp.le.s32.totalorder 1, %s12
      %p162 = scmp.lt.s32.totalorder %s12, 9
      %p163 = pnand %p161, %p162
      %p164 = pneg %p163
      // Predicated region
      $region9: #{cnn_forward.5} parent=5 // pred_check
        _
      $region10: #{cnn_forward.5} parent=5 // pred_check_branch
        %166 = sbr.rel (%p163) target = $region12
      $region11: #{cnn_forward.5} parent=5 // pred_region
        %s167 = ssub.s32 %s12, 1
        // Predicated region
        $region13: #{cnn_forward.5} parent=11 // pred_check
          %p168 = pneg %p33
        $region14: #{cnn_forward.5} parent=11 // pred_check_branch
          %170 = sbr.rel (%p168) target = $region16
        $region15: #{cnn_forward.5} parent=11 // pred_region
          _
        $region16: #{cnn_forward.5} parent=11 // pred_fallthru
          _
        // Predicated region
        $region17: #{cnn_forward.5} parent=11 // pred_check
          %p171 = pneg %p132
        $region18: #{cnn_forward.5} parent=11 // pred_check_branch
          %173 = sbr.rel (%p171) target = $region20
        $region19: #{cnn_forward.5} parent=11 // pred_region
          _
        $region20: #{cnn_forward.5} parent=11 // pred_fallthru
          _
      $region12: #{cnn_forward.5} parent=5 // pred_fallthru
        _
      %p174 = scmp.lt.s32.totalorder %s12, 8
      // Predicated region
      $region21: #{cnn_forward.5} parent=5 // pred_check
        %p175 = pneg %p174
      $region22: #{cnn_forward.5} parent=5 // pred_check_branch
        %177 = sbr.rel (%p175) target = $region24
      $region23: #{cnn_forward.5} parent=5 // pred_region
        // Predicated region
        $region25: #{cnn_forward.5} parent=23 // pred_check
          %p178 = pneg %p53
        $region26: #{cnn_forward.5} parent=23 // pred_check_branch
          %180 = sbr.rel (%p178) target = $region28
        $region27: #{cnn_forward.5} parent=23 // pred_region
          %s181 = sand.u32 %s43, 1
          %s182 = sand.u32 %s43, 1
          %s183 = smul.addr %s182, 1568
          %s184 = scalar_lea.vmem [#allocation3], %s183
          %s185 = smul.addr %s12, 4
          %s186 = scalar_lea.vmem %s1, %s185
          // Predicated region
          $region29: #{cnn_forward.5} parent=27 // pred_check
            _
          $region30: #{cnn_forward.5} parent=27 // pred_check_branch
            %188 = sbr.rel (0) target = $region32
          $region31: #{cnn_forward.5} parent=27 // pred_region
            // Predicated region
            $region33: #{cnn_forward.5} parent=31 // pred_check
              _
            $region34: #{cnn_forward.5} parent=31 // pred_check_branch
              %190 = sbr.rel target = $region36
            $region35: #{cnn_forward.5} parent=31 // pred_region
              // Predicated region
              $region48: #{cnn_forward.5} parent=35 // pred_check
                _
              $region49: #{cnn_forward.5} parent=35 // pred_check_branch
                %987 = sbr.rel (0) target = $region51
              $region50: #{cnn_forward.5} parent=35 // pred_region
                loop: start=0, step=1, limit=1
                $region52: #{cnn_forward.5} parent=50 // loop_pre_header
                  _
                $region53: #{cnn_forward.5} parent=50 // loop_header
                  %s989 = sphi 0, %s993
                  %p990 = scmp.ge.s32.totalorder %s989, 1
                  %s994 = sphi %s186, %s186
                  %s995 = sphi %s184, %s184
                $region54: #{cnn_forward.5} parent=50 // loop_header_branch
                  %992 = sbr.rel (%p990) target = $region58
                $region55: #{cnn_forward.5} parent=50 // loop_body
                  _
                $region56: #{cnn_forward.5} parent=50 // loop_footer
                  %s993 = sadd.s32 1, %s989
                $region57: #{cnn_forward.5} parent=50 // loop_footer_branch
                  %988 = sbr.rel target = $region53
                $region58: #{cnn_forward.5} parent=50 // loop_exit
                  _
                loop: start=0, step=1, limit=1
                $region59: #{cnn_forward.5} parent=50 // loop_pre_header
                  _
                $region60: #{cnn_forward.5} parent=50 // loop_header
                  %s998 = sphi 0, %s1002
                  %p999 = scmp.ge.s32.totalorder %s998, 1
                  %s1003 = sphi %s186, %s186
                  %s1004 = sphi %s184, %s184
                $region61: #{cnn_forward.5} parent=50 // loop_header_branch
                  %1001 = sbr.rel (%p999) target = $region65
                $region62: #{cnn_forward.5} parent=50 // loop_body
                  %v1005 = vld [vmem:[%s1003] sm:$0xf]
                  %1006 = vst [vmem:[%s1004] sm:$0xf] %v1005
                  %v1007 = vld [vmem:[%s1003 + $0x20] sm:$0xf]
                  %1008 = vst [vmem:[%s1004 + $0x4] sm:$0xf] %v1007
                  %v1009 = vld [vmem:[%s1003 + $0x40] sm:$0xf]
                  %1010 = vst [vmem:[%s1004 + $0x8] sm:$0xf] %v1009
                  %v1011 = vld [vmem:[%s1003 + $0x60] sm:$0xf]
                  %1012 = vst [vmem:[%s1004 + $0xc] sm:$0xf] %v1011
                  %v1013 = vld [vmem:[%s1003 + $0x80] sm:$0xf]
                  %1014 = vst [vmem:[%s1004 + $0x10] sm:$0xf] %v1013
                  %v1015 = vld [vmem:[%s1003 + $0xa0] sm:$0xf]
                  %1016 = vst [vmem:[%s1004 + $0x14] sm:$0xf] %v1015
                  %v1017 = vld [vmem:[%s1003 + $0xc0] sm:$0xf]
                  %1018 = vst [vmem:[%s1004 + $0x18] sm:$0xf] %v1017
                  %v1019 = vld [vmem:[%s1003 + $0xe0] sm:$0xf]
                  %1020 = vst [vmem:[%s1004 + $0x1c] sm:$0xf] %v1019
                  %v1021 = vld [vmem:[%s1003 + $0x100] sm:$0xf]
                  %1022 = vst [vmem:[%s1004 + $0x20] sm:$0xf] %v1021
                  %v1023 = vld [vmem:[%s1003 + $0x120] sm:$0xf]
                  %1024 = vst [vmem:[%s1004 + $0x24] sm:$0xf] %v1023
                  %v1025 = vld [vmem:[%s1003 + $0x140] sm:$0xf]
                  %1026 = vst [vmem:[%s1004 + $0x28] sm:$0xf] %v1025
                  %v1027 = vld [vmem:[%s1003 + $0x160] sm:$0xf]
                  %1028 = vst [vmem:[%s1004 + $0x2c] sm:$0xf] %v1027
                  %v1029 = vld [vmem:[%s1003 + $0x180] sm:$0xf]
                  %1030 = vst [vmem:[%s1004 + $0x30] sm:$0xf] %v1029
                  %v1031 = vld [vmem:[%s1003 + $0x1a0] sm:$0xf]
                  %1032 = vst [vmem:[%s1004 + $0x34] sm:$0xf] %v1031
                  %v1033 = vld [vmem:[%s1003 + $0x1c0] sm:$0xf]
                  %1034 = vst [vmem:[%s1004 + $0x38] sm:$0xf] %v1033
                  %v1035 = vld [vmem:[%s1003 + $0x1e0] sm:$0xf]
                  %1036 = vst [vmem:[%s1004 + $0x3c] sm:$0xf] %v1035
                  %v1037 = vld [vmem:[%s1003 + $0x200] sm:$0xf]
                  %1038 = vst [vmem:[%s1004 + $0x40] sm:$0xf] %v1037
                  %v1039 = vld [vmem:[%s1003 + $0x220] sm:$0xf]
                  %1040 = vst [vmem:[%s1004 + $0x44] sm:$0xf] %v1039
                  %v1041 = vld [vmem:[%s1003 + $0x240] sm:$0xf]
                  %1042 = vst [vmem:[%s1004 + $0x48] sm:$0xf] %v1041
                  %v1043 = vld [vmem:[%s1003 + $0x260] sm:$0xf]
                  %1044 = vst [vmem:[%s1004 + $0x4c] sm:$0xf] %v1043
                  %v1045 = vld [vmem:[%s1003 + $0x280] sm:$0xf]
                  %1046 = vst [vmem:[%s1004 + $0x50] sm:$0xf] %v1045
                  %v1047 = vld [vmem:[%s1003 + $0x2a0] sm:$0xf]
                  %1048 = vst [vmem:[%s1004 + $0x54] sm:$0xf] %v1047
                  %v1049 = vld [vmem:[%s1003 + $0x2c0] sm:$0xf]
                  %1050 = vst [vmem:[%s1004 + $0x58] sm:$0xf] %v1049
                  %v1051 = vld [vmem:[%s1003 + $0x2e0] sm:$0xf]
                  %1052 = vst [vmem:[%s1004 + $0x5c] sm:$0xf] %v1051
                  %v1053 = vld [vmem:[%s1003 + $0x300] sm:$0xf]
                  %1054 = vst [vmem:[%s1004 + $0x60] sm:$0xf] %v1053
                  %v1055 = vld [vmem:[%s1003 + $0x320] sm:$0xf]
                  %1056 = vst [vmem:[%s1004 + $0x64] sm:$0xf] %v1055
                  %v1057 = vld [vmem:[%s1003 + $0x340] sm:$0xf]
                  %1058 = vst [vmem:[%s1004 + $0x68] sm:$0xf] %v1057
                  %v1059 = vld [vmem:[%s1003 + $0x360] sm:$0xf]
                  %1060 = vst [vmem:[%s1004 + $0x6c] sm:$0xf] %v1059
                  %v1061 = vld [vmem:[%s1003 + $0x380] sm:$0xf]
                  %1062 = vst [vmem:[%s1004 + $0x70] sm:$0xf] %v1061
                  %v1063 = vld [vmem:[%s1003 + $0x3a0] sm:$0xf]
                  %1064 = vst [vmem:[%s1004 + $0x74] sm:$0xf] %v1063
                  %v1065 = vld [vmem:[%s1003 + $0x3c0] sm:$0xf]
                  %1066 = vst [vmem:[%s1004 + $0x78] sm:$0xf] %v1065
                  %v1067 = vld [vmem:[%s1003 + $0x3e0] sm:$0xf]
                  %1068 = vst [vmem:[%s1004 + $0x7c] sm:$0xf] %v1067
                  %v1069 = vld [vmem:[%s1003 + $0x400] sm:$0xf]
                  %1070 = vst [vmem:[%s1004 + $0x80] sm:$0xf] %v1069
                  %v1071 = vld [vmem:[%s1003 + $0x420] sm:$0xf]
                  %1072 = vst [vmem:[%s1004 + $0x84] sm:$0xf] %v1071
                  %v1073 = vld [vmem:[%s1003 + $0x440] sm:$0xf]
                  %1074 = vst [vmem:[%s1004 + $0x88] sm:$0xf] %v1073
                  %v1075 = vld [vmem:[%s1003 + $0x460] sm:$0xf]
                  %1076 = vst [vmem:[%s1004 + $0x8c] sm:$0xf] %v1075
                  %v1077 = vld [vmem:[%s1003 + $0x480] sm:$0xf]
                  %1078 = vst [vmem:[%s1004 + $0x90] sm:$0xf] %v1077
                  %v1079 = vld [vmem:[%s1003 + $0x4a0] sm:$0xf]
                  %1080 = vst [vmem:[%s1004 + $0x94] sm:$0xf] %v1079
                  %v1081 = vld [vmem:[%s1003 + $0x4c0] sm:$0xf]
                  %1082 = vst [vmem:[%s1004 + $0x98] sm:$0xf] %v1081
                  %v1083 = vld [vmem:[%s1003 + $0x4e0] sm:$0xf]
                  %1084 = vst [vmem:[%s1004 + $0x9c] sm:$0xf] %v1083
                  %v1085 = vld [vmem:[%s1003 + $0x500] sm:$0xf]
                  %1086 = vst [vmem:[%s1004 + $0xa0] sm:$0xf] %v1085
                  %v1087 = vld [vmem:[%s1003 + $0x520] sm:$0xf]
                  %1088 = vst [vmem:[%s1004 + $0xa4] sm:$0xf] %v1087
                  %v1089 = vld [vmem:[%s1003 + $0x540] sm:$0xf]
                  %1090 = vst [vmem:[%s1004 + $0xa8] sm:$0xf] %v1089
                  %v1091 = vld [vmem:[%s1003 + $0x560] sm:$0xf]
                  %1092 = vst [vmem:[%s1004 + $0xac] sm:$0xf] %v1091
                  %v1093 = vld [vmem:[%s1003 + $0x580] sm:$0xf]
                  %1094 = vst [vmem:[%s1004 + $0xb0] sm:$0xf] %v1093
                  %v1095 = vld [vmem:[%s1003 + $0x5a0] sm:$0xf]
                  %1096 = vst [vmem:[%s1004 + $0xb4] sm:$0xf] %v1095
                  %v1097 = vld [vmem:[%s1003 + $0x5c0] sm:$0xf]
                  %1098 = vst [vmem:[%s1004 + $0xb8] sm:$0xf] %v1097
                  %v1099 = vld [vmem:[%s1003 + $0x5e0] sm:$0xf]
                  %1100 = vst [vmem:[%s1004 + $0xbc] sm:$0xf] %v1099
                  %v1101 = vld [vmem:[%s1003 + $0x600] sm:$0xf]
                  %1102 = vst [vmem:[%s1004 + $0xc0] sm:$0xf] %v1101
                  %v1103 = vld [vmem:[%s1003 + $0x620] sm:$0xf]
                  %1104 = vst [vmem:[%s1004 + $0xc4] sm:$0xf] %v1103
                  %v1105 = vld [vmem:[%s1003 + $0x640] sm:$0xf]
                  %1106 = vst [vmem:[%s1004 + $0xc8] sm:$0xf] %v1105
                  %v1107 = vld [vmem:[%s1003 + $0x660] sm:$0xf]
                  %1108 = vst [vmem:[%s1004 + $0xcc] sm:$0xf] %v1107
                  %v1109 = vld [vmem:[%s1003 + $0x680] sm:$0xf]
                  %1110 = vst [vmem:[%s1004 + $0xd0] sm:$0xf] %v1109
                  %v1111 = vld [vmem:[%s1003 + $0x6a0] sm:$0xf]
                  %1112 = vst [vmem:[%s1004 + $0xd4] sm:$0xf] %v1111
                  %v1113 = vld [vmem:[%s1003 + $0x6c0] sm:$0xf]
                  %1114 = vst [vmem:[%s1004 + $0xd8] sm:$0xf] %v1113
                  %v1115 = vld [vmem:[%s1003 + $0x6e0] sm:$0xf]
                  %1116 = vst [vmem:[%s1004 + $0xdc] sm:$0xf] %v1115
                  %v1117 = vld [vmem:[%s1003 + $0x700] sm:$0xf]
                  %1118 = vst [vmem:[%s1004 + $0xe0] sm:$0xf] %v1117
                  %v1119 = vld [vmem:[%s1003 + $0x720] sm:$0xf]
                  %1120 = vst [vmem:[%s1004 + $0xe4] sm:$0xf] %v1119
                  %v1121 = vld [vmem:[%s1003 + $0x740] sm:$0xf]
                  %1122 = vst [vmem:[%s1004 + $0xe8] sm:$0xf] %v1121
                  %v1123 = vld [vmem:[%s1003 + $0x760] sm:$0xf]
                  %1124 = vst [vmem:[%s1004 + $0xec] sm:$0xf] %v1123
                  %v1125 = vld [vmem:[%s1003 + $0x780] sm:$0xf]
                  %1126 = vst [vmem:[%s1004 + $0xf0] sm:$0xf] %v1125
                  %v1127 = vld [vmem:[%s1003 + $0x7a0] sm:$0xf]
                  %1128 = vst [vmem:[%s1004 + $0xf4] sm:$0xf] %v1127
                  %v1129 = vld [vmem:[%s1003 + $0x7c0] sm:$0xf]
                  %1130 = vst [vmem:[%s1004 + $0xf8] sm:$0xf] %v1129
                  %v1131 = vld [vmem:[%s1003 + $0x7e0] sm:$0xf]
                  %1132 = vst [vmem:[%s1004 + $0xfc] sm:$0xf] %v1131
                  %v1133 = vld [vmem:[%s1003 + $0x800] sm:$0xf]
                  %1134 = vst [vmem:[%s1004 + $0x100] sm:$0xf] %v1133
                  %v1135 = vld [vmem:[%s1003 + $0x820] sm:$0xf]
                  %1136 = vst [vmem:[%s1004 + $0x104] sm:$0xf] %v1135
                  %v1137 = vld [vmem:[%s1003 + $0x840] sm:$0xf]
                  %1138 = vst [vmem:[%s1004 + $0x108] sm:$0xf] %v1137
                  %v1139 = vld [vmem:[%s1003 + $0x860] sm:$0xf]
                  %1140 = vst [vmem:[%s1004 + $0x10c] sm:$0xf] %v1139
                  %v1141 = vld [vmem:[%s1003 + $0x880] sm:$0xf]
                  %1142 = vst [vmem:[%s1004 + $0x110] sm:$0xf] %v1141
                  %v1143 = vld [vmem:[%s1003 + $0x8a0] sm:$0xf]
                  %1144 = vst [vmem:[%s1004 + $0x114] sm:$0xf] %v1143
                  %v1145 = vld [vmem:[%s1003 + $0x8c0] sm:$0xf]
                  %1146 = vst [vmem:[%s1004 + $0x118] sm:$0xf] %v1145
                  %v1147 = vld [vmem:[%s1003 + $0x8e0] sm:$0xf]
                  %1148 = vst [vmem:[%s1004 + $0x11c] sm:$0xf] %v1147
                  %v1149 = vld [vmem:[%s1003 + $0x900] sm:$0xf]
                  %1150 = vst [vmem:[%s1004 + $0x120] sm:$0xf] %v1149
                  %v1151 = vld [vmem:[%s1003 + $0x920] sm:$0xf]
                  %1152 = vst [vmem:[%s1004 + $0x124] sm:$0xf] %v1151
                  %v1153 = vld [vmem:[%s1003 + $0x940] sm:$0xf]
                  %1154 = vst [vmem:[%s1004 + $0x128] sm:$0xf] %v1153
                  %v1155 = vld [vmem:[%s1003 + $0x960] sm:$0xf]
                  %1156 = vst [vmem:[%s1004 + $0x12c] sm:$0xf] %v1155
                  %v1157 = vld [vmem:[%s1003 + $0x980] sm:$0xf]
                  %1158 = vst [vmem:[%s1004 + $0x130] sm:$0xf] %v1157
                  %v1159 = vld [vmem:[%s1003 + $0x9a0] sm:$0xf]
                  %1160 = vst [vmem:[%s1004 + $0x134] sm:$0xf] %v1159
                  %v1161 = vld [vmem:[%s1003 + $0x9c0] sm:$0xf]
                  %1162 = vst [vmem:[%s1004 + $0x138] sm:$0xf] %v1161
                  %v1163 = vld [vmem:[%s1003 + $0x9e0] sm:$0xf]
                  %1164 = vst [vmem:[%s1004 + $0x13c] sm:$0xf] %v1163
                  %v1165 = vld [vmem:[%s1003 + $0xa00] sm:$0xf]
                  %1166 = vst [vmem:[%s1004 + $0x140] sm:$0xf] %v1165
                  %v1167 = vld [vmem:[%s1003 + $0xa20] sm:$0xf]
                  %1168 = vst [vmem:[%s1004 + $0x144] sm:$0xf] %v1167
                  %v1169 = vld [vmem:[%s1003 + $0xa40] sm:$0xf]
                  %1170 = vst [vmem:[%s1004 + $0x148] sm:$0xf] %v1169
                  %v1171 = vld [vmem:[%s1003 + $0xa60] sm:$0xf]
                  %1172 = vst [vmem:[%s1004 + $0x14c] sm:$0xf] %v1171
                  %v1173 = vld [vmem:[%s1003 + $0xa80] sm:$0xf]
                  %1174 = vst [vmem:[%s1004 + $0x150] sm:$0xf] %v1173
                  %v1175 = vld [vmem:[%s1003 + $0xaa0] sm:$0xf]
                  %1176 = vst [vmem:[%s1004 + $0x154] sm:$0xf] %v1175
                  %v1177 = vld [vmem:[%s1003 + $0xac0] sm:$0xf]
                  %1178 = vst [vmem:[%s1004 + $0x158] sm:$0xf] %v1177
                  %v1179 = vld [vmem:[%s1003 + $0xae0] sm:$0xf]
                  %1180 = vst [vmem:[%s1004 + $0x15c] sm:$0xf] %v1179
                  %v1181 = vld [vmem:[%s1003 + $0xb00] sm:$0xf]
                  %1182 = vst [vmem:[%s1004 + $0x160] sm:$0xf] %v1181
                  %v1183 = vld [vmem:[%s1003 + $0xb20] sm:$0xf]
                  %1184 = vst [vmem:[%s1004 + $0x164] sm:$0xf] %v1183
                  %v1185 = vld [vmem:[%s1003 + $0xb40] sm:$0xf]
                  %1186 = vst [vmem:[%s1004 + $0x168] sm:$0xf] %v1185
                  %v1187 = vld [vmem:[%s1003 + $0xb60] sm:$0xf]
                  %1188 = vst [vmem:[%s1004 + $0x16c] sm:$0xf] %v1187
                  %v1189 = vld [vmem:[%s1003 + $0xb80] sm:$0xf]
                  %1190 = vst [vmem:[%s1004 + $0x170] sm:$0xf] %v1189
                  %v1191 = vld [vmem:[%s1003 + $0xba0] sm:$0xf]
                  %1192 = vst [vmem:[%s1004 + $0x174] sm:$0xf] %v1191
                  %v1193 = vld [vmem:[%s1003 + $0xbc0] sm:$0xf]
                  %1194 = vst [vmem:[%s1004 + $0x178] sm:$0xf] %v1193
                  %v1195 = vld [vmem:[%s1003 + $0xbe0] sm:$0xf]
                  %1196 = vst [vmem:[%s1004 + $0x17c] sm:$0xf] %v1195
                  %v1197 = vld [vmem:[%s1003 + $0xc00] sm:$0xf]
                  %1198 = vst [vmem:[%s1004 + $0x180] sm:$0xf] %v1197
                  %v1199 = vld [vmem:[%s1003 + $0xc20] sm:$0xf]
                  %1200 = vst [vmem:[%s1004 + $0x184] sm:$0xf] %v1199
                  %v1201 = vld [vmem:[%s1003 + $0xc40] sm:$0xf]
                  %1202 = vst [vmem:[%s1004 + $0x188] sm:$0xf] %v1201
                  %v1203 = vld [vmem:[%s1003 + $0xc60] sm:$0xf]
                  %1204 = vst [vmem:[%s1004 + $0x18c] sm:$0xf] %v1203
                  %v1205 = vld [vmem:[%s1003 + $0xc80] sm:$0xf]
                  %1206 = vst [vmem:[%s1004 + $0x190] sm:$0xf] %v1205
                  %v1207 = vld [vmem:[%s1003 + $0xca0] sm:$0xf]
                  %1208 = vst [vmem:[%s1004 + $0x194] sm:$0xf] %v1207
                  %v1209 = vld [vmem:[%s1003 + $0xcc0] sm:$0xf]
                  %1210 = vst [vmem:[%s1004 + $0x198] sm:$0xf] %v1209
                  %v1211 = vld [vmem:[%s1003 + $0xce0] sm:$0xf]
                  %1212 = vst [vmem:[%s1004 + $0x19c] sm:$0xf] %v1211
                  %v1213 = vld [vmem:[%s1003 + $0xd00] sm:$0xf]
                  %1214 = vst [vmem:[%s1004 + $0x1a0] sm:$0xf] %v1213
                  %v1215 = vld [vmem:[%s1003 + $0xd20] sm:$0xf]
                  %1216 = vst [vmem:[%s1004 + $0x1a4] sm:$0xf] %v1215
                  %v1217 = vld [vmem:[%s1003 + $0xd40] sm:$0xf]
                  %1218 = vst [vmem:[%s1004 + $0x1a8] sm:$0xf] %v1217
                  %v1219 = vld [vmem:[%s1003 + $0xd60] sm:$0xf]
                  %1220 = vst [vmem:[%s1004 + $0x1ac] sm:$0xf] %v1219
                  %v1221 = vld [vmem:[%s1003 + $0xd80] sm:$0xf]
                  %1222 = vst [vmem:[%s1004 + $0x1b0] sm:$0xf] %v1221
                  %v1223 = vld [vmem:[%s1003 + $0xda0] sm:$0xf]
                  %1224 = vst [vmem:[%s1004 + $0x1b4] sm:$0xf] %v1223
                  %v1225 = vld [vmem:[%s1003 + $0xdc0] sm:$0xf]
                  %1226 = vst [vmem:[%s1004 + $0x1b8] sm:$0xf] %v1225
                  %v1227 = vld [vmem:[%s1003 + $0xde0] sm:$0xf]
                  %1228 = vst [vmem:[%s1004 + $0x1bc] sm:$0xf] %v1227
                  %v1229 = vld [vmem:[%s1003 + $0xe00] sm:$0xf]
                  %1230 = vst [vmem:[%s1004 + $0x1c0] sm:$0xf] %v1229
                  %v1231 = vld [vmem:[%s1003 + $0xe20] sm:$0xf]
                  %1232 = vst [vmem:[%s1004 + $0x1c4] sm:$0xf] %v1231
                  %v1233 = vld [vmem:[%s1003 + $0xe40] sm:$0xf]
                  %1234 = vst [vmem:[%s1004 + $0x1c8] sm:$0xf] %v1233
                  %v1235 = vld [vmem:[%s1003 + $0xe60] sm:$0xf]
                  %1236 = vst [vmem:[%s1004 + $0x1cc] sm:$0xf] %v1235
                  %v1237 = vld [vmem:[%s1003 + $0xe80] sm:$0xf]
                  %1238 = vst [vmem:[%s1004 + $0x1d0] sm:$0xf] %v1237
                  %v1239 = vld [vmem:[%s1003 + $0xea0] sm:$0xf]
                  %1240 = vst [vmem:[%s1004 + $0x1d4] sm:$0xf] %v1239
                  %v1241 = vld [vmem:[%s1003 + $0xec0] sm:$0xf]
                  %1242 = vst [vmem:[%s1004 + $0x1d8] sm:$0xf] %v1241
                  %v1243 = vld [vmem:[%s1003 + $0xee0] sm:$0xf]
                  %1244 = vst [vmem:[%s1004 + $0x1dc] sm:$0xf] %v1243
                  %v1245 = vld [vmem:[%s1003 + $0xf00] sm:$0xf]
                  %1246 = vst [vmem:[%s1004 + $0x1e0] sm:$0xf] %v1245
                  %v1247 = vld [vmem:[%s1003 + $0xf20] sm:$0xf]
                  %1248 = vst [vmem:[%s1004 + $0x1e4] sm:$0xf] %v1247
                  %v1249 = vld [vmem:[%s1003 + $0xf40] sm:$0xf]
                  %1250 = vst [vmem:[%s1004 + $0x1e8] sm:$0xf] %v1249
                  %v1251 = vld [vmem:[%s1003 + $0xf60] sm:$0xf]
                  %1252 = vst [vmem:[%s1004 + $0x1ec] sm:$0xf] %v1251
                  %v1253 = vld [vmem:[%s1003 + $0xf80] sm:$0xf]
                  %1254 = vst [vmem:[%s1004 + $0x1f0] sm:$0xf] %v1253
                  %v1255 = vld [vmem:[%s1003 + $0xfa0] sm:$0xf]
                  %1256 = vst [vmem:[%s1004 + $0x1f4] sm:$0xf] %v1255
                  %v1257 = vld [vmem:[%s1003 + $0xfc0] sm:$0xf]
                  %1258 = vst [vmem:[%s1004 + $0x1f8] sm:$0xf] %v1257
                  %v1259 = vld [vmem:[%s1003 + $0xfe0] sm:$0xf]
                  %1260 = vst [vmem:[%s1004 + $0x1fc] sm:$0xf] %v1259
                  %v1261 = vld [vmem:[%s1003 + $0x1000] sm:$0xf]
                  %1262 = vst [vmem:[%s1004 + $0x200] sm:$0xf] %v1261
                  %v1263 = vld [vmem:[%s1003 + $0x1020] sm:$0xf]
                  %1264 = vst [vmem:[%s1004 + $0x204] sm:$0xf] %v1263
                  %v1265 = vld [vmem:[%s1003 + $0x1040] sm:$0xf]
                  %1266 = vst [vmem:[%s1004 + $0x208] sm:$0xf] %v1265
                  %v1267 = vld [vmem:[%s1003 + $0x1060] sm:$0xf]
                  %1268 = vst [vmem:[%s1004 + $0x20c] sm:$0xf] %v1267
                  %v1269 = vld [vmem:[%s1003 + $0x1080] sm:$0xf]
                  %1270 = vst [vmem:[%s1004 + $0x210] sm:$0xf] %v1269
                  %v1271 = vld [vmem:[%s1003 + $0x10a0] sm:$0xf]
                  %1272 = vst [vmem:[%s1004 + $0x214] sm:$0xf] %v1271
                  %v1273 = vld [vmem:[%s1003 + $0x10c0] sm:$0xf]
                  %1274 = vst [vmem:[%s1004 + $0x218] sm:$0xf] %v1273
                  %v1275 = vld [vmem:[%s1003 + $0x10e0] sm:$0xf]
                  %1276 = vst [vmem:[%s1004 + $0x21c] sm:$0xf] %v1275
                  %v1277 = vld [vmem:[%s1003 + $0x1100] sm:$0xf]
                  %1278 = vst [vmem:[%s1004 + $0x220] sm:$0xf] %v1277
                  %v1279 = vld [vmem:[%s1003 + $0x1120] sm:$0xf]
                  %1280 = vst [vmem:[%s1004 + $0x224] sm:$0xf] %v1279
                  %v1281 = vld [vmem:[%s1003 + $0x1140] sm:$0xf]
                  %1282 = vst [vmem:[%s1004 + $0x228] sm:$0xf] %v1281
                  %v1283 = vld [vmem:[%s1003 + $0x1160] sm:$0xf]
                  %1284 = vst [vmem:[%s1004 + $0x22c] sm:$0xf] %v1283
                  %v1285 = vld [vmem:[%s1003 + $0x1180] sm:$0xf]
                  %1286 = vst [vmem:[%s1004 + $0x230] sm:$0xf] %v1285
                  %v1287 = vld [vmem:[%s1003 + $0x11a0] sm:$0xf]
                  %1288 = vst [vmem:[%s1004 + $0x234] sm:$0xf] %v1287
                  %v1289 = vld [vmem:[%s1003 + $0x11c0] sm:$0xf]
                  %1290 = vst [vmem:[%s1004 + $0x238] sm:$0xf] %v1289
                  %v1291 = vld [vmem:[%s1003 + $0x11e0] sm:$0xf]
                  %1292 = vst [vmem:[%s1004 + $0x23c] sm:$0xf] %v1291
                  %v1293 = vld [vmem:[%s1003 + $0x1200] sm:$0xf]
                  %1294 = vst [vmem:[%s1004 + $0x240] sm:$0xf] %v1293
                  %v1295 = vld [vmem:[%s1003 + $0x1220] sm:$0xf]
                  %1296 = vst [vmem:[%s1004 + $0x244] sm:$0xf] %v1295
                  %v1297 = vld [vmem:[%s1003 + $0x1240] sm:$0xf]
                  %1298 = vst [vmem:[%s1004 + $0x248] sm:$0xf] %v1297
                  %v1299 = vld [vmem:[%s1003 + $0x1260] sm:$0xf]
                  %1300 = vst [vmem:[%s1004 + $0x24c] sm:$0xf] %v1299
                  %v1301 = vld [vmem:[%s1003 + $0x1280] sm:$0xf]
                  %1302 = vst [vmem:[%s1004 + $0x250] sm:$0xf] %v1301
                  %v1303 = vld [vmem:[%s1003 + $0x12a0] sm:$0xf]
                  %1304 = vst [vmem:[%s1004 + $0x254] sm:$0xf] %v1303
                  %v1305 = vld [vmem:[%s1003 + $0x12c0] sm:$0xf]
                  %1306 = vst [vmem:[%s1004 + $0x258] sm:$0xf] %v1305
                  %v1307 = vld [vmem:[%s1003 + $0x12e0] sm:$0xf]
                  %1308 = vst [vmem:[%s1004 + $0x25c] sm:$0xf] %v1307
                  %v1309 = vld [vmem:[%s1003 + $0x1300] sm:$0xf]
                  %1310 = vst [vmem:[%s1004 + $0x260] sm:$0xf] %v1309
                  %v1311 = vld [vmem:[%s1003 + $0x1320] sm:$0xf]
                  %1312 = vst [vmem:[%s1004 + $0x264] sm:$0xf] %v1311
                  %v1313 = vld [vmem:[%s1003 + $0x1340] sm:$0xf]
                  %1314 = vst [vmem:[%s1004 + $0x268] sm:$0xf] %v1313
                  %v1315 = vld [vmem:[%s1003 + $0x1360] sm:$0xf]
                  %1316 = vst [vmem:[%s1004 + $0x26c] sm:$0xf] %v1315
                  %v1317 = vld [vmem:[%s1003 + $0x1380] sm:$0xf]
                  %1318 = vst [vmem:[%s1004 + $0x270] sm:$0xf] %v1317
                  %v1319 = vld [vmem:[%s1003 + $0x13a0] sm:$0xf]
                  %1320 = vst [vmem:[%s1004 + $0x274] sm:$0xf] %v1319
                  %v1321 = vld [vmem:[%s1003 + $0x13c0] sm:$0xf]
                  %1322 = vst [vmem:[%s1004 + $0x278] sm:$0xf] %v1321
                  %v1323 = vld [vmem:[%s1003 + $0x13e0] sm:$0xf]
                  %1324 = vst [vmem:[%s1004 + $0x27c] sm:$0xf] %v1323
                  %v1325 = vld [vmem:[%s1003 + $0x1400] sm:$0xf]
                  %1326 = vst [vmem:[%s1004 + $0x280] sm:$0xf] %v1325
                  %v1327 = vld [vmem:[%s1003 + $0x1420] sm:$0xf]
                  %1328 = vst [vmem:[%s1004 + $0x284] sm:$0xf] %v1327
                  %v1329 = vld [vmem:[%s1003 + $0x1440] sm:$0xf]
                  %1330 = vst [vmem:[%s1004 + $0x288] sm:$0xf] %v1329
                  %v1331 = vld [vmem:[%s1003 + $0x1460] sm:$0xf]
                  %1332 = vst [vmem:[%s1004 + $0x28c] sm:$0xf] %v1331
                  %v1333 = vld [vmem:[%s1003 + $0x1480] sm:$0xf]
                  %1334 = vst [vmem:[%s1004 + $0x290] sm:$0xf] %v1333
                  %v1335 = vld [vmem:[%s1003 + $0x14a0] sm:$0xf]
                  %1336 = vst [vmem:[%s1004 + $0x294] sm:$0xf] %v1335
                  %v1337 = vld [vmem:[%s1003 + $0x14c0] sm:$0xf]
                  %1338 = vst [vmem:[%s1004 + $0x298] sm:$0xf] %v1337
                  %v1339 = vld [vmem:[%s1003 + $0x14e0] sm:$0xf]
                  %1340 = vst [vmem:[%s1004 + $0x29c] sm:$0xf] %v1339
                  %v1341 = vld [vmem:[%s1003 + $0x1500] sm:$0xf]
                  %1342 = vst [vmem:[%s1004 + $0x2a0] sm:$0xf] %v1341
                  %v1343 = vld [vmem:[%s1003 + $0x1520] sm:$0xf]
                  %1344 = vst [vmem:[%s1004 + $0x2a4] sm:$0xf] %v1343
                  %v1345 = vld [vmem:[%s1003 + $0x1540] sm:$0xf]
                  %1346 = vst [vmem:[%s1004 + $0x2a8] sm:$0xf] %v1345
                  %v1347 = vld [vmem:[%s1003 + $0x1560] sm:$0xf]
                  %1348 = vst [vmem:[%s1004 + $0x2ac] sm:$0xf] %v1347
                  %v1349 = vld [vmem:[%s1003 + $0x1580] sm:$0xf]
                  %1350 = vst [vmem:[%s1004 + $0x2b0] sm:$0xf] %v1349
                  %v1351 = vld [vmem:[%s1003 + $0x15a0] sm:$0xf]
                  %1352 = vst [vmem:[%s1004 + $0x2b4] sm:$0xf] %v1351
                  %v1353 = vld [vmem:[%s1003 + $0x15c0] sm:$0xf]
                  %1354 = vst [vmem:[%s1004 + $0x2b8] sm:$0xf] %v1353
                  %v1355 = vld [vmem:[%s1003 + $0x15e0] sm:$0xf]
                  %1356 = vst [vmem:[%s1004 + $0x2bc] sm:$0xf] %v1355
                  %v1357 = vld [vmem:[%s1003 + $0x1600] sm:$0xf]
                  %1358 = vst [vmem:[%s1004 + $0x2c0] sm:$0xf] %v1357
                  %v1359 = vld [vmem:[%s1003 + $0x1620] sm:$0xf]
                  %1360 = vst [vmem:[%s1004 + $0x2c4] sm:$0xf] %v1359
                  %v1361 = vld [vmem:[%s1003 + $0x1640] sm:$0xf]
                  %1362 = vst [vmem:[%s1004 + $0x2c8] sm:$0xf] %v1361
                  %v1363 = vld [vmem:[%s1003 + $0x1660] sm:$0xf]
                  %1364 = vst [vmem:[%s1004 + $0x2cc] sm:$0xf] %v1363
                  %v1365 = vld [vmem:[%s1003 + $0x1680] sm:$0xf]
                  %1366 = vst [vmem:[%s1004 + $0x2d0] sm:$0xf] %v1365
                  %v1367 = vld [vmem:[%s1003 + $0x16a0] sm:$0xf]
                  %1368 = vst [vmem:[%s1004 + $0x2d4] sm:$0xf] %v1367
                  %v1369 = vld [vmem:[%s1003 + $0x16c0] sm:$0xf]
                  %1370 = vst [vmem:[%s1004 + $0x2d8] sm:$0xf] %v1369
                  %v1371 = vld [vmem:[%s1003 + $0x16e0] sm:$0xf]
                  %1372 = vst [vmem:[%s1004 + $0x2dc] sm:$0xf] %v1371
                  %v1373 = vld [vmem:[%s1003 + $0x1700] sm:$0xf]
                  %1374 = vst [vmem:[%s1004 + $0x2e0] sm:$0xf] %v1373
                  %v1375 = vld [vmem:[%s1003 + $0x1720] sm:$0xf]
                  %1376 = vst [vmem:[%s1004 + $0x2e4] sm:$0xf] %v1375
                  %v1377 = vld [vmem:[%s1003 + $0x1740] sm:$0xf]
                  %1378 = vst [vmem:[%s1004 + $0x2e8] sm:$0xf] %v1377
                  %v1379 = vld [vmem:[%s1003 + $0x1760] sm:$0xf]
                  %1380 = vst [vmem:[%s1004 + $0x2ec] sm:$0xf] %v1379
                  %v1381 = vld [vmem:[%s1003 + $0x1780] sm:$0xf]
                  %1382 = vst [vmem:[%s1004 + $0x2f0] sm:$0xf] %v1381
                  %v1383 = vld [vmem:[%s1003 + $0x17a0] sm:$0xf]
                  %1384 = vst [vmem:[%s1004 + $0x2f4] sm:$0xf] %v1383
                  %v1385 = vld [vmem:[%s1003 + $0x17c0] sm:$0xf]
                  %1386 = vst [vmem:[%s1004 + $0x2f8] sm:$0xf] %v1385
                  %v1387 = vld [vmem:[%s1003 + $0x17e0] sm:$0xf]
                  %1388 = vst [vmem:[%s1004 + $0x2fc] sm:$0xf] %v1387
                  %v1389 = vld [vmem:[%s1003 + $0x1800] sm:$0xf]
                  %1390 = vst [vmem:[%s1004 + $0x300] sm:$0xf] %v1389
                  %v1391 = vld [vmem:[%s1003 + $0x1820] sm:$0xf]
                  %1392 = vst [vmem:[%s1004 + $0x304] sm:$0xf] %v1391
                  %v1393 = vld [vmem:[%s1003 + $0x1840] sm:$0xf]
                  %1394 = vst [vmem:[%s1004 + $0x308] sm:$0xf] %v1393
                  %v1395 = vld [vmem:[%s1003 + $0x1860] sm:$0xf]
                  %1396 = vst [vmem:[%s1004 + $0x30c] sm:$0xf] %v1395
                  %v1397 = vld [vmem:[%s1003 + $0x1880] sm:$0xf]
                  %1398 = vst [vmem:[%s1004 + $0x310] sm:$0xf] %v1397
                  %v1399 = vld [vmem:[%s1003 + $0x18a0] sm:$0xf]
                  %1400 = vst [vmem:[%s1004 + $0x314] sm:$0xf] %v1399
                  %v1401 = vld [vmem:[%s1003 + $0x18c0] sm:$0xf]
                  %1402 = vst [vmem:[%s1004 + $0x318] sm:$0xf] %v1401
                  %v1403 = vld [vmem:[%s1003 + $0x18e0] sm:$0xf]
                  %1404 = vst [vmem:[%s1004 + $0x31c] sm:$0xf] %v1403
                  %v1405 = vld [vmem:[%s1003 + $0x1900] sm:$0xf]
                  %1406 = vst [vmem:[%s1004 + $0x320] sm:$0xf] %v1405
                  %v1407 = vld [vmem:[%s1003 + $0x1920] sm:$0xf]
                  %1408 = vst [vmem:[%s1004 + $0x324] sm:$0xf] %v1407
                  %v1409 = vld [vmem:[%s1003 + $0x1940] sm:$0xf]
                  %1410 = vst [vmem:[%s1004 + $0x328] sm:$0xf] %v1409
                  %v1411 = vld [vmem:[%s1003 + $0x1960] sm:$0xf]
                  %1412 = vst [vmem:[%s1004 + $0x32c] sm:$0xf] %v1411
                  %v1413 = vld [vmem:[%s1003 + $0x1980] sm:$0xf]
                  %1414 = vst [vmem:[%s1004 + $0x330] sm:$0xf] %v1413
                  %v1415 = vld [vmem:[%s1003 + $0x19a0] sm:$0xf]
                  %1416 = vst [vmem:[%s1004 + $0x334] sm:$0xf] %v1415
                  %v1417 = vld [vmem:[%s1003 + $0x19c0] sm:$0xf]
                  %1418 = vst [vmem:[%s1004 + $0x338] sm:$0xf] %v1417
                  %v1419 = vld [vmem:[%s1003 + $0x19e0] sm:$0xf]
                  %1420 = vst [vmem:[%s1004 + $0x33c] sm:$0xf] %v1419
                  %v1421 = vld [vmem:[%s1003 + $0x1a00] sm:$0xf]
                  %1422 = vst [vmem:[%s1004 + $0x340] sm:$0xf] %v1421
                  %v1423 = vld [vmem:[%s1003 + $0x1a20] sm:$0xf]
                  %1424 = vst [vmem:[%s1004 + $0x344] sm:$0xf] %v1423
                  %v1425 = vld [vmem:[%s1003 + $0x1a40] sm:$0xf]
                  %1426 = vst [vmem:[%s1004 + $0x348] sm:$0xf] %v1425
                  %v1427 = vld [vmem:[%s1003 + $0x1a60] sm:$0xf]
                  %1428 = vst [vmem:[%s1004 + $0x34c] sm:$0xf] %v1427
                  %v1429 = vld [vmem:[%s1003 + $0x1a80] sm:$0xf]
                  %1430 = vst [vmem:[%s1004 + $0x350] sm:$0xf] %v1429
                  %v1431 = vld [vmem:[%s1003 + $0x1aa0] sm:$0xf]
                  %1432 = vst [vmem:[%s1004 + $0x354] sm:$0xf] %v1431
                  %v1433 = vld [vmem:[%s1003 + $0x1ac0] sm:$0xf]
                  %1434 = vst [vmem:[%s1004 + $0x358] sm:$0xf] %v1433
                  %v1435 = vld [vmem:[%s1003 + $0x1ae0] sm:$0xf]
                  %1436 = vst [vmem:[%s1004 + $0x35c] sm:$0xf] %v1435
                  %v1437 = vld [vmem:[%s1003 + $0x1b00] sm:$0xf]
                  %1438 = vst [vmem:[%s1004 + $0x360] sm:$0xf] %v1437
                  %v1439 = vld [vmem:[%s1003 + $0x1b20] sm:$0xf]
                  %1440 = vst [vmem:[%s1004 + $0x364] sm:$0xf] %v1439
                  %v1441 = vld [vmem:[%s1003 + $0x1b40] sm:$0xf]
                  %1442 = vst [vmem:[%s1004 + $0x368] sm:$0xf] %v1441
                  %v1443 = vld [vmem:[%s1003 + $0x1b60] sm:$0xf]
                  %1444 = vst [vmem:[%s1004 + $0x36c] sm:$0xf] %v1443
                  %v1445 = vld [vmem:[%s1003 + $0x1b80] sm:$0xf]
                  %1446 = vst [vmem:[%s1004 + $0x370] sm:$0xf] %v1445
                  %v1447 = vld [vmem:[%s1003 + $0x1ba0] sm:$0xf]
                  %1448 = vst [vmem:[%s1004 + $0x374] sm:$0xf] %v1447
                  %v1449 = vld [vmem:[%s1003 + $0x1bc0] sm:$0xf]
                  %1450 = vst [vmem:[%s1004 + $0x378] sm:$0xf] %v1449
                  %v1451 = vld [vmem:[%s1003 + $0x1be0] sm:$0xf]
                  %1452 = vst [vmem:[%s1004 + $0x37c] sm:$0xf] %v1451
                  %v1453 = vld [vmem:[%s1003 + $0x1c00] sm:$0xf]
                  %1454 = vst [vmem:[%s1004 + $0x380] sm:$0xf] %v1453
                  %v1455 = vld [vmem:[%s1003 + $0x1c20] sm:$0xf]
                  %1456 = vst [vmem:[%s1004 + $0x384] sm:$0xf] %v1455
                  %v1457 = vld [vmem:[%s1003 + $0x1c40] sm:$0xf]
                  %1458 = vst [vmem:[%s1004 + $0x388] sm:$0xf] %v1457
                  %v1459 = vld [vmem:[%s1003 + $0x1c60] sm:$0xf]
                  %1460 = vst [vmem:[%s1004 + $0x38c] sm:$0xf] %v1459
                  %v1461 = vld [vmem:[%s1003 + $0x1c80] sm:$0xf]
                  %1462 = vst [vmem:[%s1004 + $0x390] sm:$0xf] %v1461
                  %v1463 = vld [vmem:[%s1003 + $0x1ca0] sm:$0xf]
                  %1464 = vst [vmem:[%s1004 + $0x394] sm:$0xf] %v1463
                  %v1465 = vld [vmem:[%s1003 + $0x1cc0] sm:$0xf]
                  %1466 = vst [vmem:[%s1004 + $0x398] sm:$0xf] %v1465
                  %v1467 = vld [vmem:[%s1003 + $0x1ce0] sm:$0xf]
                  %1468 = vst [vmem:[%s1004 + $0x39c] sm:$0xf] %v1467
                  %v1469 = vld [vmem:[%s1003 + $0x1d00] sm:$0xf]
                  %1470 = vst [vmem:[%s1004 + $0x3a0] sm:$0xf] %v1469
                  %v1471 = vld [vmem:[%s1003 + $0x1d20] sm:$0xf]
                  %1472 = vst [vmem:[%s1004 + $0x3a4] sm:$0xf] %v1471
                  %v1473 = vld [vmem:[%s1003 + $0x1d40] sm:$0xf]
                  %1474 = vst [vmem:[%s1004 + $0x3a8] sm:$0xf] %v1473
                  %v1475 = vld [vmem:[%s1003 + $0x1d60] sm:$0xf]
                  %1476 = vst [vmem:[%s1004 + $0x3ac] sm:$0xf] %v1475
                  %v1477 = vld [vmem:[%s1003 + $0x1d80] sm:$0xf]
                  %1478 = vst [vmem:[%s1004 + $0x3b0] sm:$0xf] %v1477
                  %v1479 = vld [vmem:[%s1003 + $0x1da0] sm:$0xf]
                  %1480 = vst [vmem:[%s1004 + $0x3b4] sm:$0xf] %v1479
                  %v1481 = vld [vmem:[%s1003 + $0x1dc0] sm:$0xf]
                  %1482 = vst [vmem:[%s1004 + $0x3b8] sm:$0xf] %v1481
                  %v1483 = vld [vmem:[%s1003 + $0x1de0] sm:$0xf]
                  %1484 = vst [vmem:[%s1004 + $0x3bc] sm:$0xf] %v1483
                  %v1485 = vld [vmem:[%s1003 + $0x1e00] sm:$0xf]
                  %1486 = vst [vmem:[%s1004 + $0x3c0] sm:$0xf] %v1485
                  %v1487 = vld [vmem:[%s1003 + $0x1e20] sm:$0xf]
                  %1488 = vst [vmem:[%s1004 + $0x3c4] sm:$0xf] %v1487
                  %v1489 = vld [vmem:[%s1003 + $0x1e40] sm:$0xf]
                  %1490 = vst [vmem:[%s1004 + $0x3c8] sm:$0xf] %v1489
                  %v1491 = vld [vmem:[%s1003 + $0x1e60] sm:$0xf]
                  %1492 = vst [vmem:[%s1004 + $0x3cc] sm:$0xf] %v1491
                  %v1493 = vld [vmem:[%s1003 + $0x1e80] sm:$0xf]
                  %1494 = vst [vmem:[%s1004 + $0x3d0] sm:$0xf] %v1493
                  %v1495 = vld [vmem:[%s1003 + $0x1ea0] sm:$0xf]
                  %1496 = vst [vmem:[%s1004 + $0x3d4] sm:$0xf] %v1495
                  %v1497 = vld [vmem:[%s1003 + $0x1ec0] sm:$0xf]
                  %1498 = vst [vmem:[%s1004 + $0x3d8] sm:$0xf] %v1497
                  %v1499 = vld [vmem:[%s1003 + $0x1ee0] sm:$0xf]
                  %1500 = vst [vmem:[%s1004 + $0x3dc] sm:$0xf] %v1499
                  %v1501 = vld [vmem:[%s1003 + $0x1f00] sm:$0xf]
                  %1502 = vst [vmem:[%s1004 + $0x3e0] sm:$0xf] %v1501
                  %v1503 = vld [vmem:[%s1003 + $0x1f20] sm:$0xf]
                  %1504 = vst [vmem:[%s1004 + $0x3e4] sm:$0xf] %v1503
                  %v1505 = vld [vmem:[%s1003 + $0x1f40] sm:$0xf]
                  %1506 = vst [vmem:[%s1004 + $0x3e8] sm:$0xf] %v1505
                  %v1507 = vld [vmem:[%s1003 + $0x1f60] sm:$0xf]
                  %1508 = vst [vmem:[%s1004 + $0x3ec] sm:$0xf] %v1507
                  %v1509 = vld [vmem:[%s1003 + $0x1f80] sm:$0xf]
                  %1510 = vst [vmem:[%s1004 + $0x3f0] sm:$0xf] %v1509
                  %v1511 = vld [vmem:[%s1003 + $0x1fa0] sm:$0xf]
                  %1512 = vst [vmem:[%s1004 + $0x3f4] sm:$0xf] %v1511
                  %v1513 = vld [vmem:[%s1003 + $0x1fc0] sm:$0xf]
                  %1514 = vst [vmem:[%s1004 + $0x3f8] sm:$0xf] %v1513
                  %v1515 = vld [vmem:[%s1003 + $0x1fe0] sm:$0xf]
                  %1516 = vst [vmem:[%s1004 + $0x3fc] sm:$0xf] %v1515
                  %v1517 = vld [vmem:[%s1003 + $0x2000] sm:$0xf]
                  %1518 = vst [vmem:[%s1004 + $0x400] sm:$0xf] %v1517
                  %v1519 = vld [vmem:[%s1003 + $0x2020] sm:$0xf]
                  %1520 = vst [vmem:[%s1004 + $0x404] sm:$0xf] %v1519
                  %v1521 = vld [vmem:[%s1003 + $0x2040] sm:$0xf]
                  %1522 = vst [vmem:[%s1004 + $0x408] sm:$0xf] %v1521
                  %v1523 = vld [vmem:[%s1003 + $0x2060] sm:$0xf]
                  %1524 = vst [vmem:[%s1004 + $0x40c] sm:$0xf] %v1523
                  %v1525 = vld [vmem:[%s1003 + $0x2080] sm:$0xf]
                  %1526 = vst [vmem:[%s1004 + $0x410] sm:$0xf] %v1525
                  %v1527 = vld [vmem:[%s1003 + $0x20a0] sm:$0xf]
                  %1528 = vst [vmem:[%s1004 + $0x414] sm:$0xf] %v1527
                  %v1529 = vld [vmem:[%s1003 + $0x20c0] sm:$0xf]
                  %1530 = vst [vmem:[%s1004 + $0x418] sm:$0xf] %v1529
                  %v1531 = vld [vmem:[%s1003 + $0x20e0] sm:$0xf]
                  %1532 = vst [vmem:[%s1004 + $0x41c] sm:$0xf] %v1531
                  %v1533 = vld [vmem:[%s1003 + $0x2100] sm:$0xf]
                  %1534 = vst [vmem:[%s1004 + $0x420] sm:$0xf] %v1533
                  %v1535 = vld [vmem:[%s1003 + $0x2120] sm:$0xf]
                  %1536 = vst [vmem:[%s1004 + $0x424] sm:$0xf] %v1535
                  %v1537 = vld [vmem:[%s1003 + $0x2140] sm:$0xf]
                  %1538 = vst [vmem:[%s1004 + $0x428] sm:$0xf] %v1537
                  %v1539 = vld [vmem:[%s1003 + $0x2160] sm:$0xf]
                  %1540 = vst [vmem:[%s1004 + $0x42c] sm:$0xf] %v1539
                  %v1541 = vld [vmem:[%s1003 + $0x2180] sm:$0xf]
                  %1542 = vst [vmem:[%s1004 + $0x430] sm:$0xf] %v1541
                  %v1543 = vld [vmem:[%s1003 + $0x21a0] sm:$0xf]
                  %1544 = vst [vmem:[%s1004 + $0x434] sm:$0xf] %v1543
                  %v1545 = vld [vmem:[%s1003 + $0x21c0] sm:$0xf]
                  %1546 = vst [vmem:[%s1004 + $0x438] sm:$0xf] %v1545
                  %v1547 = vld [vmem:[%s1003 + $0x21e0] sm:$0xf]
                  %1548 = vst [vmem:[%s1004 + $0x43c] sm:$0xf] %v1547
                  %v1549 = vld [vmem:[%s1003 + $0x2200] sm:$0xf]
                  %1550 = vst [vmem:[%s1004 + $0x440] sm:$0xf] %v1549
                  %v1551 = vld [vmem:[%s1003 + $0x2220] sm:$0xf]
                  %1552 = vst [vmem:[%s1004 + $0x444] sm:$0xf] %v1551
                  %v1553 = vld [vmem:[%s1003 + $0x2240] sm:$0xf]
                  %1554 = vst [vmem:[%s1004 + $0x448] sm:$0xf] %v1553
                  %v1555 = vld [vmem:[%s1003 + $0x2260] sm:$0xf]
                  %1556 = vst [vmem:[%s1004 + $0x44c] sm:$0xf] %v1555
                  %v1557 = vld [vmem:[%s1003 + $0x2280] sm:$0xf]
                  %1558 = vst [vmem:[%s1004 + $0x450] sm:$0xf] %v1557
                  %v1559 = vld [vmem:[%s1003 + $0x22a0] sm:$0xf]
                  %1560 = vst [vmem:[%s1004 + $0x454] sm:$0xf] %v1559
                  %v1561 = vld [vmem:[%s1003 + $0x22c0] sm:$0xf]
                  %1562 = vst [vmem:[%s1004 + $0x458] sm:$0xf] %v1561
                  %v1563 = vld [vmem:[%s1003 + $0x22e0] sm:$0xf]
                  %1564 = vst [vmem:[%s1004 + $0x45c] sm:$0xf] %v1563
                  %v1565 = vld [vmem:[%s1003 + $0x2300] sm:$0xf]
                  %1566 = vst [vmem:[%s1004 + $0x460] sm:$0xf] %v1565
                  %v1567 = vld [vmem:[%s1003 + $0x2320] sm:$0xf]
                  %1568 = vst [vmem:[%s1004 + $0x464] sm:$0xf] %v1567
                  %v1569 = vld [vmem:[%s1003 + $0x2340] sm:$0xf]
                  %1570 = vst [vmem:[%s1004 + $0x468] sm:$0xf] %v1569
                  %v1571 = vld [vmem:[%s1003 + $0x2360] sm:$0xf]
                  %1572 = vst [vmem:[%s1004 + $0x46c] sm:$0xf] %v1571
                  %v1573 = vld [vmem:[%s1003 + $0x2380] sm:$0xf]
                  %1574 = vst [vmem:[%s1004 + $0x470] sm:$0xf] %v1573
                  %v1575 = vld [vmem:[%s1003 + $0x23a0] sm:$0xf]
                  %1576 = vst [vmem:[%s1004 + $0x474] sm:$0xf] %v1575
                  %v1577 = vld [vmem:[%s1003 + $0x23c0] sm:$0xf]
                  %1578 = vst [vmem:[%s1004 + $0x478] sm:$0xf] %v1577
                  %v1579 = vld [vmem:[%s1003 + $0x23e0] sm:$0xf]
                  %1580 = vst [vmem:[%s1004 + $0x47c] sm:$0xf] %v1579
                  %v1581 = vld [vmem:[%s1003 + $0x2400] sm:$0xf]
                  %1582 = vst [vmem:[%s1004 + $0x480] sm:$0xf] %v1581
                  %v1583 = vld [vmem:[%s1003 + $0x2420] sm:$0xf]
                  %1584 = vst [vmem:[%s1004 + $0x484] sm:$0xf] %v1583
                  %v1585 = vld [vmem:[%s1003 + $0x2440] sm:$0xf]
                  %1586 = vst [vmem:[%s1004 + $0x488] sm:$0xf] %v1585
                  %v1587 = vld [vmem:[%s1003 + $0x2460] sm:$0xf]
                  %1588 = vst [vmem:[%s1004 + $0x48c] sm:$0xf] %v1587
                  %v1589 = vld [vmem:[%s1003 + $0x2480] sm:$0xf]
                  %1590 = vst [vmem:[%s1004 + $0x490] sm:$0xf] %v1589
                  %v1591 = vld [vmem:[%s1003 + $0x24a0] sm:$0xf]
                  %1592 = vst [vmem:[%s1004 + $0x494] sm:$0xf] %v1591
                  %v1593 = vld [vmem:[%s1003 + $0x24c0] sm:$0xf]
                  %1594 = vst [vmem:[%s1004 + $0x498] sm:$0xf] %v1593
                  %v1595 = vld [vmem:[%s1003 + $0x24e0] sm:$0xf]
                  %1596 = vst [vmem:[%s1004 + $0x49c] sm:$0xf] %v1595
                  %v1597 = vld [vmem:[%s1003 + $0x2500] sm:$0xf]
                  %1598 = vst [vmem:[%s1004 + $0x4a0] sm:$0xf] %v1597
                  %v1599 = vld [vmem:[%s1003 + $0x2520] sm:$0xf]
                  %1600 = vst [vmem:[%s1004 + $0x4a4] sm:$0xf] %v1599
                  %v1601 = vld [vmem:[%s1003 + $0x2540] sm:$0xf]
                  %1602 = vst [vmem:[%s1004 + $0x4a8] sm:$0xf] %v1601
                  %v1603 = vld [vmem:[%s1003 + $0x2560] sm:$0xf]
                  %1604 = vst [vmem:[%s1004 + $0x4ac] sm:$0xf] %v1603
                  %v1605 = vld [vmem:[%s1003 + $0x2580] sm:$0xf]
                  %1606 = vst [vmem:[%s1004 + $0x4b0] sm:$0xf] %v1605
                  %v1607 = vld [vmem:[%s1003 + $0x25a0] sm:$0xf]
                  %1608 = vst [vmem:[%s1004 + $0x4b4] sm:$0xf] %v1607
                  %v1609 = vld [vmem:[%s1003 + $0x25c0] sm:$0xf]
                  %1610 = vst [vmem:[%s1004 + $0x4b8] sm:$0xf] %v1609
                  %v1611 = vld [vmem:[%s1003 + $0x25e0] sm:$0xf]
                  %1612 = vst [vmem:[%s1004 + $0x4bc] sm:$0xf] %v1611
                  %v1613 = vld [vmem:[%s1003 + $0x2600] sm:$0xf]
                  %1614 = vst [vmem:[%s1004 + $0x4c0] sm:$0xf] %v1613
                  %v1615 = vld [vmem:[%s1003 + $0x2620] sm:$0xf]
                  %1616 = vst [vmem:[%s1004 + $0x4c4] sm:$0xf] %v1615
                  %v1617 = vld [vmem:[%s1003 + $0x2640] sm:$0xf]
                  %1618 = vst [vmem:[%s1004 + $0x4c8] sm:$0xf] %v1617
                  %v1619 = vld [vmem:[%s1003 + $0x2660] sm:$0xf]
                  %1620 = vst [vmem:[%s1004 + $0x4cc] sm:$0xf] %v1619
                  %v1621 = vld [vmem:[%s1003 + $0x2680] sm:$0xf]
                  %1622 = vst [vmem:[%s1004 + $0x4d0] sm:$0xf] %v1621
                  %v1623 = vld [vmem:[%s1003 + $0x26a0] sm:$0xf]
                  %1624 = vst [vmem:[%s1004 + $0x4d4] sm:$0xf] %v1623
                  %v1625 = vld [vmem:[%s1003 + $0x26c0] sm:$0xf]
                  %1626 = vst [vmem:[%s1004 + $0x4d8] sm:$0xf] %v1625
                  %v1627 = vld [vmem:[%s1003 + $0x26e0] sm:$0xf]
                  %1628 = vst [vmem:[%s1004 + $0x4dc] sm:$0xf] %v1627
                  %v1629 = vld [vmem:[%s1003 + $0x2700] sm:$0xf]
                  %1630 = vst [vmem:[%s1004 + $0x4e0] sm:$0xf] %v1629
                  %v1631 = vld [vmem:[%s1003 + $0x2720] sm:$0xf]
                  %1632 = vst [vmem:[%s1004 + $0x4e4] sm:$0xf] %v1631
                  %v1633 = vld [vmem:[%s1003 + $0x2740] sm:$0xf]
                  %1634 = vst [vmem:[%s1004 + $0x4e8] sm:$0xf] %v1633
                  %v1635 = vld [vmem:[%s1003 + $0x2760] sm:$0xf]
                  %1636 = vst [vmem:[%s1004 + $0x4ec] sm:$0xf] %v1635
                  %v1637 = vld [vmem:[%s1003 + $0x2780] sm:$0xf]
                  %1638 = vst [vmem:[%s1004 + $0x4f0] sm:$0xf] %v1637
                  %v1639 = vld [vmem:[%s1003 + $0x27a0] sm:$0xf]
                  %1640 = vst [vmem:[%s1004 + $0x4f4] sm:$0xf] %v1639
                  %v1641 = vld [vmem:[%s1003 + $0x27c0] sm:$0xf]
                  %1642 = vst [vmem:[%s1004 + $0x4f8] sm:$0xf] %v1641
                  %v1643 = vld [vmem:[%s1003 + $0x27e0] sm:$0xf]
                  %1644 = vst [vmem:[%s1004 + $0x4fc] sm:$0xf] %v1643
                  %v1645 = vld [vmem:[%s1003 + $0x2800] sm:$0xf]
                  %1646 = vst [vmem:[%s1004 + $0x500] sm:$0xf] %v1645
                  %v1647 = vld [vmem:[%s1003 + $0x2820] sm:$0xf]
                  %1648 = vst [vmem:[%s1004 + $0x504] sm:$0xf] %v1647
                  %v1649 = vld [vmem:[%s1003 + $0x2840] sm:$0xf]
                  %1650 = vst [vmem:[%s1004 + $0x508] sm:$0xf] %v1649
                  %v1651 = vld [vmem:[%s1003 + $0x2860] sm:$0xf]
                  %1652 = vst [vmem:[%s1004 + $0x50c] sm:$0xf] %v1651
                  %v1653 = vld [vmem:[%s1003 + $0x2880] sm:$0xf]
                  %1654 = vst [vmem:[%s1004 + $0x510] sm:$0xf] %v1653
                  %v1655 = vld [vmem:[%s1003 + $0x28a0] sm:$0xf]
                  %1656 = vst [vmem:[%s1004 + $0x514] sm:$0xf] %v1655
                  %v1657 = vld [vmem:[%s1003 + $0x28c0] sm:$0xf]
                  %1658 = vst [vmem:[%s1004 + $0x518] sm:$0xf] %v1657
                  %v1659 = vld [vmem:[%s1003 + $0x28e0] sm:$0xf]
                  %1660 = vst [vmem:[%s1004 + $0x51c] sm:$0xf] %v1659
                  %v1661 = vld [vmem:[%s1003 + $0x2900] sm:$0xf]
                  %1662 = vst [vmem:[%s1004 + $0x520] sm:$0xf] %v1661
                  %v1663 = vld [vmem:[%s1003 + $0x2920] sm:$0xf]
                  %1664 = vst [vmem:[%s1004 + $0x524] sm:$0xf] %v1663
                  %v1665 = vld [vmem:[%s1003 + $0x2940] sm:$0xf]
                  %1666 = vst [vmem:[%s1004 + $0x528] sm:$0xf] %v1665
                  %v1667 = vld [vmem:[%s1003 + $0x2960] sm:$0xf]
                  %1668 = vst [vmem:[%s1004 + $0x52c] sm:$0xf] %v1667
                  %v1669 = vld [vmem:[%s1003 + $0x2980] sm:$0xf]
                  %1670 = vst [vmem:[%s1004 + $0x530] sm:$0xf] %v1669
                  %v1671 = vld [vmem:[%s1003 + $0x29a0] sm:$0xf]
                  %1672 = vst [vmem:[%s1004 + $0x534] sm:$0xf] %v1671
                  %v1673 = vld [vmem:[%s1003 + $0x29c0] sm:$0xf]
                  %1674 = vst [vmem:[%s1004 + $0x538] sm:$0xf] %v1673
                  %v1675 = vld [vmem:[%s1003 + $0x29e0] sm:$0xf]
                  %1676 = vst [vmem:[%s1004 + $0x53c] sm:$0xf] %v1675
                  %v1677 = vld [vmem:[%s1003 + $0x2a00] sm:$0xf]
                  %1678 = vst [vmem:[%s1004 + $0x540] sm:$0xf] %v1677
                  %v1679 = vld [vmem:[%s1003 + $0x2a20] sm:$0xf]
                  %1680 = vst [vmem:[%s1004 + $0x544] sm:$0xf] %v1679
                  %v1681 = vld [vmem:[%s1003 + $0x2a40] sm:$0xf]
                  %1682 = vst [vmem:[%s1004 + $0x548] sm:$0xf] %v1681
                  %v1683 = vld [vmem:[%s1003 + $0x2a60] sm:$0xf]
                  %1684 = vst [vmem:[%s1004 + $0x54c] sm:$0xf] %v1683
                  %v1685 = vld [vmem:[%s1003 + $0x2a80] sm:$0xf]
                  %1686 = vst [vmem:[%s1004 + $0x550] sm:$0xf] %v1685
                  %v1687 = vld [vmem:[%s1003 + $0x2aa0] sm:$0xf]
                  %1688 = vst [vmem:[%s1004 + $0x554] sm:$0xf] %v1687
                  %v1689 = vld [vmem:[%s1003 + $0x2ac0] sm:$0xf]
                  %1690 = vst [vmem:[%s1004 + $0x558] sm:$0xf] %v1689
                  %v1691 = vld [vmem:[%s1003 + $0x2ae0] sm:$0xf]
                  %1692 = vst [vmem:[%s1004 + $0x55c] sm:$0xf] %v1691
                  %v1693 = vld [vmem:[%s1003 + $0x2b00] sm:$0xf]
                  %1694 = vst [vmem:[%s1004 + $0x560] sm:$0xf] %v1693
                  %v1695 = vld [vmem:[%s1003 + $0x2b20] sm:$0xf]
                  %1696 = vst [vmem:[%s1004 + $0x564] sm:$0xf] %v1695
                  %v1697 = vld [vmem:[%s1003 + $0x2b40] sm:$0xf]
                  %1698 = vst [vmem:[%s1004 + $0x568] sm:$0xf] %v1697
                  %v1699 = vld [vmem:[%s1003 + $0x2b60] sm:$0xf]
                  %1700 = vst [vmem:[%s1004 + $0x56c] sm:$0xf] %v1699
                  %v1701 = vld [vmem:[%s1003 + $0x2b80] sm:$0xf]
                  %1702 = vst [vmem:[%s1004 + $0x570] sm:$0xf] %v1701
                  %v1703 = vld [vmem:[%s1003 + $0x2ba0] sm:$0xf]
                  %1704 = vst [vmem:[%s1004 + $0x574] sm:$0xf] %v1703
                  %v1705 = vld [vmem:[%s1003 + $0x2bc0] sm:$0xf]
                  %1706 = vst [vmem:[%s1004 + $0x578] sm:$0xf] %v1705
                  %v1707 = vld [vmem:[%s1003 + $0x2be0] sm:$0xf]
                  %1708 = vst [vmem:[%s1004 + $0x57c] sm:$0xf] %v1707
                  %v1709 = vld [vmem:[%s1003 + $0x2c00] sm:$0xf]
                  %1710 = vst [vmem:[%s1004 + $0x580] sm:$0xf] %v1709
                  %v1711 = vld [vmem:[%s1003 + $0x2c20] sm:$0xf]
                  %1712 = vst [vmem:[%s1004 + $0x584] sm:$0xf] %v1711
                  %v1713 = vld [vmem:[%s1003 + $0x2c40] sm:$0xf]
                  %1714 = vst [vmem:[%s1004 + $0x588] sm:$0xf] %v1713
                  %v1715 = vld [vmem:[%s1003 + $0x2c60] sm:$0xf]
                  %1716 = vst [vmem:[%s1004 + $0x58c] sm:$0xf] %v1715
                  %v1717 = vld [vmem:[%s1003 + $0x2c80] sm:$0xf]
                  %1718 = vst [vmem:[%s1004 + $0x590] sm:$0xf] %v1717
                  %v1719 = vld [vmem:[%s1003 + $0x2ca0] sm:$0xf]
                  %1720 = vst [vmem:[%s1004 + $0x594] sm:$0xf] %v1719
                  %v1721 = vld [vmem:[%s1003 + $0x2cc0] sm:$0xf]
                  %1722 = vst [vmem:[%s1004 + $0x598] sm:$0xf] %v1721
                  %v1723 = vld [vmem:[%s1003 + $0x2ce0] sm:$0xf]
                  %1724 = vst [vmem:[%s1004 + $0x59c] sm:$0xf] %v1723
                  %v1725 = vld [vmem:[%s1003 + $0x2d00] sm:$0xf]
                  %1726 = vst [vmem:[%s1004 + $0x5a0] sm:$0xf] %v1725
                  %v1727 = vld [vmem:[%s1003 + $0x2d20] sm:$0xf]
                  %1728 = vst [vmem:[%s1004 + $0x5a4] sm:$0xf] %v1727
                  %v1729 = vld [vmem:[%s1003 + $0x2d40] sm:$0xf]
                  %1730 = vst [vmem:[%s1004 + $0x5a8] sm:$0xf] %v1729
                  %v1731 = vld [vmem:[%s1003 + $0x2d60] sm:$0xf]
                  %1732 = vst [vmem:[%s1004 + $0x5ac] sm:$0xf] %v1731
                  %v1733 = vld [vmem:[%s1003 + $0x2d80] sm:$0xf]
                  %1734 = vst [vmem:[%s1004 + $0x5b0] sm:$0xf] %v1733
                  %v1735 = vld [vmem:[%s1003 + $0x2da0] sm:$0xf]
                  %1736 = vst [vmem:[%s1004 + $0x5b4] sm:$0xf] %v1735
                  %v1737 = vld [vmem:[%s1003 + $0x2dc0] sm:$0xf]
                  %1738 = vst [vmem:[%s1004 + $0x5b8] sm:$0xf] %v1737
                  %v1739 = vld [vmem:[%s1003 + $0x2de0] sm:$0xf]
                  %1740 = vst [vmem:[%s1004 + $0x5bc] sm:$0xf] %v1739
                  %v1741 = vld [vmem:[%s1003 + $0x2e00] sm:$0xf]
                  %1742 = vst [vmem:[%s1004 + $0x5c0] sm:$0xf] %v1741
                  %v1743 = vld [vmem:[%s1003 + $0x2e20] sm:$0xf]
                  %1744 = vst [vmem:[%s1004 + $0x5c4] sm:$0xf] %v1743
                  %v1745 = vld [vmem:[%s1003 + $0x2e40] sm:$0xf]
                  %1746 = vst [vmem:[%s1004 + $0x5c8] sm:$0xf] %v1745
                  %v1747 = vld [vmem:[%s1003 + $0x2e60] sm:$0xf]
                  %1748 = vst [vmem:[%s1004 + $0x5cc] sm:$0xf] %v1747
                  %v1749 = vld [vmem:[%s1003 + $0x2e80] sm:$0xf]
                  %1750 = vst [vmem:[%s1004 + $0x5d0] sm:$0xf] %v1749
                  %v1751 = vld [vmem:[%s1003 + $0x2ea0] sm:$0xf]
                  %1752 = vst [vmem:[%s1004 + $0x5d4] sm:$0xf] %v1751
                  %v1753 = vld [vmem:[%s1003 + $0x2ec0] sm:$0xf]
                  %1754 = vst [vmem:[%s1004 + $0x5d8] sm:$0xf] %v1753
                  %v1755 = vld [vmem:[%s1003 + $0x2ee0] sm:$0xf]
                  %1756 = vst [vmem:[%s1004 + $0x5dc] sm:$0xf] %v1755
                  %v1757 = vld [vmem:[%s1003 + $0x2f00] sm:$0xf]
                  %1758 = vst [vmem:[%s1004 + $0x5e0] sm:$0xf] %v1757
                  %v1759 = vld [vmem:[%s1003 + $0x2f20] sm:$0xf]
                  %1760 = vst [vmem:[%s1004 + $0x5e4] sm:$0xf] %v1759
                  %v1761 = vld [vmem:[%s1003 + $0x2f40] sm:$0xf]
                  %1762 = vst [vmem:[%s1004 + $0x5e8] sm:$0xf] %v1761
                  %v1763 = vld [vmem:[%s1003 + $0x2f60] sm:$0xf]
                  %1764 = vst [vmem:[%s1004 + $0x5ec] sm:$0xf] %v1763
                  %v1765 = vld [vmem:[%s1003 + $0x2f80] sm:$0xf]
                  %1766 = vst [vmem:[%s1004 + $0x5f0] sm:$0xf] %v1765
                  %v1767 = vld [vmem:[%s1003 + $0x2fa0] sm:$0xf]
                  %1768 = vst [vmem:[%s1004 + $0x5f4] sm:$0xf] %v1767
                  %v1769 = vld [vmem:[%s1003 + $0x2fc0] sm:$0xf]
                  %1770 = vst [vmem:[%s1004 + $0x5f8] sm:$0xf] %v1769
                  %v1771 = vld [vmem:[%s1003 + $0x2fe0] sm:$0xf]
                  %1772 = vst [vmem:[%s1004 + $0x5fc] sm:$0xf] %v1771
                  %v1773 = vld [vmem:[%s1003 + $0x3000] sm:$0xf]
                  %1774 = vst [vmem:[%s1004 + $0x600] sm:$0xf] %v1773
                  %v1775 = vld [vmem:[%s1003 + $0x3020] sm:$0xf]
                  %1776 = vst [vmem:[%s1004 + $0x604] sm:$0xf] %v1775
                  %v1777 = vld [vmem:[%s1003 + $0x3040] sm:$0xf]
                  %1778 = vst [vmem:[%s1004 + $0x608] sm:$0xf] %v1777
                  %v1779 = vld [vmem:[%s1003 + $0x3060] sm:$0xf]
                  %1780 = vst [vmem:[%s1004 + $0x60c] sm:$0xf] %v1779
                  %v1781 = vld [vmem:[%s1003 + $0x3080] sm:$0xf]
                  %1782 = vst [vmem:[%s1004 + $0x610] sm:$0xf] %v1781
                  %v1783 = vld [vmem:[%s1003 + $0x30a0] sm:$0xf]
                  %1784 = vst [vmem:[%s1004 + $0x614] sm:$0xf] %v1783
                  %v1785 = vld [vmem:[%s1003 + $0x30c0] sm:$0xf]
                  %1786 = vst [vmem:[%s1004 + $0x618] sm:$0xf] %v1785
                  %v1787 = vld [vmem:[%s1003 + $0x30e0] sm:$0xf]
                  %1788 = vst [vmem:[%s1004 + $0x61c] sm:$0xf] %v1787
                $region63: #{cnn_forward.5} parent=50 // loop_footer
                  %s1002 = sadd.s32 1, %s998
                $region64: #{cnn_forward.5} parent=50 // loop_footer_branch
                  %997 = sbr.rel target = $region60
                $region65: #{cnn_forward.5} parent=50 // loop_exit
                  _
              $region51: #{cnn_forward.5} parent=35 // pred_fallthru
                _
            $region36: #{cnn_forward.5} parent=31 // pred_fallthru
              _
            // Predicated region
            $region37: #{cnn_forward.5} parent=31 // pred_check
              _
            $region38: #{cnn_forward.5} parent=31 // pred_check_branch
              %192 = sbr.rel (0) target = $region40
            $region39: #{cnn_forward.5} parent=31 // pred_region
              loop: start=0, step=1, limit=1
              $region41: #{cnn_forward.5} parent=39 // loop_pre_header
                _
              $region42: #{cnn_forward.5} parent=39 // loop_header
                %s195 = sphi 0, %s199
                %p196 = scmp.ge.s32.totalorder %s195, 1
                %s200 = sphi %s186, %s186
                %s201 = sphi %s184, %s184
              $region43: #{cnn_forward.5} parent=39 // loop_header_branch
                %198 = sbr.rel (%p196) target = $region47
              $region44: #{cnn_forward.5} parent=39 // loop_body
                %v202 = vld [vmem:[%s200] sm:$0xf]
                %203 = vst [vmem:[%s201] sm:$0xf] %v202
                %v204 = vld [vmem:[%s200 + $0x20] sm:$0xf]
                %205 = vst [vmem:[%s201 + $0x4] sm:$0xf] %v204
                %v206 = vld [vmem:[%s200 + $0x40] sm:$0xf]
                %207 = vst [vmem:[%s201 + $0x8] sm:$0xf] %v206
                %v208 = vld [vmem:[%s200 + $0x60] sm:$0xf]
                %209 = vst [vmem:[%s201 + $0xc] sm:$0xf] %v208
                %v210 = vld [vmem:[%s200 + $0x80] sm:$0xf]
                %211 = vst [vmem:[%s201 + $0x10] sm:$0xf] %v210
                %v212 = vld [vmem:[%s200 + $0xa0] sm:$0xf]
                %213 = vst [vmem:[%s201 + $0x14] sm:$0xf] %v212
                %v214 = vld [vmem:[%s200 + $0xc0] sm:$0xf]
                %215 = vst [vmem:[%s201 + $0x18] sm:$0xf] %v214
                %v216 = vld [vmem:[%s200 + $0xe0] sm:$0xf]
                %217 = vst [vmem:[%s201 + $0x1c] sm:$0xf] %v216
                %v218 = vld [vmem:[%s200 + $0x100] sm:$0xf]
                %219 = vst [vmem:[%s201 + $0x20] sm:$0xf] %v218
                %v220 = vld [vmem:[%s200 + $0x120] sm:$0xf]
                %221 = vst [vmem:[%s201 + $0x24] sm:$0xf] %v220
                %v222 = vld [vmem:[%s200 + $0x140] sm:$0xf]
                %223 = vst [vmem:[%s201 + $0x28] sm:$0xf] %v222
                %v224 = vld [vmem:[%s200 + $0x160] sm:$0xf]
                %225 = vst [vmem:[%s201 + $0x2c] sm:$0xf] %v224
                %v226 = vld [vmem:[%s200 + $0x180] sm:$0xf]
                %227 = vst [vmem:[%s201 + $0x30] sm:$0xf] %v226
                %v228 = vld [vmem:[%s200 + $0x1a0] sm:$0xf]
                %229 = vst [vmem:[%s201 + $0x34] sm:$0xf] %v228
                %v230 = vld [vmem:[%s200 + $0x1c0] sm:$0xf]
                %231 = vst [vmem:[%s201 + $0x38] sm:$0xf] %v230
                %v232 = vld [vmem:[%s200 + $0x1e0] sm:$0xf]
                %233 = vst [vmem:[%s201 + $0x3c] sm:$0xf] %v232
                %v234 = vld [vmem:[%s200 + $0x200] sm:$0xf]
                %235 = vst [vmem:[%s201 + $0x40] sm:$0xf] %v234
                %v236 = vld [vmem:[%s200 + $0x220] sm:$0xf]
                %237 = vst [vmem:[%s201 + $0x44] sm:$0xf] %v236
                %v238 = vld [vmem:[%s200 + $0x240] sm:$0xf]
                %239 = vst [vmem:[%s201 + $0x48] sm:$0xf] %v238
                %v240 = vld [vmem:[%s200 + $0x260] sm:$0xf]
                %241 = vst [vmem:[%s201 + $0x4c] sm:$0xf] %v240
                %v242 = vld [vmem:[%s200 + $0x280] sm:$0xf]
                %243 = vst [vmem:[%s201 + $0x50] sm:$0xf] %v242
                %v244 = vld [vmem:[%s200 + $0x2a0] sm:$0xf]
                %245 = vst [vmem:[%s201 + $0x54] sm:$0xf] %v244
                %v246 = vld [vmem:[%s200 + $0x2c0] sm:$0xf]
                %247 = vst [vmem:[%s201 + $0x58] sm:$0xf] %v246
                %v248 = vld [vmem:[%s200 + $0x2e0] sm:$0xf]
                %249 = vst [vmem:[%s201 + $0x5c] sm:$0xf] %v248
                %v250 = vld [vmem:[%s200 + $0x300] sm:$0xf]
                %251 = vst [vmem:[%s201 + $0x60] sm:$0xf] %v250
                %v252 = vld [vmem:[%s200 + $0x320] sm:$0xf]
                %253 = vst [vmem:[%s201 + $0x64] sm:$0xf] %v252
                %v254 = vld [vmem:[%s200 + $0x340] sm:$0xf]
                %255 = vst [vmem:[%s201 + $0x68] sm:$0xf] %v254
                %v256 = vld [vmem:[%s200 + $0x360] sm:$0xf]
                %257 = vst [vmem:[%s201 + $0x6c] sm:$0xf] %v256
                %v258 = vld [vmem:[%s200 + $0x380] sm:$0xf]
                %259 = vst [vmem:[%s201 + $0x70] sm:$0xf] %v258
                %v260 = vld [vmem:[%s200 + $0x3a0] sm:$0xf]
                %261 = vst [vmem:[%s201 + $0x74] sm:$0xf] %v260
                %v262 = vld [vmem:[%s200 + $0x3c0] sm:$0xf]
                %263 = vst [vmem:[%s201 + $0x78] sm:$0xf] %v262
                %v264 = vld [vmem:[%s200 + $0x3e0] sm:$0xf]
                %265 = vst [vmem:[%s201 + $0x7c] sm:$0xf] %v264
                %v266 = vld [vmem:[%s200 + $0x400] sm:$0xf]
                %267 = vst [vmem:[%s201 + $0x80] sm:$0xf] %v266
                %v268 = vld [vmem:[%s200 + $0x420] sm:$0xf]
                %269 = vst [vmem:[%s201 + $0x84] sm:$0xf] %v268
                %v270 = vld [vmem:[%s200 + $0x440] sm:$0xf]
                %271 = vst [vmem:[%s201 + $0x88] sm:$0xf] %v270
                %v272 = vld [vmem:[%s200 + $0x460] sm:$0xf]
                %273 = vst [vmem:[%s201 + $0x8c] sm:$0xf] %v272
                %v274 = vld [vmem:[%s200 + $0x480] sm:$0xf]
                %275 = vst [vmem:[%s201 + $0x90] sm:$0xf] %v274
                %v276 = vld [vmem:[%s200 + $0x4a0] sm:$0xf]
                %277 = vst [vmem:[%s201 + $0x94] sm:$0xf] %v276
                %v278 = vld [vmem:[%s200 + $0x4c0] sm:$0xf]
                %279 = vst [vmem:[%s201 + $0x98] sm:$0xf] %v278
                %v280 = vld [vmem:[%s200 + $0x4e0] sm:$0xf]
                %281 = vst [vmem:[%s201 + $0x9c] sm:$0xf] %v280
                %v282 = vld [vmem:[%s200 + $0x500] sm:$0xf]
                %283 = vst [vmem:[%s201 + $0xa0] sm:$0xf] %v282
                %v284 = vld [vmem:[%s200 + $0x520] sm:$0xf]
                %285 = vst [vmem:[%s201 + $0xa4] sm:$0xf] %v284
                %v286 = vld [vmem:[%s200 + $0x540] sm:$0xf]
                %287 = vst [vmem:[%s201 + $0xa8] sm:$0xf] %v286
                %v288 = vld [vmem:[%s200 + $0x560] sm:$0xf]
                %289 = vst [vmem:[%s201 + $0xac] sm:$0xf] %v288
                %v290 = vld [vmem:[%s200 + $0x580] sm:$0xf]
                %291 = vst [vmem:[%s201 + $0xb0] sm:$0xf] %v290
                %v292 = vld [vmem:[%s200 + $0x5a0] sm:$0xf]
                %293 = vst [vmem:[%s201 + $0xb4] sm:$0xf] %v292
                %v294 = vld [vmem:[%s200 + $0x5c0] sm:$0xf]
                %295 = vst [vmem:[%s201 + $0xb8] sm:$0xf] %v294
                %v296 = vld [vmem:[%s200 + $0x5e0] sm:$0xf]
                %297 = vst [vmem:[%s201 + $0xbc] sm:$0xf] %v296
                %v298 = vld [vmem:[%s200 + $0x600] sm:$0xf]
                %299 = vst [vmem:[%s201 + $0xc0] sm:$0xf] %v298
                %v300 = vld [vmem:[%s200 + $0x620] sm:$0xf]
                %301 = vst [vmem:[%s201 + $0xc4] sm:$0xf] %v300
                %v302 = vld [vmem:[%s200 + $0x640] sm:$0xf]
                %303 = vst [vmem:[%s201 + $0xc8] sm:$0xf] %v302
                %v304 = vld [vmem:[%s200 + $0x660] sm:$0xf]
                %305 = vst [vmem:[%s201 + $0xcc] sm:$0xf] %v304
                %v306 = vld [vmem:[%s200 + $0x680] sm:$0xf]
                %307 = vst [vmem:[%s201 + $0xd0] sm:$0xf] %v306
                %v308 = vld [vmem:[%s200 + $0x6a0] sm:$0xf]
                %309 = vst [vmem:[%s201 + $0xd4] sm:$0xf] %v308
                %v310 = vld [vmem:[%s200 + $0x6c0] sm:$0xf]
                %311 = vst [vmem:[%s201 + $0xd8] sm:$0xf] %v310
                %v312 = vld [vmem:[%s200 + $0x6e0] sm:$0xf]
                %313 = vst [vmem:[%s201 + $0xdc] sm:$0xf] %v312
                %v314 = vld [vmem:[%s200 + $0x700] sm:$0xf]
                %315 = vst [vmem:[%s201 + $0xe0] sm:$0xf] %v314
                %v316 = vld [vmem:[%s200 + $0x720] sm:$0xf]
                %317 = vst [vmem:[%s201 + $0xe4] sm:$0xf] %v316
                %v318 = vld [vmem:[%s200 + $0x740] sm:$0xf]
                %319 = vst [vmem:[%s201 + $0xe8] sm:$0xf] %v318
                %v320 = vld [vmem:[%s200 + $0x760] sm:$0xf]
                %321 = vst [vmem:[%s201 + $0xec] sm:$0xf] %v320
                %v322 = vld [vmem:[%s200 + $0x780] sm:$0xf]
                %323 = vst [vmem:[%s201 + $0xf0] sm:$0xf] %v322
                %v324 = vld [vmem:[%s200 + $0x7a0] sm:$0xf]
                %325 = vst [vmem:[%s201 + $0xf4] sm:$0xf] %v324
                %v326 = vld [vmem:[%s200 + $0x7c0] sm:$0xf]
                %327 = vst [vmem:[%s201 + $0xf8] sm:$0xf] %v326
                %v328 = vld [vmem:[%s200 + $0x7e0] sm:$0xf]
                %329 = vst [vmem:[%s201 + $0xfc] sm:$0xf] %v328
                %v330 = vld [vmem:[%s200 + $0x800] sm:$0xf]
                %331 = vst [vmem:[%s201 + $0x100] sm:$0xf] %v330
                %v332 = vld [vmem:[%s200 + $0x820] sm:$0xf]
                %333 = vst [vmem:[%s201 + $0x104] sm:$0xf] %v332
                %v334 = vld [vmem:[%s200 + $0x840] sm:$0xf]
                %335 = vst [vmem:[%s201 + $0x108] sm:$0xf] %v334
                %v336 = vld [vmem:[%s200 + $0x860] sm:$0xf]
                %337 = vst [vmem:[%s201 + $0x10c] sm:$0xf] %v336
                %v338 = vld [vmem:[%s200 + $0x880] sm:$0xf]
                %339 = vst [vmem:[%s201 + $0x110] sm:$0xf] %v338
                %v340 = vld [vmem:[%s200 + $0x8a0] sm:$0xf]
                %341 = vst [vmem:[%s201 + $0x114] sm:$0xf] %v340
                %v342 = vld [vmem:[%s200 + $0x8c0] sm:$0xf]
                %343 = vst [vmem:[%s201 + $0x118] sm:$0xf] %v342
                %v344 = vld [vmem:[%s200 + $0x8e0] sm:$0xf]
                %345 = vst [vmem:[%s201 + $0x11c] sm:$0xf] %v344
                %v346 = vld [vmem:[%s200 + $0x900] sm:$0xf]
                %347 = vst [vmem:[%s201 + $0x120] sm:$0xf] %v346
                %v348 = vld [vmem:[%s200 + $0x920] sm:$0xf]
                %349 = vst [vmem:[%s201 + $0x124] sm:$0xf] %v348
                %v350 = vld [vmem:[%s200 + $0x940] sm:$0xf]
                %351 = vst [vmem:[%s201 + $0x128] sm:$0xf] %v350
                %v352 = vld [vmem:[%s200 + $0x960] sm:$0xf]
                %353 = vst [vmem:[%s201 + $0x12c] sm:$0xf] %v352
                %v354 = vld [vmem:[%s200 + $0x980] sm:$0xf]
                %355 = vst [vmem:[%s201 + $0x130] sm:$0xf] %v354
                %v356 = vld [vmem:[%s200 + $0x9a0] sm:$0xf]
                %357 = vst [vmem:[%s201 + $0x134] sm:$0xf] %v356
                %v358 = vld [vmem:[%s200 + $0x9c0] sm:$0xf]
                %359 = vst [vmem:[%s201 + $0x138] sm:$0xf] %v358
                %v360 = vld [vmem:[%s200 + $0x9e0] sm:$0xf]
                %361 = vst [vmem:[%s201 + $0x13c] sm:$0xf] %v360
                %v362 = vld [vmem:[%s200 + $0xa00] sm:$0xf]
                %363 = vst [vmem:[%s201 + $0x140] sm:$0xf] %v362
                %v364 = vld [vmem:[%s200 + $0xa20] sm:$0xf]
                %365 = vst [vmem:[%s201 + $0x144] sm:$0xf] %v364
                %v366 = vld [vmem:[%s200 + $0xa40] sm:$0xf]
                %367 = vst [vmem:[%s201 + $0x148] sm:$0xf] %v366
                %v368 = vld [vmem:[%s200 + $0xa60] sm:$0xf]
                %369 = vst [vmem:[%s201 + $0x14c] sm:$0xf] %v368
                %v370 = vld [vmem:[%s200 + $0xa80] sm:$0xf]
                %371 = vst [vmem:[%s201 + $0x150] sm:$0xf] %v370
                %v372 = vld [vmem:[%s200 + $0xaa0] sm:$0xf]
                %373 = vst [vmem:[%s201 + $0x154] sm:$0xf] %v372
                %v374 = vld [vmem:[%s200 + $0xac0] sm:$0xf]
                %375 = vst [vmem:[%s201 + $0x158] sm:$0xf] %v374
                %v376 = vld [vmem:[%s200 + $0xae0] sm:$0xf]
                %377 = vst [vmem:[%s201 + $0x15c] sm:$0xf] %v376
                %v378 = vld [vmem:[%s200 + $0xb00] sm:$0xf]
                %379 = vst [vmem:[%s201 + $0x160] sm:$0xf] %v378
                %v380 = vld [vmem:[%s200 + $0xb20] sm:$0xf]
                %381 = vst [vmem:[%s201 + $0x164] sm:$0xf] %v380
                %v382 = vld [vmem:[%s200 + $0xb40] sm:$0xf]
                %383 = vst [vmem:[%s201 + $0x168] sm:$0xf] %v382
                %v384 = vld [vmem:[%s200 + $0xb60] sm:$0xf]
                %385 = vst [vmem:[%s201 + $0x16c] sm:$0xf] %v384
                %v386 = vld [vmem:[%s200 + $0xb80] sm:$0xf]
                %387 = vst [vmem:[%s201 + $0x170] sm:$0xf] %v386
                %v388 = vld [vmem:[%s200 + $0xba0] sm:$0xf]
                %389 = vst [vmem:[%s201 + $0x174] sm:$0xf] %v388
                %v390 = vld [vmem:[%s200 + $0xbc0] sm:$0xf]
                %391 = vst [vmem:[%s201 + $0x178] sm:$0xf] %v390
                %v392 = vld [vmem:[%s200 + $0xbe0] sm:$0xf]
                %393 = vst [vmem:[%s201 + $0x17c] sm:$0xf] %v392
                %v394 = vld [vmem:[%s200 + $0xc00] sm:$0xf]
                %395 = vst [vmem:[%s201 + $0x180] sm:$0xf] %v394
                %v396 = vld [vmem:[%s200 + $0xc20] sm:$0xf]
                %397 = vst [vmem:[%s201 + $0x184] sm:$0xf] %v396
                %v398 = vld [vmem:[%s200 + $0xc40] sm:$0xf]
                %399 = vst [vmem:[%s201 + $0x188] sm:$0xf] %v398
                %v400 = vld [vmem:[%s200 + $0xc60] sm:$0xf]
                %401 = vst [vmem:[%s201 + $0x18c] sm:$0xf] %v400
                %v402 = vld [vmem:[%s200 + $0xc80] sm:$0xf]
                %403 = vst [vmem:[%s201 + $0x190] sm:$0xf] %v402
                %v404 = vld [vmem:[%s200 + $0xca0] sm:$0xf]
                %405 = vst [vmem:[%s201 + $0x194] sm:$0xf] %v404
                %v406 = vld [vmem:[%s200 + $0xcc0] sm:$0xf]
                %407 = vst [vmem:[%s201 + $0x198] sm:$0xf] %v406
                %v408 = vld [vmem:[%s200 + $0xce0] sm:$0xf]
                %409 = vst [vmem:[%s201 + $0x19c] sm:$0xf] %v408
                %v410 = vld [vmem:[%s200 + $0xd00] sm:$0xf]
                %411 = vst [vmem:[%s201 + $0x1a0] sm:$0xf] %v410
                %v412 = vld [vmem:[%s200 + $0xd20] sm:$0xf]
                %413 = vst [vmem:[%s201 + $0x1a4] sm:$0xf] %v412
                %v414 = vld [vmem:[%s200 + $0xd40] sm:$0xf]
                %415 = vst [vmem:[%s201 + $0x1a8] sm:$0xf] %v414
                %v416 = vld [vmem:[%s200 + $0xd60] sm:$0xf]
                %417 = vst [vmem:[%s201 + $0x1ac] sm:$0xf] %v416
                %v418 = vld [vmem:[%s200 + $0xd80] sm:$0xf]
                %419 = vst [vmem:[%s201 + $0x1b0] sm:$0xf] %v418
                %v420 = vld [vmem:[%s200 + $0xda0] sm:$0xf]
                %421 = vst [vmem:[%s201 + $0x1b4] sm:$0xf] %v420
                %v422 = vld [vmem:[%s200 + $0xdc0] sm:$0xf]
                %423 = vst [vmem:[%s201 + $0x1b8] sm:$0xf] %v422
                %v424 = vld [vmem:[%s200 + $0xde0] sm:$0xf]
                %425 = vst [vmem:[%s201 + $0x1bc] sm:$0xf] %v424
                %v426 = vld [vmem:[%s200 + $0xe00] sm:$0xf]
                %427 = vst [vmem:[%s201 + $0x1c0] sm:$0xf] %v426
                %v428 = vld [vmem:[%s200 + $0xe20] sm:$0xf]
                %429 = vst [vmem:[%s201 + $0x1c4] sm:$0xf] %v428
                %v430 = vld [vmem:[%s200 + $0xe40] sm:$0xf]
                %431 = vst [vmem:[%s201 + $0x1c8] sm:$0xf] %v430
                %v432 = vld [vmem:[%s200 + $0xe60] sm:$0xf]
                %433 = vst [vmem:[%s201 + $0x1cc] sm:$0xf] %v432
                %v434 = vld [vmem:[%s200 + $0xe80] sm:$0xf]
                %435 = vst [vmem:[%s201 + $0x1d0] sm:$0xf] %v434
                %v436 = vld [vmem:[%s200 + $0xea0] sm:$0xf]
                %437 = vst [vmem:[%s201 + $0x1d4] sm:$0xf] %v436
                %v438 = vld [vmem:[%s200 + $0xec0] sm:$0xf]
                %439 = vst [vmem:[%s201 + $0x1d8] sm:$0xf] %v438
                %v440 = vld [vmem:[%s200 + $0xee0] sm:$0xf]
                %441 = vst [vmem:[%s201 + $0x1dc] sm:$0xf] %v440
                %v442 = vld [vmem:[%s200 + $0xf00] sm:$0xf]
                %443 = vst [vmem:[%s201 + $0x1e0] sm:$0xf] %v442
                %v444 = vld [vmem:[%s200 + $0xf20] sm:$0xf]
                %445 = vst [vmem:[%s201 + $0x1e4] sm:$0xf] %v444
                %v446 = vld [vmem:[%s200 + $0xf40] sm:$0xf]
                %447 = vst [vmem:[%s201 + $0x1e8] sm:$0xf] %v446
                %v448 = vld [vmem:[%s200 + $0xf60] sm:$0xf]
                %449 = vst [vmem:[%s201 + $0x1ec] sm:$0xf] %v448
                %v450 = vld [vmem:[%s200 + $0xf80] sm:$0xf]
                %451 = vst [vmem:[%s201 + $0x1f0] sm:$0xf] %v450
                %v452 = vld [vmem:[%s200 + $0xfa0] sm:$0xf]
                %453 = vst [vmem:[%s201 + $0x1f4] sm:$0xf] %v452
                %v454 = vld [vmem:[%s200 + $0xfc0] sm:$0xf]
                %455 = vst [vmem:[%s201 + $0x1f8] sm:$0xf] %v454
                %v456 = vld [vmem:[%s200 + $0xfe0] sm:$0xf]
                %457 = vst [vmem:[%s201 + $0x1fc] sm:$0xf] %v456
                %v458 = vld [vmem:[%s200 + $0x1000] sm:$0xf]
                %459 = vst [vmem:[%s201 + $0x200] sm:$0xf] %v458
                %v460 = vld [vmem:[%s200 + $0x1020] sm:$0xf]
                %461 = vst [vmem:[%s201 + $0x204] sm:$0xf] %v460
                %v462 = vld [vmem:[%s200 + $0x1040] sm:$0xf]
                %463 = vst [vmem:[%s201 + $0x208] sm:$0xf] %v462
                %v464 = vld [vmem:[%s200 + $0x1060] sm:$0xf]
                %465 = vst [vmem:[%s201 + $0x20c] sm:$0xf] %v464
                %v466 = vld [vmem:[%s200 + $0x1080] sm:$0xf]
                %467 = vst [vmem:[%s201 + $0x210] sm:$0xf] %v466
                %v468 = vld [vmem:[%s200 + $0x10a0] sm:$0xf]
                %469 = vst [vmem:[%s201 + $0x214] sm:$0xf] %v468
                %v470 = vld [vmem:[%s200 + $0x10c0] sm:$0xf]
                %471 = vst [vmem:[%s201 + $0x218] sm:$0xf] %v470
                %v472 = vld [vmem:[%s200 + $0x10e0] sm:$0xf]
                %473 = vst [vmem:[%s201 + $0x21c] sm:$0xf] %v472
                %v474 = vld [vmem:[%s200 + $0x1100] sm:$0xf]
                %475 = vst [vmem:[%s201 + $0x220] sm:$0xf] %v474
                %v476 = vld [vmem:[%s200 + $0x1120] sm:$0xf]
                %477 = vst [vmem:[%s201 + $0x224] sm:$0xf] %v476
                %v478 = vld [vmem:[%s200 + $0x1140] sm:$0xf]
                %479 = vst [vmem:[%s201 + $0x228] sm:$0xf] %v478
                %v480 = vld [vmem:[%s200 + $0x1160] sm:$0xf]
                %481 = vst [vmem:[%s201 + $0x22c] sm:$0xf] %v480
                %v482 = vld [vmem:[%s200 + $0x1180] sm:$0xf]
                %483 = vst [vmem:[%s201 + $0x230] sm:$0xf] %v482
                %v484 = vld [vmem:[%s200 + $0x11a0] sm:$0xf]
                %485 = vst [vmem:[%s201 + $0x234] sm:$0xf] %v484
                %v486 = vld [vmem:[%s200 + $0x11c0] sm:$0xf]
                %487 = vst [vmem:[%s201 + $0x238] sm:$0xf] %v486
                %v488 = vld [vmem:[%s200 + $0x11e0] sm:$0xf]
                %489 = vst [vmem:[%s201 + $0x23c] sm:$0xf] %v488
                %v490 = vld [vmem:[%s200 + $0x1200] sm:$0xf]
                %491 = vst [vmem:[%s201 + $0x240] sm:$0xf] %v490
                %v492 = vld [vmem:[%s200 + $0x1220] sm:$0xf]
                %493 = vst [vmem:[%s201 + $0x244] sm:$0xf] %v492
                %v494 = vld [vmem:[%s200 + $0x1240] sm:$0xf]
                %495 = vst [vmem:[%s201 + $0x248] sm:$0xf] %v494
                %v496 = vld [vmem:[%s200 + $0x1260] sm:$0xf]
                %497 = vst [vmem:[%s201 + $0x24c] sm:$0xf] %v496
                %v498 = vld [vmem:[%s200 + $0x1280] sm:$0xf]
                %499 = vst [vmem:[%s201 + $0x250] sm:$0xf] %v498
                %v500 = vld [vmem:[%s200 + $0x12a0] sm:$0xf]
                %501 = vst [vmem:[%s201 + $0x254] sm:$0xf] %v500
                %v502 = vld [vmem:[%s200 + $0x12c0] sm:$0xf]
                %503 = vst [vmem:[%s201 + $0x258] sm:$0xf] %v502
                %v504 = vld [vmem:[%s200 + $0x12e0] sm:$0xf]
                %505 = vst [vmem:[%s201 + $0x25c] sm:$0xf] %v504
                %v506 = vld [vmem:[%s200 + $0x1300] sm:$0xf]
                %507 = vst [vmem:[%s201 + $0x260] sm:$0xf] %v506
                %v508 = vld [vmem:[%s200 + $0x1320] sm:$0xf]
                %509 = vst [vmem:[%s201 + $0x264] sm:$0xf] %v508
                %v510 = vld [vmem:[%s200 + $0x1340] sm:$0xf]
                %511 = vst [vmem:[%s201 + $0x268] sm:$0xf] %v510
                %v512 = vld [vmem:[%s200 + $0x1360] sm:$0xf]
                %513 = vst [vmem:[%s201 + $0x26c] sm:$0xf] %v512
                %v514 = vld [vmem:[%s200 + $0x1380] sm:$0xf]
                %515 = vst [vmem:[%s201 + $0x270] sm:$0xf] %v514
                %v516 = vld [vmem:[%s200 + $0x13a0] sm:$0xf]
                %517 = vst [vmem:[%s201 + $0x274] sm:$0xf] %v516
                %v518 = vld [vmem:[%s200 + $0x13c0] sm:$0xf]
                %519 = vst [vmem:[%s201 + $0x278] sm:$0xf] %v518
                %v520 = vld [vmem:[%s200 + $0x13e0] sm:$0xf]
                %521 = vst [vmem:[%s201 + $0x27c] sm:$0xf] %v520
                %v522 = vld [vmem:[%s200 + $0x1400] sm:$0xf]
                %523 = vst [vmem:[%s201 + $0x280] sm:$0xf] %v522
                %v524 = vld [vmem:[%s200 + $0x1420] sm:$0xf]
                %525 = vst [vmem:[%s201 + $0x284] sm:$0xf] %v524
                %v526 = vld [vmem:[%s200 + $0x1440] sm:$0xf]
                %527 = vst [vmem:[%s201 + $0x288] sm:$0xf] %v526
                %v528 = vld [vmem:[%s200 + $0x1460] sm:$0xf]
                %529 = vst [vmem:[%s201 + $0x28c] sm:$0xf] %v528
                %v530 = vld [vmem:[%s200 + $0x1480] sm:$0xf]
                %531 = vst [vmem:[%s201 + $0x290] sm:$0xf] %v530
                %v532 = vld [vmem:[%s200 + $0x14a0] sm:$0xf]
                %533 = vst [vmem:[%s201 + $0x294] sm:$0xf] %v532
                %v534 = vld [vmem:[%s200 + $0x14c0] sm:$0xf]
                %535 = vst [vmem:[%s201 + $0x298] sm:$0xf] %v534
                %v536 = vld [vmem:[%s200 + $0x14e0] sm:$0xf]
                %537 = vst [vmem:[%s201 + $0x29c] sm:$0xf] %v536
                %v538 = vld [vmem:[%s200 + $0x1500] sm:$0xf]
                %539 = vst [vmem:[%s201 + $0x2a0] sm:$0xf] %v538
                %v540 = vld [vmem:[%s200 + $0x1520] sm:$0xf]
                %541 = vst [vmem:[%s201 + $0x2a4] sm:$0xf] %v540
                %v542 = vld [vmem:[%s200 + $0x1540] sm:$0xf]
                %543 = vst [vmem:[%s201 + $0x2a8] sm:$0xf] %v542
                %v544 = vld [vmem:[%s200 + $0x1560] sm:$0xf]
                %545 = vst [vmem:[%s201 + $0x2ac] sm:$0xf] %v544
                %v546 = vld [vmem:[%s200 + $0x1580] sm:$0xf]
                %547 = vst [vmem:[%s201 + $0x2b0] sm:$0xf] %v546
                %v548 = vld [vmem:[%s200 + $0x15a0] sm:$0xf]
                %549 = vst [vmem:[%s201 + $0x2b4] sm:$0xf] %v548
                %v550 = vld [vmem:[%s200 + $0x15c0] sm:$0xf]
                %551 = vst [vmem:[%s201 + $0x2b8] sm:$0xf] %v550
                %v552 = vld [vmem:[%s200 + $0x15e0] sm:$0xf]
                %553 = vst [vmem:[%s201 + $0x2bc] sm:$0xf] %v552
                %v554 = vld [vmem:[%s200 + $0x1600] sm:$0xf]
                %555 = vst [vmem:[%s201 + $0x2c0] sm:$0xf] %v554
                %v556 = vld [vmem:[%s200 + $0x1620] sm:$0xf]
                %557 = vst [vmem:[%s201 + $0x2c4] sm:$0xf] %v556
                %v558 = vld [vmem:[%s200 + $0x1640] sm:$0xf]
                %559 = vst [vmem:[%s201 + $0x2c8] sm:$0xf] %v558
                %v560 = vld [vmem:[%s200 + $0x1660] sm:$0xf]
                %561 = vst [vmem:[%s201 + $0x2cc] sm:$0xf] %v560
                %v562 = vld [vmem:[%s200 + $0x1680] sm:$0xf]
                %563 = vst [vmem:[%s201 + $0x2d0] sm:$0xf] %v562
                %v564 = vld [vmem:[%s200 + $0x16a0] sm:$0xf]
                %565 = vst [vmem:[%s201 + $0x2d4] sm:$0xf] %v564
                %v566 = vld [vmem:[%s200 + $0x16c0] sm:$0xf]
                %567 = vst [vmem:[%s201 + $0x2d8] sm:$0xf] %v566
                %v568 = vld [vmem:[%s200 + $0x16e0] sm:$0xf]
                %569 = vst [vmem:[%s201 + $0x2dc] sm:$0xf] %v568
                %v570 = vld [vmem:[%s200 + $0x1700] sm:$0xf]
                %571 = vst [vmem:[%s201 + $0x2e0] sm:$0xf] %v570
                %v572 = vld [vmem:[%s200 + $0x1720] sm:$0xf]
                %573 = vst [vmem:[%s201 + $0x2e4] sm:$0xf] %v572
                %v574 = vld [vmem:[%s200 + $0x1740] sm:$0xf]
                %575 = vst [vmem:[%s201 + $0x2e8] sm:$0xf] %v574
                %v576 = vld [vmem:[%s200 + $0x1760] sm:$0xf]
                %577 = vst [vmem:[%s201 + $0x2ec] sm:$0xf] %v576
                %v578 = vld [vmem:[%s200 + $0x1780] sm:$0xf]
                %579 = vst [vmem:[%s201 + $0x2f0] sm:$0xf] %v578
                %v580 = vld [vmem:[%s200 + $0x17a0] sm:$0xf]
                %581 = vst [vmem:[%s201 + $0x2f4] sm:$0xf] %v580
                %v582 = vld [vmem:[%s200 + $0x17c0] sm:$0xf]
                %583 = vst [vmem:[%s201 + $0x2f8] sm:$0xf] %v582
                %v584 = vld [vmem:[%s200 + $0x17e0] sm:$0xf]
                %585 = vst [vmem:[%s201 + $0x2fc] sm:$0xf] %v584
                %v586 = vld [vmem:[%s200 + $0x1800] sm:$0xf]
                %587 = vst [vmem:[%s201 + $0x300] sm:$0xf] %v586
                %v588 = vld [vmem:[%s200 + $0x1820] sm:$0xf]
                %589 = vst [vmem:[%s201 + $0x304] sm:$0xf] %v588
                %v590 = vld [vmem:[%s200 + $0x1840] sm:$0xf]
                %591 = vst [vmem:[%s201 + $0x308] sm:$0xf] %v590
                %v592 = vld [vmem:[%s200 + $0x1860] sm:$0xf]
                %593 = vst [vmem:[%s201 + $0x30c] sm:$0xf] %v592
                %v594 = vld [vmem:[%s200 + $0x1880] sm:$0xf]
                %595 = vst [vmem:[%s201 + $0x310] sm:$0xf] %v594
                %v596 = vld [vmem:[%s200 + $0x18a0] sm:$0xf]
                %597 = vst [vmem:[%s201 + $0x314] sm:$0xf] %v596
                %v598 = vld [vmem:[%s200 + $0x18c0] sm:$0xf]
                %599 = vst [vmem:[%s201 + $0x318] sm:$0xf] %v598
                %v600 = vld [vmem:[%s200 + $0x18e0] sm:$0xf]
                %601 = vst [vmem:[%s201 + $0x31c] sm:$0xf] %v600
                %v602 = vld [vmem:[%s200 + $0x1900] sm:$0xf]
                %603 = vst [vmem:[%s201 + $0x320] sm:$0xf] %v602
                %v604 = vld [vmem:[%s200 + $0x1920] sm:$0xf]
                %605 = vst [vmem:[%s201 + $0x324] sm:$0xf] %v604
                %v606 = vld [vmem:[%s200 + $0x1940] sm:$0xf]
                %607 = vst [vmem:[%s201 + $0x328] sm:$0xf] %v606
                %v608 = vld [vmem:[%s200 + $0x1960] sm:$0xf]
                %609 = vst [vmem:[%s201 + $0x32c] sm:$0xf] %v608
                %v610 = vld [vmem:[%s200 + $0x1980] sm:$0xf]
                %611 = vst [vmem:[%s201 + $0x330] sm:$0xf] %v610
                %v612 = vld [vmem:[%s200 + $0x19a0] sm:$0xf]
                %613 = vst [vmem:[%s201 + $0x334] sm:$0xf] %v612
                %v614 = vld [vmem:[%s200 + $0x19c0] sm:$0xf]
                %615 = vst [vmem:[%s201 + $0x338] sm:$0xf] %v614
                %v616 = vld [vmem:[%s200 + $0x19e0] sm:$0xf]
                %617 = vst [vmem:[%s201 + $0x33c] sm:$0xf] %v616
                %v618 = vld [vmem:[%s200 + $0x1a00] sm:$0xf]
                %619 = vst [vmem:[%s201 + $0x340] sm:$0xf] %v618
                %v620 = vld [vmem:[%s200 + $0x1a20] sm:$0xf]
                %621 = vst [vmem:[%s201 + $0x344] sm:$0xf] %v620
                %v622 = vld [vmem:[%s200 + $0x1a40] sm:$0xf]
                %623 = vst [vmem:[%s201 + $0x348] sm:$0xf] %v622
                %v624 = vld [vmem:[%s200 + $0x1a60] sm:$0xf]
                %625 = vst [vmem:[%s201 + $0x34c] sm:$0xf] %v624
                %v626 = vld [vmem:[%s200 + $0x1a80] sm:$0xf]
                %627 = vst [vmem:[%s201 + $0x350] sm:$0xf] %v626
                %v628 = vld [vmem:[%s200 + $0x1aa0] sm:$0xf]
                %629 = vst [vmem:[%s201 + $0x354] sm:$0xf] %v628
                %v630 = vld [vmem:[%s200 + $0x1ac0] sm:$0xf]
                %631 = vst [vmem:[%s201 + $0x358] sm:$0xf] %v630
                %v632 = vld [vmem:[%s200 + $0x1ae0] sm:$0xf]
                %633 = vst [vmem:[%s201 + $0x35c] sm:$0xf] %v632
                %v634 = vld [vmem:[%s200 + $0x1b00] sm:$0xf]
                %635 = vst [vmem:[%s201 + $0x360] sm:$0xf] %v634
                %v636 = vld [vmem:[%s200 + $0x1b20] sm:$0xf]
                %637 = vst [vmem:[%s201 + $0x364] sm:$0xf] %v636
                %v638 = vld [vmem:[%s200 + $0x1b40] sm:$0xf]
                %639 = vst [vmem:[%s201 + $0x368] sm:$0xf] %v638
                %v640 = vld [vmem:[%s200 + $0x1b60] sm:$0xf]
                %641 = vst [vmem:[%s201 + $0x36c] sm:$0xf] %v640
                %v642 = vld [vmem:[%s200 + $0x1b80] sm:$0xf]
                %643 = vst [vmem:[%s201 + $0x370] sm:$0xf] %v642
                %v644 = vld [vmem:[%s200 + $0x1ba0] sm:$0xf]
                %645 = vst [vmem:[%s201 + $0x374] sm:$0xf] %v644
                %v646 = vld [vmem:[%s200 + $0x1bc0] sm:$0xf]
                %647 = vst [vmem:[%s201 + $0x378] sm:$0xf] %v646
                %v648 = vld [vmem:[%s200 + $0x1be0] sm:$0xf]
                %649 = vst [vmem:[%s201 + $0x37c] sm:$0xf] %v648
                %v650 = vld [vmem:[%s200 + $0x1c00] sm:$0xf]
                %651 = vst [vmem:[%s201 + $0x380] sm:$0xf] %v650
                %v652 = vld [vmem:[%s200 + $0x1c20] sm:$0xf]
                %653 = vst [vmem:[%s201 + $0x384] sm:$0xf] %v652
                %v654 = vld [vmem:[%s200 + $0x1c40] sm:$0xf]
                %655 = vst [vmem:[%s201 + $0x388] sm:$0xf] %v654
                %v656 = vld [vmem:[%s200 + $0x1c60] sm:$0xf]
                %657 = vst [vmem:[%s201 + $0x38c] sm:$0xf] %v656
                %v658 = vld [vmem:[%s200 + $0x1c80] sm:$0xf]
                %659 = vst [vmem:[%s201 + $0x390] sm:$0xf] %v658
                %v660 = vld [vmem:[%s200 + $0x1ca0] sm:$0xf]
                %661 = vst [vmem:[%s201 + $0x394] sm:$0xf] %v660
                %v662 = vld [vmem:[%s200 + $0x1cc0] sm:$0xf]
                %663 = vst [vmem:[%s201 + $0x398] sm:$0xf] %v662
                %v664 = vld [vmem:[%s200 + $0x1ce0] sm:$0xf]
                %665 = vst [vmem:[%s201 + $0x39c] sm:$0xf] %v664
                %v666 = vld [vmem:[%s200 + $0x1d00] sm:$0xf]
                %667 = vst [vmem:[%s201 + $0x3a0] sm:$0xf] %v666
                %v668 = vld [vmem:[%s200 + $0x1d20] sm:$0xf]
                %669 = vst [vmem:[%s201 + $0x3a4] sm:$0xf] %v668
                %v670 = vld [vmem:[%s200 + $0x1d40] sm:$0xf]
                %671 = vst [vmem:[%s201 + $0x3a8] sm:$0xf] %v670
                %v672 = vld [vmem:[%s200 + $0x1d60] sm:$0xf]
                %673 = vst [vmem:[%s201 + $0x3ac] sm:$0xf] %v672
                %v674 = vld [vmem:[%s200 + $0x1d80] sm:$0xf]
                %675 = vst [vmem:[%s201 + $0x3b0] sm:$0xf] %v674
                %v676 = vld [vmem:[%s200 + $0x1da0] sm:$0xf]
                %677 = vst [vmem:[%s201 + $0x3b4] sm:$0xf] %v676
                %v678 = vld [vmem:[%s200 + $0x1dc0] sm:$0xf]
                %679 = vst [vmem:[%s201 + $0x3b8] sm:$0xf] %v678
                %v680 = vld [vmem:[%s200 + $0x1de0] sm:$0xf]
                %681 = vst [vmem:[%s201 + $0x3bc] sm:$0xf] %v680
                %v682 = vld [vmem:[%s200 + $0x1e00] sm:$0xf]
                %683 = vst [vmem:[%s201 + $0x3c0] sm:$0xf] %v682
                %v684 = vld [vmem:[%s200 + $0x1e20] sm:$0xf]
                %685 = vst [vmem:[%s201 + $0x3c4] sm:$0xf] %v684
                %v686 = vld [vmem:[%s200 + $0x1e40] sm:$0xf]
                %687 = vst [vmem:[%s201 + $0x3c8] sm:$0xf] %v686
                %v688 = vld [vmem:[%s200 + $0x1e60] sm:$0xf]
                %689 = vst [vmem:[%s201 + $0x3cc] sm:$0xf] %v688
                %v690 = vld [vmem:[%s200 + $0x1e80] sm:$0xf]
                %691 = vst [vmem:[%s201 + $0x3d0] sm:$0xf] %v690
                %v692 = vld [vmem:[%s200 + $0x1ea0] sm:$0xf]
                %693 = vst [vmem:[%s201 + $0x3d4] sm:$0xf] %v692
                %v694 = vld [vmem:[%s200 + $0x1ec0] sm:$0xf]
                %695 = vst [vmem:[%s201 + $0x3d8] sm:$0xf] %v694
                %v696 = vld [vmem:[%s200 + $0x1ee0] sm:$0xf]
                %697 = vst [vmem:[%s201 + $0x3dc] sm:$0xf] %v696
                %v698 = vld [vmem:[%s200 + $0x1f00] sm:$0xf]
                %699 = vst [vmem:[%s201 + $0x3e0] sm:$0xf] %v698
                %v700 = vld [vmem:[%s200 + $0x1f20] sm:$0xf]
                %701 = vst [vmem:[%s201 + $0x3e4] sm:$0xf] %v700
                %v702 = vld [vmem:[%s200 + $0x1f40] sm:$0xf]
                %703 = vst [vmem:[%s201 + $0x3e8] sm:$0xf] %v702
                %v704 = vld [vmem:[%s200 + $0x1f60] sm:$0xf]
                %705 = vst [vmem:[%s201 + $0x3ec] sm:$0xf] %v704
                %v706 = vld [vmem:[%s200 + $0x1f80] sm:$0xf]
                %707 = vst [vmem:[%s201 + $0x3f0] sm:$0xf] %v706
                %v708 = vld [vmem:[%s200 + $0x1fa0] sm:$0xf]
                %709 = vst [vmem:[%s201 + $0x3f4] sm:$0xf] %v708
                %v710 = vld [vmem:[%s200 + $0x1fc0] sm:$0xf]
                %711 = vst [vmem:[%s201 + $0x3f8] sm:$0xf] %v710
                %v712 = vld [vmem:[%s200 + $0x1fe0] sm:$0xf]
                %713 = vst [vmem:[%s201 + $0x3fc] sm:$0xf] %v712
                %v714 = vld [vmem:[%s200 + $0x2000] sm:$0xf]
                %715 = vst [vmem:[%s201 + $0x400] sm:$0xf] %v714
                %v716 = vld [vmem:[%s200 + $0x2020] sm:$0xf]
                %717 = vst [vmem:[%s201 + $0x404] sm:$0xf] %v716
                %v718 = vld [vmem:[%s200 + $0x2040] sm:$0xf]
                %719 = vst [vmem:[%s201 + $0x408] sm:$0xf] %v718
                %v720 = vld [vmem:[%s200 + $0x2060] sm:$0xf]
                %721 = vst [vmem:[%s201 + $0x40c] sm:$0xf] %v720
                %v722 = vld [vmem:[%s200 + $0x2080] sm:$0xf]
                %723 = vst [vmem:[%s201 + $0x410] sm:$0xf] %v722
                %v724 = vld [vmem:[%s200 + $0x20a0] sm:$0xf]
                %725 = vst [vmem:[%s201 + $0x414] sm:$0xf] %v724
                %v726 = vld [vmem:[%s200 + $0x20c0] sm:$0xf]
                %727 = vst [vmem:[%s201 + $0x418] sm:$0xf] %v726
                %v728 = vld [vmem:[%s200 + $0x20e0] sm:$0xf]
                %729 = vst [vmem:[%s201 + $0x41c] sm:$0xf] %v728
                %v730 = vld [vmem:[%s200 + $0x2100] sm:$0xf]
                %731 = vst [vmem:[%s201 + $0x420] sm:$0xf] %v730
                %v732 = vld [vmem:[%s200 + $0x2120] sm:$0xf]
                %733 = vst [vmem:[%s201 + $0x424] sm:$0xf] %v732
                %v734 = vld [vmem:[%s200 + $0x2140] sm:$0xf]
                %735 = vst [vmem:[%s201 + $0x428] sm:$0xf] %v734
                %v736 = vld [vmem:[%s200 + $0x2160] sm:$0xf]
                %737 = vst [vmem:[%s201 + $0x42c] sm:$0xf] %v736
                %v738 = vld [vmem:[%s200 + $0x2180] sm:$0xf]
                %739 = vst [vmem:[%s201 + $0x430] sm:$0xf] %v738
                %v740 = vld [vmem:[%s200 + $0x21a0] sm:$0xf]
                %741 = vst [vmem:[%s201 + $0x434] sm:$0xf] %v740
                %v742 = vld [vmem:[%s200 + $0x21c0] sm:$0xf]
                %743 = vst [vmem:[%s201 + $0x438] sm:$0xf] %v742
                %v744 = vld [vmem:[%s200 + $0x21e0] sm:$0xf]
                %745 = vst [vmem:[%s201 + $0x43c] sm:$0xf] %v744
                %v746 = vld [vmem:[%s200 + $0x2200] sm:$0xf]
                %747 = vst [vmem:[%s201 + $0x440] sm:$0xf] %v746
                %v748 = vld [vmem:[%s200 + $0x2220] sm:$0xf]
                %749 = vst [vmem:[%s201 + $0x444] sm:$0xf] %v748
                %v750 = vld [vmem:[%s200 + $0x2240] sm:$0xf]
                %751 = vst [vmem:[%s201 + $0x448] sm:$0xf] %v750
                %v752 = vld [vmem:[%s200 + $0x2260] sm:$0xf]
                %753 = vst [vmem:[%s201 + $0x44c] sm:$0xf] %v752
                %v754 = vld [vmem:[%s200 + $0x2280] sm:$0xf]
                %755 = vst [vmem:[%s201 + $0x450] sm:$0xf] %v754
                %v756 = vld [vmem:[%s200 + $0x22a0] sm:$0xf]
                %757 = vst [vmem:[%s201 + $0x454] sm:$0xf] %v756
                %v758 = vld [vmem:[%s200 + $0x22c0] sm:$0xf]
                %759 = vst [vmem:[%s201 + $0x458] sm:$0xf] %v758
                %v760 = vld [vmem:[%s200 + $0x22e0] sm:$0xf]
                %761 = vst [vmem:[%s201 + $0x45c] sm:$0xf] %v760
                %v762 = vld [vmem:[%s200 + $0x2300] sm:$0xf]
                %763 = vst [vmem:[%s201 + $0x460] sm:$0xf] %v762
                %v764 = vld [vmem:[%s200 + $0x2320] sm:$0xf]
                %765 = vst [vmem:[%s201 + $0x464] sm:$0xf] %v764
                %v766 = vld [vmem:[%s200 + $0x2340] sm:$0xf]
                %767 = vst [vmem:[%s201 + $0x468] sm:$0xf] %v766
                %v768 = vld [vmem:[%s200 + $0x2360] sm:$0xf]
                %769 = vst [vmem:[%s201 + $0x46c] sm:$0xf] %v768
                %v770 = vld [vmem:[%s200 + $0x2380] sm:$0xf]
                %771 = vst [vmem:[%s201 + $0x470] sm:$0xf] %v770
                %v772 = vld [vmem:[%s200 + $0x23a0] sm:$0xf]
                %773 = vst [vmem:[%s201 + $0x474] sm:$0xf] %v772
                %v774 = vld [vmem:[%s200 + $0x23c0] sm:$0xf]
                %775 = vst [vmem:[%s201 + $0x478] sm:$0xf] %v774
                %v776 = vld [vmem:[%s200 + $0x23e0] sm:$0xf]
                %777 = vst [vmem:[%s201 + $0x47c] sm:$0xf] %v776
                %v778 = vld [vmem:[%s200 + $0x2400] sm:$0xf]
                %779 = vst [vmem:[%s201 + $0x480] sm:$0xf] %v778
                %v780 = vld [vmem:[%s200 + $0x2420] sm:$0xf]
                %781 = vst [vmem:[%s201 + $0x484] sm:$0xf] %v780
                %v782 = vld [vmem:[%s200 + $0x2440] sm:$0xf]
                %783 = vst [vmem:[%s201 + $0x488] sm:$0xf] %v782
                %v784 = vld [vmem:[%s200 + $0x2460] sm:$0xf]
                %785 = vst [vmem:[%s201 + $0x48c] sm:$0xf] %v784
                %v786 = vld [vmem:[%s200 + $0x2480] sm:$0xf]
                %787 = vst [vmem:[%s201 + $0x490] sm:$0xf] %v786
                %v788 = vld [vmem:[%s200 + $0x24a0] sm:$0xf]
                %789 = vst [vmem:[%s201 + $0x494] sm:$0xf] %v788
                %v790 = vld [vmem:[%s200 + $0x24c0] sm:$0xf]
                %791 = vst [vmem:[%s201 + $0x498] sm:$0xf] %v790
                %v792 = vld [vmem:[%s200 + $0x24e0] sm:$0xf]
                %793 = vst [vmem:[%s201 + $0x49c] sm:$0xf] %v792
                %v794 = vld [vmem:[%s200 + $0x2500] sm:$0xf]
                %795 = vst [vmem:[%s201 + $0x4a0] sm:$0xf] %v794
                %v796 = vld [vmem:[%s200 + $0x2520] sm:$0xf]
                %797 = vst [vmem:[%s201 + $0x4a4] sm:$0xf] %v796
                %v798 = vld [vmem:[%s200 + $0x2540] sm:$0xf]
                %799 = vst [vmem:[%s201 + $0x4a8] sm:$0xf] %v798
                %v800 = vld [vmem:[%s200 + $0x2560] sm:$0xf]
                %801 = vst [vmem:[%s201 + $0x4ac] sm:$0xf] %v800
                %v802 = vld [vmem:[%s200 + $0x2580] sm:$0xf]
                %803 = vst [vmem:[%s201 + $0x4b0] sm:$0xf] %v802
                %v804 = vld [vmem:[%s200 + $0x25a0] sm:$0xf]
                %805 = vst [vmem:[%s201 + $0x4b4] sm:$0xf] %v804
                %v806 = vld [vmem:[%s200 + $0x25c0] sm:$0xf]
                %807 = vst [vmem:[%s201 + $0x4b8] sm:$0xf] %v806
                %v808 = vld [vmem:[%s200 + $0x25e0] sm:$0xf]
                %809 = vst [vmem:[%s201 + $0x4bc] sm:$0xf] %v808
                %v810 = vld [vmem:[%s200 + $0x2600] sm:$0xf]
                %811 = vst [vmem:[%s201 + $0x4c0] sm:$0xf] %v810
                %v812 = vld [vmem:[%s200 + $0x2620] sm:$0xf]
                %813 = vst [vmem:[%s201 + $0x4c4] sm:$0xf] %v812
                %v814 = vld [vmem:[%s200 + $0x2640] sm:$0xf]
                %815 = vst [vmem:[%s201 + $0x4c8] sm:$0xf] %v814
                %v816 = vld [vmem:[%s200 + $0x2660] sm:$0xf]
                %817 = vst [vmem:[%s201 + $0x4cc] sm:$0xf] %v816
                %v818 = vld [vmem:[%s200 + $0x2680] sm:$0xf]
                %819 = vst [vmem:[%s201 + $0x4d0] sm:$0xf] %v818
                %v820 = vld [vmem:[%s200 + $0x26a0] sm:$0xf]
                %821 = vst [vmem:[%s201 + $0x4d4] sm:$0xf] %v820
                %v822 = vld [vmem:[%s200 + $0x26c0] sm:$0xf]
                %823 = vst [vmem:[%s201 + $0x4d8] sm:$0xf] %v822
                %v824 = vld [vmem:[%s200 + $0x26e0] sm:$0xf]
                %825 = vst [vmem:[%s201 + $0x4dc] sm:$0xf] %v824
                %v826 = vld [vmem:[%s200 + $0x2700] sm:$0xf]
                %827 = vst [vmem:[%s201 + $0x4e0] sm:$0xf] %v826
                %v828 = vld [vmem:[%s200 + $0x2720] sm:$0xf]
                %829 = vst [vmem:[%s201 + $0x4e4] sm:$0xf] %v828
                %v830 = vld [vmem:[%s200 + $0x2740] sm:$0xf]
                %831 = vst [vmem:[%s201 + $0x4e8] sm:$0xf] %v830
                %v832 = vld [vmem:[%s200 + $0x2760] sm:$0xf]
                %833 = vst [vmem:[%s201 + $0x4ec] sm:$0xf] %v832
                %v834 = vld [vmem:[%s200 + $0x2780] sm:$0xf]
                %835 = vst [vmem:[%s201 + $0x4f0] sm:$0xf] %v834
                %v836 = vld [vmem:[%s200 + $0x27a0] sm:$0xf]
                %837 = vst [vmem:[%s201 + $0x4f4] sm:$0xf] %v836
                %v838 = vld [vmem:[%s200 + $0x27c0] sm:$0xf]
                %839 = vst [vmem:[%s201 + $0x4f8] sm:$0xf] %v838
                %v840 = vld [vmem:[%s200 + $0x27e0] sm:$0xf]
                %841 = vst [vmem:[%s201 + $0x4fc] sm:$0xf] %v840
                %v842 = vld [vmem:[%s200 + $0x2800] sm:$0xf]
                %843 = vst [vmem:[%s201 + $0x500] sm:$0xf] %v842
                %v844 = vld [vmem:[%s200 + $0x2820] sm:$0xf]
                %845 = vst [vmem:[%s201 + $0x504] sm:$0xf] %v844
                %v846 = vld [vmem:[%s200 + $0x2840] sm:$0xf]
                %847 = vst [vmem:[%s201 + $0x508] sm:$0xf] %v846
                %v848 = vld [vmem:[%s200 + $0x2860] sm:$0xf]
                %849 = vst [vmem:[%s201 + $0x50c] sm:$0xf] %v848
                %v850 = vld [vmem:[%s200 + $0x2880] sm:$0xf]
                %851 = vst [vmem:[%s201 + $0x510] sm:$0xf] %v850
                %v852 = vld [vmem:[%s200 + $0x28a0] sm:$0xf]
                %853 = vst [vmem:[%s201 + $0x514] sm:$0xf] %v852
                %v854 = vld [vmem:[%s200 + $0x28c0] sm:$0xf]
                %855 = vst [vmem:[%s201 + $0x518] sm:$0xf] %v854
                %v856 = vld [vmem:[%s200 + $0x28e0] sm:$0xf]
                %857 = vst [vmem:[%s201 + $0x51c] sm:$0xf] %v856
                %v858 = vld [vmem:[%s200 + $0x2900] sm:$0xf]
                %859 = vst [vmem:[%s201 + $0x520] sm:$0xf] %v858
                %v860 = vld [vmem:[%s200 + $0x2920] sm:$0xf]
                %861 = vst [vmem:[%s201 + $0x524] sm:$0xf] %v860
                %v862 = vld [vmem:[%s200 + $0x2940] sm:$0xf]
                %863 = vst [vmem:[%s201 + $0x528] sm:$0xf] %v862
                %v864 = vld [vmem:[%s200 + $0x2960] sm:$0xf]
                %865 = vst [vmem:[%s201 + $0x52c] sm:$0xf] %v864
                %v866 = vld [vmem:[%s200 + $0x2980] sm:$0xf]
                %867 = vst [vmem:[%s201 + $0x530] sm:$0xf] %v866
                %v868 = vld [vmem:[%s200 + $0x29a0] sm:$0xf]
                %869 = vst [vmem:[%s201 + $0x534] sm:$0xf] %v868
                %v870 = vld [vmem:[%s200 + $0x29c0] sm:$0xf]
                %871 = vst [vmem:[%s201 + $0x538] sm:$0xf] %v870
                %v872 = vld [vmem:[%s200 + $0x29e0] sm:$0xf]
                %873 = vst [vmem:[%s201 + $0x53c] sm:$0xf] %v872
                %v874 = vld [vmem:[%s200 + $0x2a00] sm:$0xf]
                %875 = vst [vmem:[%s201 + $0x540] sm:$0xf] %v874
                %v876 = vld [vmem:[%s200 + $0x2a20] sm:$0xf]
                %877 = vst [vmem:[%s201 + $0x544] sm:$0xf] %v876
                %v878 = vld [vmem:[%s200 + $0x2a40] sm:$0xf]
                %879 = vst [vmem:[%s201 + $0x548] sm:$0xf] %v878
                %v880 = vld [vmem:[%s200 + $0x2a60] sm:$0xf]
                %881 = vst [vmem:[%s201 + $0x54c] sm:$0xf] %v880
                %v882 = vld [vmem:[%s200 + $0x2a80] sm:$0xf]
                %883 = vst [vmem:[%s201 + $0x550] sm:$0xf] %v882
                %v884 = vld [vmem:[%s200 + $0x2aa0] sm:$0xf]
                %885 = vst [vmem:[%s201 + $0x554] sm:$0xf] %v884
                %v886 = vld [vmem:[%s200 + $0x2ac0] sm:$0xf]
                %887 = vst [vmem:[%s201 + $0x558] sm:$0xf] %v886
                %v888 = vld [vmem:[%s200 + $0x2ae0] sm:$0xf]
                %889 = vst [vmem:[%s201 + $0x55c] sm:$0xf] %v888
                %v890 = vld [vmem:[%s200 + $0x2b00] sm:$0xf]
                %891 = vst [vmem:[%s201 + $0x560] sm:$0xf] %v890
                %v892 = vld [vmem:[%s200 + $0x2b20] sm:$0xf]
                %893 = vst [vmem:[%s201 + $0x564] sm:$0xf] %v892
                %v894 = vld [vmem:[%s200 + $0x2b40] sm:$0xf]
                %895 = vst [vmem:[%s201 + $0x568] sm:$0xf] %v894
                %v896 = vld [vmem:[%s200 + $0x2b60] sm:$0xf]
                %897 = vst [vmem:[%s201 + $0x56c] sm:$0xf] %v896
                %v898 = vld [vmem:[%s200 + $0x2b80] sm:$0xf]
                %899 = vst [vmem:[%s201 + $0x570] sm:$0xf] %v898
                %v900 = vld [vmem:[%s200 + $0x2ba0] sm:$0xf]
                %901 = vst [vmem:[%s201 + $0x574] sm:$0xf] %v900
                %v902 = vld [vmem:[%s200 + $0x2bc0] sm:$0xf]
                %903 = vst [vmem:[%s201 + $0x578] sm:$0xf] %v902
                %v904 = vld [vmem:[%s200 + $0x2be0] sm:$0xf]
                %905 = vst [vmem:[%s201 + $0x57c] sm:$0xf] %v904
                %v906 = vld [vmem:[%s200 + $0x2c00] sm:$0xf]
                %907 = vst [vmem:[%s201 + $0x580] sm:$0xf] %v906
                %v908 = vld [vmem:[%s200 + $0x2c20] sm:$0xf]
                %909 = vst [vmem:[%s201 + $0x584] sm:$0xf] %v908
                %v910 = vld [vmem:[%s200 + $0x2c40] sm:$0xf]
                %911 = vst [vmem:[%s201 + $0x588] sm:$0xf] %v910
                %v912 = vld [vmem:[%s200 + $0x2c60] sm:$0xf]
                %913 = vst [vmem:[%s201 + $0x58c] sm:$0xf] %v912
                %v914 = vld [vmem:[%s200 + $0x2c80] sm:$0xf]
                %915 = vst [vmem:[%s201 + $0x590] sm:$0xf] %v914
                %v916 = vld [vmem:[%s200 + $0x2ca0] sm:$0xf]
                %917 = vst [vmem:[%s201 + $0x594] sm:$0xf] %v916
                %v918 = vld [vmem:[%s200 + $0x2cc0] sm:$0xf]
                %919 = vst [vmem:[%s201 + $0x598] sm:$0xf] %v918
                %v920 = vld [vmem:[%s200 + $0x2ce0] sm:$0xf]
                %921 = vst [vmem:[%s201 + $0x59c] sm:$0xf] %v920
                %v922 = vld [vmem:[%s200 + $0x2d00] sm:$0xf]
                %923 = vst [vmem:[%s201 + $0x5a0] sm:$0xf] %v922
                %v924 = vld [vmem:[%s200 + $0x2d20] sm:$0xf]
                %925 = vst [vmem:[%s201 + $0x5a4] sm:$0xf] %v924
                %v926 = vld [vmem:[%s200 + $0x2d40] sm:$0xf]
                %927 = vst [vmem:[%s201 + $0x5a8] sm:$0xf] %v926
                %v928 = vld [vmem:[%s200 + $0x2d60] sm:$0xf]
                %929 = vst [vmem:[%s201 + $0x5ac] sm:$0xf] %v928
                %v930 = vld [vmem:[%s200 + $0x2d80] sm:$0xf]
                %931 = vst [vmem:[%s201 + $0x5b0] sm:$0xf] %v930
                %v932 = vld [vmem:[%s200 + $0x2da0] sm:$0xf]
                %933 = vst [vmem:[%s201 + $0x5b4] sm:$0xf] %v932
                %v934 = vld [vmem:[%s200 + $0x2dc0] sm:$0xf]
                %935 = vst [vmem:[%s201 + $0x5b8] sm:$0xf] %v934
                %v936 = vld [vmem:[%s200 + $0x2de0] sm:$0xf]
                %937 = vst [vmem:[%s201 + $0x5bc] sm:$0xf] %v936
                %v938 = vld [vmem:[%s200 + $0x2e00] sm:$0xf]
                %939 = vst [vmem:[%s201 + $0x5c0] sm:$0xf] %v938
                %v940 = vld [vmem:[%s200 + $0x2e20] sm:$0xf]
                %941 = vst [vmem:[%s201 + $0x5c4] sm:$0xf] %v940
                %v942 = vld [vmem:[%s200 + $0x2e40] sm:$0xf]
                %943 = vst [vmem:[%s201 + $0x5c8] sm:$0xf] %v942
                %v944 = vld [vmem:[%s200 + $0x2e60] sm:$0xf]
                %945 = vst [vmem:[%s201 + $0x5cc] sm:$0xf] %v944
                %v946 = vld [vmem:[%s200 + $0x2e80] sm:$0xf]
                %947 = vst [vmem:[%s201 + $0x5d0] sm:$0xf] %v946
                %v948 = vld [vmem:[%s200 + $0x2ea0] sm:$0xf]
                %949 = vst [vmem:[%s201 + $0x5d4] sm:$0xf] %v948
                %v950 = vld [vmem:[%s200 + $0x2ec0] sm:$0xf]
                %951 = vst [vmem:[%s201 + $0x5d8] sm:$0xf] %v950
                %v952 = vld [vmem:[%s200 + $0x2ee0] sm:$0xf]
                %953 = vst [vmem:[%s201 + $0x5dc] sm:$0xf] %v952
                %v954 = vld [vmem:[%s200 + $0x2f00] sm:$0xf]
                %955 = vst [vmem:[%s201 + $0x5e0] sm:$0xf] %v954
                %v956 = vld [vmem:[%s200 + $0x2f20] sm:$0xf]
                %957 = vst [vmem:[%s201 + $0x5e4] sm:$0xf] %v956
                %v958 = vld [vmem:[%s200 + $0x2f40] sm:$0xf]
                %959 = vst [vmem:[%s201 + $0x5e8] sm:$0xf] %v958
                %v960 = vld [vmem:[%s200 + $0x2f60] sm:$0xf]
                %961 = vst [vmem:[%s201 + $0x5ec] sm:$0xf] %v960
                %v962 = vld [vmem:[%s200 + $0x2f80] sm:$0xf]
                %963 = vst [vmem:[%s201 + $0x5f0] sm:$0xf] %v962
                %v964 = vld [vmem:[%s200 + $0x2fa0] sm:$0xf]
                %965 = vst [vmem:[%s201 + $0x5f4] sm:$0xf] %v964
                %v966 = vld [vmem:[%s200 + $0x2fc0] sm:$0xf]
                %967 = vst [vmem:[%s201 + $0x5f8] sm:$0xf] %v966
                %v968 = vld [vmem:[%s200 + $0x2fe0] sm:$0xf]
                %969 = vst [vmem:[%s201 + $0x5fc] sm:$0xf] %v968
                %v970 = vld [vmem:[%s200 + $0x3000] sm:$0xf]
                %971 = vst [vmem:[%s201 + $0x600] sm:$0xf] %v970
                %v972 = vld [vmem:[%s200 + $0x3020] sm:$0xf]
                %973 = vst [vmem:[%s201 + $0x604] sm:$0xf] %v972
                %v974 = vld [vmem:[%s200 + $0x3040] sm:$0xf]
                %975 = vst [vmem:[%s201 + $0x608] sm:$0xf] %v974
                %v976 = vld [vmem:[%s200 + $0x3060] sm:$0xf]
                %977 = vst [vmem:[%s201 + $0x60c] sm:$0xf] %v976
                %v978 = vld [vmem:[%s200 + $0x3080] sm:$0xf]
                %979 = vst [vmem:[%s201 + $0x610] sm:$0xf] %v978
                %v980 = vld [vmem:[%s200 + $0x30a0] sm:$0xf]
                %981 = vst [vmem:[%s201 + $0x614] sm:$0xf] %v980
                %v982 = vld [vmem:[%s200 + $0x30c0] sm:$0xf]
                %983 = vst [vmem:[%s201 + $0x618] sm:$0xf] %v982
                %v984 = vld [vmem:[%s200 + $0x30e0] sm:$0xf]
                %985 = vst [vmem:[%s201 + $0x61c] sm:$0xf] %v984
              $region45: #{cnn_forward.5} parent=39 // loop_footer
                %s199 = sadd.s32 1, %s195
              $region46: #{cnn_forward.5} parent=39 // loop_footer_branch
                %194 = sbr.rel target = $region42
              $region47: #{cnn_forward.5} parent=39 // loop_exit
                _
            $region40: #{cnn_forward.5} parent=31 // pred_fallthru
              _
          $region32: #{cnn_forward.5} parent=27 // pred_fallthru
            _
          %1789 = vnop
        $region28: #{cnn_forward.5} parent=23 // pred_fallthru
          _
        // Predicated region
        $region66: #{cnn_forward.5} parent=23 // pred_check
          %p1790 = pneg %p79
        $region67: #{cnn_forward.5} parent=23 // pred_check_branch
          %1792 = sbr.rel (%p1790) target = $region69
        $region68: #{cnn_forward.5} parent=23 // pred_region
          %p1793 = scmp.lt.s32.totalorder %s12, 7
          %s1794 = scalar_select %p1793, %s12, 7
          %s1795 = scalar_lea.vmem %s2, %s1794
        $region69: #{cnn_forward.5} parent=23 // pred_fallthru
          _
        // Predicated region
        $region70: #{cnn_forward.5} parent=23 // pred_check
          %p1796 = pneg %p105
        $region71: #{cnn_forward.5} parent=23 // pred_check_branch
          %1798 = sbr.rel (%p1796) target = $region73
        $region72: #{cnn_forward.5} parent=23 // pred_region
          %s1799 = smul.u32 16, %s12
          %p1800 = scmp.lt.s32.totalorder %s1799, 127
          %s1801 = scalar_select %p1800, %s1799, 127
          %s1802 = smul.addr %s1801, 4
          %s1803 = scalar_lea.vmem %s3, %s1802
          %s1804 = smul.u32 16, %s12
        $region73: #{cnn_forward.5} parent=23 // pred_fallthru
          _
      $region24: #{cnn_forward.5} parent=5 // pred_fallthru
        _
      %p1805 = scmp.le.s32.totalorder 1, %s12
      %p1806 = scmp.lt.s32.totalorder %s12, 9
      %p1807 = pnand %p1805, %p1806
      %p1808 = pneg %p1807
      // Predicated region
      $region74: #{cnn_forward.5} parent=5 // pred_check
        _
      $region75: #{cnn_forward.5} parent=5 // pred_check_branch
        %1810 = sbr.rel (%p1807) target = $region77
      $region76: #{cnn_forward.5} parent=5 // pred_region
        %s1811 = ssub.s32 %s12, 1
        %s1812 = sand.u32 %s46, 1
        %s1813 = sand.u32 %s46, 1
        %s1814 = smul.addr %s1813, 1568
        %s1815 = scalar_lea.vmem [#allocation3], %s1814
        // Predicated region
        $region78: #{cnn_forward.5} parent=76 // pred_check
          %p1816 = pneg %p59
        $region79: #{cnn_forward.5} parent=76 // pred_check_branch
          %1818 = sbr.rel (%p1816) target = $region81
        $region80: #{cnn_forward.5} parent=76 // pred_region
          _
        $region81: #{cnn_forward.5} parent=76 // pred_fallthru
          _
        %p1819 = pneg %p33
        %p1820 = pneg %p30
        %s1821 = sand.u32 %s46, 1
        %s1822 = sand.u32 %s46, 1
        %s1823 = smul.addr %s1822, 1568
        %s1824 = scalar_lea.vmem [#allocation3], %s1823
        %p1825 = pneg %p59
        %p1826 = pneg %p56
        %p1827 = scmp.lt.s32.totalorder %s17, 7
        %s1828 = scalar_select %p1827, %s17, 7
        %s1829 = scalar_lea.vmem %s2, %s1828
        %p1830 = pneg %p85
        %p1831 = pneg %p82
        %s1832 = smul.u32 16, %s17
        %p1833 = scmp.lt.s32.totalorder %s1832, 127
        %s1834 = scalar_select %p1833, %s1832, 127
        %s1835 = smul.addr %s1834, 4
        %s1836 = scalar_lea.vmem %s3, %s1835
        %p1837 = pneg %p111
        %p1838 = pneg %p108
        %p1839 = pneg %p132
        %p1840 = pneg %p129
        %p1841 = pneg %p153
        %p1842 = pneg %p150
        %p1843 = scmp.lt.s32.totalorder %s17, 7
        %s1844 = scalar_select %p1843, %s17, 7
        %s1845 = scalar_lea.vmem %s2, %s1844
        %s1846 = smul.u32 16, %s17
        %p1847 = scmp.lt.s32.totalorder %s1846, 127
        %s1848 = scalar_select %p1847, %s1846, 127
        %s1849 = smul.addr %s1848, 4
        %s1850 = scalar_lea.vmem %s3, %s1849
        %s1851 = smul.u32 16, %s17
        %p1853 = scmp.eq.s32.totalorder %s17, 0
        // Predicated region
        $region82: #{cnn_forward.5} parent=76 // pred_check
          %p1854 = pneg %p1853
        $region83: #{cnn_forward.5} parent=76 // pred_check_branch
          %1856 = sbr.rel (%p1854) target = $region85
        $region84: #{cnn_forward.5} parent=76 // pred_region
          %1857 = vst [vmem:[#allocation2] sm:$0x3] 0.0
        $region85: #{cnn_forward.5} parent=76 // pred_fallthru
          _
        %v1858 = vld [vmem:[%s0] sm:$0xff]
        %v1859 = vld [vmem:[%s0 + $0x8] sm:$0xff]
        %v1860 = vld [vmem:[%s0 + $0x10] sm:$0xff]
        %v1861 = vld [vmem:[%s0 + $0x18] sm:$0x1]
        %v1862 = vld [vmem:[%s1815] sm:$0xf]
        %v1863 = vld [vmem:[%s1815 + $0x4] sm:$0xf]
        %v1864 = vld [vmem:[%s1815 + $0x8] sm:$0xf]
        %v1865 = vld [vmem:[%s1815 + $0xc] sm:$0xf]
        %v1866 = vld [vmem:[%s1815 + $0x10] sm:$0xf]
        %v1867 = vld [vmem:[%s1815 + $0x14] sm:$0xf]
        %v1868 = vld [vmem:[%s1815 + $0x18] sm:$0xf]
        %v1869 = vld [vmem:[%s1815 + $0x1c] sm:$0xf]
        %v1870 = vld [vmem:[%s1815 + $0x20] sm:$0xf]
        %v1871 = vld [vmem:[%s1815 + $0x24] sm:$0xf]
        %v1872 = vld [vmem:[%s1815 + $0x28] sm:$0xf]
        %v1873 = vld [vmem:[%s1815 + $0x2c] sm:$0xf]
        %v1874 = vld [vmem:[%s1815 + $0x30] sm:$0xf]
        %v1875 = vld [vmem:[%s1815 + $0x34] sm:$0xf]
        %v1876 = vld [vmem:[%s1815 + $0x38] sm:$0xf]
        %v1877 = vld [vmem:[%s1815 + $0x3c] sm:$0xf]
        %v1878 = vld [vmem:[%s1815 + $0x40] sm:$0xf]
        %v1879 = vld [vmem:[%s1815 + $0x44] sm:$0xf]
        %v1880 = vld [vmem:[%s1815 + $0x48] sm:$0xf]
        %v1881 = vld [vmem:[%s1815 + $0x4c] sm:$0xf]
        %v1882 = vld [vmem:[%s1815 + $0x50] sm:$0xf]
        %v1883 = vld [vmem:[%s1815 + $0x54] sm:$0xf]
        %v1884 = vld [vmem:[%s1815 + $0x58] sm:$0xf]
        %v1885 = vld [vmem:[%s1815 + $0x5c] sm:$0xf]
        %v1886 = vld [vmem:[%s1815 + $0x60] sm:$0xf]
        %v1887 = vld [vmem:[%s1815 + $0x64] sm:$0xf]
        %v1888 = vld [vmem:[%s1815 + $0x68] sm:$0xf]
        %v1889 = vld [vmem:[%s1815 + $0x6c] sm:$0xf]
        %v1890 = vld [vmem:[%s1815 + $0x70] sm:$0xf]
        %v1891 = vld [vmem:[%s1815 + $0x74] sm:$0xf]
        %v1892 = vld [vmem:[%s1815 + $0x78] sm:$0xf]
        %v1893 = vld [vmem:[%s1815 + $0x7c] sm:$0xf]
        %v1894 = vld [vmem:[%s1815 + $0x80] sm:$0xf]
        %v1895 = vld [vmem:[%s1815 + $0x84] sm:$0xf]
        %v1896 = vld [vmem:[%s1815 + $0x88] sm:$0xf]
        %v1897 = vld [vmem:[%s1815 + $0x8c] sm:$0xf]
        %v1898 = vld [vmem:[%s1815 + $0x90] sm:$0xf]
        %v1899 = vld [vmem:[%s1815 + $0x94] sm:$0xf]
        %v1900 = vld [vmem:[%s1815 + $0x98] sm:$0xf]
        %v1901 = vld [vmem:[%s1815 + $0x9c] sm:$0xf]
        %v1902 = vld [vmem:[%s1815 + $0xa0] sm:$0xf]
        %v1903 = vld [vmem:[%s1815 + $0xa4] sm:$0xf]
        %v1904 = vld [vmem:[%s1815 + $0xa8] sm:$0xf]
        %v1905 = vld [vmem:[%s1815 + $0xac] sm:$0xf]
        %v1906 = vld [vmem:[%s1815 + $0xb0] sm:$0xf]
        %v1907 = vld [vmem:[%s1815 + $0xb4] sm:$0xf]
        %v1908 = vld [vmem:[%s1815 + $0xb8] sm:$0xf]
        %v1909 = vld [vmem:[%s1815 + $0xbc] sm:$0xf]
        %v1910 = vld [vmem:[%s1815 + $0xc0] sm:$0xf]
        %v1911 = vld [vmem:[%s1815 + $0xc4] sm:$0xf]
        %v1912 = vld [vmem:[%s1815 + $0xc8] sm:$0xf]
        %v1913 = vld [vmem:[%s1815 + $0xcc] sm:$0xf]
        %v1914 = vld [vmem:[%s1815 + $0xd0] sm:$0xf]
        %v1915 = vld [vmem:[%s1815 + $0xd4] sm:$0xf]
        %v1916 = vld [vmem:[%s1815 + $0xd8] sm:$0xf]
        %v1917 = vld [vmem:[%s1815 + $0xdc] sm:$0xf]
        %v1918 = vld [vmem:[%s1815 + $0xe0] sm:$0xf]
        %v1919 = vld [vmem:[%s1815 + $0xe4] sm:$0xf]
        %v1920 = vld [vmem:[%s1815 + $0xe8] sm:$0xf]
        %v1921 = vld [vmem:[%s1815 + $0xec] sm:$0xf]
        %v1922 = vld [vmem:[%s1815 + $0xf0] sm:$0xf]
        %v1923 = vld [vmem:[%s1815 + $0xf4] sm:$0xf]
        %v1924 = vld [vmem:[%s1815 + $0xf8] sm:$0xf]
        %v1925 = vld [vmem:[%s1815 + $0xfc] sm:$0xf]
        %v1926 = vld [vmem:[%s1815 + $0x100] sm:$0xf]
        %v1927 = vld [vmem:[%s1815 + $0x104] sm:$0xf]
        %v1928 = vld [vmem:[%s1815 + $0x108] sm:$0xf]
        %v1929 = vld [vmem:[%s1815 + $0x10c] sm:$0xf]
        %v1930 = vld [vmem:[%s1815 + $0x110] sm:$0xf]
        %v1931 = vld [vmem:[%s1815 + $0x114] sm:$0xf]
        %v1932 = vld [vmem:[%s1815 + $0x118] sm:$0xf]
        %v1933 = vld [vmem:[%s1815 + $0x11c] sm:$0xf]
        %v1934 = vld [vmem:[%s1815 + $0x120] sm:$0xf]
        %v1935 = vld [vmem:[%s1815 + $0x124] sm:$0xf]
        %v1936 = vld [vmem:[%s1815 + $0x128] sm:$0xf]
        %v1937 = vld [vmem:[%s1815 + $0x12c] sm:$0xf]
        %v1938 = vld [vmem:[%s1815 + $0x130] sm:$0xf]
        %v1939 = vld [vmem:[%s1815 + $0x134] sm:$0xf]
        %v1940 = vld [vmem:[%s1815 + $0x138] sm:$0xf]
        %v1941 = vld [vmem:[%s1815 + $0x13c] sm:$0xf]
        %v1942 = vld [vmem:[%s1815 + $0x140] sm:$0xf]
        %v1943 = vld [vmem:[%s1815 + $0x144] sm:$0xf]
        %v1944 = vld [vmem:[%s1815 + $0x148] sm:$0xf]
        %v1945 = vld [vmem:[%s1815 + $0x14c] sm:$0xf]
        %v1946 = vld [vmem:[%s1815 + $0x150] sm:$0xf]
        %v1947 = vld [vmem:[%s1815 + $0x154] sm:$0xf]
        %v1948 = vld [vmem:[%s1815 + $0x158] sm:$0xf]
        %v1949 = vld [vmem:[%s1815 + $0x15c] sm:$0xf]
        %v1950 = vld [vmem:[%s1815 + $0x160] sm:$0xf]
        %v1951 = vld [vmem:[%s1815 + $0x164] sm:$0xf]
        %v1952 = vld [vmem:[%s1815 + $0x168] sm:$0xf]
        %v1953 = vld [vmem:[%s1815 + $0x16c] sm:$0xf]
        %v1954 = vld [vmem:[%s1815 + $0x170] sm:$0xf]
        %v1955 = vld [vmem:[%s1815 + $0x174] sm:$0xf]
        %v1956 = vld [vmem:[%s1815 + $0x178] sm:$0xf]
        %v1957 = vld [vmem:[%s1815 + $0x17c] sm:$0xf]
        %v1958 = vld [vmem:[%s1815 + $0x180] sm:$0xf]
        %v1959 = vld [vmem:[%s1815 + $0x184] sm:$0xf]
        %v1960 = vld [vmem:[%s1815 + $0x188] sm:$0xf]
        %v1961 = vld [vmem:[%s1815 + $0x18c] sm:$0xf]
        %v1962 = vld [vmem:[%s1815 + $0x190] sm:$0xf]
        %v1963 = vld [vmem:[%s1815 + $0x194] sm:$0xf]
        %v1964 = vld [vmem:[%s1815 + $0x198] sm:$0xf]
        %v1965 = vld [vmem:[%s1815 + $0x19c] sm:$0xf]
        %v1966 = vld [vmem:[%s1815 + $0x1a0] sm:$0xf]
        %v1967 = vld [vmem:[%s1815 + $0x1a4] sm:$0xf]
        %v1968 = vld [vmem:[%s1815 + $0x1a8] sm:$0xf]
        %v1969 = vld [vmem:[%s1815 + $0x1ac] sm:$0xf]
        %v1970 = vld [vmem:[%s1815 + $0x1b0] sm:$0xf]
        %v1971 = vld [vmem:[%s1815 + $0x1b4] sm:$0xf]
        %v1972 = vld [vmem:[%s1815 + $0x1b8] sm:$0xf]
        %v1973 = vld [vmem:[%s1815 + $0x1bc] sm:$0xf]
        %v1974 = vld [vmem:[%s1815 + $0x1c0] sm:$0xf]
        %v1975 = vld [vmem:[%s1815 + $0x1c4] sm:$0xf]
        %v1976 = vld [vmem:[%s1815 + $0x1c8] sm:$0xf]
        %v1977 = vld [vmem:[%s1815 + $0x1cc] sm:$0xf]
        %v1978 = vld [vmem:[%s1815 + $0x1d0] sm:$0xf]
        %v1979 = vld [vmem:[%s1815 + $0x1d4] sm:$0xf]
        %v1980 = vld [vmem:[%s1815 + $0x1d8] sm:$0xf]
        %v1981 = vld [vmem:[%s1815 + $0x1dc] sm:$0xf]
        %v1982 = vld [vmem:[%s1815 + $0x1e0] sm:$0xf]
        %v1983 = vld [vmem:[%s1815 + $0x1e4] sm:$0xf]
        %v1984 = vld [vmem:[%s1815 + $0x1e8] sm:$0xf]
        %v1985 = vld [vmem:[%s1815 + $0x1ec] sm:$0xf]
        %v1986 = vld [vmem:[%s1815 + $0x1f0] sm:$0xf]
        %v1987 = vld [vmem:[%s1815 + $0x1f4] sm:$0xf]
        %v1988 = vld [vmem:[%s1815 + $0x1f8] sm:$0xf]
        %v1989 = vld [vmem:[%s1815 + $0x1fc] sm:$0xf]
        %v1990 = vld [vmem:[%s1815 + $0x200] sm:$0xf]
        %v1991 = vld [vmem:[%s1815 + $0x204] sm:$0xf]
        %v1992 = vld [vmem:[%s1815 + $0x208] sm:$0xf]
        %v1993 = vld [vmem:[%s1815 + $0x20c] sm:$0xf]
        %v1994 = vld [vmem:[%s1815 + $0x210] sm:$0xf]
        %v1995 = vld [vmem:[%s1815 + $0x214] sm:$0xf]
        %v1996 = vld [vmem:[%s1815 + $0x218] sm:$0xf]
        %v1997 = vld [vmem:[%s1815 + $0x21c] sm:$0xf]
        %v1998 = vld [vmem:[%s1815 + $0x220] sm:$0xf]
        %v1999 = vld [vmem:[%s1815 + $0x224] sm:$0xf]
        %v2000 = vld [vmem:[%s1815 + $0x228] sm:$0xf]
        %v2001 = vld [vmem:[%s1815 + $0x22c] sm:$0xf]
        %v2002 = vld [vmem:[%s1815 + $0x230] sm:$0xf]
        %v2003 = vld [vmem:[%s1815 + $0x234] sm:$0xf]
        %v2004 = vld [vmem:[%s1815 + $0x238] sm:$0xf]
        %v2005 = vld [vmem:[%s1815 + $0x23c] sm:$0xf]
        %v2006 = vld [vmem:[%s1815 + $0x240] sm:$0xf]
        %v2007 = vld [vmem:[%s1815 + $0x244] sm:$0xf]
        %v2008 = vld [vmem:[%s1815 + $0x248] sm:$0xf]
        %v2009 = vld [vmem:[%s1815 + $0x24c] sm:$0xf]
        %v2010 = vld [vmem:[%s1815 + $0x250] sm:$0xf]
        %v2011 = vld [vmem:[%s1815 + $0x254] sm:$0xf]
        %v2012 = vld [vmem:[%s1815 + $0x258] sm:$0xf]
        %v2013 = vld [vmem:[%s1815 + $0x25c] sm:$0xf]
        %v2014 = vld [vmem:[%s1815 + $0x260] sm:$0xf]
        %v2015 = vld [vmem:[%s1815 + $0x264] sm:$0xf]
        %v2016 = vld [vmem:[%s1815 + $0x268] sm:$0xf]
        %v2017 = vld [vmem:[%s1815 + $0x26c] sm:$0xf]
        %v2018 = vld [vmem:[%s1815 + $0x270] sm:$0xf]
        %v2019 = vld [vmem:[%s1815 + $0x274] sm:$0xf]
        %v2020 = vld [vmem:[%s1815 + $0x278] sm:$0xf]
        %v2021 = vld [vmem:[%s1815 + $0x27c] sm:$0xf]
        %v2022 = vld [vmem:[%s1815 + $0x280] sm:$0xf]
        %v2023 = vld [vmem:[%s1815 + $0x284] sm:$0xf]
        %v2024 = vld [vmem:[%s1815 + $0x288] sm:$0xf]
        %v2025 = vld [vmem:[%s1815 + $0x28c] sm:$0xf]
        %v2026 = vld [vmem:[%s1815 + $0x290] sm:$0xf]
        %v2027 = vld [vmem:[%s1815 + $0x294] sm:$0xf]
        %v2028 = vld [vmem:[%s1815 + $0x298] sm:$0xf]
        %v2029 = vld [vmem:[%s1815 + $0x29c] sm:$0xf]
        %v2030 = vld [vmem:[%s1815 + $0x2a0] sm:$0xf]
        %v2031 = vld [vmem:[%s1815 + $0x2a4] sm:$0xf]
        %v2032 = vld [vmem:[%s1815 + $0x2a8] sm:$0xf]
        %v2033 = vld [vmem:[%s1815 + $0x2ac] sm:$0xf]
        %v2034 = vld [vmem:[%s1815 + $0x2b0] sm:$0xf]
        %v2035 = vld [vmem:[%s1815 + $0x2b4] sm:$0xf]
        %v2036 = vld [vmem:[%s1815 + $0x2b8] sm:$0xf]
        %v2037 = vld [vmem:[%s1815 + $0x2bc] sm:$0xf]
        %v2038 = vld [vmem:[%s1815 + $0x2c0] sm:$0xf]
        %v2039 = vld [vmem:[%s1815 + $0x2c4] sm:$0xf]
        %v2040 = vld [vmem:[%s1815 + $0x2c8] sm:$0xf]
        %v2041 = vld [vmem:[%s1815 + $0x2cc] sm:$0xf]
        %v2042 = vld [vmem:[%s1815 + $0x2d0] sm:$0xf]
        %v2043 = vld [vmem:[%s1815 + $0x2d4] sm:$0xf]
        %v2044 = vld [vmem:[%s1815 + $0x2d8] sm:$0xf]
        %v2045 = vld [vmem:[%s1815 + $0x2dc] sm:$0xf]
        %v2046 = vld [vmem:[%s1815 + $0x2e0] sm:$0xf]
        %v2047 = vld [vmem:[%s1815 + $0x2e4] sm:$0xf]
        %v2048 = vld [vmem:[%s1815 + $0x2e8] sm:$0xf]
        %v2049 = vld [vmem:[%s1815 + $0x2ec] sm:$0xf]
        %v2050 = vld [vmem:[%s1815 + $0x2f0] sm:$0xf]
        %v2051 = vld [vmem:[%s1815 + $0x2f4] sm:$0xf]
        %v2052 = vld [vmem:[%s1815 + $0x2f8] sm:$0xf]
        %v2053 = vld [vmem:[%s1815 + $0x2fc] sm:$0xf]
        %v2054 = vld [vmem:[%s1815 + $0x300] sm:$0xf]
        %v2055 = vld [vmem:[%s1815 + $0x304] sm:$0xf]
        %v2056 = vld [vmem:[%s1815 + $0x308] sm:$0xf]
        %v2057 = vld [vmem:[%s1815 + $0x30c] sm:$0xf]
        %v2058 = vld [vmem:[%s1815 + $0x310] sm:$0xf]
        %v2059 = vld [vmem:[%s1815 + $0x314] sm:$0xf]
        %v2060 = vld [vmem:[%s1815 + $0x318] sm:$0xf]
        %v2061 = vld [vmem:[%s1815 + $0x31c] sm:$0xf]
        %v2062 = vld [vmem:[%s1815 + $0x320] sm:$0xf]
        %v2063 = vld [vmem:[%s1815 + $0x324] sm:$0xf]
        %v2064 = vld [vmem:[%s1815 + $0x328] sm:$0xf]
        %v2065 = vld [vmem:[%s1815 + $0x32c] sm:$0xf]
        %v2066 = vld [vmem:[%s1815 + $0x330] sm:$0xf]
        %v2067 = vld [vmem:[%s1815 + $0x334] sm:$0xf]
        %v2068 = vld [vmem:[%s1815 + $0x338] sm:$0xf]
        %v2069 = vld [vmem:[%s1815 + $0x33c] sm:$0xf]
        %v2070 = vld [vmem:[%s1815 + $0x340] sm:$0xf]
        %v2071 = vld [vmem:[%s1815 + $0x344] sm:$0xf]
        %v2072 = vld [vmem:[%s1815 + $0x348] sm:$0xf]
        %v2073 = vld [vmem:[%s1815 + $0x34c] sm:$0xf]
        %v2074 = vld [vmem:[%s1815 + $0x350] sm:$0xf]
        %v2075 = vld [vmem:[%s1815 + $0x354] sm:$0xf]
        %v2076 = vld [vmem:[%s1815 + $0x358] sm:$0xf]
        %v2077 = vld [vmem:[%s1815 + $0x35c] sm:$0xf]
        %v2078 = vld [vmem:[%s1815 + $0x360] sm:$0xf]
        %v2079 = vld [vmem:[%s1815 + $0x364] sm:$0xf]
        %v2080 = vld [vmem:[%s1815 + $0x368] sm:$0xf]
        %v2081 = vld [vmem:[%s1815 + $0x36c] sm:$0xf]
        %v2082 = vld [vmem:[%s1815 + $0x370] sm:$0xf]
        %v2083 = vld [vmem:[%s1815 + $0x374] sm:$0xf]
        %v2084 = vld [vmem:[%s1815 + $0x378] sm:$0xf]
        %v2085 = vld [vmem:[%s1815 + $0x37c] sm:$0xf]
        %v2086 = vld [vmem:[%s1815 + $0x380] sm:$0xf]
        %v2087 = vld [vmem:[%s1815 + $0x384] sm:$0xf]
        %v2088 = vld [vmem:[%s1815 + $0x388] sm:$0xf]
        %v2089 = vld [vmem:[%s1815 + $0x38c] sm:$0xf]
        %v2090 = vld [vmem:[%s1815 + $0x390] sm:$0xf]
        %v2091 = vld [vmem:[%s1815 + $0x394] sm:$0xf]
        %v2092 = vld [vmem:[%s1815 + $0x398] sm:$0xf]
        %v2093 = vld [vmem:[%s1815 + $0x39c] sm:$0xf]
        %v2094 = vld [vmem:[%s1815 + $0x3a0] sm:$0xf]
        %v2095 = vld [vmem:[%s1815 + $0x3a4] sm:$0xf]
        %v2096 = vld [vmem:[%s1815 + $0x3a8] sm:$0xf]
        %v2097 = vld [vmem:[%s1815 + $0x3ac] sm:$0xf]
        %v2098 = vld [vmem:[%s1815 + $0x3b0] sm:$0xf]
        %v2099 = vld [vmem:[%s1815 + $0x3b4] sm:$0xf]
        %v2100 = vld [vmem:[%s1815 + $0x3b8] sm:$0xf]
        %v2101 = vld [vmem:[%s1815 + $0x3bc] sm:$0xf]
        %v2102 = vld [vmem:[%s1815 + $0x3c0] sm:$0xf]
        %v2103 = vld [vmem:[%s1815 + $0x3c4] sm:$0xf]
        %v2104 = vld [vmem:[%s1815 + $0x3c8] sm:$0xf]
        %v2105 = vld [vmem:[%s1815 + $0x3cc] sm:$0xf]
        %v2106 = vld [vmem:[%s1815 + $0x3d0] sm:$0xf]
        %v2107 = vld [vmem:[%s1815 + $0x3d4] sm:$0xf]
        %v2108 = vld [vmem:[%s1815 + $0x3d8] sm:$0xf]
        %v2109 = vld [vmem:[%s1815 + $0x3dc] sm:$0xf]
        %v2110 = vld [vmem:[%s1815 + $0x3e0] sm:$0xf]
        %v2111 = vld [vmem:[%s1815 + $0x3e4] sm:$0xf]
        %v2112 = vld [vmem:[%s1815 + $0x3e8] sm:$0xf]
        %v2113 = vld [vmem:[%s1815 + $0x3ec] sm:$0xf]
        %v2114 = vld [vmem:[%s1815 + $0x3f0] sm:$0xf]
        %v2115 = vld [vmem:[%s1815 + $0x3f4] sm:$0xf]
        %v2116 = vld [vmem:[%s1815 + $0x3f8] sm:$0xf]
        %v2117 = vld [vmem:[%s1815 + $0x3fc] sm:$0xf]
        %v2118 = vld [vmem:[%s1815 + $0x400] sm:$0xf]
        %v2119 = vld [vmem:[%s1815 + $0x404] sm:$0xf]
        %v2120 = vld [vmem:[%s1815 + $0x408] sm:$0xf]
        %v2121 = vld [vmem:[%s1815 + $0x40c] sm:$0xf]
        %v2122 = vld [vmem:[%s1815 + $0x410] sm:$0xf]
        %v2123 = vld [vmem:[%s1815 + $0x414] sm:$0xf]
        %v2124 = vld [vmem:[%s1815 + $0x418] sm:$0xf]
        %v2125 = vld [vmem:[%s1815 + $0x41c] sm:$0xf]
        %v2126 = vld [vmem:[%s1815 + $0x420] sm:$0xf]
        %v2127 = vld [vmem:[%s1815 + $0x424] sm:$0xf]
        %v2128 = vld [vmem:[%s1815 + $0x428] sm:$0xf]
        %v2129 = vld [vmem:[%s1815 + $0x42c] sm:$0xf]
        %v2130 = vld [vmem:[%s1815 + $0x430] sm:$0xf]
        %v2131 = vld [vmem:[%s1815 + $0x434] sm:$0xf]
        %v2132 = vld [vmem:[%s1815 + $0x438] sm:$0xf]
        %v2133 = vld [vmem:[%s1815 + $0x43c] sm:$0xf]
        %v2134 = vld [vmem:[%s1815 + $0x440] sm:$0xf]
        %v2135 = vld [vmem:[%s1815 + $0x444] sm:$0xf]
        %v2136 = vld [vmem:[%s1815 + $0x448] sm:$0xf]
        %v2137 = vld [vmem:[%s1815 + $0x44c] sm:$0xf]
        %v2138 = vld [vmem:[%s1815 + $0x450] sm:$0xf]
        %v2139 = vld [vmem:[%s1815 + $0x454] sm:$0xf]
        %v2140 = vld [vmem:[%s1815 + $0x458] sm:$0xf]
        %v2141 = vld [vmem:[%s1815 + $0x45c] sm:$0xf]
        %v2142 = vld [vmem:[%s1815 + $0x460] sm:$0xf]
        %v2143 = vld [vmem:[%s1815 + $0x464] sm:$0xf]
        %v2144 = vld [vmem:[%s1815 + $0x468] sm:$0xf]
        %v2145 = vld [vmem:[%s1815 + $0x46c] sm:$0xf]
        %v2146 = vld [vmem:[%s1815 + $0x470] sm:$0xf]
        %v2147 = vld [vmem:[%s1815 + $0x474] sm:$0xf]
        %v2148 = vld [vmem:[%s1815 + $0x478] sm:$0xf]
        %v2149 = vld [vmem:[%s1815 + $0x47c] sm:$0xf]
        %v2150 = vld [vmem:[%s1815 + $0x480] sm:$0xf]
        %v2151 = vld [vmem:[%s1815 + $0x484] sm:$0xf]
        %v2152 = vld [vmem:[%s1815 + $0x488] sm:$0xf]
        %v2153 = vld [vmem:[%s1815 + $0x48c] sm:$0xf]
        %v2154 = vld [vmem:[%s1815 + $0x490] sm:$0xf]
        %v2155 = vld [vmem:[%s1815 + $0x494] sm:$0xf]
        %v2156 = vld [vmem:[%s1815 + $0x498] sm:$0xf]
        %v2157 = vld [vmem:[%s1815 + $0x49c] sm:$0xf]
        %v2158 = vld [vmem:[%s1815 + $0x4a0] sm:$0xf]
        %v2159 = vld [vmem:[%s1815 + $0x4a4] sm:$0xf]
        %v2160 = vld [vmem:[%s1815 + $0x4a8] sm:$0xf]
        %v2161 = vld [vmem:[%s1815 + $0x4ac] sm:$0xf]
        %v2162 = vld [vmem:[%s1815 + $0x4b0] sm:$0xf]
        %v2163 = vld [vmem:[%s1815 + $0x4b4] sm:$0xf]
        %v2164 = vld [vmem:[%s1815 + $0x4b8] sm:$0xf]
        %v2165 = vld [vmem:[%s1815 + $0x4bc] sm:$0xf]
        %v2166 = vld [vmem:[%s1815 + $0x4c0] sm:$0xf]
        %v2167 = vld [vmem:[%s1815 + $0x4c4] sm:$0xf]
        %v2168 = vld [vmem:[%s1815 + $0x4c8] sm:$0xf]
        %v2169 = vld [vmem:[%s1815 + $0x4cc] sm:$0xf]
        %v2170 = vld [vmem:[%s1815 + $0x4d0] sm:$0xf]
        %v2171 = vld [vmem:[%s1815 + $0x4d4] sm:$0xf]
        %v2172 = vld [vmem:[%s1815 + $0x4d8] sm:$0xf]
        %v2173 = vld [vmem:[%s1815 + $0x4dc] sm:$0xf]
        %v2174 = vld [vmem:[%s1815 + $0x4e0] sm:$0xf]
        %v2175 = vld [vmem:[%s1815 + $0x4e4] sm:$0xf]
        %v2176 = vld [vmem:[%s1815 + $0x4e8] sm:$0xf]
        %v2177 = vld [vmem:[%s1815 + $0x4ec] sm:$0xf]
        %v2178 = vld [vmem:[%s1815 + $0x4f0] sm:$0xf]
        %v2179 = vld [vmem:[%s1815 + $0x4f4] sm:$0xf]
        %v2180 = vld [vmem:[%s1815 + $0x4f8] sm:$0xf]
        %v2181 = vld [vmem:[%s1815 + $0x4fc] sm:$0xf]
        %v2182 = vld [vmem:[%s1815 + $0x500] sm:$0xf]
        %v2183 = vld [vmem:[%s1815 + $0x504] sm:$0xf]
        %v2184 = vld [vmem:[%s1815 + $0x508] sm:$0xf]
        %v2185 = vld [vmem:[%s1815 + $0x50c] sm:$0xf]
        %v2186 = vld [vmem:[%s1815 + $0x510] sm:$0xf]
        %v2187 = vld [vmem:[%s1815 + $0x514] sm:$0xf]
        %v2188 = vld [vmem:[%s1815 + $0x518] sm:$0xf]
        %v2189 = vld [vmem:[%s1815 + $0x51c] sm:$0xf]
        %v2190 = vld [vmem:[%s1815 + $0x520] sm:$0xf]
        %v2191 = vld [vmem:[%s1815 + $0x524] sm:$0xf]
        %v2192 = vld [vmem:[%s1815 + $0x528] sm:$0xf]
        %v2193 = vld [vmem:[%s1815 + $0x52c] sm:$0xf]
        %v2194 = vld [vmem:[%s1815 + $0x530] sm:$0xf]
        %v2195 = vld [vmem:[%s1815 + $0x534] sm:$0xf]
        %v2196 = vld [vmem:[%s1815 + $0x538] sm:$0xf]
        %v2197 = vld [vmem:[%s1815 + $0x53c] sm:$0xf]
        %v2198 = vld [vmem:[%s1815 + $0x540] sm:$0xf]
        %v2199 = vld [vmem:[%s1815 + $0x544] sm:$0xf]
        %v2200 = vld [vmem:[%s1815 + $0x548] sm:$0xf]
        %v2201 = vld [vmem:[%s1815 + $0x54c] sm:$0xf]
        %v2202 = vld [vmem:[%s1815 + $0x550] sm:$0xf]
        %v2203 = vld [vmem:[%s1815 + $0x554] sm:$0xf]
        %v2204 = vld [vmem:[%s1815 + $0x558] sm:$0xf]
        %v2205 = vld [vmem:[%s1815 + $0x55c] sm:$0xf]
        %v2206 = vld [vmem:[%s1815 + $0x560] sm:$0xf]
        %v2207 = vld [vmem:[%s1815 + $0x564] sm:$0xf]
        %v2208 = vld [vmem:[%s1815 + $0x568] sm:$0xf]
        %v2209 = vld [vmem:[%s1815 + $0x56c] sm:$0xf]
        %v2210 = vld [vmem:[%s1815 + $0x570] sm:$0xf]
        %v2211 = vld [vmem:[%s1815 + $0x574] sm:$0xf]
        %v2212 = vld [vmem:[%s1815 + $0x578] sm:$0xf]
        %v2213 = vld [vmem:[%s1815 + $0x57c] sm:$0xf]
        %v2214 = vld [vmem:[%s1815 + $0x580] sm:$0xf]
        %v2215 = vld [vmem:[%s1815 + $0x584] sm:$0xf]
        %v2216 = vld [vmem:[%s1815 + $0x588] sm:$0xf]
        %v2217 = vld [vmem:[%s1815 + $0x58c] sm:$0xf]
        %v2218 = vld [vmem:[%s1815 + $0x590] sm:$0xf]
        %v2219 = vld [vmem:[%s1815 + $0x594] sm:$0xf]
        %v2220 = vld [vmem:[%s1815 + $0x598] sm:$0xf]
        %v2221 = vld [vmem:[%s1815 + $0x59c] sm:$0xf]
        %v2222 = vld [vmem:[%s1815 + $0x5a0] sm:$0xf]
        %v2223 = vld [vmem:[%s1815 + $0x5a4] sm:$0xf]
        %v2224 = vld [vmem:[%s1815 + $0x5a8] sm:$0xf]
        %v2225 = vld [vmem:[%s1815 + $0x5ac] sm:$0xf]
        %v2226 = vld [vmem:[%s1815 + $0x5b0] sm:$0xf]
        %v2227 = vld [vmem:[%s1815 + $0x5b4] sm:$0xf]
        %v2228 = vld [vmem:[%s1815 + $0x5b8] sm:$0xf]
        %v2229 = vld [vmem:[%s1815 + $0x5bc] sm:$0xf]
        %v2230 = vld [vmem:[%s1815 + $0x5c0] sm:$0xf]
        %v2231 = vld [vmem:[%s1815 + $0x5c4] sm:$0xf]
        %v2232 = vld [vmem:[%s1815 + $0x5c8] sm:$0xf]
        %v2233 = vld [vmem:[%s1815 + $0x5cc] sm:$0xf]
        %v2234 = vld [vmem:[%s1815 + $0x5d0] sm:$0xf]
        %v2235 = vld [vmem:[%s1815 + $0x5d4] sm:$0xf]
        %v2236 = vld [vmem:[%s1815 + $0x5d8] sm:$0xf]
        %v2237 = vld [vmem:[%s1815 + $0x5dc] sm:$0xf]
        %v2238 = vld [vmem:[%s1815 + $0x5e0] sm:$0xf]
        %v2239 = vld [vmem:[%s1815 + $0x5e4] sm:$0xf]
        %v2240 = vld [vmem:[%s1815 + $0x5e8] sm:$0xf]
        %v2241 = vld [vmem:[%s1815 + $0x5ec] sm:$0xf]
        %v2242 = vld [vmem:[%s1815 + $0x5f0] sm:$0xf]
        %v2243 = vld [vmem:[%s1815 + $0x5f4] sm:$0xf]
        %v2244 = vld [vmem:[%s1815 + $0x5f8] sm:$0xf]
        %v2245 = vld [vmem:[%s1815 + $0x5fc] sm:$0xf]
        %v2246 = vld [vmem:[%s1815 + $0x600] sm:$0xf]
        %v2247 = vld [vmem:[%s1815 + $0x604] sm:$0xf]
        %v2248 = vld [vmem:[%s1815 + $0x608] sm:$0xf]
        %v2249 = vld [vmem:[%s1815 + $0x60c] sm:$0xf]
        %v2250 = vld [vmem:[%s1815 + $0x610] sm:$0xf]
        %v2251 = vld [vmem:[%s1815 + $0x614] sm:$0xf]
        %v2252 = vld [vmem:[%s1815 + $0x618] sm:$0xf]
        %v2253 = vld [vmem:[%s1815 + $0x61c] sm:$0xf]
        %v2254 = vld [vmem:[%s1845] sm:$0x1]
        %v2256 = vlaneseq
        %v2257 = vshrl.u32 %v2256, 7
        %v2258 = vsub.s32 0, %v2257
        %v2259 = vrot.slane %v2254, %v2258
        %v2265 = vcombine.high %v1858, %v1858
        %v2267 = vunpack.c.l.s4 1966171168
        %v2268 = vunpack.c.0.s8 %v2267
        %v2269 = vlaneseq
        %v2270 = vshrl.u32 %v2269, 7
        %v2271 = vsub.s32 %v2268, %v2270
        %v2272 = vrot.slane %v1858, %v2271
        %v2274 = vunpack.c.l.s4 1966171168
        %v2275 = vunpack.c.0.s8 %v2274
        %v2276 = vlaneseq
        %v2277 = vshrl.u32 %v2276, 7
        %v2278 = vsub.s32 %v2275, %v2277
        %v2279 = vrot.slane %v2265, %v2278
        %v2280 = vcombine.high %v2272, %v2272
        %v2281 = vcombine.high %v2279, %v2279
        %v2283 = vunpack.c.l.s4 1966171168
        %v2284 = vunpack.c.0.s8 %v2283
        %v2285 = vlaneseq
        %v2286 = vshrl.u32 %v2285, 7
        %v2287 = vsub.s32 %v2284, %v2286
        %v2288 = vrot.slane %v2272, %v2287
        %v2290 = vunpack.c.l.s4 1966171168
        %v2291 = vunpack.c.0.s8 %v2290
        %v2292 = vlaneseq
        %v2293 = vshrl.u32 %v2292, 7
        %v2294 = vsub.s32 %v2291, %v2293
        %v2295 = vrot.slane %v2279, %v2294
        %v2297 = vunpack.c.l.s4 1966171168
        %v2298 = vunpack.c.0.s8 %v2297
        %v2299 = vlaneseq
        %v2300 = vshrl.u32 %v2299, 7
        %v2301 = vsub.s32 %v2298, %v2300
        %v2302 = vrot.slane %v2280, %v2301
        %v2304 = vunpack.c.l.s4 1966171168
        %v2305 = vunpack.c.0.s8 %v2304
        %v2306 = vlaneseq
        %v2307 = vshrl.u32 %v2306, 7
        %v2308 = vsub.s32 %v2305, %v2307
        %v2309 = vrot.slane %v2281, %v2308
        %v2310 = vcombine.high %v2288, %v2288
        %v2311 = vcombine.high %v2295, %v2295
        %v2312 = vcombine.high %v2302, %v2302
        %v2313 = vcombine.high %v2309, %v2309
        %v2314 = vcombine.high %v1859, %v1859
        %v2316 = vunpack.c.l.s4 1966171168
        %v2317 = vunpack.c.0.s8 %v2316
        %v2318 = vlaneseq
        %v2319 = vshrl.u32 %v2318, 7
        %v2320 = vsub.s32 %v2317, %v2319
        %v2321 = vrot.slane %v1859, %v2320
        %v2323 = vunpack.c.l.s4 1966171168
        %v2324 = vunpack.c.0.s8 %v2323
        %v2325 = vlaneseq
        %v2326 = vshrl.u32 %v2325, 7
        %v2327 = vsub.s32 %v2324, %v2326
        %v2328 = vrot.slane %v2314, %v2327
        %v2329 = vcombine.high %v2321, %v2321
        %v2330 = vcombine.high %v2328, %v2328
        %v2332 = vunpack.c.l.s4 1966171168
        %v2333 = vunpack.c.0.s8 %v2332
        %v2334 = vlaneseq
        %v2335 = vshrl.u32 %v2334, 7
        %v2336 = vsub.s32 %v2333, %v2335
        %v2337 = vrot.slane %v2321, %v2336
        %v2339 = vunpack.c.l.s4 1966171168
        %v2340 = vunpack.c.0.s8 %v2339
        %v2341 = vlaneseq
        %v2342 = vshrl.u32 %v2341, 7
        %v2343 = vsub.s32 %v2340, %v2342
        %v2344 = vrot.slane %v2328, %v2343
        %v2346 = vunpack.c.l.s4 1966171168
        %v2347 = vunpack.c.0.s8 %v2346
        %v2348 = vlaneseq
        %v2349 = vshrl.u32 %v2348, 7
        %v2350 = vsub.s32 %v2347, %v2349
        %v2351 = vrot.slane %v2329, %v2350
        %v2353 = vunpack.c.l.s4 1966171168
        %v2354 = vunpack.c.0.s8 %v2353
        %v2355 = vlaneseq
        %v2356 = vshrl.u32 %v2355, 7
        %v2357 = vsub.s32 %v2354, %v2356
        %v2358 = vrot.slane %v2330, %v2357
        %v2359 = vcombine.high %v2337, %v2337
        %v2360 = vcombine.high %v2344, %v2344
        %v2361 = vcombine.high %v2351, %v2351
        %v2362 = vcombine.high %v2358, %v2358
        %v2363 = vcombine.high %v1860, %v1860
        %v2365 = vunpack.c.l.s4 1966171168
        %v2366 = vunpack.c.0.s8 %v2365
        %v2367 = vlaneseq
        %v2368 = vshrl.u32 %v2367, 7
        %v2369 = vsub.s32 %v2366, %v2368
        %v2370 = vrot.slane %v1860, %v2369
        %v2372 = vunpack.c.l.s4 1966171168
        %v2373 = vunpack.c.0.s8 %v2372
        %v2374 = vlaneseq
        %v2375 = vshrl.u32 %v2374, 7
        %v2376 = vsub.s32 %v2373, %v2375
        %v2377 = vrot.slane %v2363, %v2376
        %v2378 = vcombine.high %v2370, %v2370
        %v2379 = vcombine.high %v2377, %v2377
        %v2381 = vunpack.c.l.s4 1966171168
        %v2382 = vunpack.c.0.s8 %v2381
        %v2383 = vlaneseq
        %v2384 = vshrl.u32 %v2383, 7
        %v2385 = vsub.s32 %v2382, %v2384
        %v2386 = vrot.slane %v2370, %v2385
        %v2388 = vunpack.c.l.s4 1966171168
        %v2389 = vunpack.c.0.s8 %v2388
        %v2390 = vlaneseq
        %v2391 = vshrl.u32 %v2390, 7
        %v2392 = vsub.s32 %v2389, %v2391
        %v2393 = vrot.slane %v2377, %v2392
        %v2395 = vunpack.c.l.s4 1966171168
        %v2396 = vunpack.c.0.s8 %v2395
        %v2397 = vlaneseq
        %v2398 = vshrl.u32 %v2397, 7
        %v2399 = vsub.s32 %v2396, %v2398
        %v2400 = vrot.slane %v2378, %v2399
        %v2402 = vunpack.c.l.s4 1966171168
        %v2403 = vunpack.c.0.s8 %v2402
        %v2404 = vlaneseq
        %v2405 = vshrl.u32 %v2404, 7
        %v2406 = vsub.s32 %v2403, %v2405
        %v2407 = vrot.slane %v2379, %v2406
        %v2408 = vcombine.high %v2386, %v2386
        %v2409 = vcombine.high %v2393, %v2393
        %v2410 = vcombine.high %v2400, %v2400
        %v2411 = vcombine.high %v2407, %v2407
        %v2413 = vunpack.c.l.s4 1966171168
        %v2414 = vunpack.c.0.s8 %v2413
        %v2415 = vlaneseq
        %v2416 = vshrl.u32 %v2415, 7
        %v2417 = vsub.s32 %v2414, %v2416
        %v2418 = vrot.slane %v1861, %v2417
        %v2420 = vunpack.c.l.s4 1966171168
        %v2421 = vunpack.c.0.s8 %v2420
        %v2422 = vlaneseq
        %v2423 = vshrl.u32 %v2422, 7
        %v2424 = vsub.s32 %v2421, %v2423
        %v2425 = vrot.slane %v2418, %v2424
        %v2842 = vunpack.c.l.b16 %v1862
        %v2843 = vunpack.c.l.b16 %v1863
        %v2844 = vunpack.c.l.b16 %v1864
        %v2845 = vunpack.c.l.b16 %v1865
        %v2846 = vunpack.c.l.b16 %v1866
        %v2847 = vunpack.c.l.b16 %v1867
        %v2848 = vunpack.c.l.b16 %v1868
        %v2849 = vunpack.c.l.b16 %v1869
        %v2850 = vunpack.c.l.b16 %v1870
        %v2851 = vunpack.c.l.b16 %v1871
        %v2852 = vunpack.c.l.b16 %v1872
        %v2853 = vunpack.c.l.b16 %v1873
        %v2854 = vunpack.c.l.b16 %v1874
        %v2855 = vunpack.c.l.b16 %v1875
        %v2856 = vunpack.c.l.b16 %v1876
        %v2857 = vunpack.c.l.b16 %v1877
        %v2858 = vunpack.c.l.b16 %v1878
        %v2859 = vunpack.c.l.b16 %v1879
        %v2860 = vunpack.c.l.b16 %v1880
        %v2861 = vunpack.c.l.b16 %v1881
        %v2862 = vunpack.c.l.b16 %v1882
        %v2863 = vunpack.c.l.b16 %v1883
        %v2864 = vunpack.c.l.b16 %v1884
        %v2865 = vunpack.c.l.b16 %v1885
        %v2866 = vunpack.c.l.b16 %v1886
        %v2867 = vunpack.c.l.b16 %v1887
        %v2868 = vunpack.c.l.b16 %v1888
        %v2869 = vunpack.c.l.b16 %v1889
        %v2870 = vunpack.c.l.b16 %v1890
        %v2871 = vunpack.c.l.b16 %v1891
        %v2872 = vunpack.c.l.b16 %v1892
        %v2873 = vunpack.c.l.b16 %v1893
        %v2874 = vunpack.c.l.b16 %v1894
        %v2875 = vunpack.c.l.b16 %v1895
        %v2876 = vunpack.c.l.b16 %v1896
        %v2877 = vunpack.c.l.b16 %v1897
        %v2878 = vunpack.c.l.b16 %v1898
        %v2879 = vunpack.c.l.b16 %v1899
        %v2880 = vunpack.c.l.b16 %v1900
        %v2881 = vunpack.c.l.b16 %v1901
        %v2882 = vunpack.c.l.b16 %v1902
        %v2883 = vunpack.c.l.b16 %v1903
        %v2884 = vunpack.c.l.b16 %v1904
        %v2885 = vunpack.c.l.b16 %v1905
        %v2886 = vunpack.c.l.b16 %v1906
        %v2887 = vunpack.c.l.b16 %v1907
        %v2888 = vunpack.c.l.b16 %v1908
        %v2889 = vunpack.c.l.b16 %v1909
        %v2890 = vunpack.c.l.b16 %v1910
        %v2891 = vunpack.c.l.b16 %v1911
        %v2892 = vunpack.c.l.b16 %v1912
        %v2893 = vunpack.c.l.b16 %v1913
        %v2894 = vunpack.c.l.b16 %v1914
        %v2895 = vunpack.c.l.b16 %v1915
        %v2896 = vunpack.c.l.b16 %v1916
        %v2897 = vunpack.c.l.b16 %v1917
        %v2898 = vunpack.c.l.b16 %v1918
        %v2899 = vunpack.c.l.b16 %v1919
        %v2900 = vunpack.c.l.b16 %v1920
        %v2901 = vunpack.c.l.b16 %v1921
        %v2902 = vunpack.c.l.b16 %v1922
        %v2903 = vunpack.c.l.b16 %v1923
        %v2904 = vunpack.c.l.b16 %v1924
        %v2905 = vunpack.c.l.b16 %v1925
        %v2906 = vunpack.c.l.b16 %v1926
        %v2907 = vunpack.c.l.b16 %v1927
        %v2908 = vunpack.c.l.b16 %v1928
        %v2909 = vunpack.c.l.b16 %v1929
        %v2910 = vunpack.c.l.b16 %v1930
        %v2911 = vunpack.c.l.b16 %v1931
        %v2912 = vunpack.c.l.b16 %v1932
        %v2913 = vunpack.c.l.b16 %v1933
        %v2914 = vunpack.c.l.b16 %v1934
        %v2915 = vunpack.c.l.b16 %v1935
        %v2916 = vunpack.c.l.b16 %v1936
        %v2917 = vunpack.c.l.b16 %v1937
        %v2918 = vunpack.c.l.b16 %v1938
        %v2919 = vunpack.c.l.b16 %v1939
        %v2920 = vunpack.c.l.b16 %v1940
        %v2921 = vunpack.c.l.b16 %v1941
        %v2922 = vunpack.c.l.b16 %v1942
        %v2923 = vunpack.c.l.b16 %v1943
        %v2924 = vunpack.c.l.b16 %v1944
        %v2925 = vunpack.c.l.b16 %v1945
        %v2926 = vunpack.c.l.b16 %v1946
        %v2927 = vunpack.c.l.b16 %v1947
        %v2928 = vunpack.c.l.b16 %v1948
        %v2929 = vunpack.c.l.b16 %v1949
        %v2930 = vunpack.c.l.b16 %v1950
        %v2931 = vunpack.c.l.b16 %v1951
        %v2932 = vunpack.c.l.b16 %v1952
        %v2933 = vunpack.c.l.b16 %v1953
        %v2934 = vunpack.c.l.b16 %v1954
        %v2935 = vunpack.c.l.b16 %v1955
        %v2936 = vunpack.c.l.b16 %v1956
        %v2937 = vunpack.c.l.b16 %v1957
        %v2938 = vunpack.c.l.b16 %v1958
        %v2939 = vunpack.c.l.b16 %v1959
        %v2940 = vunpack.c.l.b16 %v1960
        %v2941 = vunpack.c.l.b16 %v1961
        %v2942 = vunpack.c.l.b16 %v1962
        %v2943 = vunpack.c.l.b16 %v1963
        %v2944 = vunpack.c.l.b16 %v1964
        %v2945 = vunpack.c.l.b16 %v1965
        %v2946 = vunpack.c.l.b16 %v1966
        %v2947 = vunpack.c.l.b16 %v1967
        %v2948 = vunpack.c.l.b16 %v1968
        %v2949 = vunpack.c.l.b16 %v1969
        %v2950 = vunpack.c.l.b16 %v1970
        %v2951 = vunpack.c.l.b16 %v1971
        %v2952 = vunpack.c.l.b16 %v1972
        %v2953 = vunpack.c.l.b16 %v1973
        %v2954 = vunpack.c.l.b16 %v1974
        %v2955 = vunpack.c.l.b16 %v1975
        %v2956 = vunpack.c.l.b16 %v1976
        %v2957 = vunpack.c.l.b16 %v1977
        %v2958 = vunpack.c.l.b16 %v1978
        %v2959 = vunpack.c.l.b16 %v1979
        %v2960 = vunpack.c.l.b16 %v1980
        %v2961 = vunpack.c.l.b16 %v1981
        %v2962 = vunpack.c.l.b16 %v1982
        %v2963 = vunpack.c.l.b16 %v1983
        %v2964 = vunpack.c.l.b16 %v1984
        %v2965 = vunpack.c.l.b16 %v1985
        %v2966 = vunpack.c.l.b16 %v1986
        %v2967 = vunpack.c.l.b16 %v1987
        %v2968 = vunpack.c.l.b16 %v1988
        %v2969 = vunpack.c.l.b16 %v1989
        %v2970 = vunpack.c.l.b16 %v1990
        %v2971 = vunpack.c.l.b16 %v1991
        %v2972 = vunpack.c.l.b16 %v1992
        %v2973 = vunpack.c.l.b16 %v1993
        %v2974 = vunpack.c.l.b16 %v1994
        %v2975 = vunpack.c.l.b16 %v1995
        %v2976 = vunpack.c.l.b16 %v1996
        %v2977 = vunpack.c.l.b16 %v1997
        %v2978 = vunpack.c.l.b16 %v1998
        %v2979 = vunpack.c.l.b16 %v1999
        %v2980 = vunpack.c.l.b16 %v2000
        %v2981 = vunpack.c.l.b16 %v2001
        %v2982 = vunpack.c.l.b16 %v2002
        %v2983 = vunpack.c.l.b16 %v2003
        %v2984 = vunpack.c.l.b16 %v2004
        %v2985 = vunpack.c.l.b16 %v2005
        %v2986 = vunpack.c.l.b16 %v2006
        %v2987 = vunpack.c.l.b16 %v2007
        %v2988 = vunpack.c.l.b16 %v2008
        %v2989 = vunpack.c.l.b16 %v2009
        %v2990 = vunpack.c.l.b16 %v2010
        %v2991 = vunpack.c.l.b16 %v2011
        %v2992 = vunpack.c.l.b16 %v2012
        %v2993 = vunpack.c.l.b16 %v2013
        %v2994 = vunpack.c.l.b16 %v2014
        %v2995 = vunpack.c.l.b16 %v2015
        %v2996 = vunpack.c.l.b16 %v2016
        %v2997 = vunpack.c.l.b16 %v2017
        %v2998 = vunpack.c.l.b16 %v2018
        %v2999 = vunpack.c.l.b16 %v2019
        %v3000 = vunpack.c.l.b16 %v2020
        %v3001 = vunpack.c.l.b16 %v2021
        %v3002 = vunpack.c.l.b16 %v2022
        %v3003 = vunpack.c.l.b16 %v2023
        %v3004 = vunpack.c.l.b16 %v2024
        %v3005 = vunpack.c.l.b16 %v2025
        %v3006 = vunpack.c.l.b16 %v2026
        %v3007 = vunpack.c.l.b16 %v2027
        %v3008 = vunpack.c.l.b16 %v2028
        %v3009 = vunpack.c.l.b16 %v2029
        %v3010 = vunpack.c.l.b16 %v2030
        %v3011 = vunpack.c.l.b16 %v2031
        %v3012 = vunpack.c.l.b16 %v2032
        %v3013 = vunpack.c.l.b16 %v2033
        %v3014 = vunpack.c.l.b16 %v2034
        %v3015 = vunpack.c.l.b16 %v2035
        %v3016 = vunpack.c.l.b16 %v2036
        %v3017 = vunpack.c.l.b16 %v2037
        %v3018 = vunpack.c.l.b16 %v2038
        %v3019 = vunpack.c.l.b16 %v2039
        %v3020 = vunpack.c.l.b16 %v2040
        %v3021 = vunpack.c.l.b16 %v2041
        %v3022 = vunpack.c.l.b16 %v2042
        %v3023 = vunpack.c.l.b16 %v2043
        %v3024 = vunpack.c.l.b16 %v2044
        %v3025 = vunpack.c.l.b16 %v2045
        %v3026 = vunpack.c.l.b16 %v2046
        %v3027 = vunpack.c.l.b16 %v2047
        %v3028 = vunpack.c.l.b16 %v2048
        %v3029 = vunpack.c.l.b16 %v2049
        %v3030 = vunpack.c.l.b16 %v2050
        %v3031 = vunpack.c.l.b16 %v2051
        %v3032 = vunpack.c.l.b16 %v2052
        %v3033 = vunpack.c.l.b16 %v2053
        %v3034 = vunpack.c.l.b16 %v2054
        %v3035 = vunpack.c.l.b16 %v2055
        %v3036 = vunpack.c.l.b16 %v2056
        %v3037 = vunpack.c.l.b16 %v2057
        %v3038 = vunpack.c.l.b16 %v2058
        %v3039 = vunpack.c.l.b16 %v2059
        %v3040 = vunpack.c.l.b16 %v2060
        %v3041 = vunpack.c.l.b16 %v2061
        %v3042 = vunpack.c.l.b16 %v2062
        %v3043 = vunpack.c.l.b16 %v2063
        %v3044 = vunpack.c.l.b16 %v2064
        %v3045 = vunpack.c.l.b16 %v2065
        %v3046 = vunpack.c.l.b16 %v2066
        %v3047 = vunpack.c.l.b16 %v2067
        %v3048 = vunpack.c.l.b16 %v2068
        %v3049 = vunpack.c.l.b16 %v2069
        %v3050 = vunpack.c.l.b16 %v2070
        %v3051 = vunpack.c.l.b16 %v2071
        %v3052 = vunpack.c.l.b16 %v2072
        %v3053 = vunpack.c.l.b16 %v2073
        %v3054 = vunpack.c.l.b16 %v2074
        %v3055 = vunpack.c.l.b16 %v2075
        %v3056 = vunpack.c.l.b16 %v2076
        %v3057 = vunpack.c.l.b16 %v2077
        %v3058 = vunpack.c.l.b16 %v2078
        %v3059 = vunpack.c.l.b16 %v2079
        %v3060 = vunpack.c.l.b16 %v2080
        %v3061 = vunpack.c.l.b16 %v2081
        %v3062 = vunpack.c.l.b16 %v2082
        %v3063 = vunpack.c.l.b16 %v2083
        %v3064 = vunpack.c.l.b16 %v2084
        %v3065 = vunpack.c.l.b16 %v2085
        %v3066 = vunpack.c.l.b16 %v2086
        %v3067 = vunpack.c.l.b16 %v2087
        %v3068 = vunpack.c.l.b16 %v2088
        %v3069 = vunpack.c.l.b16 %v2089
        %v3070 = vunpack.c.l.b16 %v2090
        %v3071 = vunpack.c.l.b16 %v2091
        %v3072 = vunpack.c.l.b16 %v2092
        %v3073 = vunpack.c.l.b16 %v2093
        %v3074 = vunpack.c.l.b16 %v2094
        %v3075 = vunpack.c.l.b16 %v2095
        %v3076 = vunpack.c.l.b16 %v2096
        %v3077 = vunpack.c.l.b16 %v2097
        %v3078 = vunpack.c.l.b16 %v2098
        %v3079 = vunpack.c.l.b16 %v2099
        %v3080 = vunpack.c.l.b16 %v2100
        %v3081 = vunpack.c.l.b16 %v2101
        %v3082 = vunpack.c.l.b16 %v2102
        %v3083 = vunpack.c.l.b16 %v2103
        %v3084 = vunpack.c.l.b16 %v2104
        %v3085 = vunpack.c.l.b16 %v2105
        %v3086 = vunpack.c.l.b16 %v2106
        %v3087 = vunpack.c.l.b16 %v2107
        %v3088 = vunpack.c.l.b16 %v2108
        %v3089 = vunpack.c.l.b16 %v2109
        %v3090 = vunpack.c.l.b16 %v2110
        %v3091 = vunpack.c.l.b16 %v2111
        %v3092 = vunpack.c.l.b16 %v2112
        %v3093 = vunpack.c.l.b16 %v2113
        %v3094 = vunpack.c.l.b16 %v2114
        %v3095 = vunpack.c.l.b16 %v2115
        %v3096 = vunpack.c.l.b16 %v2116
        %v3097 = vunpack.c.l.b16 %v2117
        %v3098 = vunpack.c.l.b16 %v2118
        %v3099 = vunpack.c.l.b16 %v2119
        %v3100 = vunpack.c.l.b16 %v2120
        %v3101 = vunpack.c.l.b16 %v2121
        %v3102 = vunpack.c.l.b16 %v2122
        %v3103 = vunpack.c.l.b16 %v2123
        %v3104 = vunpack.c.l.b16 %v2124
        %v3105 = vunpack.c.l.b16 %v2125
        %v3106 = vunpack.c.l.b16 %v2126
        %v3107 = vunpack.c.l.b16 %v2127
        %v3108 = vunpack.c.l.b16 %v2128
        %v3109 = vunpack.c.l.b16 %v2129
        %v3110 = vunpack.c.l.b16 %v2130
        %v3111 = vunpack.c.l.b16 %v2131
        %v3112 = vunpack.c.l.b16 %v2132
        %v3113 = vunpack.c.l.b16 %v2133
        %v3114 = vunpack.c.l.b16 %v2134
        %v3115 = vunpack.c.l.b16 %v2135
        %v3116 = vunpack.c.l.b16 %v2136
        %v3117 = vunpack.c.l.b16 %v2137
        %v3118 = vunpack.c.l.b16 %v2138
        %v3119 = vunpack.c.l.b16 %v2139
        %v3120 = vunpack.c.l.b16 %v2140
        %v3121 = vunpack.c.l.b16 %v2141
        %v3122 = vunpack.c.l.b16 %v2142
        %v3123 = vunpack.c.l.b16 %v2143
        %v3124 = vunpack.c.l.b16 %v2144
        %v3125 = vunpack.c.l.b16 %v2145
        %v3126 = vunpack.c.l.b16 %v2146
        %v3127 = vunpack.c.l.b16 %v2147
        %v3128 = vunpack.c.l.b16 %v2148
        %v3129 = vunpack.c.l.b16 %v2149
        %v3130 = vunpack.c.l.b16 %v2150
        %v3131 = vunpack.c.l.b16 %v2151
        %v3132 = vunpack.c.l.b16 %v2152
        %v3133 = vunpack.c.l.b16 %v2153
        %v3134 = vunpack.c.l.b16 %v2154
        %v3135 = vunpack.c.l.b16 %v2155
        %v3136 = vunpack.c.l.b16 %v2156
        %v3137 = vunpack.c.l.b16 %v2157
        %v3138 = vunpack.c.l.b16 %v2158
        %v3139 = vunpack.c.l.b16 %v2159
        %v3140 = vunpack.c.l.b16 %v2160
        %v3141 = vunpack.c.l.b16 %v2161
        %v3142 = vunpack.c.l.b16 %v2162
        %v3143 = vunpack.c.l.b16 %v2163
        %v3144 = vunpack.c.l.b16 %v2164
        %v3145 = vunpack.c.l.b16 %v2165
        %v3146 = vunpack.c.l.b16 %v2166
        %v3147 = vunpack.c.l.b16 %v2167
        %v3148 = vunpack.c.l.b16 %v2168
        %v3149 = vunpack.c.l.b16 %v2169
        %v3150 = vunpack.c.l.b16 %v2170
        %v3151 = vunpack.c.l.b16 %v2171
        %v3152 = vunpack.c.l.b16 %v2172
        %v3153 = vunpack.c.l.b16 %v2173
        %v3154 = vunpack.c.l.b16 %v2174
        %v3155 = vunpack.c.l.b16 %v2175
        %v3156 = vunpack.c.l.b16 %v2176
        %v3157 = vunpack.c.l.b16 %v2177
        %v3158 = vunpack.c.l.b16 %v2178
        %v3159 = vunpack.c.l.b16 %v2179
        %v3160 = vunpack.c.l.b16 %v2180
        %v3161 = vunpack.c.l.b16 %v2181
        %v3162 = vunpack.c.l.b16 %v2182
        %v3163 = vunpack.c.l.b16 %v2183
        %v3164 = vunpack.c.l.b16 %v2184
        %v3165 = vunpack.c.l.b16 %v2185
        %v3166 = vunpack.c.l.b16 %v2186
        %v3167 = vunpack.c.l.b16 %v2187
        %v3168 = vunpack.c.l.b16 %v2188
        %v3169 = vunpack.c.l.b16 %v2189
        %v3170 = vunpack.c.l.b16 %v2190
        %v3171 = vunpack.c.l.b16 %v2191
        %v3172 = vunpack.c.l.b16 %v2192
        %v3173 = vunpack.c.l.b16 %v2193
        %v3174 = vunpack.c.l.b16 %v2194
        %v3175 = vunpack.c.l.b16 %v2195
        %v3176 = vunpack.c.l.b16 %v2196
        %v3177 = vunpack.c.l.b16 %v2197
        %v3178 = vunpack.c.l.b16 %v2198
        %v3179 = vunpack.c.l.b16 %v2199
        %v3180 = vunpack.c.l.b16 %v2200
        %v3181 = vunpack.c.l.b16 %v2201
        %v3182 = vunpack.c.l.b16 %v2202
        %v3183 = vunpack.c.l.b16 %v2203
        %v3184 = vunpack.c.l.b16 %v2204
        %v3185 = vunpack.c.l.b16 %v2205
        %v3186 = vunpack.c.l.b16 %v2206
        %v3187 = vunpack.c.l.b16 %v2207
        %v3188 = vunpack.c.l.b16 %v2208
        %v3189 = vunpack.c.l.b16 %v2209
        %v3190 = vunpack.c.l.b16 %v2210
        %v3191 = vunpack.c.l.b16 %v2211
        %v3192 = vunpack.c.l.b16 %v2212
        %v3193 = vunpack.c.l.b16 %v2213
        %v3194 = vunpack.c.l.b16 %v2214
        %v3195 = vunpack.c.l.b16 %v2215
        %v3196 = vunpack.c.l.b16 %v2216
        %v3197 = vunpack.c.l.b16 %v2217
        %v3198 = vunpack.c.l.b16 %v2218
        %v3199 = vunpack.c.l.b16 %v2219
        %v3200 = vunpack.c.l.b16 %v2220
        %v3201 = vunpack.c.l.b16 %v2221
        %v3202 = vunpack.c.l.b16 %v2222
        %v3203 = vunpack.c.l.b16 %v2223
        %v3204 = vunpack.c.l.b16 %v2224
        %v3205 = vunpack.c.l.b16 %v2225
        %v3206 = vunpack.c.l.b16 %v2226
        %v3207 = vunpack.c.l.b16 %v2227
        %v3208 = vunpack.c.l.b16 %v2228
        %v3209 = vunpack.c.l.b16 %v2229
        %v3210 = vunpack.c.l.b16 %v2230
        %v3211 = vunpack.c.l.b16 %v2231
        %v3212 = vunpack.c.l.b16 %v2232
        %v3213 = vunpack.c.l.b16 %v2233
        %v3214 = vunpack.c.l.b16 %v2234
        %v3215 = vunpack.c.l.b16 %v2235
        %v3216 = vunpack.c.l.b16 %v2236
        %v3217 = vunpack.c.l.b16 %v2237
        %v3218 = vunpack.c.l.b16 %v2238
        %v3219 = vunpack.c.l.b16 %v2239
        %v3220 = vunpack.c.l.b16 %v2240
        %v3221 = vunpack.c.l.b16 %v2241
        %v3222 = vunpack.c.l.b16 %v2242
        %v3223 = vunpack.c.l.b16 %v2243
        %v3224 = vunpack.c.l.b16 %v2244
        %v3225 = vunpack.c.l.b16 %v2245
        %v3226 = vunpack.c.l.b16 %v2246
        %v3227 = vunpack.c.l.b16 %v2247
        %v3228 = vunpack.c.l.b16 %v2248
        %v3229 = vunpack.c.l.b16 %v2249
        %v3230 = vunpack.c.l.b16 %v2250
        %v3231 = vunpack.c.l.b16 %v2251
        %v3232 = vunpack.c.l.b16 %v2252
        %v3233 = vunpack.c.l.b16 %v2253
        %v3234 = vpack.c.b16 %v2843, %v2842
        %v3235 = vpack.c.b16 %v2845, %v2844
        %v3236 = vpack.c.b16 %v2847, %v2846
        %v3237 = vpack.c.b16 %v2849, %v2848
        %v3238 = vpack.c.b16 %v2851, %v2850
        %v3239 = vpack.c.b16 %v2853, %v2852
        %v3240 = vpack.c.b16 %v2855, %v2854
        %v3241 = vpack.c.b16 %v2857, %v2856
        %v3242 = vpack.c.b16 %v2859, %v2858
        %v3243 = vpack.c.b16 %v2861, %v2860
        %v3244 = vpack.c.b16 %v2863, %v2862
        %v3245 = vpack.c.b16 %v2865, %v2864
        %v3246 = vpack.c.b16 %v2867, %v2866
        %v3247 = vpack.c.b16 %v2869, %v2868
        %v3248 = vpack.c.b16 %v2871, %v2870
        %v3249 = vpack.c.b16 %v2873, %v2872
        %v3250 = vpack.c.b16 %v2875, %v2874
        %v3251 = vpack.c.b16 %v2877, %v2876
        %v3252 = vpack.c.b16 %v2879, %v2878
        %v3253 = vpack.c.b16 %v2881, %v2880
        %v3254 = vpack.c.b16 %v2883, %v2882
        %v3255 = vpack.c.b16 %v2885, %v2884
        %v3256 = vpack.c.b16 %v2887, %v2886
        %v3257 = vpack.c.b16 %v2889, %v2888
        %v3258 = vpack.c.b16 %v2891, %v2890
        %v3259 = vpack.c.b16 %v2893, %v2892
        %v3260 = vpack.c.b16 %v2895, %v2894
        %v3261 = vpack.c.b16 %v2897, %v2896
        %v3262 = vpack.c.b16 %v2899, %v2898
        %v3263 = vpack.c.b16 %v2901, %v2900
        %v3264 = vpack.c.b16 %v2903, %v2902
        %v3265 = vpack.c.b16 %v2905, %v2904
        %v3266 = vpack.c.b16 %v2907, %v2906
        %v3267 = vpack.c.b16 %v2909, %v2908
        %v3268 = vpack.c.b16 %v2911, %v2910
        %v3269 = vpack.c.b16 %v2913, %v2912
        %v3270 = vpack.c.b16 %v2915, %v2914
        %v3271 = vpack.c.b16 %v2917, %v2916
        %v3272 = vpack.c.b16 %v2919, %v2918
        %v3273 = vpack.c.b16 %v2921, %v2920
        %v3274 = vpack.c.b16 %v2923, %v2922
        %v3275 = vpack.c.b16 %v2925, %v2924
        %v3276 = vpack.c.b16 %v2927, %v2926
        %v3277 = vpack.c.b16 %v2929, %v2928
        %v3278 = vpack.c.b16 %v2931, %v2930
        %v3279 = vpack.c.b16 %v2933, %v2932
        %v3280 = vpack.c.b16 %v2935, %v2934
        %v3281 = vpack.c.b16 %v2937, %v2936
        %v3282 = vpack.c.b16 %v2939, %v2938
        %v3283 = vpack.c.b16 %v2941, %v2940
        %v3284 = vpack.c.b16 %v2943, %v2942
        %v3285 = vpack.c.b16 %v2945, %v2944
        %v3286 = vpack.c.b16 %v2947, %v2946
        %v3287 = vpack.c.b16 %v2949, %v2948
        %v3288 = vpack.c.b16 %v2951, %v2950
        %v3289 = vpack.c.b16 %v2953, %v2952
        %v3290 = vpack.c.b16 %v2955, %v2954
        %v3291 = vpack.c.b16 %v2957, %v2956
        %v3292 = vpack.c.b16 %v2959, %v2958
        %v3293 = vpack.c.b16 %v2961, %v2960
        %v3294 = vpack.c.b16 %v2963, %v2962
        %v3295 = vpack.c.b16 %v2965, %v2964
        %v3296 = vpack.c.b16 %v2967, %v2966
        %v3297 = vpack.c.b16 %v2969, %v2968
        %v3298 = vpack.c.b16 %v2971, %v2970
        %v3299 = vpack.c.b16 %v2973, %v2972
        %v3300 = vpack.c.b16 %v2975, %v2974
        %v3301 = vpack.c.b16 %v2977, %v2976
        %v3302 = vpack.c.b16 %v2979, %v2978
        %v3303 = vpack.c.b16 %v2981, %v2980
        %v3304 = vpack.c.b16 %v2983, %v2982
        %v3305 = vpack.c.b16 %v2985, %v2984
        %v3306 = vpack.c.b16 %v2987, %v2986
        %v3307 = vpack.c.b16 %v2989, %v2988
        %v3308 = vpack.c.b16 %v2991, %v2990
        %v3309 = vpack.c.b16 %v2993, %v2992
        %v3310 = vpack.c.b16 %v2995, %v2994
        %v3311 = vpack.c.b16 %v2997, %v2996
        %v3312 = vpack.c.b16 %v2999, %v2998
        %v3313 = vpack.c.b16 %v3001, %v3000
        %v3314 = vpack.c.b16 %v3003, %v3002
        %v3315 = vpack.c.b16 %v3005, %v3004
        %v3316 = vpack.c.b16 %v3007, %v3006
        %v3317 = vpack.c.b16 %v3009, %v3008
        %v3318 = vpack.c.b16 %v3011, %v3010
        %v3319 = vpack.c.b16 %v3013, %v3012
        %v3320 = vpack.c.b16 %v3015, %v3014
        %v3321 = vpack.c.b16 %v3017, %v3016
        %v3322 = vpack.c.b16 %v3019, %v3018
        %v3323 = vpack.c.b16 %v3021, %v3020
        %v3324 = vpack.c.b16 %v3023, %v3022
        %v3325 = vpack.c.b16 %v3025, %v3024
        %v3326 = vpack.c.b16 %v3027, %v3026
        %v3327 = vpack.c.b16 %v3029, %v3028
        %v3328 = vpack.c.b16 %v3031, %v3030
        %v3329 = vpack.c.b16 %v3033, %v3032
        %v3330 = vpack.c.b16 %v3035, %v3034
        %v3331 = vpack.c.b16 %v3037, %v3036
        %v3332 = vpack.c.b16 %v3039, %v3038
        %v3333 = vpack.c.b16 %v3041, %v3040
        %v3334 = vpack.c.b16 %v3043, %v3042
        %v3335 = vpack.c.b16 %v3045, %v3044
        %v3336 = vpack.c.b16 %v3047, %v3046
        %v3337 = vpack.c.b16 %v3049, %v3048
        %v3338 = vpack.c.b16 %v3051, %v3050
        %v3339 = vpack.c.b16 %v3053, %v3052
        %v3340 = vpack.c.b16 %v3055, %v3054
        %v3341 = vpack.c.b16 %v3057, %v3056
        %v3342 = vpack.c.b16 %v3059, %v3058
        %v3343 = vpack.c.b16 %v3061, %v3060
        %v3344 = vpack.c.b16 %v3063, %v3062
        %v3345 = vpack.c.b16 %v3065, %v3064
        %v3346 = vpack.c.b16 %v3067, %v3066
        %v3347 = vpack.c.b16 %v3069, %v3068
        %v3348 = vpack.c.b16 %v3071, %v3070
        %v3349 = vpack.c.b16 %v3073, %v3072
        %v3350 = vpack.c.b16 %v3075, %v3074
        %v3351 = vpack.c.b16 %v3077, %v3076
        %v3352 = vpack.c.b16 %v3079, %v3078
        %v3353 = vpack.c.b16 %v3081, %v3080
        %v3354 = vpack.c.b16 %v3083, %v3082
        %v3355 = vpack.c.b16 %v3085, %v3084
        %v3356 = vpack.c.b16 %v3087, %v3086
        %v3357 = vpack.c.b16 %v3089, %v3088
        %v3358 = vpack.c.b16 %v3091, %v3090
        %v3359 = vpack.c.b16 %v3093, %v3092
        %v3360 = vpack.c.b16 %v3095, %v3094
        %v3361 = vpack.c.b16 %v3097, %v3096
        %v3362 = vpack.c.b16 %v3099, %v3098
        %v3363 = vpack.c.b16 %v3101, %v3100
        %v3364 = vpack.c.b16 %v3103, %v3102
        %v3365 = vpack.c.b16 %v3105, %v3104
        %v3366 = vpack.c.b16 %v3107, %v3106
        %v3367 = vpack.c.b16 %v3109, %v3108
        %v3368 = vpack.c.b16 %v3111, %v3110
        %v3369 = vpack.c.b16 %v3113, %v3112
        %v3370 = vpack.c.b16 %v3115, %v3114
        %v3371 = vpack.c.b16 %v3117, %v3116
        %v3372 = vpack.c.b16 %v3119, %v3118
        %v3373 = vpack.c.b16 %v3121, %v3120
        %v3374 = vpack.c.b16 %v3123, %v3122
        %v3375 = vpack.c.b16 %v3125, %v3124
        %v3376 = vpack.c.b16 %v3127, %v3126
        %v3377 = vpack.c.b16 %v3129, %v3128
        %v3378 = vpack.c.b16 %v3131, %v3130
        %v3379 = vpack.c.b16 %v3133, %v3132
        %v3380 = vpack.c.b16 %v3135, %v3134
        %v3381 = vpack.c.b16 %v3137, %v3136
        %v3382 = vpack.c.b16 %v3139, %v3138
        %v3383 = vpack.c.b16 %v3141, %v3140
        %v3384 = vpack.c.b16 %v3143, %v3142
        %v3385 = vpack.c.b16 %v3145, %v3144
        %v3386 = vpack.c.b16 %v3147, %v3146
        %v3387 = vpack.c.b16 %v3149, %v3148
        %v3388 = vpack.c.b16 %v3151, %v3150
        %v3389 = vpack.c.b16 %v3153, %v3152
        %v3390 = vpack.c.b16 %v3155, %v3154
        %v3391 = vpack.c.b16 %v3157, %v3156
        %v3392 = vpack.c.b16 %v3159, %v3158
        %v3393 = vpack.c.b16 %v3161, %v3160
        %v3394 = vpack.c.b16 %v3163, %v3162
        %v3395 = vpack.c.b16 %v3165, %v3164
        %v3396 = vpack.c.b16 %v3167, %v3166
        %v3397 = vpack.c.b16 %v3169, %v3168
        %v3398 = vpack.c.b16 %v3171, %v3170
        %v3399 = vpack.c.b16 %v3173, %v3172
        %v3400 = vpack.c.b16 %v3175, %v3174
        %v3401 = vpack.c.b16 %v3177, %v3176
        %v3402 = vpack.c.b16 %v3179, %v3178
        %v3403 = vpack.c.b16 %v3181, %v3180
        %v3404 = vpack.c.b16 %v3183, %v3182
        %v3405 = vpack.c.b16 %v3185, %v3184
        %v3406 = vpack.c.b16 %v3187, %v3186
        %v3407 = vpack.c.b16 %v3189, %v3188
        %v3408 = vpack.c.b16 %v3191, %v3190
        %v3409 = vpack.c.b16 %v3193, %v3192
        %v3410 = vpack.c.b16 %v3195, %v3194
        %v3411 = vpack.c.b16 %v3197, %v3196
        %v3412 = vpack.c.b16 %v3199, %v3198
        %v3413 = vpack.c.b16 %v3201, %v3200
        %v3414 = vpack.c.b16 %v3203, %v3202
        %v3415 = vpack.c.b16 %v3205, %v3204
        %v3416 = vpack.c.b16 %v3207, %v3206
        %v3417 = vpack.c.b16 %v3209, %v3208
        %v3418 = vpack.c.b16 %v3211, %v3210
        %v3419 = vpack.c.b16 %v3213, %v3212
        %v3420 = vpack.c.b16 %v3215, %v3214
        %v3421 = vpack.c.b16 %v3217, %v3216
        %v3422 = vpack.c.b16 %v3219, %v3218
        %v3423 = vpack.c.b16 %v3221, %v3220
        %v3424 = vpack.c.b16 %v3223, %v3222
        %v3425 = vpack.c.b16 %v3225, %v3224
        %v3426 = vpack.c.b16 %v3227, %v3226
        %v3427 = vpack.c.b16 %v3229, %v3228
        %v3428 = vpack.c.b16 %v3231, %v3230
        %v3429 = vpack.c.b16 %v3233, %v3232
        %vm3626 = vcmask 523264
        %v3628 = vsel %vm3626, %v2425, 0
        %3630 = vmatprep.subr.bf16.mxu0 0
        %3631 = vmatpush1.bf16.msra.mxu0 %v3234
        %3632 = vmatprep.subr.bf16.mxu0 0
        %3633 = vmatpush1.bf16.msra.mxu0 %v3235
        %3634 = vmatprep.subr.bf16.mxu0 0
        %3635 = vmatpush1.bf16.msra.mxu0 %v3236
        %3636 = vmatprep.subr.bf16.mxu0 0
        %3637 = vmatpush1.bf16.msra.mxu0 %v3237
        %3638 = vmatprep.subr.bf16.mxu0 0
        %3639 = vmatpush1.bf16.msra.mxu0 %v3238
        %3640 = vmatprep.subr.bf16.mxu0 0
        %3641 = vmatpush1.bf16.msra.mxu0 %v3239
        %3642 = vmatprep.subr.bf16.mxu0 0
        %3643 = vmatpush1.bf16.msra.mxu0 %v3240
        %3644 = vmatprep.subr.bf16.mxu0 0
        %3645 = vmatpush1.bf16.msra.mxu0 %v3241
        %3646 = vmatprep.subr.bf16.mxu0 0
        %3647 = vmatpush1.bf16.msra.mxu0 %v3242
        %3648 = vmatprep.subr.bf16.mxu0 0
        %3649 = vmatpush1.bf16.msra.mxu0 %v3243
        %3650 = vmatprep.subr.bf16.mxu0 0
        %3651 = vmatpush1.bf16.msra.mxu0 %v3244
        %3652 = vmatprep.subr.bf16.mxu0 0
        %3653 = vmatpush1.bf16.msra.mxu0 %v3245
        %3654 = vmatprep.subr.bf16.mxu0 0
        %3655 = vmatpush1.bf16.msra.mxu0 %v3246
        %3656 = vmatprep.subr.bf16.mxu0 0
        %3657 = vmatpush1.bf16.msra.mxu0 %v3247
        %3658 = vmatprep.subr.bf16.mxu0 0
        %3659 = vmatpush1.bf16.msra.mxu0 %v3248
        %3660 = vmatprep.subr.bf16.mxu0 0
        %3661 = vmatpush1.bf16.msra.mxu0 %v3249
        %3662 = vmatprep.mubr.bf16.mxu0 %v2302
        %3663 = vmatmul.mubr.bf16.gmra.mrb[0].mxu0 %v2288
        %v3664 = vpop.f32.mrb[0].mxu0
        %v3665 = vadd.f32 %v2259, %v3664
        %v3666 = vpop.f32.mrb[0].mxu0
        %v3667 = vpop.f32.mrb[0].mxu0
        %v3668 = vpop.f32.mrb[0].mxu0
        %3669 = vdwg.mxu0
        %3670 = vmatprep.subr.bf16.mxu0 0
        %3671 = vmatpush1.bf16.msra.mxu0 %v3250
        %3672 = vmatprep.subr.bf16.mxu0 0
        %3673 = vmatpush1.bf16.msra.mxu0 %v3251
        %3674 = vmatprep.subr.bf16.mxu0 0
        %3675 = vmatpush1.bf16.msra.mxu0 %v3252
        %3676 = vmatprep.subr.bf16.mxu0 0
        %3677 = vmatpush1.bf16.msra.mxu0 %v3253
        %3678 = vmatprep.subr.bf16.mxu0 0
        %3679 = vmatpush1.bf16.msra.mxu0 %v3254
        %3680 = vmatprep.subr.bf16.mxu0 0
        %3681 = vmatpush1.bf16.msra.mxu0 %v3255
        %3682 = vmatprep.subr.bf16.mxu0 0
        %3683 = vmatpush1.bf16.msra.mxu0 %v3256
        %3684 = vmatprep.subr.bf16.mxu0 0
        %3685 = vmatpush1.bf16.msra.mxu0 %v3257
        %3686 = vmatprep.subr.bf16.mxu0 0
        %3687 = vmatpush1.bf16.msra.mxu0 %v3258
        %3688 = vmatprep.subr.bf16.mxu0 0
        %3689 = vmatpush1.bf16.msra.mxu0 %v3259
        %3690 = vmatprep.subr.bf16.mxu0 0
        %3691 = vmatpush1.bf16.msra.mxu0 %v3260
        %3692 = vmatprep.subr.bf16.mxu0 0
        %3693 = vmatpush1.bf16.msra.mxu0 %v3261
        %3694 = vmatprep.subr.bf16.mxu0 0
        %3695 = vmatpush1.bf16.msra.mxu0 %v3262
        %3696 = vmatprep.subr.bf16.mxu0 0
        %3697 = vmatpush1.bf16.msra.mxu0 %v3263
        %3698 = vmatprep.subr.bf16.mxu0 0
        %3699 = vmatpush1.bf16.msra.mxu0 %v3264
        %3700 = vmatprep.subr.bf16.mxu0 0
        %3701 = vmatpush1.bf16.msra.mxu0 %v3265
        %3702 = vmatprep.mubr.bf16.mxu0 %v2312
        %3703 = vmatmul.mubr.bf16.gmra.mrb[0].mxu0 %v2310
        %v3704 = vpop.f32.mrb[0].mxu0
        %v3705 = vadd.f32 %v3665, %v3704
        %v3706 = vpop.f32.mrb[0].mxu0
        %v3707 = vpop.f32.mrb[0].mxu0
        %v3708 = vpop.f32.mrb[0].mxu0
        %3709 = vdwg.mxu0
        %3710 = vmatprep.subr.bf16.mxu0 0
        %3711 = vmatpush1.bf16.msra.mxu0 %v3266
        %3712 = vmatprep.subr.bf16.mxu0 0
        %3713 = vmatpush1.bf16.msra.mxu0 %v3267
        %3714 = vmatprep.subr.bf16.mxu0 0
        %3715 = vmatpush1.bf16.msra.mxu0 %v3268
        %3716 = vmatprep.subr.bf16.mxu0 0
        %3717 = vmatpush1.bf16.msra.mxu0 %v3269
        %3718 = vmatprep.subr.bf16.mxu0 0
        %3719 = vmatpush1.bf16.msra.mxu0 %v3270
        %3720 = vmatprep.subr.bf16.mxu0 0
        %3721 = vmatpush1.bf16.msra.mxu0 %v3271
        %3722 = vmatprep.subr.bf16.mxu0 0
        %3723 = vmatpush1.bf16.msra.mxu0 %v3272
        %3724 = vmatprep.subr.bf16.mxu0 0
        %3725 = vmatpush1.bf16.msra.mxu0 %v3273
        %3726 = vmatprep.subr.bf16.mxu0 0
        %3727 = vmatpush1.bf16.msra.mxu0 %v3274
        %3728 = vmatprep.subr.bf16.mxu0 0
        %3729 = vmatpush1.bf16.msra.mxu0 %v3275
        %3730 = vmatprep.subr.bf16.mxu0 0
        %3731 = vmatpush1.bf16.msra.mxu0 %v3276
        %3732 = vmatprep.subr.bf16.mxu0 0
        %3733 = vmatpush1.bf16.msra.mxu0 %v3277
        %3734 = vmatprep.subr.bf16.mxu0 0
        %3735 = vmatpush1.bf16.msra.mxu0 %v3278
        %3736 = vmatprep.subr.bf16.mxu0 0
        %3737 = vmatpush1.bf16.msra.mxu0 %v3279
        %3738 = vmatprep.subr.bf16.mxu0 0
        %3739 = vmatpush1.bf16.msra.mxu0 %v3280
        %3740 = vmatprep.subr.bf16.mxu0 0
        %3741 = vmatpush1.bf16.msra.mxu0 %v3281
        %3742 = vmatprep.mubr.bf16.mxu0 %v2309
        %3743 = vmatmul.mubr.bf16.gmra.mrb[0].mxu0 %v2295
        %v3744 = vpop.f32.mrb[0].mxu0
        %v3745 = vadd.f32 %v3705, %v3744
        %v3746 = vpop.f32.mrb[0].mxu0
        %v3747 = vpop.f32.mrb[0].mxu0
        %v3748 = vpop.f32.mrb[0].mxu0
        %3749 = vdwg.mxu0
        %3750 = vmatprep.subr.bf16.mxu0 0
        %3751 = vmatpush1.bf16.msra.mxu0 %v3282
        %3752 = vmatprep.subr.bf16.mxu0 0
        %3753 = vmatpush1.bf16.msra.mxu0 %v3283
        %3754 = vmatprep.subr.bf16.mxu0 0
        %3755 = vmatpush1.bf16.msra.mxu0 %v3284
        %3756 = vmatprep.subr.bf16.mxu0 0
        %3757 = vmatpush1.bf16.msra.mxu0 %v3285
        %3758 = vmatprep.subr.bf16.mxu0 0
        %3759 = vmatpush1.bf16.msra.mxu0 %v3286
        %3760 = vmatprep.subr.bf16.mxu0 0
        %3761 = vmatpush1.bf16.msra.mxu0 %v3287
        %3762 = vmatprep.subr.bf16.mxu0 0
        %3763 = vmatpush1.bf16.msra.mxu0 %v3288
        %3764 = vmatprep.subr.bf16.mxu0 0
        %3765 = vmatpush1.bf16.msra.mxu0 %v3289
        %3766 = vmatprep.subr.bf16.mxu0 0
        %3767 = vmatpush1.bf16.msra.mxu0 %v3290
        %3768 = vmatprep.subr.bf16.mxu0 0
        %3769 = vmatpush1.bf16.msra.mxu0 %v3291
        %3770 = vmatprep.subr.bf16.mxu0 0
        %3771 = vmatpush1.bf16.msra.mxu0 %v3292
        %3772 = vmatprep.subr.bf16.mxu0 0
        %3773 = vmatpush1.bf16.msra.mxu0 %v3293
        %3774 = vmatprep.subr.bf16.mxu0 0
        %3775 = vmatpush1.bf16.msra.mxu0 %v3294
        %3776 = vmatprep.subr.bf16.mxu0 0
        %3777 = vmatpush1.bf16.msra.mxu0 %v3295
        %3778 = vmatprep.subr.bf16.mxu0 0
        %3779 = vmatpush1.bf16.msra.mxu0 %v3296
        %3780 = vmatprep.subr.bf16.mxu0 0
        %3781 = vmatpush1.bf16.msra.mxu0 %v3297
        %3782 = vmatprep.mubr.bf16.mxu0 %v2313
        %3783 = vmatmul.mubr.bf16.gmra.mrb[0].mxu0 %v2311
        %v3784 = vpop.f32.mrb[0].mxu0
        %v3785 = vadd.f32 %v3745, %v3784
        %v3786 = vpop.f32.mrb[0].mxu0
        %v3787 = vpop.f32.mrb[0].mxu0
        %v3788 = vpop.f32.mrb[0].mxu0
        %3789 = vdwg.mxu0
        %3790 = vmatprep.subr.bf16.mxu0 0
        %3791 = vmatpush1.bf16.msra.mxu0 %v3298
        %3792 = vmatprep.subr.bf16.mxu0 0
        %3793 = vmatpush1.bf16.msra.mxu0 %v3299
        %3794 = vmatprep.subr.bf16.mxu0 0
        %3795 = vmatpush1.bf16.msra.mxu0 %v3300
        %3796 = vmatprep.subr.bf16.mxu0 0
        %3797 = vmatpush1.bf16.msra.mxu0 %v3301
        %3798 = vmatprep.subr.bf16.mxu0 0
        %3799 = vmatpush1.bf16.msra.mxu0 %v3302
        %3800 = vmatprep.subr.bf16.mxu0 0
        %3801 = vmatpush1.bf16.msra.mxu0 %v3303
        %3802 = vmatprep.subr.bf16.mxu0 0
        %3803 = vmatpush1.bf16.msra.mxu0 %v3304
        %3804 = vmatprep.subr.bf16.mxu0 0
        %3805 = vmatpush1.bf16.msra.mxu0 %v3305
        %3806 = vmatprep.subr.bf16.mxu0 0
        %3807 = vmatpush1.bf16.msra.mxu0 %v3306
        %3808 = vmatprep.subr.bf16.mxu0 0
        %3809 = vmatpush1.bf16.msra.mxu0 %v3307
        %3810 = vmatprep.subr.bf16.mxu0 0
        %3811 = vmatpush1.bf16.msra.mxu0 %v3308
        %3812 = vmatprep.subr.bf16.mxu0 0
        %3813 = vmatpush1.bf16.msra.mxu0 %v3309
        %3814 = vmatprep.subr.bf16.mxu0 0
        %3815 = vmatpush1.bf16.msra.mxu0 %v3310
        %3816 = vmatprep.subr.bf16.mxu0 0
        %3817 = vmatpush1.bf16.msra.mxu0 %v3311
        %3818 = vmatprep.subr.bf16.mxu0 0
        %3819 = vmatpush1.bf16.msra.mxu0 %v3312
        %3820 = vmatprep.subr.bf16.mxu0 0
        %3821 = vmatpush1.bf16.msra.mxu0 %v3313
        %3822 = vmatprep.mubr.bf16.mxu0 %v2351
        %3823 = vmatmul.mubr.bf16.gmra.mrb[0].mxu0 %v2337
        %v3824 = vpop.f32.mrb[0].mxu0
        %v3825 = vadd.f32 %v3785, %v3824
        %v3826 = vpop.f32.mrb[0].mxu0
        %v3827 = vpop.f32.mrb[0].mxu0
        %v3828 = vpop.f32.mrb[0].mxu0
        %3829 = vdwg.mxu0
        %3830 = vmatprep.subr.bf16.mxu0 0
        %3831 = vmatpush1.bf16.msra.mxu0 %v3314
        %3832 = vmatprep.subr.bf16.mxu0 0
        %3833 = vmatpush1.bf16.msra.mxu0 %v3315
        %3834 = vmatprep.subr.bf16.mxu0 0
        %3835 = vmatpush1.bf16.msra.mxu0 %v3316
        %3836 = vmatprep.subr.bf16.mxu0 0
        %3837 = vmatpush1.bf16.msra.mxu0 %v3317
        %3838 = vmatprep.subr.bf16.mxu0 0
        %3839 = vmatpush1.bf16.msra.mxu0 %v3318
        %3840 = vmatprep.subr.bf16.mxu0 0
        %3841 = vmatpush1.bf16.msra.mxu0 %v3319
        %3842 = vmatprep.subr.bf16.mxu0 0
        %3843 = vmatpush1.bf16.msra.mxu0 %v3320
        %3844 = vmatprep.subr.bf16.mxu0 0
        %3845 = vmatpush1.bf16.msra.mxu0 %v3321
        %3846 = vmatprep.subr.bf16.mxu0 0
        %3847 = vmatpush1.bf16.msra.mxu0 %v3322
        %3848 = vmatprep.subr.bf16.mxu0 0
        %3849 = vmatpush1.bf16.msra.mxu0 %v3323
        %3850 = vmatprep.subr.bf16.mxu0 0
        %3851 = vmatpush1.bf16.msra.mxu0 %v3324
        %3852 = vmatprep.subr.bf16.mxu0 0
        %3853 = vmatpush1.bf16.msra.mxu0 %v3325
        %3854 = vmatprep.subr.bf16.mxu0 0
        %3855 = vmatpush1.bf16.msra.mxu0 %v3326
        %3856 = vmatprep.subr.bf16.mxu0 0
        %3857 = vmatpush1.bf16.msra.mxu0 %v3327
        %3858 = vmatprep.subr.bf16.mxu0 0
        %3859 = vmatpush1.bf16.msra.mxu0 %v3328
        %3860 = vmatprep.subr.bf16.mxu0 0
        %3861 = vmatpush1.bf16.msra.mxu0 %v3329
        %3862 = vmatprep.mubr.bf16.mxu0 %v2361
        %3863 = vmatmul.mubr.bf16.gmra.mrb[0].mxu0 %v2359
        %v3864 = vpop.f32.mrb[0].mxu0
        %v3865 = vadd.f32 %v3825, %v3864
        %v3866 = vpop.f32.mrb[0].mxu0
        %v3867 = vpop.f32.mrb[0].mxu0
        %v3868 = vpop.f32.mrb[0].mxu0
        %3869 = vdwg.mxu0
        %3870 = vmatprep.subr.bf16.mxu0 0
        %3871 = vmatpush1.bf16.msra.mxu0 %v3330
        %3872 = vmatprep.subr.bf16.mxu0 0
        %3873 = vmatpush1.bf16.msra.mxu0 %v3331
        %3874 = vmatprep.subr.bf16.mxu0 0
        %3875 = vmatpush1.bf16.msra.mxu0 %v3332
        %3876 = vmatprep.subr.bf16.mxu0 0
        %3877 = vmatpush1.bf16.msra.mxu0 %v3333
        %3878 = vmatprep.subr.bf16.mxu0 0
        %3879 = vmatpush1.bf16.msra.mxu0 %v3334
        %3880 = vmatprep.subr.bf16.mxu0 0
        %3881 = vmatpush1.bf16.msra.mxu0 %v3335
        %3882 = vmatprep.subr.bf16.mxu0 0
        %3883 = vmatpush1.bf16.msra.mxu0 %v3336
        %3884 = vmatprep.subr.bf16.mxu0 0
        %3885 = vmatpush1.bf16.msra.mxu0 %v3337
        %3886 = vmatprep.subr.bf16.mxu0 0
        %3887 = vmatpush1.bf16.msra.mxu0 %v3338
        %3888 = vmatprep.subr.bf16.mxu0 0
        %3889 = vmatpush1.bf16.msra.mxu0 %v3339
        %3890 = vmatprep.subr.bf16.mxu0 0
        %3891 = vmatpush1.bf16.msra.mxu0 %v3340
        %3892 = vmatprep.subr.bf16.mxu0 0
        %3893 = vmatpush1.bf16.msra.mxu0 %v3341
        %3894 = vmatprep.subr.bf16.mxu0 0
        %3895 = vmatpush1.bf16.msra.mxu0 %v3342
        %3896 = vmatprep.subr.bf16.mxu0 0
        %3897 = vmatpush1.bf16.msra.mxu0 %v3343
        %3898 = vmatprep.subr.bf16.mxu0 0
        %3899 = vmatpush1.bf16.msra.mxu0 %v3344
        %3900 = vmatprep.subr.bf16.mxu0 0
        %3901 = vmatpush1.bf16.msra.mxu0 %v3345
        %3902 = vmatprep.mubr.bf16.mxu0 %v2358
        %3903 = vmatmul.mubr.bf16.gmra.mrb[0].mxu0 %v2344
        %v3904 = vpop.f32.mrb[0].mxu0
        %v3905 = vadd.f32 %v3865, %v3904
        %v3906 = vpop.f32.mrb[0].mxu0
        %v3907 = vpop.f32.mrb[0].mxu0
        %v3908 = vpop.f32.mrb[0].mxu0
        %3909 = vdwg.mxu0
        %3910 = vmatprep.subr.bf16.mxu0 0
        %3911 = vmatpush1.bf16.msra.mxu0 %v3346
        %3912 = vmatprep.subr.bf16.mxu0 0
        %3913 = vmatpush1.bf16.msra.mxu0 %v3347
        %3914 = vmatprep.subr.bf16.mxu0 0
        %3915 = vmatpush1.bf16.msra.mxu0 %v3348
        %3916 = vmatprep.subr.bf16.mxu0 0
        %3917 = vmatpush1.bf16.msra.mxu0 %v3349
        %3918 = vmatprep.subr.bf16.mxu0 0
        %3919 = vmatpush1.bf16.msra.mxu0 %v3350
        %3920 = vmatprep.subr.bf16.mxu0 0
        %3921 = vmatpush1.bf16.msra.mxu0 %v3351
        %3922 = vmatprep.subr.bf16.mxu0 0
        %3923 = vmatpush1.bf16.msra.mxu0 %v3352
        %3924 = vmatprep.subr.bf16.mxu0 0
        %3925 = vmatpush1.bf16.msra.mxu0 %v3353
        %3926 = vmatprep.subr.bf16.mxu0 0
        %3927 = vmatpush1.bf16.msra.mxu0 %v3354
        %3928 = vmatprep.subr.bf16.mxu0 0
        %3929 = vmatpush1.bf16.msra.mxu0 %v3355
        %3930 = vmatprep.subr.bf16.mxu0 0
        %3931 = vmatpush1.bf16.msra.mxu0 %v3356
        %3932 = vmatprep.subr.bf16.mxu0 0
        %3933 = vmatpush1.bf16.msra.mxu0 %v3357
        %3934 = vmatprep.subr.bf16.mxu0 0
        %3935 = vmatpush1.bf16.msra.mxu0 %v3358
        %3936 = vmatprep.subr.bf16.mxu0 0
        %3937 = vmatpush1.bf16.msra.mxu0 %v3359
        %3938 = vmatprep.subr.bf16.mxu0 0
        %3939 = vmatpush1.bf16.msra.mxu0 %v3360
        %3940 = vmatprep.subr.bf16.mxu0 0
        %3941 = vmatpush1.bf16.msra.mxu0 %v3361
        %3942 = vmatprep.mubr.bf16.mxu0 %v2362
        %3943 = vmatmul.mubr.bf16.gmra.mrb[0].mxu0 %v2360
        %v3944 = vpop.f32.mrb[0].mxu0
        %v3945 = vadd.f32 %v3905, %v3944
        %v3946 = vpop.f32.mrb[0].mxu0
        %v3947 = vpop.f32.mrb[0].mxu0
        %v3948 = vpop.f32.mrb[0].mxu0
        %3949 = vdwg.mxu0
        %3950 = vmatprep.subr.bf16.mxu0 0
        %3951 = vmatpush1.bf16.msra.mxu0 %v3362
        %3952 = vmatprep.subr.bf16.mxu0 0
        %3953 = vmatpush1.bf16.msra.mxu0 %v3363
        %3954 = vmatprep.subr.bf16.mxu0 0
        %3955 = vmatpush1.bf16.msra.mxu0 %v3364
        %3956 = vmatprep.subr.bf16.mxu0 0
        %3957 = vmatpush1.bf16.msra.mxu0 %v3365
        %3958 = vmatprep.subr.bf16.mxu0 0
        %3959 = vmatpush1.bf16.msra.mxu0 %v3366
        %3960 = vmatprep.subr.bf16.mxu0 0
        %3961 = vmatpush1.bf16.msra.mxu0 %v3367
        %3962 = vmatprep.subr.bf16.mxu0 0
        %3963 = vmatpush1.bf16.msra.mxu0 %v3368
        %3964 = vmatprep.subr.bf16.mxu0 0
        %3965 = vmatpush1.bf16.msra.mxu0 %v3369
        %3966 = vmatprep.subr.bf16.mxu0 0
        %3967 = vmatpush1.bf16.msra.mxu0 %v3370
        %3968 = vmatprep.subr.bf16.mxu0 0
        %3969 = vmatpush1.bf16.msra.mxu0 %v3371
        %3970 = vmatprep.subr.bf16.mxu0 0
        %3971 = vmatpush1.bf16.msra.mxu0 %v3372
        %3972 = vmatprep.subr.bf16.mxu0 0
        %3973 = vmatpush1.bf16.msra.mxu0 %v3373
        %3974 = vmatprep.subr.bf16.mxu0 0
        %3975 = vmatpush1.bf16.msra.mxu0 %v3374
        %3976 = vmatprep.subr.bf16.mxu0 0
        %3977 = vmatpush1.bf16.msra.mxu0 %v3375
        %3978 = vmatprep.subr.bf16.mxu0 0
        %3979 = vmatpush1.bf16.msra.mxu0 %v3376
        %3980 = vmatprep.subr.bf16.mxu0 0
        %3981 = vmatpush1.bf16.msra.mxu0 %v3377
        %3982 = vmatprep.mubr.bf16.mxu0 %v2400
        %3983 = vmatmul.mubr.bf16.gmra.mrb[0].mxu0 %v2386
        %v3984 = vpop.f32.mrb[0].mxu0
        %v3985 = vadd.f32 %v3945, %v3984
        %v3986 = vpop.f32.mrb[0].mxu0
        %v3987 = vpop.f32.mrb[0].mxu0
        %v3988 = vpop.f32.mrb[0].mxu0
        %3989 = vdwg.mxu0
        %3990 = vmatprep.subr.bf16.mxu0 0
        %3991 = vmatpush1.bf16.msra.mxu0 %v3378
        %3992 = vmatprep.subr.bf16.mxu0 0
        %3993 = vmatpush1.bf16.msra.mxu0 %v3379
        %3994 = vmatprep.subr.bf16.mxu0 0
        %3995 = vmatpush1.bf16.msra.mxu0 %v3380
        %3996 = vmatprep.subr.bf16.mxu0 0
        %3997 = vmatpush1.bf16.msra.mxu0 %v3381
        %3998 = vmatprep.subr.bf16.mxu0 0
        %3999 = vmatpush1.bf16.msra.mxu0 %v3382
        %4000 = vmatprep.subr.bf16.mxu0 0
        %4001 = vmatpush1.bf16.msra.mxu0 %v3383
        %4002 = vmatprep.subr.bf16.mxu0 0
        %4003 = vmatpush1.bf16.msra.mxu0 %v3384
        %4004 = vmatprep.subr.bf16.mxu0 0
        %4005 = vmatpush1.bf16.msra.mxu0 %v3385
        %4006 = vmatprep.subr.bf16.mxu0 0
        %4007 = vmatpush1.bf16.msra.mxu0 %v3386
        %4008 = vmatprep.subr.bf16.mxu0 0
        %4009 = vmatpush1.bf16.msra.mxu0 %v3387
        %4010 = vmatprep.subr.bf16.mxu0 0
        %4011 = vmatpush1.bf16.msra.mxu0 %v3388
        %4012 = vmatprep.subr.bf16.mxu0 0
        %4013 = vmatpush1.bf16.msra.mxu0 %v3389
        %4014 = vmatprep.subr.bf16.mxu0 0
        %4015 = vmatpush1.bf16.msra.mxu0 %v3390
        %4016 = vmatprep.subr.bf16.mxu0 0
        %4017 = vmatpush1.bf16.msra.mxu0 %v3391
        %4018 = vmatprep.subr.bf16.mxu0 0
        %4019 = vmatpush1.bf16.msra.mxu0 %v3392
        %4020 = vmatprep.subr.bf16.mxu0 0
        %4021 = vmatpush1.bf16.msra.mxu0 %v3393
        %4022 = vmatprep.mubr.bf16.mxu0 %v2410
        %4023 = vmatmul.mubr.bf16.gmra.mrb[0].mxu0 %v2408
        %v4024 = vpop.f32.mrb[0].mxu0
        %v4025 = vadd.f32 %v3985, %v4024
        %v4026 = vpop.f32.mrb[0].mxu0
        %v4027 = vpop.f32.mrb[0].mxu0
        %v4028 = vpop.f32.mrb[0].mxu0
        %4029 = vdwg.mxu0
        %4030 = vmatprep.subr.bf16.mxu0 0
        %4031 = vmatpush1.bf16.msra.mxu0 %v3394
        %4032 = vmatprep.subr.bf16.mxu0 0
        %4033 = vmatpush1.bf16.msra.mxu0 %v3395
        %4034 = vmatprep.subr.bf16.mxu0 0
        %4035 = vmatpush1.bf16.msra.mxu0 %v3396
        %4036 = vmatprep.subr.bf16.mxu0 0
        %4037 = vmatpush1.bf16.msra.mxu0 %v3397
        %4038 = vmatprep.subr.bf16.mxu0 0
        %4039 = vmatpush1.bf16.msra.mxu0 %v3398
        %4040 = vmatprep.subr.bf16.mxu0 0
        %4041 = vmatpush1.bf16.msra.mxu0 %v3399
        %4042 = vmatprep.subr.bf16.mxu0 0
        %4043 = vmatpush1.bf16.msra.mxu0 %v3400
        %4044 = vmatprep.subr.bf16.mxu0 0
        %4045 = vmatpush1.bf16.msra.mxu0 %v3401
        %4046 = vmatprep.subr.bf16.mxu0 0
        %4047 = vmatpush1.bf16.msra.mxu0 %v3402
        %4048 = vmatprep.subr.bf16.mxu0 0
        %4049 = vmatpush1.bf16.msra.mxu0 %v3403
        %4050 = vmatprep.subr.bf16.mxu0 0
        %4051 = vmatpush1.bf16.msra.mxu0 %v3404
        %4052 = vmatprep.subr.bf16.mxu0 0
        %4053 = vmatpush1.bf16.msra.mxu0 %v3405
        %4054 = vmatprep.subr.bf16.mxu0 0
        %4055 = vmatpush1.bf16.msra.mxu0 %v3406
        %4056 = vmatprep.subr.bf16.mxu0 0
        %4057 = vmatpush1.bf16.msra.mxu0 %v3407
        %4058 = vmatprep.subr.bf16.mxu0 0
        %4059 = vmatpush1.bf16.msra.mxu0 %v3408
        %4060 = vmatprep.subr.bf16.mxu0 0
        %4061 = vmatpush1.bf16.msra.mxu0 %v3409
        %4062 = vmatprep.mubr.bf16.mxu0 %v2407
        %4063 = vmatmul.mubr.bf16.gmra.mrb[0].mxu0 %v2393
        %v4064 = vpop.f32.mrb[0].mxu0
        %v4065 = vadd.f32 %v4025, %v4064
        %v4066 = vpop.f32.mrb[0].mxu0
        %v4067 = vpop.f32.mrb[0].mxu0
        %v4068 = vpop.f32.mrb[0].mxu0
        %4069 = vdwg.mxu0
        %4070 = vmatprep.subr.bf16.mxu0 0
        %4071 = vmatpush1.bf16.msra.mxu0 %v3410
        %4072 = vmatprep.subr.bf16.mxu0 0
        %4073 = vmatpush1.bf16.msra.mxu0 %v3411
        %4074 = vmatprep.subr.bf16.mxu0 0
        %4075 = vmatpush1.bf16.msra.mxu0 %v3412
        %4076 = vmatprep.subr.bf16.mxu0 0
        %4077 = vmatpush1.bf16.msra.mxu0 %v3413
        %4078 = vmatprep.subr.bf16.mxu0 0
        %4079 = vmatpush1.bf16.msra.mxu0 %v3414
        %4080 = vmatprep.subr.bf16.mxu0 0
        %4081 = vmatpush1.bf16.msra.mxu0 %v3415
        %4082 = vmatprep.subr.bf16.mxu0 0
        %4083 = vmatpush1.bf16.msra.mxu0 %v3416
        %4084 = vmatprep.subr.bf16.mxu0 0
        %4085 = vmatpush1.bf16.msra.mxu0 %v3417
        %4086 = vmatprep.subr.bf16.mxu0 0
        %4087 = vmatpush1.bf16.msra.mxu0 %v3418
        %4088 = vmatprep.subr.bf16.mxu0 0
        %4089 = vmatpush1.bf16.msra.mxu0 %v3419
        %4090 = vmatprep.subr.bf16.mxu0 0
        %4091 = vmatpush1.bf16.msra.mxu0 %v3420
        %4092 = vmatprep.subr.bf16.mxu0 0
        %4093 = vmatpush1.bf16.msra.mxu0 %v3421
        %4094 = vmatprep.subr.bf16.mxu0 0
        %4095 = vmatpush1.bf16.msra.mxu0 %v3422
        %4096 = vmatprep.subr.bf16.mxu0 0
        %4097 = vmatpush1.bf16.msra.mxu0 %v3423
        %4098 = vmatprep.subr.bf16.mxu0 0
        %4099 = vmatpush1.bf16.msra.mxu0 %v3424
        %4100 = vmatprep.subr.bf16.mxu0 0
        %4101 = vmatpush1.bf16.msra.mxu0 %v3425
        %4102 = vmatprep.mubr.bf16.mxu0 %v2411
        %4103 = vmatmul.mubr.bf16.gmra.mrb[0].mxu0 %v2409
        %v4104 = vpop.f32.mrb[0].mxu0
        %v4105 = vadd.f32 %v4065, %v4104
        %v4106 = vpop.f32.mrb[0].mxu0
        %v4107 = vpop.f32.mrb[0].mxu0
        %v4108 = vpop.f32.mrb[0].mxu0
        %4109 = vdwg.mxu0
        %4110 = vmatprep.subr.bf16.mxu0 0
        %4111 = vmatpush1.bf16.msra.mxu0 %v3426
        %4112 = vmatprep.subr.bf16.mxu0 0
        %4113 = vmatpush1.bf16.msra.mxu0 %v3427
        %4114 = vmatprep.subr.bf16.mxu0 0
        %4115 = vmatpush1.bf16.msra.mxu0 %v3428
        %4116 = vmatprep.subr.bf16.mxu0 0
        %4117 = vmatpush1.bf16.msra.mxu0 %v3429
        %4118 = vmatprep.subr.bf16.mxu0 0
        %4119 = vmatpush1.bf16.msra.mxu0 0
        %4120 = vmatprep.subr.bf16.mxu0 0
        %4121 = vmatpush1.bf16.msra.mxu0 0
        %4122 = vmatprep.subr.bf16.mxu0 0
        %4123 = vmatpush1.bf16.msra.mxu0 0
        %4124 = vmatprep.subr.bf16.mxu0 0
        %4125 = vmatpush1.bf16.msra.mxu0 0
        %4126 = vmatprep.subr.bf16.mxu0 0
        %4127 = vmatpush1.bf16.msra.mxu0 0
        %4128 = vmatprep.subr.bf16.mxu0 0
        %4129 = vmatpush1.bf16.msra.mxu0 0
        %4130 = vmatprep.subr.bf16.mxu0 0
        %4131 = vmatpush1.bf16.msra.mxu0 0
        %4132 = vmatprep.subr.bf16.mxu0 0
        %4133 = vmatpush1.bf16.msra.mxu0 0
        %4134 = vmatprep.subr.bf16.mxu0 0
        %4135 = vmatpush1.bf16.msra.mxu0 0
        %4136 = vmatprep.subr.bf16.mxu0 0
        %4137 = vmatpush1.bf16.msra.mxu0 0
        %4138 = vmatprep.subr.bf16.mxu0 0
        %4139 = vmatpush1.bf16.msra.mxu0 0
        %4140 = vmatprep.subr.bf16.mxu0 0
        %4141 = vmatpush1.bf16.msra.mxu0 0
        %4142 = vmatprep.mubr.bf16.mxu0 0
        %4143 = vmatmul.mubr.bf16.gmra.mrb[0].mxu0 %v3628
        %v4144 = vpop.f32.mrb[0].mxu0
        %v4145 = vadd.f32 %v4105, %v4144
        %v4146 = vpop.f32.mrb[0].mxu0
        %v4147 = vpop.f32.mrb[0].mxu0
        %v4148 = vpop.f32.mrb[0].mxu0
        %4149 = vdwg.mxu0
        %v4150 = vmax.f32 %v4145, 0.0
        %v4151 = vpack.c.bf16 %v4150, %v4150
        %v4152 = vld [vmem:[#allocation2] sm:$0x3]
        %v4153 = vld [vmem:[%s1850] sm:$0xf]
        %v4154 = vld [vmem:[%s1850 + $0x4] sm:$0xf]
        %v4155 = vld [vmem:[%s1850 + $0x8] sm:$0xf]
        %v4156 = vld [vmem:[%s1850 + $0xc] sm:$0xf]
        %v4157 = vld [vmem:[%s1850 + $0x10] sm:$0xf]
        %v4158 = vld [vmem:[%s1850 + $0x14] sm:$0xf]
        %v4159 = vld [vmem:[%s1850 + $0x18] sm:$0xf]
        %v4160 = vld [vmem:[%s1850 + $0x1c] sm:$0xf]
        %v4161 = vld [vmem:[%s1850 + $0x20] sm:$0xf]
        %v4162 = vld [vmem:[%s1850 + $0x24] sm:$0xf]
        %v4163 = vld [vmem:[%s1850 + $0x28] sm:$0xf]
        %v4164 = vld [vmem:[%s1850 + $0x2c] sm:$0xf]
        %v4165 = vld [vmem:[%s1850 + $0x30] sm:$0xf]
        %v4166 = vld [vmem:[%s1850 + $0x34] sm:$0xf]
        %v4167 = vld [vmem:[%s1850 + $0x38] sm:$0xf]
        %v4168 = vld [vmem:[%s1850 + $0x3c] sm:$0xf]
        %v4185 = vunpack.c.l.b16 %v4153
        %v4186 = vunpack.c.l.b16 %v4154
        %v4187 = vunpack.c.l.b16 %v4155
        %v4188 = vunpack.c.l.b16 %v4156
        %v4189 = vunpack.c.l.b16 %v4157
        %v4190 = vunpack.c.l.b16 %v4158
        %v4191 = vunpack.c.l.b16 %v4159
        %v4192 = vunpack.c.l.b16 %v4160
        %v4193 = vunpack.c.l.b16 %v4161
        %v4194 = vunpack.c.l.b16 %v4162
        %v4195 = vunpack.c.l.b16 %v4163
        %v4196 = vunpack.c.l.b16 %v4164
        %v4197 = vunpack.c.l.b16 %v4165
        %v4198 = vunpack.c.l.b16 %v4166
        %v4199 = vunpack.c.l.b16 %v4167
        %v4200 = vunpack.c.l.b16 %v4168
        %v4201 = vpack.c.b16 %v4186, %v4185
        %v4202 = vpack.c.b16 %v4188, %v4187
        %v4203 = vpack.c.b16 %v4190, %v4189
        %v4204 = vpack.c.b16 %v4192, %v4191
        %v4205 = vpack.c.b16 %v4194, %v4193
        %v4206 = vpack.c.b16 %v4196, %v4195
        %v4207 = vpack.c.b16 %v4198, %v4197
        %v4208 = vpack.c.b16 %v4200, %v4199
        %4217 = vmatprep.subr.bf16.mxu0 0
        %4218 = vmatpush1.bf16.msra.mxu0 %v4201
        %4219 = vmatprep.subr.bf16.mxu0 0
        %4220 = vmatpush1.bf16.msra.mxu0 %v4202
        %4221 = vmatprep.subr.bf16.mxu0 0
        %4222 = vmatpush1.bf16.msra.mxu0 %v4203
        %4223 = vmatprep.subr.bf16.mxu0 0
        %4224 = vmatpush1.bf16.msra.mxu0 %v4204
        %4225 = vmatprep.subr.bf16.mxu0 0
        %4226 = vmatpush1.bf16.msra.mxu0 %v4205
        %4227 = vmatprep.subr.bf16.mxu0 0
        %4228 = vmatpush1.bf16.msra.mxu0 %v4206
        %4229 = vmatprep.subr.bf16.mxu0 0
        %4230 = vmatpush1.bf16.msra.mxu0 %v4207
        %4231 = vmatprep.subr.bf16.mxu0 0
        %4232 = vmatpush1.bf16.msra.mxu0 %v4208
        %4233 = vmatprep.subr.bf16.mxu0 0
        %4234 = vmatpush1.bf16.msra.mxu0 0
        %4235 = vmatprep.subr.bf16.mxu0 0
        %4236 = vmatpush1.bf16.msra.mxu0 0
        %4237 = vmatprep.subr.bf16.mxu0 0
        %4238 = vmatpush1.bf16.msra.mxu0 0
        %4239 = vmatprep.subr.bf16.mxu0 0
        %4240 = vmatpush1.bf16.msra.mxu0 0
        %4241 = vmatprep.subr.bf16.mxu0 0
        %4242 = vmatpush1.bf16.msra.mxu0 0
        %4243 = vmatprep.subr.bf16.mxu0 0
        %4244 = vmatpush1.bf16.msra.mxu0 0
        %4245 = vmatprep.subr.bf16.mxu0 0
        %4246 = vmatpush1.bf16.msra.mxu0 0
        %4247 = vmatprep.subr.bf16.mxu0 0
        %4248 = vmatpush1.bf16.msra.mxu0 0
        %4249 = vmatprep.mubr.bf16.mxu0 0
        %4250 = vmatmul.mubr.bf16.gmra.mrb[0].mxu0 %v4151
        %v4251 = vpop.f32.mrb[0].mxu0
        %v4252 = vadd.f32 0.0, %v4251
        %v4253 = vpop.f32.mrb[0].mxu0
        %v4254 = vpop.f32.mrb[0].mxu0
        %v4255 = vpop.f32.mrb[0].mxu0
        %4256 = vdwg.mxu0
        %v4257 = vadd.f32 %v4152, %v4252
        %4258 = vst [vmem:[#allocation2] sm:$0x3] %v4257
        %p4259 = scmp.eq.s32.totalorder %s17, 7
        // Predicated region
        $region86: #{cnn_forward.5} parent=76 // pred_check
          %p4260 = pneg %p4259
        $region87: #{cnn_forward.5} parent=76 // pred_check_branch
          %4262 = sbr.rel (%p4260) target = $region89
        $region88: #{cnn_forward.5} parent=76 // pred_region
          %v4263 = vld [vmem:[#allocation2] sm:$0x3]
          %v4264 = vld [vmem:[%s4] sm:$0x1]
          %v4266 = vlaneseq
          %v4267 = vshrl.u32 %v4266, 7
          %v4268 = vsub.s32 0, %v4267
          %v4269 = vrot.slane %v4264, %v4268
          %v4271 = vadd.f32 %v4263, %v4269
          %4272 = vst [vmem:[#allocation4] sm:$0x3] %v4271
        $region89: #{cnn_forward.5} parent=76 // pred_fallthru
          _
        // Predicated region
        $region90: #{cnn_forward.5} parent=76 // pred_check
          %p4273 = pneg %p150
        $region91: #{cnn_forward.5} parent=76 // pred_check_branch
          %4275 = sbr.rel (%p4273) target = $region93
        $region92: #{cnn_forward.5} parent=76 // pred_region
          %s4277 = ssub.s32 32, 32
          %4278 = vsyncadd [#allocation5], %s4277
          %s4280 = sshll.u32 [#allocation4], 4
          %s4281 = int_to_ptr.vmem [resolvable:$true] %s4280
          %4283 = dma.vmem_to_hbm [thread:$0]  %s4281, 32, %s5, [#allocation5]
        $region93: #{cnn_forward.5} parent=76 // pred_fallthru
          _
        // Predicated region
        $region94: #{cnn_forward.5} parent=76 // pred_check
          %p4284 = pneg %p150
        $region95: #{cnn_forward.5} parent=76 // pred_check_branch
          %4286 = sbr.rel (%p4284) target = $region97
        $region96: #{cnn_forward.5} parent=76 // pred_region
          %4287 = dma.done [#allocation5], 32
        $region97: #{cnn_forward.5} parent=76 // pred_fallthru
          _
      $region77: #{cnn_forward.5} parent=5 // pred_fallthru
        _
      %p4288 = scmp.le.s32.totalorder 2, %s12
      // Predicated region
      $region98: #{cnn_forward.5} parent=5 // pred_check
        %p4289 = pneg %p4288
      $region99: #{cnn_forward.5} parent=5 // pred_check_branch
        %4291 = sbr.rel (%p4289) target = $region101
      $region100: #{cnn_forward.5} parent=5 // pred_region
        %s4292 = ssub.s32 %s12, 2
      $region101: #{cnn_forward.5} parent=5 // pred_fallthru
        _
    $region6: #{cnn_forward.5} parent=1 // loop_footer
      %s16 = sadd.s32 1, %s12
    $region7: #{cnn_forward.5} parent=1 // loop_footer_branch
      %11 = sbr.rel target = $region3
    $region8: #{cnn_forward.5} parent=1 // loop_exit
      _
    %4293 = vsyncpa [#allocation5], 1
    %s4294 = scalar_lea.sflag [#allocation5], 1
    %4295 = vsyncpa %s4294, 1

</llo_original>
